<compile_context>
chip_gen: v6e
topology: v6e:2x2x1
jax: 0.10.0
libtpu: 0.0.40
codegen_flags: <defaults>
</compile_context>

<pallas_src>
import functools

import jax
import jax.numpy as jnp
from jax.experimental import pallas as pl
from jax.experimental.pallas import tpu as pltpu

BN_EPS = 1e-3        # nn.BatchNorm1d(..., eps=0.001)
LN_EPS = 1e-5        # nn.LayerNorm default eps
LEAKY_SLOPE = 0.01   # nn.LeakyReLU default negative_slope
LANE = 128


def _round_up(n, m=LANE):
    return (n + m - 1) // m * m


# ---------------------------------------------------------------------------
# In-kernel helpers
# ---------------------------------------------------------------------------
def _accum_bn_stats(s_ref, h, t, inv_tile_rows, mask):
    """Accumulate shifted one-pass BatchNorm column statistics for one row tile.

    s_ref rows: 0 = shift K (first tile's column mean), 1 = sum(h-K), 2 = sum((h-K)^2).
    The shift keeps E[x^2]-E[x]^2 cancellation-safe even when |mean| >> std.
    `mask` (0/1 column vector) excludes padded batch rows; None if B % TB == 0."""
    @pl.when(t == 0)
    def _():
        h0 = h if mask is None else h * mask
        s_ref[0:1, :] = jnp.sum(h0, axis=0, keepdims=True) * inv_tile_rows
        s_ref[1:3, :] = jnp.zeros((2, h.shape[1]), jnp.float32)

    k = s_ref[0:1, :]
    shifted = (h - k) if mask is None else (h - k) * mask
    s_ref[1:2, :] += jnp.sum(shifted, axis=0, keepdims=True)
    s_ref[2:3, :] += jnp.sum(shifted * shifted, axis=0, keepdims=True)


def _finalize_bn_stats(s_ref, inv_n):
    """Convert (K, sum, sumsq) into (mean, inv_std) stored in rows 0 / 1."""
    k = s_ref[0:1, :]
    m1 = s_ref[1:2, :] * inv_n
    m2 = s_ref[2:3, :] * inv_n
    var = jnp.maximum(m2 - m1 * m1, 0.0)
    s_ref[0:1, :] = k + m1
    s_ref[1:2, :] = jax.lax.rsqrt(var + BN_EPS)


def _apply_bn_ln(s_ref, h, inv_feat):
    """BatchNorm (batch stats from s_ref) -> LayerNorm (no affine) over valid features.

    Padded feature columns are exactly zero on entry (zero weight cols, no bias) and are
    excluded from the LN stats by dividing by the TRUE feature count (inv_feat).
    Post-BN values are unit-scale, so the uncentered LN variance is numerically safe."""
    h = (h - s_ref[0:1, :]) * s_ref[1:2, :]
    lsum = jnp.sum(h, axis=1, keepdims=True)
    lsq = jnp.sum(h * h, axis=1, keepdims=True)
    lmean = lsum * inv_feat
    lvar = jnp.maximum(lsq * inv_feat - lmean * lmean, 0.0)
    return (h - lmean) * jax.lax.rsqrt(lvar + LN_EPS)
    # NOTE: if a bundle dump ever shows the XLU saturating, the axis=0 sums in
    # _accum_bn_stats can be moved onto the (idle) MXU via a resident ones-row matmul.


def _leaky_relu(h):
    return jnp.maximum(h, LEAKY_SLOPE * h)   # mul+max (2 VALU ops) vs cmp+mul+select


# ---------------------------------------------------------------------------
# Kernel
# ---------------------------------------------------------------------------
def st_vae_kernel(
    x_ref, eps_ref,
    enc_w_ref, mulvar_w_ref, mulvar_b_ref, dec_w_ref, fin_w_ref,
    y_ref, ml_ref,
    z_cache, s_enc, s_dec, s_fin,
    *, inv_n, inv_tile_rows, inv_hidden, inv_class, l_pad, tile_rows, n_valid, needs_mask,
):
    p = pl.program_id(0)               # pass index 0..3 (see module docstring)
    t = pl.program_id(1)               # batch-tile index
    last = pl.num_programs(1) - 1

    if needs_mask:                     # static: only emitted when B % tile_rows != 0
        rows = t * tile_rows + jax.lax.broadcasted_iota(jnp.int32, (tile_rows, 1), 0)
        mask = (rows < n_valid).astype(jnp.float32)
    else:
        mask = None

    def enc_linear():
        return jnp.dot(x_ref[...], enc_w_ref[...], preferred_element_type=jnp.float32)

    def dec_linear(z):
        return jnp.dot(z.astype(jnp.bfloat16), dec_w_ref[...],
                       preferred_element_type=jnp.float32)

    # ---- pass 0: encoder Linear -> BN1 batch statistics ----
    @pl.when(p == 0)
    def _():
        h = enc_linear()
        _accum_bn_stats(s_enc, h, t, inv_tile_rows, mask)

        @pl.when(t == last)
        def _():
            _finalize_bn_stats(s_enc, inv_n)

    # ---- pass 1: encoder apply, mu/log_var, z (cached), decoder Linear -> BN2 stats ----
    @pl.when(p == 1)
    def _():
        h = enc_linear()
        h = _leaky_relu(_apply_bn_ln(s_enc, h, inv_hidden))
        # TODO(synk): nn.Dropout(p=0.1) in train mode is stochastic; implemented as identity
        # (eval semantics) to keep the kernel deterministic.
        ml = jnp.dot(h.astype(jnp.bfloat16), mulvar_w_ref[...],
                     preferred_element_type=jnp.float32) + mulvar_b_ref[...]
        ml_ref[...] = ml                       # lane-dense [TB, 2*l_pad] store
        mu = ml[:, :l_pad]
        log_var = ml[:, l_pad:]
        z = eps_ref[...] * jnp.exp(0.5 * log_var) + mu
        z_cache[t] = z                         # cached so passes 2-3 never re-read HBM
        d = dec_linear(z)
        _accum_bn_stats(s_dec, d, t, inv_tile_rows, mask)

        @pl.when(t == last)
        def _():
            _finalize_bn_stats(s_dec, inv_n)

    # ---- pass 2: decoder apply, final Linear -> BN3 stats ----
    @pl.when(p == 2)
    def _():
        d = _leaky_relu(_apply_bn_ln(s_dec, dec_linear(z_cache[t]), inv_hidden))
        y = jnp.dot(d.astype(jnp.bfloat16), fin_w_ref[...],
                    preferred_element_type=jnp.float32)
        _accum_bn_stats(s_fin, y, t, inv_tile_rows, mask)

        @pl.when(t == last)
        def _():
            _finalize_bn_stats(s_fin, inv_n)

    # ---- pass 3: decoder + final apply, tanh -> y ----
    @pl.when(p == 3)
    def _():
        d = _leaky_relu(_apply_bn_ln(s_dec, dec_linear(z_cache[t]), inv_hidden))
        y = jnp.dot(d.astype(jnp.bfloat16), fin_w_ref[...],
                    preferred_element_type=jnp.float32)
        y = _apply_bn_ln(s_fin, y, inv_class)
        y_ref[...] = jnp.tanh(y)


# ---------------------------------------------------------------------------
# Parameter prep + wrapper
# ---------------------------------------------------------------------------
def prepare_params(params, n_input, n_class, n_latent, n_hidden):
    """Pad feature dims to 128, cast matmul weights to bf16, fuse the mu/log_var heads,
    drop the Linear biases that cancel exactly under the affine-free train-mode BatchNorm."""
    in_p, h_p, l_p, c_p = map(_round_up, (n_input, n_hidden, n_latent, n_class))

    def pad2(a, rows, cols, dtype):
        r, c = a.shape
        return jnp.pad(a, ((0, rows - r), (0, cols - c))).astype(dtype)

    mu_w = pad2(params["mu_w"], h_p, l_p, jnp.bfloat16)
    var_w = pad2(params["var_w"], h_p, l_p, jnp.bfloat16)
    mu_b = pad2(params["mu_b"], 1, l_p, jnp.float32)
    var_b = pad2(params["var_b"], 1, l_p, jnp.float32)
    return {
        "enc_w": pad2(params["enc_w"], in_p, h_p, jnp.bfloat16),
        "mulvar_w": jnp.concatenate([mu_w, var_w], axis=1),   # [H_p, 2*L_p] bf16
        "mulvar_b": jnp.concatenate([mu_b, var_b], axis=1),   # [1, 2*L_p] f32
        "dec_w": pad2(params["dec_w"], l_p, h_p, jnp.bfloat16),
        "fin_w": pad2(params["fin_w"], h_p, c_p, jnp.bfloat16),
        "scale": params["scale"].astype(jnp.float32),
        "add": params["add"].astype(jnp.float32),
    }


@functools.partial(jax.jit,
                   static_argnames=("n_input", "n_class", "n_latent", "n_hidden", "tile_rows"))
def st_vae_forward(x, eps, prepped, *, n_input, n_class, n_latent, n_hidden, tile_rows=256):
    B = x.shape[0]
    in_p, h_p, l_p, c_p = map(_round_up, (n_input, n_hidden, n_latent, n_class))

    tb = min(tile_rows, _round_up(B, 8))          # row tile (matmul M dim); >=256 for v6e/v7x MXU
    b_pad = _round_up(B, tb)
    nt = b_pad // tb
    needs_mask = (b_pad != B)
    last = nt - 1

    x_p = jnp.pad(x, ((0, b_pad - B), (0, in_p - n_input))).astype(jnp.bfloat16)
    eps_p = jnp.pad(eps, ((0, b_pad - B), (0, l_p - n_latent))).astype(jnp.float32)

    kernel = functools.partial(
        st_vae_kernel,
        inv_n=1.0 / B, inv_tile_rows=1.0 / tb,
        inv_hidden=1.0 / n_hidden, inv_class=1.0 / n_class,
        l_pad=l_p, tile_rows=tb, n_valid=B, needs_mask=needs_mask)

    # ----- BlockSpecs -----
    def resident(shape):
        # Constant index_map -> fetched once, VMEM-resident across all grid steps.
        return pl.BlockSpec(shape, lambda p, t: (0, 0))

    # x needed in passes 0,1; afterwards park on the last tile (no re-fetch).
    x_spec = pl.BlockSpec((tb, in_p), lambda p, t: (jnp.where(p <= 1, t, last), 0))
    # eps needed in pass 1 only.
    eps_spec = pl.BlockSpec(
        (tb, l_p), lambda p, t: (jnp.where(p == 1, t, jnp.where(p == 0, 0, last)), 0))
    # Outputs advance their block index only during the pass that writes them; every block
    # is visited in one consecutive run, so no stale buffer is ever flushed over valid data.
    ml_spec = pl.BlockSpec(
        (tb, 2 * l_p), lambda p, t: (jnp.where(p == 1, t, jnp.where(p == 0, 0, last)), 0))
    y_spec = pl.BlockSpec((tb, c_p), lambda p, t: (jnp.where(p == 3, t, 0), 0))

    in_specs = [
        x_spec, eps_spec,
        resident((in_p, h_p)),        # enc_w
        resident((h_p, 2 * l_p)),     # mulvar_w (fused mu|log_var head)
        resident((1, 2 * l_p)),       # mulvar_b
        resident((l_p, h_p)),         # dec_w
        resident((h_p, c_p)),         # fin_w
    ]
    out_specs = (y_spec, ml_spec)
    out_shape = (jax.ShapeDtypeStruct((b_pad, c_p), jnp.float32),      # y (padded classes)
                 jax.ShapeDtypeStruct((b_pad, 2 * l_p), jnp.float32))  # [mu | log_var] slab

    scratch_shapes = [
        pltpu.VMEM((nt, tb, l_p), jnp.float32),   # z cache (4*l_p bytes/row)
        pltpu.VMEM((3, h_p), jnp.float32),        # BN1 stats (K/sum/sumsq -> mean/inv_std)
        pltpu.VMEM((3, h_p), jnp.float32),        # BN2 stats
        pltpu.VMEM((3, c_p), jnp.float32),        # BN3 stats
    ]

    # ----- VMEM budget (resident weights + double-buffered tiles + scratch + temporaries) -----
    w_bytes = 2 * ((in_p * h_p + h_p * 2 * l_p + l_p * h_p + h_p * c_p) * 2 + 2 * l_p * 4)
    tile_bytes = 2 * tb * (in_p * 2 + l_p * 4 + c_p * 4 + 2 * l_p * 4)
    scratch_bytes = nt * tb * l_p * 4 + 8 * (2 * h_p + c_p) * 4
    temp_bytes = 12 * tb * max(in_p, h_p, 2 * l_p, c_p) * 4
    vmem_limit = int(min(max(w_bytes + tile_bytes + scratch_bytes + temp_bytes + (4 << 20),
                             16 << 20), 112 << 20))

    # ----- advisory cost estimate (matmul recompute across passes included) -----
    flops = 2 * b_pad * (2 * in_p * h_p + h_p * 2 * l_p + 3 * l_p * h_p + 2 * h_p * c_p)
    transcendentals = b_pad * (l_p + c_p)
    bytes_accessed = (2 * b_pad * in_p * 2 + b_pad * l_p * 4
                      + (in_p * h_p + h_p * 2 * l_p + l_p * h_p + h_p * c_p) * 2 + 2 * l_p * 4
                      + b_pad * (c_p + 2 * l_p) * 4)

    y_pad, ml = pl.pallas_call(
        kernel,
        out_shape=out_shape,
        grid_spec=pltpu.PrefetchScalarGridSpec(
            num_scalar_prefetch=0,
            grid=(4, nt),
            in_specs=in_specs,
            out_specs=out_specs,
            scratch_shapes=scratch_shapes),
        compiler_params=pltpu.CompilerParams(
            # Both axes must stay "arbitrary": the pass axis is sequentially dependent and
            # the row-tile axis carries the cross-tile BN statistics accumulation.
            dimension_semantics=("arbitrary", "arbitrary"),
            vmem_limit_bytes=vmem_limit),
        cost_estimate=pl.CostEstimate(flops=int(flops),
                                      transcendentals=int(transcendentals),
                                      bytes_accessed=int(bytes_accessed)),
    )(x_p, eps_p, prepped["enc_w"], prepped["mulvar_w"], prepped["mulvar_b"],
      prepped["dec_w"], prepped["fin_w"])

    # Slice away padding.
    y = y_pad[:B, :n_class]
    mu = ml[:B, :n_latent]
    log_var = ml[:B, l_p:l_p + n_latent]

    # Parameter transforms are independent of x -> outside the kernel (XLA fuses them).
    scale = jax.nn.sigmoid(prepped["scale"])
    additive = jnp.exp(prepped["add"])
    return y, scale, additive, mu, log_var


# ---------------------------------------------------------------------------
# Pure-JAX reference (same padded bf16 weights) for a structural correctness check
# ---------------------------------------------------------------------------
def st_vae_reference(x, eps, prepped, *, n_input, n_class, n_latent, n_hidden):
    in_p, h_p, l_p, c_p = map(_round_up, (n_input, n_hidden, n_latent, n_class))
    x_p = jnp.pad(x, ((0, 0), (0, in_p - n_input))).astype(jnp.bfloat16)
    eps_p = jnp.pad(eps, ((0, 0), (0, l_p - n_latent))).astype(jnp.float32)

    def bn_ln(h, n_feat):
        mean = jnp.mean(h, axis=0, keepdims=True)
        var = jnp.mean((h - mean) ** 2, axis=0, keepdims=True)
        h = (h - mean) * jax.lax.rsqrt(var + BN_EPS)
        hv = h[:, :n_feat]
        lmean = jnp.mean(hv, axis=1, keepdims=True)
        lvar = jnp.mean((hv - lmean) ** 2, axis=1, keepdims=True)
        return (h - lmean) * jax.lax.rsqrt(lvar + LN_EPS)

    lrelu = lambda h: jnp.where(h > 0, h, LEAKY_SLOPE * h)
    h = jnp.dot(x_p, prepped["enc_w"], preferred_element_type=jnp.float32)
    h = lrelu(bn_ln(h, n_hidden))
    ml = jnp.dot(h.astype(jnp.bfloat16), prepped["mulvar_w"],
                 preferred_element_type=jnp.float32) + prepped["mulvar_b"]
    mu, log_var = ml[:, :l_p], ml[:, l_p:]
    z = eps_p * jnp.exp(0.5 * log_var) + mu
    d = jnp.dot(z.astype(jnp.bfloat16), prepped["dec_w"], preferred_element_type=jnp.float32)
    d = lrelu(bn_ln(d, n_hidden))
    y = jnp.dot(d.astype(jnp.bfloat16), prepped["fin_w"], preferred_element_type=jnp.float32)
    y = jnp.tanh(bn_ln(y, n_class))
    return y[:, :n_class], mu[:, :n_latent], log_var[:, :n_latent]


def init_params(key, n_input, n_class, n_latent, n_hidden):
    """Deterministic synthetic parameters (shapes match the PyTorch module, n_layers=2).
    Linear weights stored pre-transposed as [n_in, n_out]; biases as [1, n_out]."""
    ks = jax.random.split(key, 12)
    norm = lambda k, shape, s=0.1: (s * jax.random.normal(k, shape)).astype(jnp.float32)
    return {
        "enc_w": norm(ks[0], (n_input, n_hidden)),
        "enc_b": norm(ks[1], (1, n_hidden)),     # dropped (cancels under affine-free BN)
        "mu_w": norm(ks[2], (n_hidden, n_latent)),
        "mu_b": norm(ks[3], (1, n_latent)),
        "var_w": norm(ks[4], (n_hidden, n_latent)),
        "var_b": norm(ks[5], (1, n_latent)),
        "dec_w": norm(ks[6], (n_latent, n_hidden)),
        "dec_b": norm(ks[7], (1, n_hidden)),     # dropped
        "fin_w": norm(ks[8], (n_hidden, n_class)),
        "fin_b": norm(ks[9], (1, n_class)),      # dropped
        "scale": norm(ks[10], (n_input,), 1.0),  # nn.Parameter(torch.randn(n_input))
        "add": norm(ks[11], (n_input,), 1.0),    # nn.Parameter(torch.randn(n_input))
        # px_r weight is computed in decode() but discarded by forward() -> omitted.
    }


if __name__ == "__main__":
    # Small shapes that still exercise the grid: B=600 -> 3 row tiles of 256 with a masked
    # ragged last tile; non-128-multiple feature dims exercise the lane padding.
    B, n_input, n_class, n_latent, n_hidden = 600, 200, 10, 20, 256

    key = jax.random.PRNGKey(0)
    k_x, k_eps, k_p = jax.random.split(key, 3)
    x = jax.random.normal(k_x, (B, n_input), dtype=jnp.float32)
    eps = jax.random.normal(k_eps, (B, n_latent), dtype=jnp.float32)   # reparameterization noise
    params = init_params(k_p, n_input, n_class, n_latent, n_hidden)
    prepped = prepare_params(params, n_input, n_class, n_latent, n_hidden)

    y_prop, scale, additive, mu, log_var = st_vae_forward(
        x, eps, prepped,
        n_input=n_input, n_class=n_class, n_latent=n_latent, n_hidden=n_hidden,
        tile_rows=256)
    jax.block_until_ready((y_prop, scale, additive, mu, log_var))

    assert y_prop.shape == (B, n_class)
    assert scale.shape == (n_input,)
    assert additive.shape == (n_input,)
    assert mu.shape == (B, n_latent)
    assert log_var.shape == (B, n_latent)

    # Structural correctness check against a pure-JAX reference using the same bf16 weights.
    y_ref, mu_ref, lv_ref = st_vae_reference(
        x, eps, prepped,
        n_input=n_input, n_class=n_class, n_latent=n_latent, n_hidden=n_hidden)
    max_diff = max(float(jnp.max(jnp.abs(y_prop - y_ref))),
                   float(jnp.max(jnp.abs(mu - mu_ref))),
                   float(jnp.max(jnp.abs(log_var - lv_ref))))
    assert max_diff < 1e-1, f"kernel vs reference max abs diff = {max_diff}"

    print("KERNEL_OK")
</pallas_src>

<mosaic_0001>
module attributes {stable_mosaic.version = 11 : i64} {
  func.func @st_vae_kernel(%arg0: i32, %arg1: i32, %arg2: memref<256x256xbf16, #tpu.memory_space<vmem>>, %arg3: memref<256x128xf32, #tpu.memory_space<vmem>>, %arg4: memref<256x256xbf16, #tpu.memory_space<vmem>>, %arg5: memref<256x256xbf16, #tpu.memory_space<vmem>>, %arg6: memref<1x256xf32, #tpu.memory_space<vmem>>, %arg7: memref<128x256xbf16, #tpu.memory_space<vmem>>, %arg8: memref<256x128xbf16, #tpu.memory_space<vmem>>, %arg9: memref<256x128xf32, #tpu.memory_space<vmem>>, %arg10: memref<256x256xf32, #tpu.memory_space<vmem>>, %arg11: memref<3x256x128xf32, #tpu.memory_space<vmem>>, %arg12: memref<3x256xf32, #tpu.memory_space<vmem>>, %arg13: memref<3x256xf32, #tpu.memory_space<vmem>>, %arg14: memref<3x128xf32, #tpu.memory_space<vmem>>) attributes {dimension_semantics = [#tpu.dimension_semantics<arbitrary>, #tpu.dimension_semantics<arbitrary>], iteration_bounds = array<i64: 4, 3>, scalar_prefetch = 0 : i64, scratch_operands = 4 : i64, tpu.core_type = #tpu.core_type<tc>, window_params = [{transform_indices = @transform_0, window_bounds = array<i64: 256, 256>}, {transform_indices = @transform_1, window_bounds = array<i64: 256, 128>}, {pipeline_mode = #tpu.pipeline_mode<synchronous>, transform_indices = @transform_2, window_bounds = array<i64: 256, 256>}, {pipeline_mode = #tpu.pipeline_mode<synchronous>, transform_indices = @transform_3, window_bounds = array<i64: 256, 256>}, {pipeline_mode = #tpu.pipeline_mode<synchronous>, transform_indices = @transform_4, window_bounds = array<i64: 1, 256>}, {pipeline_mode = #tpu.pipeline_mode<synchronous>, transform_indices = @transform_5, window_bounds = array<i64: 128, 256>}, {pipeline_mode = #tpu.pipeline_mode<synchronous>, transform_indices = @transform_6, window_bounds = array<i64: 256, 128>}, {transform_indices = @transform_7, window_bounds = array<i64: 256, 128>}, {transform_indices = @transform_8, window_bounds = array<i64: 256, 256>}]} {
    %c256_i32 = arith.constant 256 : i32
    %0 = arith.muli %arg1, %c256_i32 : i32
    %1 = tpu.iota {dimensions = array<i32: 0>} : vector<256x1xi32>
    %2 = vector.broadcast %0 : i32 to vector<256x1xi32>
    %3 = arith.addi %2, %1 : vector<256x1xi32>
    %c600_i32 = arith.constant 600 : i32
    %4 = vector.broadcast %c600_i32 : i32 to vector<256x1xi32>
    %5 = arith.cmpi slt, %3, %4 : vector<256x1xi32>
    %6 = arith.extui %5 : vector<256x1xi1> to vector<256x1xi32>
    %7 = arith.sitofp %6 : vector<256x1xi32> to vector<256x1xf32>
    %c0_i32 = arith.constant 0 : i32
    %8 = arith.cmpi eq, %arg0, %c0_i32 : i32
    %9 = arith.extui %8 : i1 to i32
    %c0_i32_0 = arith.constant 0 : i32
    %10 = arith.cmpi ne, %9, %c0_i32_0 : i32
    scf.if %10 {
      %c0 = arith.constant 0 : index
      %c0_4 = arith.constant 0 : index
      %20 = vector.load %arg2[%c0, %c0_4] : memref<256x256xbf16, #tpu.memory_space<vmem>>, vector<256x256xbf16>
      %c0_5 = arith.constant 0 : index
      %c0_6 = arith.constant 0 : index
      %21 = vector.load %arg4[%c0_5, %c0_6] : memref<256x256xbf16, #tpu.memory_space<vmem>>, vector<256x256xbf16>
      %cst = arith.constant dense<0.000000e+00> : vector<256x256xf32>
      %22 = tpu.matmul %20, %21, %cst {dimension_numbers = #tpu.dot_dimension_numbers<[1], [0], [0], [1], [0, 0, 1, 1], [], []>} : vector<256x256xbf16>, vector<256x256xbf16>, vector<256x256xf32> -> vector<256x256xf32>
      %c0_i32_7 = arith.constant 0 : i32
      %23 = arith.cmpi eq, %arg1, %c0_i32_7 : i32
      %24 = arith.extui %23 : i1 to i32
      %c0_i32_8 = arith.constant 0 : i32
      %25 = arith.cmpi ne, %24, %c0_i32_8 : i32
      scf.if %25 {
        %45 = vector.broadcast %7 : vector<256x1xf32> to vector<256x256xf32>
        %46 = arith.mulf %22, %45 : vector<256x256xf32>
        %cst_21 = arith.constant dense<0.000000e+00> : vector<256xf32>
        %47 = vector.multi_reduction <add>, %46, %cst_21 [0] : vector<256x256xf32> to vector<256xf32>
        %48 = vector.shape_cast %47 : vector<256xf32> to vector<1x256xf32>
        %cst_22 = arith.constant 3.906250e-03 : f32
        %49 = vector.broadcast %cst_22 : f32 to vector<1x256xf32>
        %50 = arith.mulf %48, %49 : vector<1x256xf32>
        %c0_23 = arith.constant 0 : index
        %c0_24 = arith.constant 0 : index
        %51 = vector.load %arg12[%c0_23, %c0_24] : memref<3x256xf32, #tpu.memory_space<vmem>>, vector<1x256xf32>
        tpu.vector_store %arg12[%c0_23, %c0_24], %50 {strides = array<i32>} : memref<3x256xf32, #tpu.memory_space<vmem>>, vector<1x256xf32>,
        %cst_25 = arith.constant 0.000000e+00 : f32
        %52 = vector.broadcast %cst_25 : f32 to vector<2x256xf32>
        %c1_26 = arith.constant 1 : index
        %c0_27 = arith.constant 0 : index
        %53 = vector.load %arg12[%c1_26, %c0_27] : memref<3x256xf32, #tpu.memory_space<vmem>>, vector<2x256xf32>
        tpu.vector_store %arg12[%c1_26, %c0_27], %52 {strides = array<i32>} : memref<3x256xf32, #tpu.memory_space<vmem>>, vector<2x256xf32>,
      } else {
      }
      %c0_9 = arith.constant 0 : index
      %c0_10 = arith.constant 0 : index
      %26 = vector.load %arg12[%c0_9, %c0_10] : memref<3x256xf32, #tpu.memory_space<vmem>>, vector<1x256xf32>
      %27 = vector.broadcast %26 : vector<1x256xf32> to vector<256x256xf32>
      %28 = arith.subf %22, %27 : vector<256x256xf32>
      %29 = vector.broadcast %7 : vector<256x1xf32> to vector<256x256xf32>
      %30 = arith.mulf %28, %29 : vector<256x256xf32>
      %c1 = arith.constant 1 : index
      %c0_11 = arith.constant 0 : index
      %31 = vector.load %arg12[%c1, %c0_11] : memref<3x256xf32, #tpu.memory_space<vmem>>, vector<1x256xf32>
      %cst_12 = arith.constant dense<0.000000e+00> : vector<256xf32>
      %32 = vector.multi_reduction <add>, %30, %cst_12 [0] : vector<256x256xf32> to vector<256xf32>
      %33 = vector.shape_cast %32 : vector<256xf32> to vector<1x256xf32>
      %34 = arith.addf %31, %33 : vector<1x256xf32>
      %c1_13 = arith.constant 1 : index
      %c0_14 = arith.constant 0 : index
      %35 = vector.load %arg12[%c1_13, %c0_14] : memref<3x256xf32, #tpu.memory_space<vmem>>, vector<1x256xf32>
      tpu.vector_store %arg12[%c1_13, %c0_14], %34 {strides = array<i32>} : memref<3x256xf32, #tpu.memory_space<vmem>>, vector<1x256xf32>,
      %c2 = arith.constant 2 : index
      %c0_15 = arith.constant 0 : index
      %36 = vector.load %arg12[%c2, %c0_15] : memref<3x256xf32, #tpu.memory_space<vmem>>, vector<1x256xf32>
      %37 = arith.mulf %30, %30 : vector<256x256xf32>
      %cst_16 = arith.constant dense<0.000000e+00> : vector<256xf32>
      %38 = vector.multi_reduction <add>, %37, %cst_16 [0] : vector<256x256xf32> to vector<256xf32>
      %39 = vector.shape_cast %38 : vector<256xf32> to vector<1x256xf32>
      %40 = arith.addf %36, %39 : vector<1x256xf32>
      %c2_17 = arith.constant 2 : index
      %c0_18 = arith.constant 0 : index
      %41 = vector.load %arg12[%c2_17, %c0_18] : memref<3x256xf32, #tpu.memory_space<vmem>>, vector<1x256xf32>
      tpu.vector_store %arg12[%c2_17, %c0_18], %40 {strides = array<i32>} : memref<3x256xf32, #tpu.memory_space<vmem>>, vector<1x256xf32>,
      %c2_i32_19 = arith.constant 2 : i32
      %42 = arith.cmpi eq, %arg1, %c2_i32_19 : i32
      %43 = arith.extui %42 : i1 to i32
      %c0_i32_20 = arith.constant 0 : i32
      %44 = arith.cmpi ne, %43, %c0_i32_20 : i32
      scf.if %44 {
        %c0_21 = arith.constant 0 : index
        %c0_22 = arith.constant 0 : index
        %45 = vector.load %arg12[%c0_21, %c0_22] : memref<3x256xf32, #tpu.memory_space<vmem>>, vector<1x256xf32>
        %c1_23 = arith.constant 1 : index
        %c0_24 = arith.constant 0 : index
        %46 = vector.load %arg12[%c1_23, %c0_24] : memref<3x256xf32, #tpu.memory_space<vmem>>, vector<1x256xf32>
        %cst_25 = arith.constant 0.00166666671 : f32
        %47 = vector.broadcast %cst_25 : f32 to vector<1x256xf32>
        %48 = arith.mulf %46, %47 : vector<1x256xf32>
        %c2_26 = arith.constant 2 : index
        %c0_27 = arith.constant 0 : index
        %49 = vector.load %arg12[%c2_26, %c0_27] : memref<3x256xf32, #tpu.memory_space<vmem>>, vector<1x256xf32>
        %cst_28 = arith.constant 0.00166666671 : f32
        %50 = vector.broadcast %cst_28 : f32 to vector<1x256xf32>
        %51 = arith.mulf %49, %50 : vector<1x256xf32>
        %52 = arith.mulf %48, %48 : vector<1x256xf32>
        %53 = arith.subf %51, %52 : vector<1x256xf32>
        %cst_29 = arith.constant 0.000000e+00 : f32
        %54 = vector.broadcast %cst_29 : f32 to vector<1x256xf32>
        %55 = arith.maximumf %53, %54 : vector<1x256xf32>
        %56 = arith.addf %45, %48 : vector<1x256xf32>
        %c0_30 = arith.constant 0 : index
        %c0_31 = arith.constant 0 : index
        %57 = vector.load %arg12[%c0_30, %c0_31] : memref<3x256xf32, #tpu.memory_space<vmem>>, vector<1x256xf32>
        tpu.vector_store %arg12[%c0_30, %c0_31], %56 {strides = array<i32>} : memref<3x256xf32, #tpu.memory_space<vmem>>, vector<1x256xf32>,
        %cst_32 = arith.constant 1.000000e-03 : f32
        %58 = vector.broadcast %cst_32 : f32 to vector<1x256xf32>
        %59 = arith.addf %55, %58 : vector<1x256xf32>
        %60 = math.rsqrt %59 : vector<1x256xf32>
        %c1_33 = arith.constant 1 : index
        %c0_34 = arith.constant 0 : index
        %61 = vector.load %arg12[%c1_33, %c0_34] : memref<3x256xf32, #tpu.memory_space<vmem>>, vector<1x256xf32>
        tpu.vector_store %arg12[%c1_33, %c0_34], %60 {strides = array<i32>} : memref<3x256xf32, #tpu.memory_space<vmem>>, vector<1x256xf32>,
      } else {
      }
    } else {
    }
    %c1_i32 = arith.constant 1 : i32
    %11 = arith.cmpi eq, %arg0, %c1_i32 : i32
    %12 = arith.extui %11 : i1 to i32
    %c0_i32_1 = arith.constant 0 : i32
    %13 = arith.cmpi ne, %12, %c0_i32_1 : i32
    scf.if %13 {
      %c0 = arith.constant 0 : index
      %c0_4 = arith.constant 0 : index
      %20 = vector.load %arg2[%c0, %c0_4] : memref<256x256xbf16, #tpu.memory_space<vmem>>, vector<256x256xbf16>
      %c0_5 = arith.constant 0 : index
      %c0_6 = arith.constant 0 : index
      %21 = vector.load %arg4[%c0_5, %c0_6] : memref<256x256xbf16, #tpu.memory_space<vmem>>, vector<256x256xbf16>
      %cst = arith.constant dense<0.000000e+00> : vector<256x256xf32>
      %22 = tpu.matmul %20, %21, %cst {dimension_numbers = #tpu.dot_dimension_numbers<[1], [0], [0], [1], [0, 0, 1, 1], [], []>} : vector<256x256xbf16>, vector<256x256xbf16>, vector<256x256xf32> -> vector<256x256xf32>
      %c0_7 = arith.constant 0 : index
      %c0_8 = arith.constant 0 : index
      %23 = vector.load %arg12[%c0_7, %c0_8] : memref<3x256xf32, #tpu.memory_space<vmem>>, vector<1x256xf32>
      %24 = vector.broadcast %23 : vector<1x256xf32> to vector<256x256xf32>
      %25 = arith.subf %22, %24 : vector<256x256xf32>
      %c1 = arith.constant 1 : index
      %c0_9 = arith.constant 0 : index
      %26 = vector.load %arg12[%c1, %c0_9] : memref<3x256xf32, #tpu.memory_space<vmem>>, vector<1x256xf32>
      %27 = vector.broadcast %26 : vector<1x256xf32> to vector<256x256xf32>
      %28 = arith.mulf %25, %27 : vector<256x256xf32>
      %cst_10 = arith.constant dense<0.000000e+00> : vector<256xf32>
      %29 = vector.multi_reduction <add>, %28, %cst_10 [1] : vector<256x256xf32> to vector<256xf32>
      %30 = vector.shape_cast %29 : vector<256xf32> to vector<256x1xf32>
      %31 = arith.mulf %28, %28 : vector<256x256xf32>
      %cst_11 = arith.constant dense<0.000000e+00> : vector<256xf32>
      %32 = vector.multi_reduction <add>, %31, %cst_11 [1] : vector<256x256xf32> to vector<256xf32>
      %33 = vector.shape_cast %32 : vector<256xf32> to vector<256x1xf32>
      %cst_12 = arith.constant 3.906250e-03 : f32
      %34 = vector.broadcast %cst_12 : f32 to vector<256x1xf32>
      %35 = arith.mulf %30, %34 : vector<256x1xf32>
      %cst_13 = arith.constant 3.906250e-03 : f32
      %36 = vector.broadcast %cst_13 : f32 to vector<256x1xf32>
      %37 = arith.mulf %33, %36 : vector<256x1xf32>
      %38 = arith.mulf %35, %35 : vector<256x1xf32>
      %39 = arith.subf %37, %38 : vector<256x1xf32>
      %cst_14 = arith.constant 0.000000e+00 : f32
      %40 = vector.broadcast %cst_14 : f32 to vector<256x1xf32>
      %41 = arith.maximumf %39, %40 : vector<256x1xf32>
      %42 = vector.broadcast %35 : vector<256x1xf32> to vector<256x256xf32>
      %43 = arith.subf %28, %42 : vector<256x256xf32>
      %cst_15 = arith.constant 9.99999974E-6 : f32
      %44 = vector.broadcast %cst_15 : f32 to vector<256x1xf32>
      %45 = arith.addf %41, %44 : vector<256x1xf32>
      %46 = math.rsqrt %45 : vector<256x1xf32>
      %47 = vector.broadcast %46 : vector<256x1xf32> to vector<256x256xf32>
      %48 = arith.mulf %43, %47 : vector<256x256xf32>
      %cst_16 = arith.constant 0.00999999977 : f32
      %49 = vector.broadcast %cst_16 : f32 to vector<256x256xf32>
      %50 = arith.mulf %49, %48 : vector<256x256xf32>
      %51 = arith.maximumf %48, %50 : vector<256x256xf32>
      %52 = arith.truncf %51 : vector<256x256xf32> to vector<256x256xbf16>
      %c0_17 = arith.constant 0 : index
      %c0_18 = arith.constant 0 : index
      %53 = vector.load %arg5[%c0_17, %c0_18] : memref<256x256xbf16, #tpu.memory_space<vmem>>, vector<256x256xbf16>
      %cst_19 = arith.constant dense<0.000000e+00> : vector<256x256xf32>
      %54 = tpu.matmul %52, %53, %cst_19 {dimension_numbers = #tpu.dot_dimension_numbers<[1], [0], [0], [1], [0, 0, 1, 1], [], []>} : vector<256x256xbf16>, vector<256x256xbf16>, vector<256x256xf32> -> vector<256x256xf32>
      %c0_20 = arith.constant 0 : index
      %c0_21 = arith.constant 0 : index
      %55 = vector.load %arg6[%c0_20, %c0_21] : memref<1x256xf32, #tpu.memory_space<vmem>>, vector<1x256xf32>
      %56 = vector.broadcast %55 : vector<1x256xf32> to vector<256x256xf32>
      %57 = arith.addf %54, %56 : vector<256x256xf32>
      %c0_22 = arith.constant 0 : index
      %c0_23 = arith.constant 0 : index
      %58 = vector.load %arg10[%c0_22, %c0_23] : memref<256x256xf32, #tpu.memory_space<vmem>>, vector<256x256xf32>
      tpu.vector_store %arg10[%c0_22, %c0_23], %57 {strides = array<i32>} : memref<256x256xf32, #tpu.memory_space<vmem>>, vector<256x256xf32>,
      %59 = vector.extract_strided_slice %57 {offsets = [0, 0], sizes = [256, 128], strides = [1, 1]} : vector<256x256xf32> to vector<256x128xf32>
      %60 = vector.extract_strided_slice %57 {offsets = [0, 128], sizes = [256, 128], strides = [1, 1]} : vector<256x256xf32> to vector<256x128xf32>
      %c0_24 = arith.constant 0 : index
      %c0_25 = arith.constant 0 : index
      %61 = vector.load %arg3[%c0_24, %c0_25] : memref<256x128xf32, #tpu.memory_space<vmem>>, vector<256x128xf32>
      %cst_26 = arith.constant 5.000000e-01 : f32
      %62 = vector.broadcast %cst_26 : f32 to vector<256x128xf32>
      %63 = arith.mulf %62, %60 : vector<256x128xf32>
      %64 = math.exp %63 : vector<256x128xf32>
      %65 = arith.mulf %61, %64 : vector<256x128xf32>
      %66 = arith.addf %65, %59 : vector<256x128xf32>
      %67 = arith.index_cast %arg1 : i32 to index
      %c0_27 = arith.constant 0 : index
      %c0_28 = arith.constant 0 : index
      %68 = vector.load %arg11[%67, %c0_27, %c0_28] : memref<3x256x128xf32, #tpu.memory_space<vmem>>, vector<1x256x128xf32>
      %69 = vector.shape_cast %68 : vector<1x256x128xf32> to vector<256x128xf32>
      %70 = vector.shape_cast %66 : vector<256x128xf32> to vector<1x256x128xf32>
      tpu.vector_store %arg11[%67, %c0_27, %c0_28], %70 {strides = array<i32>} : memref<3x256x128xf32, #tpu.memory_space<vmem>>, vector<1x256x128xf32>,
      %71 = arith.truncf %66 : vector<256x128xf32> to vector<256x128xbf16>
      %c0_29 = arith.constant 0 : index
      %c0_30 = arith.constant 0 : index
      %72 = vector.load %arg7[%c0_29, %c0_30] : memref<128x256xbf16, #tpu.memory_space<vmem>>, vector<128x256xbf16>
      %cst_31 = arith.constant dense<0.000000e+00> : vector<256x256xf32>
      %73 = tpu.matmul %71, %72, %cst_31 {dimension_numbers = #tpu.dot_dimension_numbers<[1], [0], [0], [1], [0, 0, 1, 1], [], []>} : vector<256x128xbf16>, vector<128x256xbf16>, vector<256x256xf32> -> vector<256x256xf32>
      %c0_i32_32 = arith.constant 0 : i32
      %74 = arith.cmpi eq, %arg1, %c0_i32_32 : i32
      %75 = arith.extui %74 : i1 to i32
      %c0_i32_33 = arith.constant 0 : i32
      %76 = arith.cmpi ne, %75, %c0_i32_33 : i32
      scf.if %76 {
        %96 = vector.broadcast %7 : vector<256x1xf32> to vector<256x256xf32>
        %97 = arith.mulf %73, %96 : vector<256x256xf32>
        %cst_47 = arith.constant dense<0.000000e+00> : vector<256xf32>
        %98 = vector.multi_reduction <add>, %97, %cst_47 [0] : vector<256x256xf32> to vector<256xf32>
        %99 = vector.shape_cast %98 : vector<256xf32> to vector<1x256xf32>
        %cst_48 = arith.constant 3.906250e-03 : f32
        %100 = vector.broadcast %cst_48 : f32 to vector<1x256xf32>
        %101 = arith.mulf %99, %100 : vector<1x256xf32>
        %c0_49 = arith.constant 0 : index
        %c0_50 = arith.constant 0 : index
        %102 = vector.load %arg13[%c0_49, %c0_50] : memref<3x256xf32, #tpu.memory_space<vmem>>, vector<1x256xf32>
        tpu.vector_store %arg13[%c0_49, %c0_50], %101 {strides = array<i32>} : memref<3x256xf32, #tpu.memory_space<vmem>>, vector<1x256xf32>,
        %cst_51 = arith.constant 0.000000e+00 : f32
        %103 = vector.broadcast %cst_51 : f32 to vector<2x256xf32>
        %c1_52 = arith.constant 1 : index
        %c0_53 = arith.constant 0 : index
        %104 = vector.load %arg13[%c1_52, %c0_53] : memref<3x256xf32, #tpu.memory_space<vmem>>, vector<2x256xf32>
        tpu.vector_store %arg13[%c1_52, %c0_53], %103 {strides = array<i32>} : memref<3x256xf32, #tpu.memory_space<vmem>>, vector<2x256xf32>,
      } else {
      }
      %c0_34 = arith.constant 0 : index
      %c0_35 = arith.constant 0 : index
      %77 = vector.load %arg13[%c0_34, %c0_35] : memref<3x256xf32, #tpu.memory_space<vmem>>, vector<1x256xf32>
      %78 = vector.broadcast %77 : vector<1x256xf32> to vector<256x256xf32>
      %79 = arith.subf %73, %78 : vector<256x256xf32>
      %80 = vector.broadcast %7 : vector<256x1xf32> to vector<256x256xf32>
      %81 = arith.mulf %79, %80 : vector<256x256xf32>
      %c1_36 = arith.constant 1 : index
      %c0_37 = arith.constant 0 : index
      %82 = vector.load %arg13[%c1_36, %c0_37] : memref<3x256xf32, #tpu.memory_space<vmem>>, vector<1x256xf32>
      %cst_38 = arith.constant dense<0.000000e+00> : vector<256xf32>
      %83 = vector.multi_reduction <add>, %81, %cst_38 [0] : vector<256x256xf32> to vector<256xf32>
      %84 = vector.shape_cast %83 : vector<256xf32> to vector<1x256xf32>
      %85 = arith.addf %82, %84 : vector<1x256xf32>
      %c1_39 = arith.constant 1 : index
      %c0_40 = arith.constant 0 : index
      %86 = vector.load %arg13[%c1_39, %c0_40] : memref<3x256xf32, #tpu.memory_space<vmem>>, vector<1x256xf32>
      tpu.vector_store %arg13[%c1_39, %c0_40], %85 {strides = array<i32>} : memref<3x256xf32, #tpu.memory_space<vmem>>, vector<1x256xf32>,
      %c2 = arith.constant 2 : index
      %c0_41 = arith.constant 0 : index
      %87 = vector.load %arg13[%c2, %c0_41] : memref<3x256xf32, #tpu.memory_space<vmem>>, vector<1x256xf32>
      %88 = arith.mulf %81, %81 : vector<256x256xf32>
      %cst_42 = arith.constant dense<0.000000e+00> : vector<256xf32>
      %89 = vector.multi_reduction <add>, %88, %cst_42 [0] : vector<256x256xf32> to vector<256xf32>
      %90 = vector.shape_cast %89 : vector<256xf32> to vector<1x256xf32>
      %91 = arith.addf %87, %90 : vector<1x256xf32>
      %c2_43 = arith.constant 2 : index
      %c0_44 = arith.constant 0 : index
      %92 = vector.load %arg13[%c2_43, %c0_44] : memref<3x256xf32, #tpu.memory_space<vmem>>, vector<1x256xf32>
      tpu.vector_store %arg13[%c2_43, %c0_44], %91 {strides = array<i32>} : memref<3x256xf32, #tpu.memory_space<vmem>>, vector<1x256xf32>,
      %c2_i32_45 = arith.constant 2 : i32
      %93 = arith.cmpi eq, %arg1, %c2_i32_45 : i32
      %94 = arith.extui %93 : i1 to i32
      %c0_i32_46 = arith.constant 0 : i32
      %95 = arith.cmpi ne, %94, %c0_i32_46 : i32
      scf.if %95 {
        %c0_47 = arith.constant 0 : index
        %c0_48 = arith.constant 0 : index
        %96 = vector.load %arg13[%c0_47, %c0_48] : memref<3x256xf32, #tpu.memory_space<vmem>>, vector<1x256xf32>
        %c1_49 = arith.constant 1 : index
        %c0_50 = arith.constant 0 : index
        %97 = vector.load %arg13[%c1_49, %c0_50] : memref<3x256xf32, #tpu.memory_space<vmem>>, vector<1x256xf32>
        %cst_51 = arith.constant 0.00166666671 : f32
        %98 = vector.broadcast %cst_51 : f32 to vector<1x256xf32>
        %99 = arith.mulf %97, %98 : vector<1x256xf32>
        %c2_52 = arith.constant 2 : index
        %c0_53 = arith.constant 0 : index
        %100 = vector.load %arg13[%c2_52, %c0_53] : memref<3x256xf32, #tpu.memory_space<vmem>>, vector<1x256xf32>
        %cst_54 = arith.constant 0.00166666671 : f32
        %101 = vector.broadcast %cst_54 : f32 to vector<1x256xf32>
        %102 = arith.mulf %100, %101 : vector<1x256xf32>
        %103 = arith.mulf %99, %99 : vector<1x256xf32>
        %104 = arith.subf %102, %103 : vector<1x256xf32>
        %cst_55 = arith.constant 0.000000e+00 : f32
        %105 = vector.broadcast %cst_55 : f32 to vector<1x256xf32>
        %106 = arith.maximumf %104, %105 : vector<1x256xf32>
        %107 = arith.addf %96, %99 : vector<1x256xf32>
        %c0_56 = arith.constant 0 : index
        %c0_57 = arith.constant 0 : index
        %108 = vector.load %arg13[%c0_56, %c0_57] : memref<3x256xf32, #tpu.memory_space<vmem>>, vector<1x256xf32>
        tpu.vector_store %arg13[%c0_56, %c0_57], %107 {strides = array<i32>} : memref<3x256xf32, #tpu.memory_space<vmem>>, vector<1x256xf32>,
        %cst_58 = arith.constant 1.000000e-03 : f32
        %109 = vector.broadcast %cst_58 : f32 to vector<1x256xf32>
        %110 = arith.addf %106, %109 : vector<1x256xf32>
        %111 = math.rsqrt %110 : vector<1x256xf32>
        %c1_59 = arith.constant 1 : index
        %c0_60 = arith.constant 0 : index
        %112 = vector.load %arg13[%c1_59, %c0_60] : memref<3x256xf32, #tpu.memory_space<vmem>>, vector<1x256xf32>
        tpu.vector_store %arg13[%c1_59, %c0_60], %111 {strides = array<i32>} : memref<3x256xf32, #tpu.memory_space<vmem>>, vector<1x256xf32>,
      } else {
      }
    } else {
    }
    %c2_i32 = arith.constant 2 : i32
    %14 = arith.cmpi eq, %arg0, %c2_i32 : i32
    %15 = arith.extui %14 : i1 to i32
    %c0_i32_2 = arith.constant 0 : i32
    %16 = arith.cmpi ne, %15, %c0_i32_2 : i32
    scf.if %16 {
      %20 = arith.index_cast %arg1 : i32 to index
      %c0 = arith.constant 0 : index
      %c0_4 = arith.constant 0 : index
      %21 = vector.load %arg11[%20, %c0, %c0_4] : memref<3x256x128xf32, #tpu.memory_space<vmem>>, vector<1x256x128xf32>
      %22 = vector.shape_cast %21 : vector<1x256x128xf32> to vector<256x128xf32>
      %23 = arith.truncf %22 : vector<256x128xf32> to vector<256x128xbf16>
      %c0_5 = arith.constant 0 : index
      %c0_6 = arith.constant 0 : index
      %24 = vector.load %arg7[%c0_5, %c0_6] : memref<128x256xbf16, #tpu.memory_space<vmem>>, vector<128x256xbf16>
      %cst = arith.constant dense<0.000000e+00> : vector<256x256xf32>
      %25 = tpu.matmul %23, %24, %cst {dimension_numbers = #tpu.dot_dimension_numbers<[1], [0], [0], [1], [0, 0, 1, 1], [], []>} : vector<256x128xbf16>, vector<128x256xbf16>, vector<256x256xf32> -> vector<256x256xf32>
      %c0_7 = arith.constant 0 : index
      %c0_8 = arith.constant 0 : index
      %26 = vector.load %arg13[%c0_7, %c0_8] : memref<3x256xf32, #tpu.memory_space<vmem>>, vector<1x256xf32>
      %27 = vector.broadcast %26 : vector<1x256xf32> to vector<256x256xf32>
      %28 = arith.subf %25, %27 : vector<256x256xf32>
      %c1 = arith.constant 1 : index
      %c0_9 = arith.constant 0 : index
      %29 = vector.load %arg13[%c1, %c0_9] : memref<3x256xf32, #tpu.memory_space<vmem>>, vector<1x256xf32>
      %30 = vector.broadcast %29 : vector<1x256xf32> to vector<256x256xf32>
      %31 = arith.mulf %28, %30 : vector<256x256xf32>
      %cst_10 = arith.constant dense<0.000000e+00> : vector<256xf32>
      %32 = vector.multi_reduction <add>, %31, %cst_10 [1] : vector<256x256xf32> to vector<256xf32>
      %33 = vector.shape_cast %32 : vector<256xf32> to vector<256x1xf32>
      %34 = arith.mulf %31, %31 : vector<256x256xf32>
      %cst_11 = arith.constant dense<0.000000e+00> : vector<256xf32>
      %35 = vector.multi_reduction <add>, %34, %cst_11 [1] : vector<256x256xf32> to vector<256xf32>
      %36 = vector.shape_cast %35 : vector<256xf32> to vector<256x1xf32>
      %cst_12 = arith.constant 3.906250e-03 : f32
      %37 = vector.broadcast %cst_12 : f32 to vector<256x1xf32>
      %38 = arith.mulf %33, %37 : vector<256x1xf32>
      %cst_13 = arith.constant 3.906250e-03 : f32
      %39 = vector.broadcast %cst_13 : f32 to vector<256x1xf32>
      %40 = arith.mulf %36, %39 : vector<256x1xf32>
      %41 = arith.mulf %38, %38 : vector<256x1xf32>
      %42 = arith.subf %40, %41 : vector<256x1xf32>
      %cst_14 = arith.constant 0.000000e+00 : f32
      %43 = vector.broadcast %cst_14 : f32 to vector<256x1xf32>
      %44 = arith.maximumf %42, %43 : vector<256x1xf32>
      %45 = vector.broadcast %38 : vector<256x1xf32> to vector<256x256xf32>
      %46 = arith.subf %31, %45 : vector<256x256xf32>
      %cst_15 = arith.constant 9.99999974E-6 : f32
      %47 = vector.broadcast %cst_15 : f32 to vector<256x1xf32>
      %48 = arith.addf %44, %47 : vector<256x1xf32>
      %49 = math.rsqrt %48 : vector<256x1xf32>
      %50 = vector.broadcast %49 : vector<256x1xf32> to vector<256x256xf32>
      %51 = arith.mulf %46, %50 : vector<256x256xf32>
      %cst_16 = arith.constant 0.00999999977 : f32
      %52 = vector.broadcast %cst_16 : f32 to vector<256x256xf32>
      %53 = arith.mulf %52, %51 : vector<256x256xf32>
      %54 = arith.maximumf %51, %53 : vector<256x256xf32>
      %55 = arith.truncf %54 : vector<256x256xf32> to vector<256x256xbf16>
      %c0_17 = arith.constant 0 : index
      %c0_18 = arith.constant 0 : index
      %56 = vector.load %arg8[%c0_17, %c0_18] : memref<256x128xbf16, #tpu.memory_space<vmem>>, vector<256x128xbf16>
      %cst_19 = arith.constant dense<0.000000e+00> : vector<256x128xf32>
      %57 = tpu.matmul %55, %56, %cst_19 {dimension_numbers = #tpu.dot_dimension_numbers<[1], [0], [0], [1], [0, 0, 1, 1], [], []>} : vector<256x256xbf16>, vector<256x128xbf16>, vector<256x128xf32> -> vector<256x128xf32>
      %c0_i32_20 = arith.constant 0 : i32
      %58 = arith.cmpi eq, %arg1, %c0_i32_20 : i32
      %59 = arith.extui %58 : i1 to i32
      %c0_i32_21 = arith.constant 0 : i32
      %60 = arith.cmpi ne, %59, %c0_i32_21 : i32
      scf.if %60 {
        %80 = vector.broadcast %7 : vector<256x1xf32> to vector<256x128xf32>
        %81 = arith.mulf %57, %80 : vector<256x128xf32>
        %cst_35 = arith.constant dense<0.000000e+00> : vector<128xf32>
        %82 = vector.multi_reduction <add>, %81, %cst_35 [0] : vector<256x128xf32> to vector<128xf32>
        %83 = vector.shape_cast %82 : vector<128xf32> to vector<1x128xf32>
        %cst_36 = arith.constant 3.906250e-03 : f32
        %84 = vector.broadcast %cst_36 : f32 to vector<1x128xf32>
        %85 = arith.mulf %83, %84 : vector<1x128xf32>
        %c0_37 = arith.constant 0 : index
        %c0_38 = arith.constant 0 : index
        %86 = vector.load %arg14[%c0_37, %c0_38] : memref<3x128xf32, #tpu.memory_space<vmem>>, vector<1x128xf32>
        tpu.vector_store %arg14[%c0_37, %c0_38], %85 {strides = array<i32>} : memref<3x128xf32, #tpu.memory_space<vmem>>, vector<1x128xf32>,
        %cst_39 = arith.constant 0.000000e+00 : f32
        %87 = vector.broadcast %cst_39 : f32 to vector<2x128xf32>
        %c1_40 = arith.constant 1 : index
        %c0_41 = arith.constant 0 : index
        %88 = vector.load %arg14[%c1_40, %c0_41] : memref<3x128xf32, #tpu.memory_space<vmem>>, vector<2x128xf32>
        tpu.vector_store %arg14[%c1_40, %c0_41], %87 {strides = array<i32>} : memref<3x128xf32, #tpu.memory_space<vmem>>, vector<2x128xf32>,
      } else {
      }
      %c0_22 = arith.constant 0 : index
      %c0_23 = arith.constant 0 : index
      %61 = vector.load %arg14[%c0_22, %c0_23] : memref<3x128xf32, #tpu.memory_space<vmem>>, vector<1x128xf32>
      %62 = vector.broadcast %61 : vector<1x128xf32> to vector<256x128xf32>
      %63 = arith.subf %57, %62 : vector<256x128xf32>
      %64 = vector.broadcast %7 : vector<256x1xf32> to vector<256x128xf32>
      %65 = arith.mulf %63, %64 : vector<256x128xf32>
      %c1_24 = arith.constant 1 : index
      %c0_25 = arith.constant 0 : index
      %66 = vector.load %arg14[%c1_24, %c0_25] : memref<3x128xf32, #tpu.memory_space<vmem>>, vector<1x128xf32>
      %cst_26 = arith.constant dense<0.000000e+00> : vector<128xf32>
      %67 = vector.multi_reduction <add>, %65, %cst_26 [0] : vector<256x128xf32> to vector<128xf32>
      %68 = vector.shape_cast %67 : vector<128xf32> to vector<1x128xf32>
      %69 = arith.addf %66, %68 : vector<1x128xf32>
      %c1_27 = arith.constant 1 : index
      %c0_28 = arith.constant 0 : index
      %70 = vector.load %arg14[%c1_27, %c0_28] : memref<3x128xf32, #tpu.memory_space<vmem>>, vector<1x128xf32>
      tpu.vector_store %arg14[%c1_27, %c0_28], %69 {strides = array<i32>} : memref<3x128xf32, #tpu.memory_space<vmem>>, vector<1x128xf32>,
      %c2 = arith.constant 2 : index
      %c0_29 = arith.constant 0 : index
      %71 = vector.load %arg14[%c2, %c0_29] : memref<3x128xf32, #tpu.memory_space<vmem>>, vector<1x128xf32>
      %72 = arith.mulf %65, %65 : vector<256x128xf32>
      %cst_30 = arith.constant dense<0.000000e+00> : vector<128xf32>
      %73 = vector.multi_reduction <add>, %72, %cst_30 [0] : vector<256x128xf32> to vector<128xf32>
      %74 = vector.shape_cast %73 : vector<128xf32> to vector<1x128xf32>
      %75 = arith.addf %71, %74 : vector<1x128xf32>
      %c2_31 = arith.constant 2 : index
      %c0_32 = arith.constant 0 : index
      %76 = vector.load %arg14[%c2_31, %c0_32] : memref<3x128xf32, #tpu.memory_space<vmem>>, vector<1x128xf32>
      tpu.vector_store %arg14[%c2_31, %c0_32], %75 {strides = array<i32>} : memref<3x128xf32, #tpu.memory_space<vmem>>, vector<1x128xf32>,
      %c2_i32_33 = arith.constant 2 : i32
      %77 = arith.cmpi eq, %arg1, %c2_i32_33 : i32
      %78 = arith.extui %77 : i1 to i32
      %c0_i32_34 = arith.constant 0 : i32
      %79 = arith.cmpi ne, %78, %c0_i32_34 : i32
      scf.if %79 {
        %c0_35 = arith.constant 0 : index
        %c0_36 = arith.constant 0 : index
        %80 = vector.load %arg14[%c0_35, %c0_36] : memref<3x128xf32, #tpu.memory_space<vmem>>, vector<1x128xf32>
        %c1_37 = arith.constant 1 : index
        %c0_38 = arith.constant 0 : index
        %81 = vector.load %arg14[%c1_37, %c0_38] : memref<3x128xf32, #tpu.memory_space<vmem>>, vector<1x128xf32>
        %cst_39 = arith.constant 0.00166666671 : f32
        %82 = vector.broadcast %cst_39 : f32 to vector<1x128xf32>
        %83 = arith.mulf %81, %82 : vector<1x128xf32>
        %c2_40 = arith.constant 2 : index
        %c0_41 = arith.constant 0 : index
        %84 = vector.load %arg14[%c2_40, %c0_41] : memref<3x128xf32, #tpu.memory_space<vmem>>, vector<1x128xf32>
        %cst_42 = arith.constant 0.00166666671 : f32
        %85 = vector.broadcast %cst_42 : f32 to vector<1x128xf32>
        %86 = arith.mulf %84, %85 : vector<1x128xf32>
        %87 = arith.mulf %83, %83 : vector<1x128xf32>
        %88 = arith.subf %86, %87 : vector<1x128xf32>
        %cst_43 = arith.constant 0.000000e+00 : f32
        %89 = vector.broadcast %cst_43 : f32 to vector<1x128xf32>
        %90 = arith.maximumf %88, %89 : vector<1x128xf32>
        %91 = arith.addf %80, %83 : vector<1x128xf32>
        %c0_44 = arith.constant 0 : index
        %c0_45 = arith.constant 0 : index
        %92 = vector.load %arg14[%c0_44, %c0_45] : memref<3x128xf32, #tpu.memory_space<vmem>>, vector<1x128xf32>
        tpu.vector_store %arg14[%c0_44, %c0_45], %91 {strides = array<i32>} : memref<3x128xf32, #tpu.memory_space<vmem>>, vector<1x128xf32>,
        %cst_46 = arith.constant 1.000000e-03 : f32
        %93 = vector.broadcast %cst_46 : f32 to vector<1x128xf32>
        %94 = arith.addf %90, %93 : vector<1x128xf32>
        %95 = math.rsqrt %94 : vector<1x128xf32>
        %c1_47 = arith.constant 1 : index
        %c0_48 = arith.constant 0 : index
        %96 = vector.load %arg14[%c1_47, %c0_48] : memref<3x128xf32, #tpu.memory_space<vmem>>, vector<1x128xf32>
        tpu.vector_store %arg14[%c1_47, %c0_48], %95 {strides = array<i32>} : memref<3x128xf32, #tpu.memory_space<vmem>>, vector<1x128xf32>,
      } else {
      }
    } else {
    }
    %c3_i32 = arith.constant 3 : i32
    %17 = arith.cmpi eq, %arg0, %c3_i32 : i32
    %18 = arith.extui %17 : i1 to i32
    %c0_i32_3 = arith.constant 0 : i32
    %19 = arith.cmpi ne, %18, %c0_i32_3 : i32
    scf.if %19 {
      %20 = arith.index_cast %arg1 : i32 to index
      %c0 = arith.constant 0 : index
      %c0_4 = arith.constant 0 : index
      %21 = vector.load %arg11[%20, %c0, %c0_4] : memref<3x256x128xf32, #tpu.memory_space<vmem>>, vector<1x256x128xf32>
      %22 = vector.shape_cast %21 : vector<1x256x128xf32> to vector<256x128xf32>
      %23 = arith.truncf %22 : vector<256x128xf32> to vector<256x128xbf16>
      %c0_5 = arith.constant 0 : index
      %c0_6 = arith.constant 0 : index
      %24 = vector.load %arg7[%c0_5, %c0_6] : memref<128x256xbf16, #tpu.memory_space<vmem>>, vector<128x256xbf16>
      %cst = arith.constant dense<0.000000e+00> : vector<256x256xf32>
      %25 = tpu.matmul %23, %24, %cst {dimension_numbers = #tpu.dot_dimension_numbers<[1], [0], [0], [1], [0, 0, 1, 1], [], []>} : vector<256x128xbf16>, vector<128x256xbf16>, vector<256x256xf32> -> vector<256x256xf32>
      %c0_7 = arith.constant 0 : index
      %c0_8 = arith.constant 0 : index
      %26 = vector.load %arg13[%c0_7, %c0_8] : memref<3x256xf32, #tpu.memory_space<vmem>>, vector<1x256xf32>
      %27 = vector.broadcast %26 : vector<1x256xf32> to vector<256x256xf32>
      %28 = arith.subf %25, %27 : vector<256x256xf32>
      %c1 = arith.constant 1 : index
      %c0_9 = arith.constant 0 : index
      %29 = vector.load %arg13[%c1, %c0_9] : memref<3x256xf32, #tpu.memory_space<vmem>>, vector<1x256xf32>
      %30 = vector.broadcast %29 : vector<1x256xf32> to vector<256x256xf32>
      %31 = arith.mulf %28, %30 : vector<256x256xf32>
      %cst_10 = arith.constant dense<0.000000e+00> : vector<256xf32>
      %32 = vector.multi_reduction <add>, %31, %cst_10 [1] : vector<256x256xf32> to vector<256xf32>
      %33 = vector.shape_cast %32 : vector<256xf32> to vector<256x1xf32>
      %34 = arith.mulf %31, %31 : vector<256x256xf32>
      %cst_11 = arith.constant dense<0.000000e+00> : vector<256xf32>
      %35 = vector.multi_reduction <add>, %34, %cst_11 [1] : vector<256x256xf32> to vector<256xf32>
      %36 = vector.shape_cast %35 : vector<256xf32> to vector<256x1xf32>
      %cst_12 = arith.constant 3.906250e-03 : f32
      %37 = vector.broadcast %cst_12 : f32 to vector<256x1xf32>
      %38 = arith.mulf %33, %37 : vector<256x1xf32>
      %cst_13 = arith.constant 3.906250e-03 : f32
      %39 = vector.broadcast %cst_13 : f32 to vector<256x1xf32>
      %40 = arith.mulf %36, %39 : vector<256x1xf32>
      %41 = arith.mulf %38, %38 : vector<256x1xf32>
      %42 = arith.subf %40, %41 : vector<256x1xf32>
      %cst_14 = arith.constant 0.000000e+00 : f32
      %43 = vector.broadcast %cst_14 : f32 to vector<256x1xf32>
      %44 = arith.maximumf %42, %43 : vector<256x1xf32>
      %45 = vector.broadcast %38 : vector<256x1xf32> to vector<256x256xf32>
      %46 = arith.subf %31, %45 : vector<256x256xf32>
      %cst_15 = arith.constant 9.99999974E-6 : f32
      %47 = vector.broadcast %cst_15 : f32 to vector<256x1xf32>
      %48 = arith.addf %44, %47 : vector<256x1xf32>
      %49 = math.rsqrt %48 : vector<256x1xf32>
      %50 = vector.broadcast %49 : vector<256x1xf32> to vector<256x256xf32>
      %51 = arith.mulf %46, %50 : vector<256x256xf32>
      %cst_16 = arith.constant 0.00999999977 : f32
      %52 = vector.broadcast %cst_16 : f32 to vector<256x256xf32>
      %53 = arith.mulf %52, %51 : vector<256x256xf32>
      %54 = arith.maximumf %51, %53 : vector<256x256xf32>
      %55 = arith.truncf %54 : vector<256x256xf32> to vector<256x256xbf16>
      %c0_17 = arith.constant 0 : index
      %c0_18 = arith.constant 0 : index
      %56 = vector.load %arg8[%c0_17, %c0_18] : memref<256x128xbf16, #tpu.memory_space<vmem>>, vector<256x128xbf16>
      %cst_19 = arith.constant dense<0.000000e+00> : vector<256x128xf32>
      %57 = tpu.matmul %55, %56, %cst_19 {dimension_numbers = #tpu.dot_dimension_numbers<[1], [0], [0], [1], [0, 0, 1, 1], [], []>} : vector<256x256xbf16>, vector<256x128xbf16>, vector<256x128xf32> -> vector<256x128xf32>
      %c0_20 = arith.constant 0 : index
      %c0_21 = arith.constant 0 : index
      %58 = vector.load %arg14[%c0_20, %c0_21] : memref<3x128xf32, #tpu.memory_space<vmem>>, vector<1x128xf32>
      %59 = vector.broadcast %58 : vector<1x128xf32> to vector<256x128xf32>
      %60 = arith.subf %57, %59 : vector<256x128xf32>
      %c1_22 = arith.constant 1 : index
      %c0_23 = arith.constant 0 : index
      %61 = vector.load %arg14[%c1_22, %c0_23] : memref<3x128xf32, #tpu.memory_space<vmem>>, vector<1x128xf32>
      %62 = vector.broadcast %61 : vector<1x128xf32> to vector<256x128xf32>
      %63 = arith.mulf %60, %62 : vector<256x128xf32>
      %cst_24 = arith.constant dense<0.000000e+00> : vector<256xf32>
      %64 = vector.multi_reduction <add>, %63, %cst_24 [1] : vector<256x128xf32> to vector<256xf32>
      %65 = vector.shape_cast %64 : vector<256xf32> to vector<256x1xf32>
      %66 = arith.mulf %63, %63 : vector<256x128xf32>
      %cst_25 = arith.constant dense<0.000000e+00> : vector<256xf32>
      %67 = vector.multi_reduction <add>, %66, %cst_25 [1] : vector<256x128xf32> to vector<256xf32>
      %68 = vector.shape_cast %67 : vector<256xf32> to vector<256x1xf32>
      %cst_26 = arith.constant 1.000000e-01 : f32
      %69 = vector.broadcast %cst_26 : f32 to vector<256x1xf32>
      %70 = arith.mulf %65, %69 : vector<256x1xf32>
      %cst_27 = arith.constant 1.000000e-01 : f32
      %71 = vector.broadcast %cst_27 : f32 to vector<256x1xf32>
      %72 = arith.mulf %68, %71 : vector<256x1xf32>
      %73 = arith.mulf %70, %70 : vector<256x1xf32>
      %74 = arith.subf %72, %73 : vector<256x1xf32>
      %cst_28 = arith.constant 0.000000e+00 : f32
      %75 = vector.broadcast %cst_28 : f32 to vector<256x1xf32>
      %76 = arith.maximumf %74, %75 : vector<256x1xf32>
      %77 = vector.broadcast %70 : vector<256x1xf32> to vector<256x128xf32>
      %78 = arith.subf %63, %77 : vector<256x128xf32>
      %cst_29 = arith.constant 9.99999974E-6 : f32
      %79 = vector.broadcast %cst_29 : f32 to vector<256x1xf32>
      %80 = arith.addf %76, %79 : vector<256x1xf32>
      %81 = math.rsqrt %80 : vector<256x1xf32>
      %82 = vector.broadcast %81 : vector<256x1xf32> to vector<256x128xf32>
      %83 = arith.mulf %78, %82 : vector<256x128xf32>
      %84 = math.tanh %83 : vector<256x128xf32>
      %c0_30 = arith.constant 0 : index
      %c0_31 = arith.constant 0 : index
      %85 = vector.load %arg9[%c0_30, %c0_31] : memref<256x128xf32, #tpu.memory_space<vmem>>, vector<256x128xf32>
      tpu.vector_store %arg9[%c0_30, %c0_31], %84 {strides = array<i32>} : memref<256x128xf32, #tpu.memory_space<vmem>>, vector<256x128xf32>,
    } else {
    }
    return
  }
  func.func @transform_0(%arg0: i32, %arg1: i32) -> (i32, i32) {
    %c1_i32 = arith.constant 1 : i32
    %0 = arith.cmpi sle, %arg0, %c1_i32 : i32
    %c2_i32 = arith.constant 2 : i32
    %1 = arith.select %0, %arg1, %c2_i32 : i32
    %c0_i32 = arith.constant 0 : i32
    %c0_i32_0 = arith.constant 0 : i32
    return %1, %c0_i32 : i32, i32
  }
  func.func @transform_1(%arg0: i32, %arg1: i32) -> (i32, i32) {
    %c1_i32 = arith.constant 1 : i32
    %0 = arith.cmpi eq, %arg0, %c1_i32 : i32
    %c0_i32 = arith.constant 0 : i32
    %1 = arith.cmpi eq, %arg0, %c0_i32 : i32
    %c0_i32_0 = arith.constant 0 : i32
    %c2_i32 = arith.constant 2 : i32
    %2 = arith.select %1, %c0_i32_0, %c2_i32 : i32
    %3 = arith.select %0, %arg1, %2 : i32
    %c0_i32_1 = arith.constant 0 : i32
    %c0_i32_2 = arith.constant 0 : i32
    return %3, %c0_i32_1 : i32, i32
  }
  func.func @transform_2(%arg0: i32, %arg1: i32) -> (i32, i32) {
    %c0_i32 = arith.constant 0 : i32
    %c0_i32_0 = arith.constant 0 : i32
    %c0_i32_1 = arith.constant 0 : i32
    return %c0_i32, %c0_i32_0 : i32, i32
  }
  func.func @transform_3(%arg0: i32, %arg1: i32) -> (i32, i32) {
    %c0_i32 = arith.constant 0 : i32
    %c0_i32_0 = arith.constant 0 : i32
    %c0_i32_1 = arith.constant 0 : i32
    return %c0_i32, %c0_i32_0 : i32, i32
  }
  func.func @transform_4(%arg0: i32, %arg1: i32) -> (i32, i32) {
    %c0_i32 = arith.constant 0 : i32
    %c0_i32_0 = arith.constant 0 : i32
    %c0_i32_1 = arith.constant 0 : i32
    return %c0_i32, %c0_i32_0 : i32, i32
  }
  func.func @transform_5(%arg0: i32, %arg1: i32) -> (i32, i32) {
    %c0_i32 = arith.constant 0 : i32
    %c0_i32_0 = arith.constant 0 : i32
    %c0_i32_1 = arith.constant 0 : i32
    return %c0_i32, %c0_i32_0 : i32, i32
  }
  func.func @transform_6(%arg0: i32, %arg1: i32) -> (i32, i32) {
    %c0_i32 = arith.constant 0 : i32
    %c0_i32_0 = arith.constant 0 : i32
    %c0_i32_1 = arith.constant 0 : i32
    return %c0_i32, %c0_i32_0 : i32, i32
  }
  func.func @transform_7(%arg0: i32, %arg1: i32) -> (i32, i32) {
    %c3_i32 = arith.constant 3 : i32
    %0 = arith.cmpi eq, %arg0, %c3_i32 : i32
    %c0_i32 = arith.constant 0 : i32
    %1 = arith.select %0, %arg1, %c0_i32 : i32
    %c0_i32_0 = arith.constant 0 : i32
    %c0_i32_1 = arith.constant 0 : i32
    return %1, %c0_i32_0 : i32, i32
  }
  func.func @transform_8(%arg0: i32, %arg1: i32) -> (i32, i32) {
    %c1_i32 = arith.constant 1 : i32
    %0 = arith.cmpi eq, %arg0, %c1_i32 : i32
    %c0_i32 = arith.constant 0 : i32
    %1 = arith.cmpi eq, %arg0, %c0_i32 : i32
    %c0_i32_0 = arith.constant 0 : i32
    %c2_i32 = arith.constant 2 : i32
    %2 = arith.select %1, %c0_i32_0, %c2_i32 : i32
    %3 = arith.select %0, %arg1, %2 : i32
    %c0_i32_1 = arith.constant 0 : i32
    %c0_i32_2 = arith.constant 0 : i32
    return %3, %c0_i32_1 : i32, i32
  }
}

</mosaic_0001>

<llo_original>
// kernel: st_vae_forward.1
$region0: #{st_vae_forward.1}
  #allocation0 [shape = 'u32[]', space=smem, size = 0x4, offset = 0x4, fixed_abs, tag = 'smem constant byte address 0x4 - core index']
  #allocation1 [shape = 'u32[144,128]{1,0:T(1,128)}', space=vmem, size = 0x12000, scoped, tag = 'internal scratch']
  #allocation2 [shape = 'f32[3,256,128]{2,1,0:T(8,128)}', space=vmem, size = 0x60000, scoped, tag = 'scratch operand']
  #allocation3 [shape = 'f32[3,256]{1,0:T(4,128)}', space=vmem, size = 0x1000, scoped, tag = 'scratch operand']
  #allocation4 [shape = 'f32[3,256]{1,0:T(4,128)}', space=vmem, size = 0x1000, scoped, tag = 'scratch operand']
  #allocation5 [shape = 'f32[3,128]{1,0:T(4,128)}', space=vmem, size = 0x800, scoped, tag = 'scratch operand']
  %s0 = inlined_call_operand.vmem [shape: bf16[768,256], index: 0, kind: input, shape index: {}]
  %s1 = inlined_call_operand.vmem [shape: f32[768,128], index: 1, kind: input, shape index: {}]
  %s2 = inlined_call_operand.vmem [shape: bf16[256,256], index: 2, kind: input, shape index: {}]
  %s3 = inlined_call_operand.vmem [shape: bf16[256,256], index: 3, kind: input, shape index: {}]
  %s4 = inlined_call_operand.vmem [shape: f32[1,256], index: 4, kind: input, shape index: {}]
  %s5 = inlined_call_operand.vmem [shape: bf16[128,256], index: 5, kind: input, shape index: {}]
  %s6 = inlined_call_operand.vmem [shape: bf16[256,128], index: 6, kind: input, shape index: {}]
  %s7 = inlined_call_operand.vmem [shape: f32[768,128], index: 7, kind: output, shape index: {0}]
  %s8 = inlined_call_operand.vmem [shape: f32[768,256], index: 8, kind: output, shape index: {1}]
  %9 = xla_tuple %s7, %s8
  %s10 = sld [smem:[#allocation0]]
  $region109: #{st_vae_forward.1} parent=0
    _
  %s12 = ssub.s32 1, %s10
  %s13 = scalar_select 0, %s12, %s10
  loop: start=0, step=1, limit=14
  $region2: #{st_vae_forward.1} parent=0 // loop_pre_header
    _
  $region3: #{st_vae_forward.1} parent=0 // loop_header
    %s15 = sphi 0, %s19
    %p16 = scmp.ge.s32.totalorder %s15, 14
    %s22 = sphi 0, %s34
    %s23 = sphi 0, %s30
    %s24 = sphi 0, %s22
    %s25 = sphi 0, %s23
    %s26 = sphi 0, %s24
    %s27 = sphi 0, %s25
    %s41 = sphi 0, %s43
    %s44 = sphi 0, %s41
    %s45 = sphi 0, %s44
    %s61 = sphi 0, %s45
    %s75 = sphi 0, %s77
    %s78 = sphi 0, %s75
    %s79 = sphi 0, %s78
    %s95 = sphi 0, %s79
    %s99 = sphi 0, %s99
    %s101 = sphi 0, %s99
    %s102 = sphi 0, %s101
    %s116 = sphi 0, %s102
    %s120 = sphi 0, %s120
    %s122 = sphi 0, %s120
    %s123 = sphi 0, %s122
    %s137 = sphi 0, %s123
    %s141 = sphi 0, %s141
    %s143 = sphi 0, %s141
    %s144 = sphi 0, %s143
    %s158 = sphi 0, %s144
    %s162 = sphi 0, %s162
    %s164 = sphi 0, %s162
    %s165 = sphi 0, %s164
    %s179 = sphi 0, %s165
    %s183 = sphi 0, %s183
    %s185 = sphi 0, %s183
    %s186 = sphi 0, %s185
    %s200 = sphi 0, %s186
    %s210 = sphi 0, %s212
    %s213 = sphi 0, %s210
    %s214 = sphi 0, %s213
    %s230 = sphi 0, %s214
    %s244 = sphi 0, %s246
    %s247 = sphi 0, %s244
    %s248 = sphi 0, %s247
    %s264 = sphi 0, %s248
  $region4: #{st_vae_forward.1} parent=0 // loop_header_branch
    %18 = sbr.rel (%p16) target = $region8
  $region5: #{st_vae_forward.1} parent=0 // loop_body
    %s20 = ssub.s32 %s15, 1
    %s21 = ssub.s32 %s15, 2
    %s28 = sadd.s32 1, %s23
    %p29 = scmp.ge.s32.totalorder %s28, 3
    %s30 = scalar_select %p29, 0, %s28
    %s31 = sadd.s32 1, %s22
    %s32 = scalar_select %p29, %s31, %s22
    %p33 = scmp.ge.s32.totalorder %s32, 4
    %s34 = scalar_select %p33, 0, %s32
    %p35 = scmp.le.s32.totalorder %s22, 1
    %s36 = scalar_select %p35, %s23, 2
    %p37 = scmp.le.s32.totalorder %s34, 1
    %s38 = scalar_select %p37, %s30, 2
    %s39 = ssub.s32 %s36, %s38
    %p40 = scmp.eq.s32.totalorder %s39, 0
    %s42 = sadd.s32 %s41, 1
    %s43 = scalar_select %p40, %s41, %s42
    %p46 = pneg %p40
    %p47 = scmp.eq.s32.totalorder %s15, 11
    %p48 = por %p46, %p47
    %p49 = scmp.ne.s32.totalorder %s41, %s44
    %p50 = scmp.eq.s32.totalorder %s15, 0
    %p51 = por %p49, %p50
    %p52 = scmp.ne.s32.totalorder %s41, %s44
    %p53 = scmp.eq.s32.totalorder %s20, 11
    %p54 = por %p52, %p53
    %p55 = scmp.ne.s32.totalorder %s44, %s45
    %p56 = scmp.eq.s32.totalorder %s20, 0
    %p57 = por %p55, %p56
    %p58 = scmp.ne.s32.totalorder %s44, %s45
    %p59 = scmp.eq.s32.totalorder %s21, 11
    %p60 = por %p58, %p59
    %p62 = scmp.ne.s32.totalorder %s45, %s61
    %p63 = scmp.eq.s32.totalorder %s21, 0
    %p64 = por %p62, %p63
    %p65 = scmp.eq.s32.totalorder %s22, 1
    %p66 = scmp.eq.s32.totalorder %s22, 0
    %s67 = scalar_select %p66, 0, 2
    %s68 = scalar_select %p65, %s23, %s67
    %p69 = scmp.eq.s32.totalorder %s34, 1
    %p70 = scmp.eq.s32.totalorder %s34, 0
    %s71 = scalar_select %p70, 0, 2
    %s72 = scalar_select %p69, %s30, %s71
    %s73 = ssub.s32 %s68, %s72
    %p74 = scmp.eq.s32.totalorder %s73, 0
    %s76 = sadd.s32 %s75, 1
    %s77 = scalar_select %p74, %s75, %s76
    %p80 = pneg %p74
    %p81 = scmp.eq.s32.totalorder %s15, 11
    %p82 = por %p80, %p81
    %p83 = scmp.ne.s32.totalorder %s75, %s78
    %p84 = scmp.eq.s32.totalorder %s15, 0
    %p85 = por %p83, %p84
    %p86 = scmp.ne.s32.totalorder %s75, %s78
    %p87 = scmp.eq.s32.totalorder %s20, 11
    %p88 = por %p86, %p87
    %p89 = scmp.ne.s32.totalorder %s78, %s79
    %p90 = scmp.eq.s32.totalorder %s20, 0
    %p91 = por %p89, %p90
    %p92 = scmp.ne.s32.totalorder %s78, %s79
    %p93 = scmp.eq.s32.totalorder %s21, 11
    %p94 = por %p92, %p93
    %p96 = scmp.ne.s32.totalorder %s79, %s95
    %p97 = scmp.eq.s32.totalorder %s21, 0
    %p98 = por %p96, %p97
    %s100 = sadd.s32 %s99, 1
    %p103 = scmp.eq.s32.totalorder %s15, 11
    %p104 = scmp.ne.s32.totalorder %s99, %s101
    %p105 = scmp.eq.s32.totalorder %s15, 0
    %p106 = por %p104, %p105
    %p107 = scmp.ne.s32.totalorder %s99, %s101
    %p108 = scmp.eq.s32.totalorder %s20, 11
    %p109 = por %p107, %p108
    %p110 = scmp.ne.s32.totalorder %s101, %s102
    %p111 = scmp.eq.s32.totalorder %s20, 0
    %p112 = por %p110, %p111
    %p113 = scmp.ne.s32.totalorder %s101, %s102
    %p114 = scmp.eq.s32.totalorder %s21, 11
    %p115 = por %p113, %p114
    %p117 = scmp.ne.s32.totalorder %s102, %s116
    %p118 = scmp.eq.s32.totalorder %s21, 0
    %p119 = por %p117, %p118
    %s121 = sadd.s32 %s120, 1
    %p124 = scmp.eq.s32.totalorder %s15, 11
    %p125 = scmp.ne.s32.totalorder %s120, %s122
    %p126 = scmp.eq.s32.totalorder %s15, 0
    %p127 = por %p125, %p126
    %p128 = scmp.ne.s32.totalorder %s120, %s122
    %p129 = scmp.eq.s32.totalorder %s20, 11
    %p130 = por %p128, %p129
    %p131 = scmp.ne.s32.totalorder %s122, %s123
    %p132 = scmp.eq.s32.totalorder %s20, 0
    %p133 = por %p131, %p132
    %p134 = scmp.ne.s32.totalorder %s122, %s123
    %p135 = scmp.eq.s32.totalorder %s21, 11
    %p136 = por %p134, %p135
    %p138 = scmp.ne.s32.totalorder %s123, %s137
    %p139 = scmp.eq.s32.totalorder %s21, 0
    %p140 = por %p138, %p139
    %s142 = sadd.s32 %s141, 1
    %p145 = scmp.eq.s32.totalorder %s15, 11
    %p146 = scmp.ne.s32.totalorder %s141, %s143
    %p147 = scmp.eq.s32.totalorder %s15, 0
    %p148 = por %p146, %p147
    %p149 = scmp.ne.s32.totalorder %s141, %s143
    %p150 = scmp.eq.s32.totalorder %s20, 11
    %p151 = por %p149, %p150
    %p152 = scmp.ne.s32.totalorder %s143, %s144
    %p153 = scmp.eq.s32.totalorder %s20, 0
    %p154 = por %p152, %p153
    %p155 = scmp.ne.s32.totalorder %s143, %s144
    %p156 = scmp.eq.s32.totalorder %s21, 11
    %p157 = por %p155, %p156
    %p159 = scmp.ne.s32.totalorder %s144, %s158
    %p160 = scmp.eq.s32.totalorder %s21, 0
    %p161 = por %p159, %p160
    %s163 = sadd.s32 %s162, 1
    %p166 = scmp.eq.s32.totalorder %s15, 11
    %p167 = scmp.ne.s32.totalorder %s162, %s164
    %p168 = scmp.eq.s32.totalorder %s15, 0
    %p169 = por %p167, %p168
    %p170 = scmp.ne.s32.totalorder %s162, %s164
    %p171 = scmp.eq.s32.totalorder %s20, 11
    %p172 = por %p170, %p171
    %p173 = scmp.ne.s32.totalorder %s164, %s165
    %p174 = scmp.eq.s32.totalorder %s20, 0
    %p175 = por %p173, %p174
    %p176 = scmp.ne.s32.totalorder %s164, %s165
    %p177 = scmp.eq.s32.totalorder %s21, 11
    %p178 = por %p176, %p177
    %p180 = scmp.ne.s32.totalorder %s165, %s179
    %p181 = scmp.eq.s32.totalorder %s21, 0
    %p182 = por %p180, %p181
    %s184 = sadd.s32 %s183, 1
    %p187 = scmp.eq.s32.totalorder %s15, 11
    %p188 = scmp.ne.s32.totalorder %s183, %s185
    %p189 = scmp.eq.s32.totalorder %s15, 0
    %p190 = por %p188, %p189
    %p191 = scmp.ne.s32.totalorder %s183, %s185
    %p192 = scmp.eq.s32.totalorder %s20, 11
    %p193 = por %p191, %p192
    %p194 = scmp.ne.s32.totalorder %s185, %s186
    %p195 = scmp.eq.s32.totalorder %s20, 0
    %p196 = por %p194, %p195
    %p197 = scmp.ne.s32.totalorder %s185, %s186
    %p198 = scmp.eq.s32.totalorder %s21, 11
    %p199 = por %p197, %p198
    %p201 = scmp.ne.s32.totalorder %s186, %s200
    %p202 = scmp.eq.s32.totalorder %s21, 0
    %p203 = por %p201, %p202
    %p204 = scmp.eq.s32.totalorder %s22, 3
    %s205 = scalar_select %p204, %s23, 0
    %p206 = scmp.eq.s32.totalorder %s34, 3
    %s207 = scalar_select %p206, %s30, 0
    %s208 = ssub.s32 %s205, %s207
    %p209 = scmp.eq.s32.totalorder %s208, 0
    %s211 = sadd.s32 %s210, 1
    %s212 = scalar_select %p209, %s210, %s211
    %p215 = pneg %p209
    %p216 = scmp.eq.s32.totalorder %s15, 11
    %p217 = por %p215, %p216
    %p218 = scmp.ne.s32.totalorder %s210, %s213
    %p219 = scmp.eq.s32.totalorder %s15, 0
    %p220 = por %p218, %p219
    %p221 = scmp.ne.s32.totalorder %s210, %s213
    %p222 = scmp.eq.s32.totalorder %s20, 11
    %p223 = por %p221, %p222
    %p224 = scmp.ne.s32.totalorder %s213, %s214
    %p225 = scmp.eq.s32.totalorder %s20, 0
    %p226 = por %p224, %p225
    %p227 = scmp.ne.s32.totalorder %s213, %s214
    %p228 = scmp.eq.s32.totalorder %s21, 11
    %p229 = por %p227, %p228
    %p231 = scmp.ne.s32.totalorder %s214, %s230
    %p232 = scmp.eq.s32.totalorder %s21, 0
    %p233 = por %p231, %p232
    %p234 = scmp.eq.s32.totalorder %s22, 1
    %p235 = scmp.eq.s32.totalorder %s22, 0
    %s236 = scalar_select %p235, 0, 2
    %s237 = scalar_select %p234, %s23, %s236
    %p238 = scmp.eq.s32.totalorder %s34, 1
    %p239 = scmp.eq.s32.totalorder %s34, 0
    %s240 = scalar_select %p239, 0, 2
    %s241 = scalar_select %p238, %s30, %s240
    %s242 = ssub.s32 %s237, %s241
    %p243 = scmp.eq.s32.totalorder %s242, 0
    %s245 = sadd.s32 %s244, 1
    %s246 = scalar_select %p243, %s244, %s245
    %p249 = pneg %p243
    %p250 = scmp.eq.s32.totalorder %s15, 11
    %p251 = por %p249, %p250
    %p252 = scmp.ne.s32.totalorder %s244, %s247
    %p253 = scmp.eq.s32.totalorder %s15, 0
    %p254 = por %p252, %p253
    %p255 = scmp.ne.s32.totalorder %s244, %s247
    %p256 = scmp.eq.s32.totalorder %s20, 11
    %p257 = por %p255, %p256
    %p258 = scmp.ne.s32.totalorder %s247, %s248
    %p259 = scmp.eq.s32.totalorder %s20, 0
    %p260 = por %p258, %p259
    %p261 = scmp.ne.s32.totalorder %s247, %s248
    %p262 = scmp.eq.s32.totalorder %s21, 11
    %p263 = por %p261, %p262
    %p265 = scmp.ne.s32.totalorder %s248, %s264
    %p266 = scmp.eq.s32.totalorder %s21, 0
    %p267 = por %p265, %p266
    %p268 = scmp.le.s32.totalorder 1, %s15
    %p269 = scmp.lt.s32.totalorder %s15, 13
    %p270 = pnand %p268, %p269
    %p271 = pneg %p270
    // Predicated region
    $region9: #{st_vae_forward.1} parent=5 // pred_check
      _
    $region10: #{st_vae_forward.1} parent=5 // pred_check_branch
      %273 = sbr.rel (%p270) target = $region12
    $region11: #{st_vae_forward.1} parent=5 // pred_region
      %s274 = ssub.s32 %s15, 1
      // Predicated region
      $region13: #{st_vae_forward.1} parent=11 // pred_check
        %p275 = pneg %p112
      $region14: #{st_vae_forward.1} parent=11 // pred_check_branch
        %277 = sbr.rel (%p275) target = $region16
      $region15: #{st_vae_forward.1} parent=11 // pred_region
        _
      $region16: #{st_vae_forward.1} parent=11 // pred_fallthru
        _
      // Predicated region
      $region17: #{st_vae_forward.1} parent=11 // pred_check
        %p278 = pneg %p133
      $region18: #{st_vae_forward.1} parent=11 // pred_check_branch
        %280 = sbr.rel (%p278) target = $region20
      $region19: #{st_vae_forward.1} parent=11 // pred_region
        _
      $region20: #{st_vae_forward.1} parent=11 // pred_fallthru
        _
      // Predicated region
      $region21: #{st_vae_forward.1} parent=11 // pred_check
        %p281 = pneg %p154
      $region22: #{st_vae_forward.1} parent=11 // pred_check_branch
        %283 = sbr.rel (%p281) target = $region24
      $region23: #{st_vae_forward.1} parent=11 // pred_region
        _
      $region24: #{st_vae_forward.1} parent=11 // pred_fallthru
        _
      // Predicated region
      $region25: #{st_vae_forward.1} parent=11 // pred_check
        %p284 = pneg %p175
      $region26: #{st_vae_forward.1} parent=11 // pred_check_branch
        %286 = sbr.rel (%p284) target = $region28
      $region27: #{st_vae_forward.1} parent=11 // pred_region
        _
      $region28: #{st_vae_forward.1} parent=11 // pred_fallthru
        _
      // Predicated region
      $region29: #{st_vae_forward.1} parent=11 // pred_check
        %p287 = pneg %p196
      $region30: #{st_vae_forward.1} parent=11 // pred_check_branch
        %289 = sbr.rel (%p287) target = $region32
      $region31: #{st_vae_forward.1} parent=11 // pred_region
        _
      $region32: #{st_vae_forward.1} parent=11 // pred_fallthru
        _
    $region12: #{st_vae_forward.1} parent=5 // pred_fallthru
      _
    %p290 = scmp.lt.s32.totalorder %s15, 12
    // Predicated region
    $region33: #{st_vae_forward.1} parent=5 // pred_check
      %p291 = pneg %p290
    $region34: #{st_vae_forward.1} parent=5 // pred_check_branch
      %293 = sbr.rel (%p291) target = $region36
    $region35: #{st_vae_forward.1} parent=5 // pred_region
      // Predicated region
      $region37: #{st_vae_forward.1} parent=35 // pred_check
        %p294 = pneg %p51
      $region38: #{st_vae_forward.1} parent=35 // pred_check_branch
        %296 = sbr.rel (%p294) target = $region40
      $region39: #{st_vae_forward.1} parent=35 // pred_region
        %p297 = scmp.le.s32.totalorder %s22, 1
        %s298 = scalar_select %p297, %s23, 2
        %s299 = smul.u32 32, %s298
        %p300 = scmp.lt.s32.totalorder %s299, 95
        %s301 = scalar_select %p300, %s299, 95
        %s302 = smul.addr %s301, 2
        %s303 = smul.addr %s302, 4
        %s304 = scalar_lea.vmem %s0, %s303
        %p305 = scmp.le.s32.totalorder %s22, 1
        %s306 = scalar_select %p305, %s23, 2
        %s307 = smul.u32 32, %s306
      $region40: #{st_vae_forward.1} parent=35 // pred_fallthru
        _
      // Predicated region
      $region41: #{st_vae_forward.1} parent=35 // pred_check
        %p308 = pneg %p85
      $region42: #{st_vae_forward.1} parent=35 // pred_check_branch
        %310 = sbr.rel (%p308) target = $region44
      $region43: #{st_vae_forward.1} parent=35 // pred_region
        %p311 = scmp.eq.s32.totalorder %s22, 1
        %p312 = scmp.eq.s32.totalorder %s22, 0
        %s313 = scalar_select %p312, 0, 2
        %s314 = scalar_select %p311, %s23, %s313
        %s315 = smul.u32 32, %s314
        %p316 = scmp.lt.s32.totalorder %s315, 95
        %s317 = scalar_select %p316, %s315, 95
        %s318 = smul.addr %s317, 8
        %s319 = scalar_lea.vmem %s1, %s318
        %p320 = scmp.eq.s32.totalorder %s22, 1
        %p321 = scmp.eq.s32.totalorder %s22, 0
        %s322 = scalar_select %p321, 0, 2
        %s323 = scalar_select %p320, %s23, %s322
        %s324 = smul.u32 32, %s323
      $region44: #{st_vae_forward.1} parent=35 // pred_fallthru
        _
    $region36: #{st_vae_forward.1} parent=5 // pred_fallthru
      _
    %p325 = scmp.le.s32.totalorder 1, %s15
    %p326 = scmp.lt.s32.totalorder %s15, 13
    %p327 = pnand %p325, %p326
    %p328 = pneg %p327
    // Predicated region
    $region45: #{st_vae_forward.1} parent=5 // pred_check
      _
    $region46: #{st_vae_forward.1} parent=5 // pred_check_branch
      %330 = sbr.rel (%p327) target = $region48
    $region47: #{st_vae_forward.1} parent=5 // pred_region
      %s331 = ssub.s32 %s15, 1
      %p332 = scmp.le.s32.totalorder %s24, 1
      %s333 = scalar_select %p332, %s25, 2
      %s334 = smul.u32 32, %s333
      %p335 = scmp.lt.s32.totalorder %s334, 95
      %s336 = scalar_select %p335, %s334, 95
      %s337 = smul.addr %s336, 2
      %s338 = smul.addr %s337, 4
      %s339 = scalar_lea.vmem %s0, %s338
      %p340 = pneg %p57
      %p341 = pneg %p54
      %p342 = scmp.eq.s32.totalorder %s24, 1
      %p343 = scmp.eq.s32.totalorder %s24, 0
      %s344 = scalar_select %p343, 0, 2
      %s345 = scalar_select %p342, %s25, %s344
      %s346 = smul.u32 32, %s345
      %p347 = scmp.lt.s32.totalorder %s346, 95
      %s348 = scalar_select %p347, %s346, 95
      %s349 = smul.addr %s348, 8
      %s350 = scalar_lea.vmem %s1, %s349
      %p351 = pneg %p91
      %p352 = pneg %p88
      %p353 = pneg %p112
      %p354 = pneg %p109
      %p355 = pneg %p133
      %p356 = pneg %p130
      %p357 = pneg %p154
      %p358 = pneg %p151
      %p359 = pneg %p175
      %p360 = pneg %p172
      %p361 = pneg %p196
      %p362 = pneg %p193
      %p363 = pneg %p226
      %p364 = pneg %p223
      %p365 = scmp.eq.s32.totalorder %s24, 3
      %s366 = scalar_select %p365, %s25, 0
      %s367 = smul.u32 32, %s366
      %p368 = scmp.lt.s32.totalorder %s367, 95
      %s369 = scalar_select %p368, %s367, 95
      %s370 = smul.addr %s369, 8
      %s371 = scalar_lea.vmem %s7, %s370
      %p372 = pneg %p260
      %p373 = pneg %p257
      %p374 = scmp.eq.s32.totalorder %s24, 1
      %p375 = scmp.eq.s32.totalorder %s24, 0
      %s376 = scalar_select %p375, 0, 2
      %s377 = scalar_select %p374, %s25, %s376
      %s378 = smul.u32 32, %s377
      %p379 = scmp.lt.s32.totalorder %s378, 95
      %s380 = scalar_select %p379, %s378, 95
      %s381 = smul.addr %s380, 2
      %s382 = smul.addr %s381, 8
      %s383 = scalar_lea.vmem %s8, %s382
      %p384 = scmp.le.s32.totalorder %s24, 1
      %s385 = scalar_select %p384, %s25, 2
      %s386 = smul.u32 32, %s385
      %p387 = scmp.lt.s32.totalorder %s386, 95
      %s388 = scalar_select %p387, %s386, 95
      %s389 = smul.addr %s388, 2
      %s390 = smul.addr %s389, 4
      %s391 = scalar_lea.vmem %s0, %s390
      %p392 = scmp.le.s32.totalorder %s24, 1
      %s393 = scalar_select %p392, %s25, 2
      %s394 = smul.u32 32, %s393
      %p395 = scmp.eq.s32.totalorder %s24, 1
      %p396 = scmp.eq.s32.totalorder %s24, 0
      %s397 = scalar_select %p396, 0, 2
      %s398 = scalar_select %p395, %s25, %s397
      %s399 = smul.u32 32, %s398
      %p400 = scmp.lt.s32.totalorder %s399, 95
      %s401 = scalar_select %p400, %s399, 95
      %s402 = smul.addr %s401, 8
      %s403 = scalar_lea.vmem %s1, %s402
      %p404 = scmp.eq.s32.totalorder %s24, 1
      %p405 = scmp.eq.s32.totalorder %s24, 0
      %s406 = scalar_select %p405, 0, 2
      %s407 = scalar_select %p404, %s25, %s406
      %s408 = smul.u32 32, %s407
      %p409 = scmp.eq.s32.totalorder %s24, 3
      %s410 = scalar_select %p409, %s25, 0
      %s411 = smul.u32 32, %s410
      %p412 = scmp.lt.s32.totalorder %s411, 95
      %s413 = scalar_select %p412, %s411, 95
      %s414 = smul.addr %s413, 8
      %s415 = scalar_lea.vmem %s7, %s414
      %p416 = scmp.eq.s32.totalorder %s24, 3
      %s417 = scalar_select %p416, %s25, 0
      %s418 = smul.u32 32, %s417
      %p419 = scmp.eq.s32.totalorder %s24, 1
      %p420 = scmp.eq.s32.totalorder %s24, 0
      %s421 = scalar_select %p420, 0, 2
      %s422 = scalar_select %p419, %s25, %s421
      %s423 = smul.u32 32, %s422
      %p424 = scmp.lt.s32.totalorder %s423, 95
      %s425 = scalar_select %p424, %s423, 95
      %s426 = smul.addr %s425, 2
      %s427 = smul.addr %s426, 8
      %s428 = scalar_lea.vmem %s8, %s427
      %p429 = scmp.eq.s32.totalorder %s24, 1
      %p430 = scmp.eq.s32.totalorder %s24, 0
      %s431 = scalar_select %p430, 0, 2
      %s432 = scalar_select %p429, %s25, %s431
      %s433 = smul.u32 32, %s432
      %s435 = smul.u32 %s25, 256
      %v436 = vlaneseq
      %v437 = vshrl.u32 %v436, 7
      %v438 = vadd.s32 %v437, 8
      %v439 = vadd.s32 %v437, 16
      %v440 = vadd.s32 %v437, 24
      %v441 = vadd.s32 %v437, 32
      %v442 = vadd.s32 %v437, 40
      %v443 = vadd.s32 %v437, 48
      %v444 = vadd.s32 %v437, 56
      %v445 = vadd.s32 %v437, 64
      %v446 = vadd.s32 %v437, 72
      %v447 = vadd.s32 %v437, 80
      %v448 = vadd.s32 %v437, 88
      %v449 = vadd.s32 %v437, 96
      %v450 = vadd.s32 %v437, 104
      %v451 = vadd.s32 %v437, 112
      %v452 = vadd.s32 %v437, 120
      %v453 = vadd.s32 %v437, 128
      %v454 = vadd.s32 %v437, 136
      %v455 = vadd.s32 %v437, 144
      %v456 = vadd.s32 %v437, 152
      %v457 = vadd.s32 %v437, 160
      %v458 = vadd.s32 %v437, 168
      %v459 = vadd.s32 %v437, 176
      %v460 = vadd.s32 %v437, 184
      %v461 = vadd.s32 %v437, 192
      %v462 = vadd.s32 %v437, 200
      %v463 = vadd.s32 %v437, 208
      %v464 = vadd.s32 %v437, 216
      %v465 = vadd.s32 %v437, 224
      %v466 = vadd.s32 %v437, 232
      %v467 = vadd.s32 %v437, 240
      %v468 = vadd.s32 %v437, 248
      %v469 = vstv %s435
      %v470 = vadd.s32 %v469, %v437
      %v471 = vadd.s32 %v469, %v438
      %v472 = vadd.s32 %v469, %v439
      %v473 = vadd.s32 %v469, %v440
      %v474 = vadd.s32 %v469, %v441
      %v475 = vadd.s32 %v469, %v442
      %v476 = vadd.s32 %v469, %v443
      %v477 = vadd.s32 %v469, %v444
      %v478 = vadd.s32 %v469, %v445
      %v479 = vadd.s32 %v469, %v446
      %v480 = vadd.s32 %v469, %v447
      %v481 = vadd.s32 %v469, %v448
      %v482 = vadd.s32 %v469, %v449
      %v483 = vadd.s32 %v469, %v450
      %v484 = vadd.s32 %v469, %v451
      %v485 = vadd.s32 %v469, %v452
      %v486 = vadd.s32 %v469, %v453
      %v487 = vadd.s32 %v469, %v454
      %v488 = vadd.s32 %v469, %v455
      %v489 = vadd.s32 %v469, %v456
      %v490 = vadd.s32 %v469, %v457
      %v491 = vadd.s32 %v469, %v458
      %v492 = vadd.s32 %v469, %v459
      %v493 = vadd.s32 %v469, %v460
      %v494 = vadd.s32 %v469, %v461
      %v495 = vadd.s32 %v469, %v462
      %v496 = vadd.s32 %v469, %v463
      %v497 = vadd.s32 %v469, %v464
      %v498 = vadd.s32 %v469, %v465
      %v499 = vadd.s32 %v469, %v466
      %v500 = vadd.s32 %v469, %v467
      %v501 = vadd.s32 %v469, %v468
      %vm502 = vcmp.lt.s32.totalorder %v470, 600
      %vm503 = vcmp.lt.s32.totalorder %v471, 600
      %vm504 = vcmp.lt.s32.totalorder %v472, 600
      %vm505 = vcmp.lt.s32.totalorder %v473, 600
      %vm506 = vcmp.lt.s32.totalorder %v474, 600
      %vm507 = vcmp.lt.s32.totalorder %v475, 600
      %vm508 = vcmp.lt.s32.totalorder %v476, 600
      %vm509 = vcmp.lt.s32.totalorder %v477, 600
      %vm510 = vcmp.lt.s32.totalorder %v478, 600
      %vm511 = vcmp.lt.s32.totalorder %v479, 600
      %vm512 = vcmp.lt.s32.totalorder %v480, 600
      %vm513 = vcmp.lt.s32.totalorder %v481, 600
      %vm514 = vcmp.lt.s32.totalorder %v482, 600
      %vm515 = vcmp.lt.s32.totalorder %v483, 600
      %vm516 = vcmp.lt.s32.totalorder %v484, 600
      %vm517 = vcmp.lt.s32.totalorder %v485, 600
      %vm518 = vcmp.lt.s32.totalorder %v486, 600
      %vm519 = vcmp.lt.s32.totalorder %v487, 600
      %vm520 = vcmp.lt.s32.totalorder %v488, 600
      %vm521 = vcmp.lt.s32.totalorder %v489, 600
      %vm522 = vcmp.lt.s32.totalorder %v490, 600
      %vm523 = vcmp.lt.s32.totalorder %v491, 600
      %vm524 = vcmp.lt.s32.totalorder %v492, 600
      %vm525 = vcmp.lt.s32.totalorder %v493, 600
      %vm526 = vcmp.lt.s32.totalorder %v494, 600
      %vm527 = vcmp.lt.s32.totalorder %v495, 600
      %vm528 = vcmp.lt.s32.totalorder %v496, 600
      %vm529 = vcmp.lt.s32.totalorder %v497, 600
      %vm530 = vcmp.lt.s32.totalorder %v498, 600
      %vm531 = vcmp.lt.s32.totalorder %v499, 600
      %vm532 = vcmp.lt.s32.totalorder %v500, 600
      %vm533 = vcmp.lt.s32.totalorder %v501, 600
      %v534 = vsel %vm502, 1, 0
      %v535 = vsel %vm503, 1, 0
      %v536 = vsel %vm504, 1, 0
      %v537 = vsel %vm505, 1, 0
      %v538 = vsel %vm506, 1, 0
      %v539 = vsel %vm507, 1, 0
      %v540 = vsel %vm508, 1, 0
      %v541 = vsel %vm509, 1, 0
      %v542 = vsel %vm510, 1, 0
      %v543 = vsel %vm511, 1, 0
      %v544 = vsel %vm512, 1, 0
      %v545 = vsel %vm513, 1, 0
      %v546 = vsel %vm514, 1, 0
      %v547 = vsel %vm515, 1, 0
      %v548 = vsel %vm516, 1, 0
      %v549 = vsel %vm517, 1, 0
      %v550 = vsel %vm518, 1, 0
      %v551 = vsel %vm519, 1, 0
      %v552 = vsel %vm520, 1, 0
      %v553 = vsel %vm521, 1, 0
      %v554 = vsel %vm522, 1, 0
      %v555 = vsel %vm523, 1, 0
      %v556 = vsel %vm524, 1, 0
      %v557 = vsel %vm525, 1, 0
      %v558 = vsel %vm526, 1, 0
      %v559 = vsel %vm527, 1, 0
      %v560 = vsel %vm528, 1, 0
      %v561 = vsel %vm529, 1, 0
      %v562 = vsel %vm530, 1, 0
      %v563 = vsel %vm531, 1, 0
      %v564 = vsel %vm532, 1, 0
      %v565 = vsel %vm533, 1, 0
      %v566 = vcvt.s32.f32 %v534
      %v567 = vcvt.s32.f32 %v535
      %v568 = vcvt.s32.f32 %v536
      %v569 = vcvt.s32.f32 %v537
      %v570 = vcvt.s32.f32 %v538
      %v571 = vcvt.s32.f32 %v539
      %v572 = vcvt.s32.f32 %v540
      %v573 = vcvt.s32.f32 %v541
      %v574 = vcvt.s32.f32 %v542
      %v575 = vcvt.s32.f32 %v543
      %v576 = vcvt.s32.f32 %v544
      %v577 = vcvt.s32.f32 %v545
      %v578 = vcvt.s32.f32 %v546
      %v579 = vcvt.s32.f32 %v547
      %v580 = vcvt.s32.f32 %v548
      %v581 = vcvt.s32.f32 %v549
      %v582 = vcvt.s32.f32 %v550
      %v583 = vcvt.s32.f32 %v551
      %v584 = vcvt.s32.f32 %v552
      %v585 = vcvt.s32.f32 %v553
      %v586 = vcvt.s32.f32 %v554
      %v587 = vcvt.s32.f32 %v555
      %v588 = vcvt.s32.f32 %v556
      %v589 = vcvt.s32.f32 %v557
      %v590 = vcvt.s32.f32 %v558
      %v591 = vcvt.s32.f32 %v559
      %v592 = vcvt.s32.f32 %v560
      %v593 = vcvt.s32.f32 %v561
      %v594 = vcvt.s32.f32 %v562
      %v595 = vcvt.s32.f32 %v563
      %v596 = vcvt.s32.f32 %v564
      %v597 = vcvt.s32.f32 %v565
      %p598 = scmp.eq.s32.totalorder %s24, 0
      // Predicated region
      $region49: #{st_vae_forward.1} parent=47 // pred_check
        %p599 = pneg %p598
      $region50: #{st_vae_forward.1} parent=47 // pred_check_branch
        %601 = sbr.rel (%p599) target = $region52
      $region51: #{st_vae_forward.1} parent=47 // pred_region
        %v602 = vld [vmem:[%s391] sm:$0xff]
        %v603 = vld [vmem:[%s391 + $0x8] sm:$0xff]
        %v604 = vld [vmem:[%s391 + $0x10] sm:$0xff]
        %v605 = vld [vmem:[%s391 + $0x18] sm:$0xff]
        %v606 = vld [vmem:[%s391 + $0x20] sm:$0xff]
        %v607 = vld [vmem:[%s391 + $0x28] sm:$0xff]
        %v608 = vld [vmem:[%s391 + $0x30] sm:$0xff]
        %v609 = vld [vmem:[%s391 + $0x38] sm:$0xff]
        %v610 = vld [vmem:[%s391 + $0x40] sm:$0xff]
        %v611 = vld [vmem:[%s391 + $0x48] sm:$0xff]
        %v612 = vld [vmem:[%s391 + $0x50] sm:$0xff]
        %v613 = vld [vmem:[%s391 + $0x58] sm:$0xff]
        %v614 = vld [vmem:[%s391 + $0x60] sm:$0xff]
        %v615 = vld [vmem:[%s391 + $0x68] sm:$0xff]
        %v616 = vld [vmem:[%s391 + $0x70] sm:$0xff]
        %v617 = vld [vmem:[%s391 + $0x78] sm:$0xff]
        %v618 = vld [vmem:[%s391 + $0x80] sm:$0xff]
        %v619 = vld [vmem:[%s391 + $0x88] sm:$0xff]
        %v620 = vld [vmem:[%s391 + $0x90] sm:$0xff]
        %v621 = vld [vmem:[%s391 + $0x98] sm:$0xff]
        %v622 = vld [vmem:[%s391 + $0xa0] sm:$0xff]
        %v623 = vld [vmem:[%s391 + $0xa8] sm:$0xff]
        %v624 = vld [vmem:[%s391 + $0xb0] sm:$0xff]
        %v625 = vld [vmem:[%s391 + $0xb8] sm:$0xff]
        %v626 = vld [vmem:[%s391 + $0xc0] sm:$0xff]
        %v627 = vld [vmem:[%s391 + $0xc8] sm:$0xff]
        %v628 = vld [vmem:[%s391 + $0xd0] sm:$0xff]
        %v629 = vld [vmem:[%s391 + $0xd8] sm:$0xff]
        %v630 = vld [vmem:[%s391 + $0xe0] sm:$0xff]
        %v631 = vld [vmem:[%s391 + $0xe8] sm:$0xff]
        %v632 = vld [vmem:[%s391 + $0xf0] sm:$0xff]
        %v633 = vld [vmem:[%s391 + $0xf8] sm:$0xff]
        %v634 = vld [vmem:[%s2] sm:$0xff]
        %v635 = vld [vmem:[%s2 + $0x8] sm:$0xff]
        %v636 = vld [vmem:[%s2 + $0x10] sm:$0xff]
        %v637 = vld [vmem:[%s2 + $0x18] sm:$0xff]
        %v638 = vld [vmem:[%s2 + $0x20] sm:$0xff]
        %v639 = vld [vmem:[%s2 + $0x28] sm:$0xff]
        %v640 = vld [vmem:[%s2 + $0x30] sm:$0xff]
        %v641 = vld [vmem:[%s2 + $0x38] sm:$0xff]
        %v642 = vld [vmem:[%s2 + $0x40] sm:$0xff]
        %v643 = vld [vmem:[%s2 + $0x48] sm:$0xff]
        %v644 = vld [vmem:[%s2 + $0x50] sm:$0xff]
        %v645 = vld [vmem:[%s2 + $0x58] sm:$0xff]
        %v646 = vld [vmem:[%s2 + $0x60] sm:$0xff]
        %v647 = vld [vmem:[%s2 + $0x68] sm:$0xff]
        %v648 = vld [vmem:[%s2 + $0x70] sm:$0xff]
        %v649 = vld [vmem:[%s2 + $0x78] sm:$0xff]
        %v650 = vld [vmem:[%s2 + $0x80] sm:$0xff]
        %v651 = vld [vmem:[%s2 + $0x88] sm:$0xff]
        %v652 = vld [vmem:[%s2 + $0x90] sm:$0xff]
        %v653 = vld [vmem:[%s2 + $0x98] sm:$0xff]
        %v654 = vld [vmem:[%s2 + $0xa0] sm:$0xff]
        %v655 = vld [vmem:[%s2 + $0xa8] sm:$0xff]
        %v656 = vld [vmem:[%s2 + $0xb0] sm:$0xff]
        %v657 = vld [vmem:[%s2 + $0xb8] sm:$0xff]
        %v658 = vld [vmem:[%s2 + $0xc0] sm:$0xff]
        %v659 = vld [vmem:[%s2 + $0xc8] sm:$0xff]
        %v660 = vld [vmem:[%s2 + $0xd0] sm:$0xff]
        %v661 = vld [vmem:[%s2 + $0xd8] sm:$0xff]
        %v662 = vld [vmem:[%s2 + $0xe0] sm:$0xff]
        %v663 = vld [vmem:[%s2 + $0xe8] sm:$0xff]
        %v664 = vld [vmem:[%s2 + $0xf0] sm:$0xff]
        %v665 = vld [vmem:[%s2 + $0xf8] sm:$0xff]
        %v698 = vunpack.c.l.b16 %v602
        %v699 = vunpack.c.h.b16 %v602
        %v700 = vunpack.c.l.b16 %v603
        %v701 = vunpack.c.h.b16 %v603
        %v702 = vunpack.c.l.b16 %v604
        %v703 = vunpack.c.h.b16 %v604
        %v704 = vunpack.c.l.b16 %v605
        %v705 = vunpack.c.h.b16 %v605
        %v706 = vunpack.c.l.b16 %v606
        %v707 = vunpack.c.h.b16 %v606
        %v708 = vunpack.c.l.b16 %v607
        %v709 = vunpack.c.h.b16 %v607
        %v710 = vunpack.c.l.b16 %v608
        %v711 = vunpack.c.h.b16 %v608
        %v712 = vunpack.c.l.b16 %v609
        %v713 = vunpack.c.h.b16 %v609
        %v714 = vunpack.c.l.b16 %v610
        %v715 = vunpack.c.h.b16 %v610
        %v716 = vunpack.c.l.b16 %v611
        %v717 = vunpack.c.h.b16 %v611
        %v718 = vunpack.c.l.b16 %v612
        %v719 = vunpack.c.h.b16 %v612
        %v720 = vunpack.c.l.b16 %v613
        %v721 = vunpack.c.h.b16 %v613
        %v722 = vunpack.c.l.b16 %v614
        %v723 = vunpack.c.h.b16 %v614
        %v724 = vunpack.c.l.b16 %v615
        %v725 = vunpack.c.h.b16 %v615
        %v726 = vunpack.c.l.b16 %v616
        %v727 = vunpack.c.h.b16 %v616
        %v728 = vunpack.c.l.b16 %v617
        %v729 = vunpack.c.h.b16 %v617
        %v730 = vunpack.c.l.b16 %v618
        %v731 = vunpack.c.h.b16 %v618
        %v732 = vunpack.c.l.b16 %v619
        %v733 = vunpack.c.h.b16 %v619
        %v734 = vunpack.c.l.b16 %v620
        %v735 = vunpack.c.h.b16 %v620
        %v736 = vunpack.c.l.b16 %v621
        %v737 = vunpack.c.h.b16 %v621
        %v738 = vunpack.c.l.b16 %v622
        %v739 = vunpack.c.h.b16 %v622
        %v740 = vunpack.c.l.b16 %v623
        %v741 = vunpack.c.h.b16 %v623
        %v742 = vunpack.c.l.b16 %v624
        %v743 = vunpack.c.h.b16 %v624
        %v744 = vunpack.c.l.b16 %v625
        %v745 = vunpack.c.h.b16 %v625
        %v746 = vunpack.c.l.b16 %v626
        %v747 = vunpack.c.h.b16 %v626
        %v748 = vunpack.c.l.b16 %v627
        %v749 = vunpack.c.h.b16 %v627
        %v750 = vunpack.c.l.b16 %v628
        %v751 = vunpack.c.h.b16 %v628
        %v752 = vunpack.c.l.b16 %v629
        %v753 = vunpack.c.h.b16 %v629
        %v754 = vunpack.c.l.b16 %v630
        %v755 = vunpack.c.h.b16 %v630
        %v756 = vunpack.c.l.b16 %v631
        %v757 = vunpack.c.h.b16 %v631
        %v758 = vunpack.c.l.b16 %v632
        %v759 = vunpack.c.h.b16 %v632
        %v760 = vunpack.c.l.b16 %v633
        %v761 = vunpack.c.h.b16 %v633
        %v762 = vpack.c.b16 %v700, %v698
        %v763 = vpack.c.b16 %v701, %v699
        %v764 = vpack.c.b16 %v704, %v702
        %v765 = vpack.c.b16 %v705, %v703
        %v766 = vpack.c.b16 %v708, %v706
        %v767 = vpack.c.b16 %v709, %v707
        %v768 = vpack.c.b16 %v712, %v710
        %v769 = vpack.c.b16 %v713, %v711
        %v770 = vpack.c.b16 %v716, %v714
        %v771 = vpack.c.b16 %v717, %v715
        %v772 = vpack.c.b16 %v720, %v718
        %v773 = vpack.c.b16 %v721, %v719
        %v774 = vpack.c.b16 %v724, %v722
        %v775 = vpack.c.b16 %v725, %v723
        %v776 = vpack.c.b16 %v728, %v726
        %v777 = vpack.c.b16 %v729, %v727
        %v778 = vpack.c.b16 %v732, %v730
        %v779 = vpack.c.b16 %v733, %v731
        %v780 = vpack.c.b16 %v736, %v734
        %v781 = vpack.c.b16 %v737, %v735
        %v782 = vpack.c.b16 %v740, %v738
        %v783 = vpack.c.b16 %v741, %v739
        %v784 = vpack.c.b16 %v744, %v742
        %v785 = vpack.c.b16 %v745, %v743
        %v786 = vpack.c.b16 %v748, %v746
        %v787 = vpack.c.b16 %v749, %v747
        %v788 = vpack.c.b16 %v752, %v750
        %v789 = vpack.c.b16 %v753, %v751
        %v790 = vpack.c.b16 %v756, %v754
        %v791 = vpack.c.b16 %v757, %v755
        %v792 = vpack.c.b16 %v760, %v758
        %v793 = vpack.c.b16 %v761, %v759
        %v858 = vunpack.c.l.b16 %v634
        %v859 = vunpack.c.h.b16 %v634
        %v860 = vunpack.c.l.b16 %v635
        %v861 = vunpack.c.h.b16 %v635
        %v862 = vunpack.c.l.b16 %v636
        %v863 = vunpack.c.h.b16 %v636
        %v864 = vunpack.c.l.b16 %v637
        %v865 = vunpack.c.h.b16 %v637
        %v866 = vunpack.c.l.b16 %v638
        %v867 = vunpack.c.h.b16 %v638
        %v868 = vunpack.c.l.b16 %v639
        %v869 = vunpack.c.h.b16 %v639
        %v870 = vunpack.c.l.b16 %v640
        %v871 = vunpack.c.h.b16 %v640
        %v872 = vunpack.c.l.b16 %v641
        %v873 = vunpack.c.h.b16 %v641
        %v874 = vunpack.c.l.b16 %v642
        %v875 = vunpack.c.h.b16 %v642
        %v876 = vunpack.c.l.b16 %v643
        %v877 = vunpack.c.h.b16 %v643
        %v878 = vunpack.c.l.b16 %v644
        %v879 = vunpack.c.h.b16 %v644
        %v880 = vunpack.c.l.b16 %v645
        %v881 = vunpack.c.h.b16 %v645
        %v882 = vunpack.c.l.b16 %v646
        %v883 = vunpack.c.h.b16 %v646
        %v884 = vunpack.c.l.b16 %v647
        %v885 = vunpack.c.h.b16 %v647
        %v886 = vunpack.c.l.b16 %v648
        %v887 = vunpack.c.h.b16 %v648
        %v888 = vunpack.c.l.b16 %v649
        %v889 = vunpack.c.h.b16 %v649
        %v890 = vunpack.c.l.b16 %v650
        %v891 = vunpack.c.h.b16 %v650
        %v892 = vunpack.c.l.b16 %v651
        %v893 = vunpack.c.h.b16 %v651
        %v894 = vunpack.c.l.b16 %v652
        %v895 = vunpack.c.h.b16 %v652
        %v896 = vunpack.c.l.b16 %v653
        %v897 = vunpack.c.h.b16 %v653
        %v898 = vunpack.c.l.b16 %v654
        %v899 = vunpack.c.h.b16 %v654
        %v900 = vunpack.c.l.b16 %v655
        %v901 = vunpack.c.h.b16 %v655
        %v902 = vunpack.c.l.b16 %v656
        %v903 = vunpack.c.h.b16 %v656
        %v904 = vunpack.c.l.b16 %v657
        %v905 = vunpack.c.h.b16 %v657
        %v906 = vunpack.c.l.b16 %v658
        %v907 = vunpack.c.h.b16 %v658
        %v908 = vunpack.c.l.b16 %v659
        %v909 = vunpack.c.h.b16 %v659
        %v910 = vunpack.c.l.b16 %v660
        %v911 = vunpack.c.h.b16 %v660
        %v912 = vunpack.c.l.b16 %v661
        %v913 = vunpack.c.h.b16 %v661
        %v914 = vunpack.c.l.b16 %v662
        %v915 = vunpack.c.h.b16 %v662
        %v916 = vunpack.c.l.b16 %v663
        %v917 = vunpack.c.h.b16 %v663
        %v918 = vunpack.c.l.b16 %v664
        %v919 = vunpack.c.h.b16 %v664
        %v920 = vunpack.c.l.b16 %v665
        %v921 = vunpack.c.h.b16 %v665
        %v922 = vpack.c.b16 %v860, %v858
        %v923 = vpack.c.b16 %v861, %v859
        %v924 = vpack.c.b16 %v864, %v862
        %v925 = vpack.c.b16 %v865, %v863
        %v926 = vpack.c.b16 %v868, %v866
        %v927 = vpack.c.b16 %v869, %v867
        %v928 = vpack.c.b16 %v872, %v870
        %v929 = vpack.c.b16 %v873, %v871
        %v930 = vpack.c.b16 %v876, %v874
        %v931 = vpack.c.b16 %v877, %v875
        %v932 = vpack.c.b16 %v880, %v878
        %v933 = vpack.c.b16 %v881, %v879
        %v934 = vpack.c.b16 %v884, %v882
        %v935 = vpack.c.b16 %v885, %v883
        %v936 = vpack.c.b16 %v888, %v886
        %v937 = vpack.c.b16 %v889, %v887
        %v938 = vpack.c.b16 %v892, %v890
        %v939 = vpack.c.b16 %v893, %v891
        %v940 = vpack.c.b16 %v896, %v894
        %v941 = vpack.c.b16 %v897, %v895
        %v942 = vpack.c.b16 %v900, %v898
        %v943 = vpack.c.b16 %v901, %v899
        %v944 = vpack.c.b16 %v904, %v902
        %v945 = vpack.c.b16 %v905, %v903
        %v946 = vpack.c.b16 %v908, %v906
        %v947 = vpack.c.b16 %v909, %v907
        %v948 = vpack.c.b16 %v912, %v910
        %v949 = vpack.c.b16 %v913, %v911
        %v950 = vpack.c.b16 %v916, %v914
        %v951 = vpack.c.b16 %v917, %v915
        %v952 = vpack.c.b16 %v920, %v918
        %v953 = vpack.c.b16 %v921, %v919
        %986 = vmatprep.subr.bf16.mxu0 %v937
        %987 = vmatpush1.bf16.msra.mxu0 %v936
        %988 = vmatprep.subr.bf16.mxu0 %v935
        %989 = vmatpush1.bf16.msra.mxu0 %v934
        %990 = vmatprep.subr.bf16.mxu0 %v933
        %991 = vmatpush1.bf16.msra.mxu0 %v932
        %992 = vmatprep.subr.bf16.mxu0 %v931
        %993 = vmatpush1.bf16.msra.mxu0 %v930
        %994 = vmatprep.subr.bf16.mxu0 %v929
        %995 = vmatpush1.bf16.msra.mxu0 %v928
        %996 = vmatprep.subr.bf16.mxu0 %v927
        %997 = vmatpush1.bf16.msra.mxu0 %v926
        %998 = vmatprep.subr.bf16.mxu0 %v925
        %999 = vmatpush1.bf16.msra.mxu0 %v924
        %1000 = vmatprep.subr.bf16.mxu0 %v923
        %1001 = vmatpush1.bf16.msra.mxu0 %v922
        %1002 = vmatprep.subr.bf16.mxu0 %v953
        %1003 = vmatpush2.bf16.msra.mxu0 %v952
        %1004 = vmatprep.subr.bf16.mxu0 %v951
        %1005 = vmatpush2.bf16.msra.mxu0 %v950
        %1006 = vmatprep.subr.bf16.mxu0 %v949
        %1007 = vmatpush2.bf16.msra.mxu0 %v948
        %1008 = vmatprep.subr.bf16.mxu0 %v947
        %1009 = vmatpush2.bf16.msra.mxu0 %v946
        %1010 = vmatprep.subr.bf16.mxu0 %v945
        %1011 = vmatpush2.bf16.msra.mxu0 %v944
        %1012 = vmatprep.subr.bf16.mxu0 %v943
        %1013 = vmatpush2.bf16.msra.mxu0 %v942
        %1014 = vmatprep.subr.bf16.mxu0 %v941
        %1015 = vmatpush2.bf16.msra.mxu0 %v940
        %1016 = vmatprep.subr.bf16.mxu0 %v939
        %1017 = vmatpush2.bf16.msra.mxu0 %v938
        %1018 = vmatprep.mubr.bf16.mxu0 %v763
        %1019 = vmatmul.mubr.bf16.gmra.mxu0 %v762
        %v1020 = vpop.f32.mrf.mxu0
        %v1021 = vadd.f32 0.0, %v1020
        %v1022 = vpop.f32.mrf.mxu0
        %v1023 = vadd.f32 0.0, %v1022
        %v1024 = vpop.f32.mrf.mxu0
        %v1025 = vadd.f32 0.0, %v1024
        %v1026 = vpop.f32.mrf.mxu0
        %v1027 = vadd.f32 0.0, %v1026
        %1028 = vmatprep.mubr.bf16.mxu0 %v765
        %1029 = vmatmul.mubr.bf16.gmra.mxu0 %v764
        %v1030 = vpop.f32.mrf.mxu0
        %v1031 = vadd.f32 0.0, %v1030
        %v1032 = vpop.f32.mrf.mxu0
        %v1033 = vadd.f32 0.0, %v1032
        %v1034 = vpop.f32.mrf.mxu0
        %v1035 = vadd.f32 0.0, %v1034
        %v1036 = vpop.f32.mrf.mxu0
        %v1037 = vadd.f32 0.0, %v1036
        %1038 = vmatprep.mubr.bf16.mxu0 %v767
        %1039 = vmatmul.mubr.bf16.gmra.mxu0 %v766
        %v1040 = vpop.f32.mrf.mxu0
        %v1041 = vadd.f32 0.0, %v1040
        %v1042 = vpop.f32.mrf.mxu0
        %v1043 = vadd.f32 0.0, %v1042
        %v1044 = vpop.f32.mrf.mxu0
        %v1045 = vadd.f32 0.0, %v1044
        %v1046 = vpop.f32.mrf.mxu0
        %v1047 = vadd.f32 0.0, %v1046
        %1048 = vmatprep.mubr.bf16.mxu0 %v769
        %1049 = vmatmul.mubr.bf16.gmra.mxu0 %v768
        %v1050 = vpop.f32.mrf.mxu0
        %v1051 = vadd.f32 0.0, %v1050
        %v1052 = vpop.f32.mrf.mxu0
        %v1053 = vadd.f32 0.0, %v1052
        %v1054 = vpop.f32.mrf.mxu0
        %v1055 = vadd.f32 0.0, %v1054
        %v1056 = vpop.f32.mrf.mxu0
        %v1057 = vadd.f32 0.0, %v1056
        %1058 = vmatprep.mubr.bf16.mxu0 %v771
        %1059 = vmatmul.mubr.bf16.gmra.mxu0 %v770
        %v1060 = vpop.f32.mrf.mxu0
        %v1061 = vadd.f32 0.0, %v1060
        %v1062 = vpop.f32.mrf.mxu0
        %v1063 = vadd.f32 0.0, %v1062
        %v1064 = vpop.f32.mrf.mxu0
        %v1065 = vadd.f32 0.0, %v1064
        %v1066 = vpop.f32.mrf.mxu0
        %v1067 = vadd.f32 0.0, %v1066
        %1068 = vmatprep.mubr.bf16.mxu0 %v773
        %1069 = vmatmul.mubr.bf16.gmra.mxu0 %v772
        %v1070 = vpop.f32.mrf.mxu0
        %v1071 = vadd.f32 0.0, %v1070
        %v1072 = vpop.f32.mrf.mxu0
        %v1073 = vadd.f32 0.0, %v1072
        %v1074 = vpop.f32.mrf.mxu0
        %v1075 = vadd.f32 0.0, %v1074
        %v1076 = vpop.f32.mrf.mxu0
        %v1077 = vadd.f32 0.0, %v1076
        %1078 = vmatprep.mubr.bf16.mxu0 %v775
        %1079 = vmatmul.mubr.bf16.gmra.mxu0 %v774
        %v1080 = vpop.f32.mrf.mxu0
        %v1081 = vadd.f32 0.0, %v1080
        %v1082 = vpop.f32.mrf.mxu0
        %v1083 = vadd.f32 0.0, %v1082
        %v1084 = vpop.f32.mrf.mxu0
        %v1085 = vadd.f32 0.0, %v1084
        %v1086 = vpop.f32.mrf.mxu0
        %v1087 = vadd.f32 0.0, %v1086
        %1088 = vmatprep.mubr.bf16.mxu0 %v777
        %1089 = vmatmul.mubr.bf16.gmra.mxu0 %v776
        %v1090 = vpop.f32.mrf.mxu0
        %v1091 = vadd.f32 0.0, %v1090
        %v1092 = vpop.f32.mrf.mxu0
        %v1093 = vadd.f32 0.0, %v1092
        %v1094 = vpop.f32.mrf.mxu0
        %v1095 = vadd.f32 0.0, %v1094
        %v1096 = vpop.f32.mrf.mxu0
        %v1097 = vadd.f32 0.0, %v1096
        %1098 = vmatprep.mubr.bf16.mxu0 %v779
        %1099 = vmatmul.mubr.bf16.gmra.mxu0 %v778
        %v1100 = vpop.f32.mrf.mxu0
        %v1101 = vadd.f32 0.0, %v1100
        %v1102 = vpop.f32.mrf.mxu0
        %v1103 = vadd.f32 0.0, %v1102
        %v1104 = vpop.f32.mrf.mxu0
        %v1105 = vadd.f32 0.0, %v1104
        %v1106 = vpop.f32.mrf.mxu0
        %v1107 = vadd.f32 0.0, %v1106
        %1108 = vmatprep.mubr.bf16.mxu0 %v781
        %1109 = vmatmul.mubr.bf16.gmra.mxu0 %v780
        %v1110 = vpop.f32.mrf.mxu0
        %v1111 = vadd.f32 0.0, %v1110
        %v1112 = vpop.f32.mrf.mxu0
        %v1113 = vadd.f32 0.0, %v1112
        %v1114 = vpop.f32.mrf.mxu0
        %v1115 = vadd.f32 0.0, %v1114
        %v1116 = vpop.f32.mrf.mxu0
        %v1117 = vadd.f32 0.0, %v1116
        %1118 = vmatprep.mubr.bf16.mxu0 %v783
        %1119 = vmatmul.mubr.bf16.gmra.mxu0 %v782
        %v1120 = vpop.f32.mrf.mxu0
        %v1121 = vadd.f32 0.0, %v1120
        %v1122 = vpop.f32.mrf.mxu0
        %v1123 = vadd.f32 0.0, %v1122
        %v1124 = vpop.f32.mrf.mxu0
        %v1125 = vadd.f32 0.0, %v1124
        %v1126 = vpop.f32.mrf.mxu0
        %v1127 = vadd.f32 0.0, %v1126
        %1128 = vmatprep.mubr.bf16.mxu0 %v785
        %1129 = vmatmul.mubr.bf16.gmra.mxu0 %v784
        %v1130 = vpop.f32.mrf.mxu0
        %v1131 = vadd.f32 0.0, %v1130
        %v1132 = vpop.f32.mrf.mxu0
        %v1133 = vadd.f32 0.0, %v1132
        %v1134 = vpop.f32.mrf.mxu0
        %v1135 = vadd.f32 0.0, %v1134
        %v1136 = vpop.f32.mrf.mxu0
        %v1137 = vadd.f32 0.0, %v1136
        %1138 = vmatprep.mubr.bf16.mxu0 %v787
        %1139 = vmatmul.mubr.bf16.gmra.mxu0 %v786
        %v1140 = vpop.f32.mrf.mxu0
        %v1141 = vadd.f32 0.0, %v1140
        %v1142 = vpop.f32.mrf.mxu0
        %v1143 = vadd.f32 0.0, %v1142
        %v1144 = vpop.f32.mrf.mxu0
        %v1145 = vadd.f32 0.0, %v1144
        %v1146 = vpop.f32.mrf.mxu0
        %v1147 = vadd.f32 0.0, %v1146
        %1148 = vmatprep.mubr.bf16.mxu0 %v789
        %1149 = vmatmul.mubr.bf16.gmra.mxu0 %v788
        %v1150 = vpop.f32.mrf.mxu0
        %v1151 = vadd.f32 0.0, %v1150
        %v1152 = vpop.f32.mrf.mxu0
        %v1153 = vadd.f32 0.0, %v1152
        %v1154 = vpop.f32.mrf.mxu0
        %v1155 = vadd.f32 0.0, %v1154
        %v1156 = vpop.f32.mrf.mxu0
        %v1157 = vadd.f32 0.0, %v1156
        %1158 = vmatprep.mubr.bf16.mxu0 %v791
        %1159 = vmatmul.mubr.bf16.gmra.mxu0 %v790
        %v1160 = vpop.f32.mrf.mxu0
        %v1161 = vadd.f32 0.0, %v1160
        %v1162 = vpop.f32.mrf.mxu0
        %v1163 = vadd.f32 0.0, %v1162
        %v1164 = vpop.f32.mrf.mxu0
        %v1165 = vadd.f32 0.0, %v1164
        %v1166 = vpop.f32.mrf.mxu0
        %v1167 = vadd.f32 0.0, %v1166
        %1168 = vmatprep.mubr.bf16.mxu0 %v793
        %1169 = vmatmul.mubr.bf16.gmra.mxu0 %v792
        %v1170 = vpop.f32.mrf.mxu0
        %v1171 = vadd.f32 0.0, %v1170
        %v1172 = vpop.f32.mrf.mxu0
        %v1173 = vadd.f32 0.0, %v1172
        %v1174 = vpop.f32.mrf.mxu0
        %v1175 = vadd.f32 0.0, %v1174
        %v1176 = vpop.f32.mrf.mxu0
        %v1177 = vadd.f32 0.0, %v1176
        %1178 = vdwg.mxu0
        %p1179 = scmp.eq.s32.totalorder %s25, 0
        // Predicated region
        $region53: #{st_vae_forward.1} parent=51 // pred_check
          %p1180 = pneg %p1179
        $region54: #{st_vae_forward.1} parent=51 // pred_check_branch
          %1182 = sbr.rel (%p1180) target = $region56
        $region55: #{st_vae_forward.1} parent=51 // pred_region
          %v1183 = vmul.f32 %v1021, %v566
          %v1184 = vmul.f32 %v1023, %v566
          %v1185 = vmul.f32 %v1025, %v567
          %v1186 = vmul.f32 %v1027, %v567
          %v1187 = vmul.f32 %v1031, %v568
          %v1188 = vmul.f32 %v1033, %v568
          %v1189 = vmul.f32 %v1035, %v569
          %v1190 = vmul.f32 %v1037, %v569
          %v1191 = vmul.f32 %v1041, %v570
          %v1192 = vmul.f32 %v1043, %v570
          %v1193 = vmul.f32 %v1045, %v571
          %v1194 = vmul.f32 %v1047, %v571
          %v1195 = vmul.f32 %v1051, %v572
          %v1196 = vmul.f32 %v1053, %v572
          %v1197 = vmul.f32 %v1055, %v573
          %v1198 = vmul.f32 %v1057, %v573
          %v1199 = vmul.f32 %v1061, %v574
          %v1200 = vmul.f32 %v1063, %v574
          %v1201 = vmul.f32 %v1065, %v575
          %v1202 = vmul.f32 %v1067, %v575
          %v1203 = vmul.f32 %v1071, %v576
          %v1204 = vmul.f32 %v1073, %v576
          %v1205 = vmul.f32 %v1075, %v577
          %v1206 = vmul.f32 %v1077, %v577
          %v1207 = vmul.f32 %v1081, %v578
          %v1208 = vmul.f32 %v1083, %v578
          %v1209 = vmul.f32 %v1085, %v579
          %v1210 = vmul.f32 %v1087, %v579
          %v1211 = vmul.f32 %v1091, %v580
          %v1212 = vmul.f32 %v1093, %v580
          %v1213 = vmul.f32 %v1095, %v581
          %v1214 = vmul.f32 %v1097, %v581
          %v1215 = vmul.f32 %v1101, %v582
          %v1216 = vmul.f32 %v1103, %v582
          %v1217 = vmul.f32 %v1105, %v583
          %v1218 = vmul.f32 %v1107, %v583
          %v1219 = vmul.f32 %v1111, %v584
          %v1220 = vmul.f32 %v1113, %v584
          %v1221 = vmul.f32 %v1115, %v585
          %v1222 = vmul.f32 %v1117, %v585
          %v1223 = vmul.f32 %v1121, %v586
          %v1224 = vmul.f32 %v1123, %v586
          %v1225 = vmul.f32 %v1125, %v587
          %v1226 = vmul.f32 %v1127, %v587
          %v1227 = vmul.f32 %v1131, %v588
          %v1228 = vmul.f32 %v1133, %v588
          %v1229 = vmul.f32 %v1135, %v589
          %v1230 = vmul.f32 %v1137, %v589
          %v1231 = vmul.f32 %v1141, %v590
          %v1232 = vmul.f32 %v1143, %v590
          %v1233 = vmul.f32 %v1145, %v591
          %v1234 = vmul.f32 %v1147, %v591
          %v1235 = vmul.f32 %v1151, %v592
          %v1236 = vmul.f32 %v1153, %v592
          %v1237 = vmul.f32 %v1155, %v593
          %v1238 = vmul.f32 %v1157, %v593
          %v1239 = vmul.f32 %v1161, %v594
          %v1240 = vmul.f32 %v1163, %v594
          %v1241 = vmul.f32 %v1165, %v595
          %v1242 = vmul.f32 %v1167, %v595
          %v1243 = vmul.f32 %v1171, %v596
          %v1244 = vmul.f32 %v1173, %v596
          %v1245 = vmul.f32 %v1175, %v597
          %v1246 = vmul.f32 %v1177, %v597
          %v1247 = vadd.f32 %v1183, %v1185
          %v1248 = vadd.f32 %v1247, %v1187
          %v1249 = vadd.f32 %v1248, %v1189
          %v1250 = vadd.f32 %v1249, %v1191
          %v1251 = vadd.f32 %v1250, %v1193
          %v1252 = vadd.f32 %v1251, %v1195
          %v1253 = vadd.f32 %v1252, %v1197
          %v1254 = vadd.f32 %v1253, %v1199
          %v1255 = vadd.f32 %v1254, %v1201
          %v1256 = vadd.f32 %v1255, %v1203
          %v1257 = vadd.f32 %v1256, %v1205
          %v1258 = vadd.f32 %v1257, %v1207
          %v1259 = vadd.f32 %v1258, %v1209
          %v1260 = vadd.f32 %v1259, %v1211
          %v1261 = vadd.f32 %v1260, %v1213
          %v1262 = vadd.f32 %v1261, %v1215
          %v1263 = vadd.f32 %v1262, %v1217
          %v1264 = vadd.f32 %v1263, %v1219
          %v1265 = vadd.f32 %v1264, %v1221
          %v1266 = vadd.f32 %v1265, %v1223
          %v1267 = vadd.f32 %v1266, %v1225
          %v1268 = vadd.f32 %v1267, %v1227
          %v1269 = vadd.f32 %v1268, %v1229
          %v1270 = vadd.f32 %v1269, %v1231
          %v1271 = vadd.f32 %v1270, %v1233
          %v1272 = vadd.f32 %v1271, %v1235
          %v1273 = vadd.f32 %v1272, %v1237
          %v1274 = vadd.f32 %v1273, %v1239
          %v1275 = vadd.f32 %v1274, %v1241
          %v1276 = vadd.f32 %v1275, %v1243
          %v1277 = vadd.f32 %v1276, %v1245
          %v1278 = vrot.slane %v1277, 4
          %v1279 = vadd.f32 %v1277, %v1278
          %v1280 = vrot.slane %v1279, 2
          %v1281 = vadd.f32 %v1279, %v1280
          %v1282 = vrot.slane %v1281, 1
          %v1283 = vadd.f32 %v1281, %v1282
          %v1284 = vadd.f32 %v1184, %v1186
          %v1285 = vadd.f32 %v1284, %v1188
          %v1286 = vadd.f32 %v1285, %v1190
          %v1287 = vadd.f32 %v1286, %v1192
          %v1288 = vadd.f32 %v1287, %v1194
          %v1289 = vadd.f32 %v1288, %v1196
          %v1290 = vadd.f32 %v1289, %v1198
          %v1291 = vadd.f32 %v1290, %v1200
          %v1292 = vadd.f32 %v1291, %v1202
          %v1293 = vadd.f32 %v1292, %v1204
          %v1294 = vadd.f32 %v1293, %v1206
          %v1295 = vadd.f32 %v1294, %v1208
          %v1296 = vadd.f32 %v1295, %v1210
          %v1297 = vadd.f32 %v1296, %v1212
          %v1298 = vadd.f32 %v1297, %v1214
          %v1299 = vadd.f32 %v1298, %v1216
          %v1300 = vadd.f32 %v1299, %v1218
          %v1301 = vadd.f32 %v1300, %v1220
          %v1302 = vadd.f32 %v1301, %v1222
          %v1303 = vadd.f32 %v1302, %v1224
          %v1304 = vadd.f32 %v1303, %v1226
          %v1305 = vadd.f32 %v1304, %v1228
          %v1306 = vadd.f32 %v1305, %v1230
          %v1307 = vadd.f32 %v1306, %v1232
          %v1308 = vadd.f32 %v1307, %v1234
          %v1309 = vadd.f32 %v1308, %v1236
          %v1310 = vadd.f32 %v1309, %v1238
          %v1311 = vadd.f32 %v1310, %v1240
          %v1312 = vadd.f32 %v1311, %v1242
          %v1313 = vadd.f32 %v1312, %v1244
          %v1314 = vadd.f32 %v1313, %v1246
          %v1315 = vrot.slane %v1314, 4
          %v1316 = vadd.f32 %v1314, %v1315
          %v1317 = vrot.slane %v1316, 2
          %v1318 = vadd.f32 %v1316, %v1317
          %v1319 = vrot.slane %v1318, 1
          %v1320 = vadd.f32 %v1318, %v1319
          %v1321 = vmul.f32 %v1283, 0.00390625
          %v1322 = vmul.f32 %v1320, 0.00390625
          %v1325 = vcombine.low %v1321, %v1322
          %v1327 = vunpack.c.l.s4 1966171168
          %v1328 = vunpack.c.0.s8 %v1327
          %v1329 = vlaneseq
          %v1330 = vshrl.u32 %v1329, 7
          %v1331 = vsub.s32 %v1328, %v1330
          %v1332 = vrot.slane %v1325, %v1331
          %v1334 = vunpack.c.l.s4 1966171168
          %v1335 = vunpack.c.0.s8 %v1334
          %v1336 = vlaneseq
          %v1337 = vshrl.u32 %v1336, 7
          %v1338 = vsub.s32 %v1335, %v1337
          %v1339 = vrot.slane %v1332, %v1338
          %v1341 = vlaneseq
          %vm1342 = vcmp.ge.s32.totalorder %v1341, 0
          %vm1343 = vcmp.lt.s32.totalorder %v1341, 256
          %vm1344 = vmand %vm1342, %vm1343
          %1345 = vst.msk [vmem:[#allocation3] ss:$4 sm:$0x3] %vm1344, %v1339
          %1346 = vst [vmem:[#allocation3] sm:$0x66] 0.0
        $region56: #{st_vae_forward.1} parent=51 // pred_fallthru
          _
        %v1347 = vld [vmem:[#allocation3] ss:$4 sm:$0x3]
        %v1349 = vlaneseq
        %v1350 = vshrl.u32 %v1349, 7
        %v1351 = vsub.s32 0, %v1350
        %v1352 = vrot.slane %v1347, %v1351
        %v1353 = vlaneseq
        %v1354 = vshrl.u32 %v1353, 7
        %v1355 = vsub.s32 1, %v1354
        %v1356 = vrot.slane %v1347, %v1355
        %v1359 = vsub.f32 %v1021, %v1352
        %v1360 = vsub.f32 %v1023, %v1356
        %v1361 = vsub.f32 %v1025, %v1352
        %v1362 = vsub.f32 %v1027, %v1356
        %v1363 = vsub.f32 %v1031, %v1352
        %v1364 = vsub.f32 %v1033, %v1356
        %v1365 = vsub.f32 %v1035, %v1352
        %v1366 = vsub.f32 %v1037, %v1356
        %v1367 = vsub.f32 %v1041, %v1352
        %v1368 = vsub.f32 %v1043, %v1356
        %v1369 = vsub.f32 %v1045, %v1352
        %v1370 = vsub.f32 %v1047, %v1356
        %v1371 = vsub.f32 %v1051, %v1352
        %v1372 = vsub.f32 %v1053, %v1356
        %v1373 = vsub.f32 %v1055, %v1352
        %v1374 = vsub.f32 %v1057, %v1356
        %v1375 = vsub.f32 %v1061, %v1352
        %v1376 = vsub.f32 %v1063, %v1356
        %v1377 = vsub.f32 %v1065, %v1352
        %v1378 = vsub.f32 %v1067, %v1356
        %v1379 = vsub.f32 %v1071, %v1352
        %v1380 = vsub.f32 %v1073, %v1356
        %v1381 = vsub.f32 %v1075, %v1352
        %v1382 = vsub.f32 %v1077, %v1356
        %v1383 = vsub.f32 %v1081, %v1352
        %v1384 = vsub.f32 %v1083, %v1356
        %v1385 = vsub.f32 %v1085, %v1352
        %v1386 = vsub.f32 %v1087, %v1356
        %v1387 = vsub.f32 %v1091, %v1352
        %v1388 = vsub.f32 %v1093, %v1356
        %v1389 = vsub.f32 %v1095, %v1352
        %v1390 = vsub.f32 %v1097, %v1356
        %v1391 = vsub.f32 %v1101, %v1352
        %v1392 = vsub.f32 %v1103, %v1356
        %v1393 = vsub.f32 %v1105, %v1352
        %v1394 = vsub.f32 %v1107, %v1356
        %v1395 = vsub.f32 %v1111, %v1352
        %v1396 = vsub.f32 %v1113, %v1356
        %v1397 = vsub.f32 %v1115, %v1352
        %v1398 = vsub.f32 %v1117, %v1356
        %v1399 = vsub.f32 %v1121, %v1352
        %v1400 = vsub.f32 %v1123, %v1356
        %v1401 = vsub.f32 %v1125, %v1352
        %v1402 = vsub.f32 %v1127, %v1356
        %v1403 = vsub.f32 %v1131, %v1352
        %v1404 = vsub.f32 %v1133, %v1356
        %v1405 = vsub.f32 %v1135, %v1352
        %v1406 = vsub.f32 %v1137, %v1356
        %v1407 = vsub.f32 %v1141, %v1352
        %v1408 = vsub.f32 %v1143, %v1356
        %v1409 = vsub.f32 %v1145, %v1352
        %v1410 = vsub.f32 %v1147, %v1356
        %v1411 = vsub.f32 %v1151, %v1352
        %v1412 = vsub.f32 %v1153, %v1356
        %v1413 = vsub.f32 %v1155, %v1352
        %v1414 = vsub.f32 %v1157, %v1356
        %v1415 = vsub.f32 %v1161, %v1352
        %v1416 = vsub.f32 %v1163, %v1356
        %v1417 = vsub.f32 %v1165, %v1352
        %v1418 = vsub.f32 %v1167, %v1356
        %v1419 = vsub.f32 %v1171, %v1352
        %v1420 = vsub.f32 %v1173, %v1356
        %v1421 = vsub.f32 %v1175, %v1352
        %v1422 = vsub.f32 %v1177, %v1356
        %v1423 = vmul.f32 %v1359, %v566
        %v1424 = vmul.f32 %v1360, %v566
        %v1425 = vmul.f32 %v1361, %v567
        %v1426 = vmul.f32 %v1362, %v567
        %v1427 = vmul.f32 %v1363, %v568
        %v1428 = vmul.f32 %v1364, %v568
        %v1429 = vmul.f32 %v1365, %v569
        %v1430 = vmul.f32 %v1366, %v569
        %v1431 = vmul.f32 %v1367, %v570
        %v1432 = vmul.f32 %v1368, %v570
        %v1433 = vmul.f32 %v1369, %v571
        %v1434 = vmul.f32 %v1370, %v571
        %v1435 = vmul.f32 %v1371, %v572
        %v1436 = vmul.f32 %v1372, %v572
        %v1437 = vmul.f32 %v1373, %v573
        %v1438 = vmul.f32 %v1374, %v573
        %v1439 = vmul.f32 %v1375, %v574
        %v1440 = vmul.f32 %v1376, %v574
        %v1441 = vmul.f32 %v1377, %v575
        %v1442 = vmul.f32 %v1378, %v575
        %v1443 = vmul.f32 %v1379, %v576
        %v1444 = vmul.f32 %v1380, %v576
        %v1445 = vmul.f32 %v1381, %v577
        %v1446 = vmul.f32 %v1382, %v577
        %v1447 = vmul.f32 %v1383, %v578
        %v1448 = vmul.f32 %v1384, %v578
        %v1449 = vmul.f32 %v1385, %v579
        %v1450 = vmul.f32 %v1386, %v579
        %v1451 = vmul.f32 %v1387, %v580
        %v1452 = vmul.f32 %v1388, %v580
        %v1453 = vmul.f32 %v1389, %v581
        %v1454 = vmul.f32 %v1390, %v581
        %v1455 = vmul.f32 %v1391, %v582
        %v1456 = vmul.f32 %v1392, %v582
        %v1457 = vmul.f32 %v1393, %v583
        %v1458 = vmul.f32 %v1394, %v583
        %v1459 = vmul.f32 %v1395, %v584
        %v1460 = vmul.f32 %v1396, %v584
        %v1461 = vmul.f32 %v1397, %v585
        %v1462 = vmul.f32 %v1398, %v585
        %v1463 = vmul.f32 %v1399, %v586
        %v1464 = vmul.f32 %v1400, %v586
        %v1465 = vmul.f32 %v1401, %v587
        %v1466 = vmul.f32 %v1402, %v587
        %v1467 = vmul.f32 %v1403, %v588
        %v1468 = vmul.f32 %v1404, %v588
        %v1469 = vmul.f32 %v1405, %v589
        %v1470 = vmul.f32 %v1406, %v589
        %v1471 = vmul.f32 %v1407, %v590
        %v1472 = vmul.f32 %v1408, %v590
        %v1473 = vmul.f32 %v1409, %v591
        %v1474 = vmul.f32 %v1410, %v591
        %v1475 = vmul.f32 %v1411, %v592
        %v1476 = vmul.f32 %v1412, %v592
        %v1477 = vmul.f32 %v1413, %v593
        %v1478 = vmul.f32 %v1414, %v593
        %v1479 = vmul.f32 %v1415, %v594
        %v1480 = vmul.f32 %v1416, %v594
        %v1481 = vmul.f32 %v1417, %v595
        %v1482 = vmul.f32 %v1418, %v595
        %v1483 = vmul.f32 %v1419, %v596
        %v1484 = vmul.f32 %v1420, %v596
        %v1485 = vmul.f32 %v1421, %v597
        %v1486 = vmul.f32 %v1422, %v597
        %s1487 = scalar_lea.vmem [#allocation3], 1
        %v1488 = vld [vmem:[%s1487] ss:$4 sm:$0x3]
        %v1489 = vadd.f32 %v1423, %v1425
        %v1490 = vadd.f32 %v1489, %v1427
        %v1491 = vadd.f32 %v1490, %v1429
        %v1492 = vadd.f32 %v1491, %v1431
        %v1493 = vadd.f32 %v1492, %v1433
        %v1494 = vadd.f32 %v1493, %v1435
        %v1495 = vadd.f32 %v1494, %v1437
        %v1496 = vadd.f32 %v1495, %v1439
        %v1497 = vadd.f32 %v1496, %v1441
        %v1498 = vadd.f32 %v1497, %v1443
        %v1499 = vadd.f32 %v1498, %v1445
        %v1500 = vadd.f32 %v1499, %v1447
        %v1501 = vadd.f32 %v1500, %v1449
        %v1502 = vadd.f32 %v1501, %v1451
        %v1503 = vadd.f32 %v1502, %v1453
        %v1504 = vadd.f32 %v1503, %v1455
        %v1505 = vadd.f32 %v1504, %v1457
        %v1506 = vadd.f32 %v1505, %v1459
        %v1507 = vadd.f32 %v1506, %v1461
        %v1508 = vadd.f32 %v1507, %v1463
        %v1509 = vadd.f32 %v1508, %v1465
        %v1510 = vadd.f32 %v1509, %v1467
        %v1511 = vadd.f32 %v1510, %v1469
        %v1512 = vadd.f32 %v1511, %v1471
        %v1513 = vadd.f32 %v1512, %v1473
        %v1514 = vadd.f32 %v1513, %v1475
        %v1515 = vadd.f32 %v1514, %v1477
        %v1516 = vadd.f32 %v1515, %v1479
        %v1517 = vadd.f32 %v1516, %v1481
        %v1518 = vadd.f32 %v1517, %v1483
        %v1519 = vadd.f32 %v1518, %v1485
        %v1520 = vrot.slane %v1519, 4
        %v1521 = vadd.f32 %v1519, %v1520
        %v1522 = vrot.slane %v1521, 2
        %v1523 = vadd.f32 %v1521, %v1522
        %v1524 = vrot.slane %v1523, 1
        %v1525 = vadd.f32 %v1523, %v1524
        %v1526 = vadd.f32 %v1424, %v1426
        %v1527 = vadd.f32 %v1526, %v1428
        %v1528 = vadd.f32 %v1527, %v1430
        %v1529 = vadd.f32 %v1528, %v1432
        %v1530 = vadd.f32 %v1529, %v1434
        %v1531 = vadd.f32 %v1530, %v1436
        %v1532 = vadd.f32 %v1531, %v1438
        %v1533 = vadd.f32 %v1532, %v1440
        %v1534 = vadd.f32 %v1533, %v1442
        %v1535 = vadd.f32 %v1534, %v1444
        %v1536 = vadd.f32 %v1535, %v1446
        %v1537 = vadd.f32 %v1536, %v1448
        %v1538 = vadd.f32 %v1537, %v1450
        %v1539 = vadd.f32 %v1538, %v1452
        %v1540 = vadd.f32 %v1539, %v1454
        %v1541 = vadd.f32 %v1540, %v1456
        %v1542 = vadd.f32 %v1541, %v1458
        %v1543 = vadd.f32 %v1542, %v1460
        %v1544 = vadd.f32 %v1543, %v1462
        %v1545 = vadd.f32 %v1544, %v1464
        %v1546 = vadd.f32 %v1545, %v1466
        %v1547 = vadd.f32 %v1546, %v1468
        %v1548 = vadd.f32 %v1547, %v1470
        %v1549 = vadd.f32 %v1548, %v1472
        %v1550 = vadd.f32 %v1549, %v1474
        %v1551 = vadd.f32 %v1550, %v1476
        %v1552 = vadd.f32 %v1551, %v1478
        %v1553 = vadd.f32 %v1552, %v1480
        %v1554 = vadd.f32 %v1553, %v1482
        %v1555 = vadd.f32 %v1554, %v1484
        %v1556 = vadd.f32 %v1555, %v1486
        %v1557 = vrot.slane %v1556, 4
        %v1558 = vadd.f32 %v1556, %v1557
        %v1559 = vrot.slane %v1558, 2
        %v1560 = vadd.f32 %v1558, %v1559
        %v1561 = vrot.slane %v1560, 1
        %v1562 = vadd.f32 %v1560, %v1561
        %v1565 = vcombine.low %v1525, %v1562
        %v1567 = vunpack.c.l.s4 1966171168
        %v1568 = vunpack.c.0.s8 %v1567
        %v1569 = vlaneseq
        %v1570 = vshrl.u32 %v1569, 7
        %v1571 = vsub.s32 %v1568, %v1570
        %v1572 = vrot.slane %v1565, %v1571
        %v1574 = vunpack.c.l.s4 1966171168
        %v1575 = vunpack.c.0.s8 %v1574
        %v1576 = vlaneseq
        %v1577 = vshrl.u32 %v1576, 7
        %v1578 = vsub.s32 %v1575, %v1577
        %v1579 = vrot.slane %v1572, %v1578
        %v1581 = vadd.f32 %v1488, %v1579
        %v1582 = vlaneseq
        %vm1583 = vcmp.ge.s32.totalorder %v1582, 0
        %vm1584 = vcmp.lt.s32.totalorder %v1582, 256
        %vm1585 = vmand %vm1583, %vm1584
        %1586 = vst.msk [vmem:[%s1487] ss:$4 sm:$0x3] %vm1585, %v1581
        %s1587 = scalar_lea.vmem [#allocation3], 2
        %v1588 = vld [vmem:[%s1587] ss:$4 sm:$0x3]
        %v1589 = vmul.f32 %v1423, %v1423
        %v1590 = vmul.f32 %v1424, %v1424
        %v1591 = vmul.f32 %v1425, %v1425
        %v1592 = vmul.f32 %v1426, %v1426
        %v1593 = vmul.f32 %v1427, %v1427
        %v1594 = vmul.f32 %v1428, %v1428
        %v1595 = vmul.f32 %v1429, %v1429
        %v1596 = vmul.f32 %v1430, %v1430
        %v1597 = vmul.f32 %v1431, %v1431
        %v1598 = vmul.f32 %v1432, %v1432
        %v1599 = vmul.f32 %v1433, %v1433
        %v1600 = vmul.f32 %v1434, %v1434
        %v1601 = vmul.f32 %v1435, %v1435
        %v1602 = vmul.f32 %v1436, %v1436
        %v1603 = vmul.f32 %v1437, %v1437
        %v1604 = vmul.f32 %v1438, %v1438
        %v1605 = vmul.f32 %v1439, %v1439
        %v1606 = vmul.f32 %v1440, %v1440
        %v1607 = vmul.f32 %v1441, %v1441
        %v1608 = vmul.f32 %v1442, %v1442
        %v1609 = vmul.f32 %v1443, %v1443
        %v1610 = vmul.f32 %v1444, %v1444
        %v1611 = vmul.f32 %v1445, %v1445
        %v1612 = vmul.f32 %v1446, %v1446
        %v1613 = vmul.f32 %v1447, %v1447
        %v1614 = vmul.f32 %v1448, %v1448
        %v1615 = vmul.f32 %v1449, %v1449
        %v1616 = vmul.f32 %v1450, %v1450
        %v1617 = vmul.f32 %v1451, %v1451
        %v1618 = vmul.f32 %v1452, %v1452
        %v1619 = vmul.f32 %v1453, %v1453
        %v1620 = vmul.f32 %v1454, %v1454
        %v1621 = vmul.f32 %v1455, %v1455
        %v1622 = vmul.f32 %v1456, %v1456
        %v1623 = vmul.f32 %v1457, %v1457
        %v1624 = vmul.f32 %v1458, %v1458
        %v1625 = vmul.f32 %v1459, %v1459
        %v1626 = vmul.f32 %v1460, %v1460
        %v1627 = vmul.f32 %v1461, %v1461
        %v1628 = vmul.f32 %v1462, %v1462
        %v1629 = vmul.f32 %v1463, %v1463
        %v1630 = vmul.f32 %v1464, %v1464
        %v1631 = vmul.f32 %v1465, %v1465
        %v1632 = vmul.f32 %v1466, %v1466
        %v1633 = vmul.f32 %v1467, %v1467
        %v1634 = vmul.f32 %v1468, %v1468
        %v1635 = vmul.f32 %v1469, %v1469
        %v1636 = vmul.f32 %v1470, %v1470
        %v1637 = vmul.f32 %v1471, %v1471
        %v1638 = vmul.f32 %v1472, %v1472
        %v1639 = vmul.f32 %v1473, %v1473
        %v1640 = vmul.f32 %v1474, %v1474
        %v1641 = vmul.f32 %v1475, %v1475
        %v1642 = vmul.f32 %v1476, %v1476
        %v1643 = vmul.f32 %v1477, %v1477
        %v1644 = vmul.f32 %v1478, %v1478
        %v1645 = vmul.f32 %v1479, %v1479
        %v1646 = vmul.f32 %v1480, %v1480
        %v1647 = vmul.f32 %v1481, %v1481
        %v1648 = vmul.f32 %v1482, %v1482
        %v1649 = vmul.f32 %v1483, %v1483
        %v1650 = vmul.f32 %v1484, %v1484
        %v1651 = vmul.f32 %v1485, %v1485
        %v1652 = vmul.f32 %v1486, %v1486
        %v1653 = vadd.f32 %v1589, %v1591
        %v1654 = vadd.f32 %v1653, %v1593
        %v1655 = vadd.f32 %v1654, %v1595
        %v1656 = vadd.f32 %v1655, %v1597
        %v1657 = vadd.f32 %v1656, %v1599
        %v1658 = vadd.f32 %v1657, %v1601
        %v1659 = vadd.f32 %v1658, %v1603
        %v1660 = vadd.f32 %v1659, %v1605
        %v1661 = vadd.f32 %v1660, %v1607
        %v1662 = vadd.f32 %v1661, %v1609
        %v1663 = vadd.f32 %v1662, %v1611
        %v1664 = vadd.f32 %v1663, %v1613
        %v1665 = vadd.f32 %v1664, %v1615
        %v1666 = vadd.f32 %v1665, %v1617
        %v1667 = vadd.f32 %v1666, %v1619
        %v1668 = vadd.f32 %v1667, %v1621
        %v1669 = vadd.f32 %v1668, %v1623
        %v1670 = vadd.f32 %v1669, %v1625
        %v1671 = vadd.f32 %v1670, %v1627
        %v1672 = vadd.f32 %v1671, %v1629
        %v1673 = vadd.f32 %v1672, %v1631
        %v1674 = vadd.f32 %v1673, %v1633
        %v1675 = vadd.f32 %v1674, %v1635
        %v1676 = vadd.f32 %v1675, %v1637
        %v1677 = vadd.f32 %v1676, %v1639
        %v1678 = vadd.f32 %v1677, %v1641
        %v1679 = vadd.f32 %v1678, %v1643
        %v1680 = vadd.f32 %v1679, %v1645
        %v1681 = vadd.f32 %v1680, %v1647
        %v1682 = vadd.f32 %v1681, %v1649
        %v1683 = vadd.f32 %v1682, %v1651
        %v1684 = vrot.slane %v1683, 4
        %v1685 = vadd.f32 %v1683, %v1684
        %v1686 = vrot.slane %v1685, 2
        %v1687 = vadd.f32 %v1685, %v1686
        %v1688 = vrot.slane %v1687, 1
        %v1689 = vadd.f32 %v1687, %v1688
        %v1690 = vadd.f32 %v1590, %v1592
        %v1691 = vadd.f32 %v1690, %v1594
        %v1692 = vadd.f32 %v1691, %v1596
        %v1693 = vadd.f32 %v1692, %v1598
        %v1694 = vadd.f32 %v1693, %v1600
        %v1695 = vadd.f32 %v1694, %v1602
        %v1696 = vadd.f32 %v1695, %v1604
        %v1697 = vadd.f32 %v1696, %v1606
        %v1698 = vadd.f32 %v1697, %v1608
        %v1699 = vadd.f32 %v1698, %v1610
        %v1700 = vadd.f32 %v1699, %v1612
        %v1701 = vadd.f32 %v1700, %v1614
        %v1702 = vadd.f32 %v1701, %v1616
        %v1703 = vadd.f32 %v1702, %v1618
        %v1704 = vadd.f32 %v1703, %v1620
        %v1705 = vadd.f32 %v1704, %v1622
        %v1706 = vadd.f32 %v1705, %v1624
        %v1707 = vadd.f32 %v1706, %v1626
        %v1708 = vadd.f32 %v1707, %v1628
        %v1709 = vadd.f32 %v1708, %v1630
        %v1710 = vadd.f32 %v1709, %v1632
        %v1711 = vadd.f32 %v1710, %v1634
        %v1712 = vadd.f32 %v1711, %v1636
        %v1713 = vadd.f32 %v1712, %v1638
        %v1714 = vadd.f32 %v1713, %v1640
        %v1715 = vadd.f32 %v1714, %v1642
        %v1716 = vadd.f32 %v1715, %v1644
        %v1717 = vadd.f32 %v1716, %v1646
        %v1718 = vadd.f32 %v1717, %v1648
        %v1719 = vadd.f32 %v1718, %v1650
        %v1720 = vadd.f32 %v1719, %v1652
        %v1721 = vrot.slane %v1720, 4
        %v1722 = vadd.f32 %v1720, %v1721
        %v1723 = vrot.slane %v1722, 2
        %v1724 = vadd.f32 %v1722, %v1723
        %v1725 = vrot.slane %v1724, 1
        %v1726 = vadd.f32 %v1724, %v1725
        %v1729 = vcombine.low %v1689, %v1726
        %v1731 = vunpack.c.l.s4 1966171168
        %v1732 = vunpack.c.0.s8 %v1731
        %v1733 = vlaneseq
        %v1734 = vshrl.u32 %v1733, 7
        %v1735 = vsub.s32 %v1732, %v1734
        %v1736 = vrot.slane %v1729, %v1735
        %v1738 = vunpack.c.l.s4 1966171168
        %v1739 = vunpack.c.0.s8 %v1738
        %v1740 = vlaneseq
        %v1741 = vshrl.u32 %v1740, 7
        %v1742 = vsub.s32 %v1739, %v1741
        %v1743 = vrot.slane %v1736, %v1742
        %v1745 = vadd.f32 %v1588, %v1743
        %1746 = vst.msk [vmem:[%s1587] ss:$4 sm:$0x3] %vm1585, %v1745
        %p1747 = scmp.eq.s32.totalorder %s25, 2
        // Predicated region
        $region57: #{st_vae_forward.1} parent=51 // pred_check
          %p1748 = pneg %p1747
        $region58: #{st_vae_forward.1} parent=51 // pred_check_branch
          %1750 = sbr.rel (%p1748) target = $region60
        $region59: #{st_vae_forward.1} parent=51 // pred_region
          %v1751 = vld [vmem:[#allocation3] ss:$4 sm:$0x3]
          %v1752 = vld [vmem:[%s1487] ss:$4 sm:$0x3]
          %v1753 = vmul.f32 %v1752, 0.0016666667
          %v1754 = vld [vmem:[%s1587] ss:$4 sm:$0x3]
          %v1755 = vmul.f32 %v1754, 0.0016666667
          %v1756 = vmul.f32 %v1753, %v1753
          %v1757 = vsub.f32 %v1755, %v1756
          %v1758 = vmax.f32 %v1757, 0.0
          %v1759 = vadd.f32 %v1751, %v1753
          %1760 = vst.msk [vmem:[#allocation3] ss:$4 sm:$0x3] %vm1585, %v1759
          %v1761 = vadd.f32 %v1758, 0.001
          %v1762 = vrsqrt.pop %v1761
          %1763 = vst.msk [vmem:[%s1487] ss:$4 sm:$0x3] %vm1585, %v1762
        $region60: #{st_vae_forward.1} parent=51 // pred_fallthru
          _
      $region52: #{st_vae_forward.1} parent=47 // pred_fallthru
        _
      %p1764 = scmp.eq.s32.totalorder %s24, 1
      // Predicated region
      $region61: #{st_vae_forward.1} parent=47 // pred_check
        %p1765 = pneg %p1764
      $region62: #{st_vae_forward.1} parent=47 // pred_check_branch
        %1767 = sbr.rel (%p1765) target = $region64
      $region63: #{st_vae_forward.1} parent=47 // pred_region
        %v1768 = vld [vmem:[%s391] sm:$0xff]
        %v1769 = vld [vmem:[%s391 + $0x8] sm:$0xff]
        %v1770 = vld [vmem:[%s391 + $0x10] sm:$0xff]
        %v1771 = vld [vmem:[%s391 + $0x18] sm:$0xff]
        %v1772 = vld [vmem:[%s391 + $0x20] sm:$0xff]
        %v1773 = vld [vmem:[%s391 + $0x28] sm:$0xff]
        %v1774 = vld [vmem:[%s391 + $0x30] sm:$0xff]
        %v1775 = vld [vmem:[%s391 + $0x38] sm:$0xff]
        %v1776 = vld [vmem:[%s391 + $0x40] sm:$0xff]
        %v1777 = vld [vmem:[%s391 + $0x48] sm:$0xff]
        %v1778 = vld [vmem:[%s391 + $0x50] sm:$0xff]
        %v1779 = vld [vmem:[%s391 + $0x58] sm:$0xff]
        %v1780 = vld [vmem:[%s391 + $0x60] sm:$0xff]
        %v1781 = vld [vmem:[%s391 + $0x68] sm:$0xff]
        %v1782 = vld [vmem:[%s391 + $0x70] sm:$0xff]
        %v1783 = vld [vmem:[%s391 + $0x78] sm:$0xff]
        %v1784 = vld [vmem:[%s391 + $0x80] sm:$0xff]
        %v1785 = vld [vmem:[%s391 + $0x88] sm:$0xff]
        %v1786 = vld [vmem:[%s391 + $0x90] sm:$0xff]
        %v1787 = vld [vmem:[%s391 + $0x98] sm:$0xff]
        %v1788 = vld [vmem:[%s391 + $0xa0] sm:$0xff]
        %v1789 = vld [vmem:[%s391 + $0xa8] sm:$0xff]
        %v1790 = vld [vmem:[%s391 + $0xb0] sm:$0xff]
        %v1791 = vld [vmem:[%s391 + $0xb8] sm:$0xff]
        %v1792 = vld [vmem:[%s391 + $0xc0] sm:$0xff]
        %v1793 = vld [vmem:[%s391 + $0xc8] sm:$0xff]
        %v1794 = vld [vmem:[%s391 + $0xd0] sm:$0xff]
        %v1795 = vld [vmem:[%s391 + $0xd8] sm:$0xff]
        %v1796 = vld [vmem:[%s391 + $0xe0] sm:$0xff]
        %v1797 = vld [vmem:[%s391 + $0xe8] sm:$0xff]
        %v1798 = vld [vmem:[%s391 + $0xf0] sm:$0xff]
        %v1799 = vld [vmem:[%s391 + $0xf8] sm:$0xff]
        %v1800 = vld [vmem:[%s2] sm:$0xff]
        %v1801 = vld [vmem:[%s2 + $0x8] sm:$0xff]
        %v1802 = vld [vmem:[%s2 + $0x10] sm:$0xff]
        %v1803 = vld [vmem:[%s2 + $0x18] sm:$0xff]
        %v1804 = vld [vmem:[%s2 + $0x20] sm:$0xff]
        %v1805 = vld [vmem:[%s2 + $0x28] sm:$0xff]
        %v1806 = vld [vmem:[%s2 + $0x30] sm:$0xff]
        %v1807 = vld [vmem:[%s2 + $0x38] sm:$0xff]
        %v1808 = vld [vmem:[%s2 + $0x40] sm:$0xff]
        %v1809 = vld [vmem:[%s2 + $0x48] sm:$0xff]
        %v1810 = vld [vmem:[%s2 + $0x50] sm:$0xff]
        %v1811 = vld [vmem:[%s2 + $0x58] sm:$0xff]
        %v1812 = vld [vmem:[%s2 + $0x60] sm:$0xff]
        %v1813 = vld [vmem:[%s2 + $0x68] sm:$0xff]
        %v1814 = vld [vmem:[%s2 + $0x70] sm:$0xff]
        %v1815 = vld [vmem:[%s2 + $0x78] sm:$0xff]
        %v1816 = vld [vmem:[%s2 + $0x80] sm:$0xff]
        %v1817 = vld [vmem:[%s2 + $0x88] sm:$0xff]
        %v1818 = vld [vmem:[%s2 + $0x90] sm:$0xff]
        %v1819 = vld [vmem:[%s2 + $0x98] sm:$0xff]
        %v1820 = vld [vmem:[%s2 + $0xa0] sm:$0xff]
        %v1821 = vld [vmem:[%s2 + $0xa8] sm:$0xff]
        %v1822 = vld [vmem:[%s2 + $0xb0] sm:$0xff]
        %v1823 = vld [vmem:[%s2 + $0xb8] sm:$0xff]
        %v1824 = vld [vmem:[%s2 + $0xc0] sm:$0xff]
        %v1825 = vld [vmem:[%s2 + $0xc8] sm:$0xff]
        %v1826 = vld [vmem:[%s2 + $0xd0] sm:$0xff]
        %v1827 = vld [vmem:[%s2 + $0xd8] sm:$0xff]
        %v1828 = vld [vmem:[%s2 + $0xe0] sm:$0xff]
        %v1829 = vld [vmem:[%s2 + $0xe8] sm:$0xff]
        %v1830 = vld [vmem:[%s2 + $0xf0] sm:$0xff]
        %v1831 = vld [vmem:[%s2 + $0xf8] sm:$0xff]
        %v1864 = vunpack.c.l.b16 %v1768
        %v1865 = vunpack.c.h.b16 %v1768
        %v1866 = vunpack.c.l.b16 %v1769
        %v1867 = vunpack.c.h.b16 %v1769
        %v1868 = vunpack.c.l.b16 %v1770
        %v1869 = vunpack.c.h.b16 %v1770
        %v1870 = vunpack.c.l.b16 %v1771
        %v1871 = vunpack.c.h.b16 %v1771
        %v1872 = vunpack.c.l.b16 %v1772
        %v1873 = vunpack.c.h.b16 %v1772
        %v1874 = vunpack.c.l.b16 %v1773
        %v1875 = vunpack.c.h.b16 %v1773
        %v1876 = vunpack.c.l.b16 %v1774
        %v1877 = vunpack.c.h.b16 %v1774
        %v1878 = vunpack.c.l.b16 %v1775
        %v1879 = vunpack.c.h.b16 %v1775
        %v1880 = vunpack.c.l.b16 %v1776
        %v1881 = vunpack.c.h.b16 %v1776
        %v1882 = vunpack.c.l.b16 %v1777
        %v1883 = vunpack.c.h.b16 %v1777
        %v1884 = vunpack.c.l.b16 %v1778
        %v1885 = vunpack.c.h.b16 %v1778
        %v1886 = vunpack.c.l.b16 %v1779
        %v1887 = vunpack.c.h.b16 %v1779
        %v1888 = vunpack.c.l.b16 %v1780
        %v1889 = vunpack.c.h.b16 %v1780
        %v1890 = vunpack.c.l.b16 %v1781
        %v1891 = vunpack.c.h.b16 %v1781
        %v1892 = vunpack.c.l.b16 %v1782
        %v1893 = vunpack.c.h.b16 %v1782
        %v1894 = vunpack.c.l.b16 %v1783
        %v1895 = vunpack.c.h.b16 %v1783
        %v1896 = vunpack.c.l.b16 %v1784
        %v1897 = vunpack.c.h.b16 %v1784
        %v1898 = vunpack.c.l.b16 %v1785
        %v1899 = vunpack.c.h.b16 %v1785
        %v1900 = vunpack.c.l.b16 %v1786
        %v1901 = vunpack.c.h.b16 %v1786
        %v1902 = vunpack.c.l.b16 %v1787
        %v1903 = vunpack.c.h.b16 %v1787
        %v1904 = vunpack.c.l.b16 %v1788
        %v1905 = vunpack.c.h.b16 %v1788
        %v1906 = vunpack.c.l.b16 %v1789
        %v1907 = vunpack.c.h.b16 %v1789
        %v1908 = vunpack.c.l.b16 %v1790
        %v1909 = vunpack.c.h.b16 %v1790
        %v1910 = vunpack.c.l.b16 %v1791
        %v1911 = vunpack.c.h.b16 %v1791
        %v1912 = vunpack.c.l.b16 %v1792
        %v1913 = vunpack.c.h.b16 %v1792
        %v1914 = vunpack.c.l.b16 %v1793
        %v1915 = vunpack.c.h.b16 %v1793
        %v1916 = vunpack.c.l.b16 %v1794
        %v1917 = vunpack.c.h.b16 %v1794
        %v1918 = vunpack.c.l.b16 %v1795
        %v1919 = vunpack.c.h.b16 %v1795
        %v1920 = vunpack.c.l.b16 %v1796
        %v1921 = vunpack.c.h.b16 %v1796
        %v1922 = vunpack.c.l.b16 %v1797
        %v1923 = vunpack.c.h.b16 %v1797
        %v1924 = vunpack.c.l.b16 %v1798
        %v1925 = vunpack.c.h.b16 %v1798
        %v1926 = vunpack.c.l.b16 %v1799
        %v1927 = vunpack.c.h.b16 %v1799
        %v1928 = vpack.c.b16 %v1866, %v1864
        %v1929 = vpack.c.b16 %v1867, %v1865
        %v1930 = vpack.c.b16 %v1870, %v1868
        %v1931 = vpack.c.b16 %v1871, %v1869
        %v1932 = vpack.c.b16 %v1874, %v1872
        %v1933 = vpack.c.b16 %v1875, %v1873
        %v1934 = vpack.c.b16 %v1878, %v1876
        %v1935 = vpack.c.b16 %v1879, %v1877
        %v1936 = vpack.c.b16 %v1882, %v1880
        %v1937 = vpack.c.b16 %v1883, %v1881
        %v1938 = vpack.c.b16 %v1886, %v1884
        %v1939 = vpack.c.b16 %v1887, %v1885
        %v1940 = vpack.c.b16 %v1890, %v1888
        %v1941 = vpack.c.b16 %v1891, %v1889
        %v1942 = vpack.c.b16 %v1894, %v1892
        %v1943 = vpack.c.b16 %v1895, %v1893
        %v1944 = vpack.c.b16 %v1898, %v1896
        %v1945 = vpack.c.b16 %v1899, %v1897
        %v1946 = vpack.c.b16 %v1902, %v1900
        %v1947 = vpack.c.b16 %v1903, %v1901
        %v1948 = vpack.c.b16 %v1906, %v1904
        %v1949 = vpack.c.b16 %v1907, %v1905
        %v1950 = vpack.c.b16 %v1910, %v1908
        %v1951 = vpack.c.b16 %v1911, %v1909
        %v1952 = vpack.c.b16 %v1914, %v1912
        %v1953 = vpack.c.b16 %v1915, %v1913
        %v1954 = vpack.c.b16 %v1918, %v1916
        %v1955 = vpack.c.b16 %v1919, %v1917
        %v1956 = vpack.c.b16 %v1922, %v1920
        %v1957 = vpack.c.b16 %v1923, %v1921
        %v1958 = vpack.c.b16 %v1926, %v1924
        %v1959 = vpack.c.b16 %v1927, %v1925
        %v2024 = vunpack.c.l.b16 %v1800
        %v2025 = vunpack.c.h.b16 %v1800
        %v2026 = vunpack.c.l.b16 %v1801
        %v2027 = vunpack.c.h.b16 %v1801
        %v2028 = vunpack.c.l.b16 %v1802
        %v2029 = vunpack.c.h.b16 %v1802
        %v2030 = vunpack.c.l.b16 %v1803
        %v2031 = vunpack.c.h.b16 %v1803
        %v2032 = vunpack.c.l.b16 %v1804
        %v2033 = vunpack.c.h.b16 %v1804
        %v2034 = vunpack.c.l.b16 %v1805
        %v2035 = vunpack.c.h.b16 %v1805
        %v2036 = vunpack.c.l.b16 %v1806
        %v2037 = vunpack.c.h.b16 %v1806
        %v2038 = vunpack.c.l.b16 %v1807
        %v2039 = vunpack.c.h.b16 %v1807
        %v2040 = vunpack.c.l.b16 %v1808
        %v2041 = vunpack.c.h.b16 %v1808
        %v2042 = vunpack.c.l.b16 %v1809
        %v2043 = vunpack.c.h.b16 %v1809
        %v2044 = vunpack.c.l.b16 %v1810
        %v2045 = vunpack.c.h.b16 %v1810
        %v2046 = vunpack.c.l.b16 %v1811
        %v2047 = vunpack.c.h.b16 %v1811
        %v2048 = vunpack.c.l.b16 %v1812
        %v2049 = vunpack.c.h.b16 %v1812
        %v2050 = vunpack.c.l.b16 %v1813
        %v2051 = vunpack.c.h.b16 %v1813
        %v2052 = vunpack.c.l.b16 %v1814
        %v2053 = vunpack.c.h.b16 %v1814
        %v2054 = vunpack.c.l.b16 %v1815
        %v2055 = vunpack.c.h.b16 %v1815
        %v2056 = vunpack.c.l.b16 %v1816
        %v2057 = vunpack.c.h.b16 %v1816
        %v2058 = vunpack.c.l.b16 %v1817
        %v2059 = vunpack.c.h.b16 %v1817
        %v2060 = vunpack.c.l.b16 %v1818
        %v2061 = vunpack.c.h.b16 %v1818
        %v2062 = vunpack.c.l.b16 %v1819
        %v2063 = vunpack.c.h.b16 %v1819
        %v2064 = vunpack.c.l.b16 %v1820
        %v2065 = vunpack.c.h.b16 %v1820
        %v2066 = vunpack.c.l.b16 %v1821
        %v2067 = vunpack.c.h.b16 %v1821
        %v2068 = vunpack.c.l.b16 %v1822
        %v2069 = vunpack.c.h.b16 %v1822
        %v2070 = vunpack.c.l.b16 %v1823
        %v2071 = vunpack.c.h.b16 %v1823
        %v2072 = vunpack.c.l.b16 %v1824
        %v2073 = vunpack.c.h.b16 %v1824
        %v2074 = vunpack.c.l.b16 %v1825
        %v2075 = vunpack.c.h.b16 %v1825
        %v2076 = vunpack.c.l.b16 %v1826
        %v2077 = vunpack.c.h.b16 %v1826
        %v2078 = vunpack.c.l.b16 %v1827
        %v2079 = vunpack.c.h.b16 %v1827
        %v2080 = vunpack.c.l.b16 %v1828
        %v2081 = vunpack.c.h.b16 %v1828
        %v2082 = vunpack.c.l.b16 %v1829
        %v2083 = vunpack.c.h.b16 %v1829
        %v2084 = vunpack.c.l.b16 %v1830
        %v2085 = vunpack.c.h.b16 %v1830
        %v2086 = vunpack.c.l.b16 %v1831
        %v2087 = vunpack.c.h.b16 %v1831
        %v2088 = vpack.c.b16 %v2026, %v2024
        %v2089 = vpack.c.b16 %v2027, %v2025
        %v2090 = vpack.c.b16 %v2030, %v2028
        %v2091 = vpack.c.b16 %v2031, %v2029
        %v2092 = vpack.c.b16 %v2034, %v2032
        %v2093 = vpack.c.b16 %v2035, %v2033
        %v2094 = vpack.c.b16 %v2038, %v2036
        %v2095 = vpack.c.b16 %v2039, %v2037
        %v2096 = vpack.c.b16 %v2042, %v2040
        %v2097 = vpack.c.b16 %v2043, %v2041
        %v2098 = vpack.c.b16 %v2046, %v2044
        %v2099 = vpack.c.b16 %v2047, %v2045
        %v2100 = vpack.c.b16 %v2050, %v2048
        %v2101 = vpack.c.b16 %v2051, %v2049
        %v2102 = vpack.c.b16 %v2054, %v2052
        %v2103 = vpack.c.b16 %v2055, %v2053
        %v2104 = vpack.c.b16 %v2058, %v2056
        %v2105 = vpack.c.b16 %v2059, %v2057
        %v2106 = vpack.c.b16 %v2062, %v2060
        %v2107 = vpack.c.b16 %v2063, %v2061
        %v2108 = vpack.c.b16 %v2066, %v2064
        %v2109 = vpack.c.b16 %v2067, %v2065
        %v2110 = vpack.c.b16 %v2070, %v2068
        %v2111 = vpack.c.b16 %v2071, %v2069
        %v2112 = vpack.c.b16 %v2074, %v2072
        %v2113 = vpack.c.b16 %v2075, %v2073
        %v2114 = vpack.c.b16 %v2078, %v2076
        %v2115 = vpack.c.b16 %v2079, %v2077
        %v2116 = vpack.c.b16 %v2082, %v2080
        %v2117 = vpack.c.b16 %v2083, %v2081
        %v2118 = vpack.c.b16 %v2086, %v2084
        %v2119 = vpack.c.b16 %v2087, %v2085
        %2152 = vmatprep.subr.bf16.mxu0 %v2103
        %2153 = vmatpush1.bf16.msra.mxu0 %v2102
        %2154 = vmatprep.subr.bf16.mxu0 %v2101
        %2155 = vmatpush1.bf16.msra.mxu0 %v2100
        %2156 = vmatprep.subr.bf16.mxu0 %v2099
        %2157 = vmatpush1.bf16.msra.mxu0 %v2098
        %2158 = vmatprep.subr.bf16.mxu0 %v2097
        %2159 = vmatpush1.bf16.msra.mxu0 %v2096
        %2160 = vmatprep.subr.bf16.mxu0 %v2095
        %2161 = vmatpush1.bf16.msra.mxu0 %v2094
        %2162 = vmatprep.subr.bf16.mxu0 %v2093
        %2163 = vmatpush1.bf16.msra.mxu0 %v2092
        %2164 = vmatprep.subr.bf16.mxu0 %v2091
        %2165 = vmatpush1.bf16.msra.mxu0 %v2090
        %2166 = vmatprep.subr.bf16.mxu0 %v2089
        %2167 = vmatpush1.bf16.msra.mxu0 %v2088
        %2168 = vmatprep.subr.bf16.mxu0 %v2119
        %2169 = vmatpush2.bf16.msra.mxu0 %v2118
        %2170 = vmatprep.subr.bf16.mxu0 %v2117
        %2171 = vmatpush2.bf16.msra.mxu0 %v2116
        %2172 = vmatprep.subr.bf16.mxu0 %v2115
        %2173 = vmatpush2.bf16.msra.mxu0 %v2114
        %2174 = vmatprep.subr.bf16.mxu0 %v2113
        %2175 = vmatpush2.bf16.msra.mxu0 %v2112
        %2176 = vmatprep.subr.bf16.mxu0 %v2111
        %2177 = vmatpush2.bf16.msra.mxu0 %v2110
        %2178 = vmatprep.subr.bf16.mxu0 %v2109
        %2179 = vmatpush2.bf16.msra.mxu0 %v2108
        %2180 = vmatprep.subr.bf16.mxu0 %v2107
        %2181 = vmatpush2.bf16.msra.mxu0 %v2106
        %2182 = vmatprep.subr.bf16.mxu0 %v2105
        %2183 = vmatpush2.bf16.msra.mxu0 %v2104
        %2184 = vmatprep.mubr.bf16.mxu0 %v1929
        %2185 = vmatmul.mubr.bf16.gmra.mxu0 %v1928
        %v2186 = vpop.f32.mrf.mxu0
        %v2187 = vadd.f32 0.0, %v2186
        %v2188 = vpop.f32.mrf.mxu0
        %v2189 = vadd.f32 0.0, %v2188
        %v2190 = vpop.f32.mrf.mxu0
        %v2191 = vadd.f32 0.0, %v2190
        %v2192 = vpop.f32.mrf.mxu0
        %v2193 = vadd.f32 0.0, %v2192
        %2194 = vmatprep.mubr.bf16.mxu0 %v1931
        %2195 = vmatmul.mubr.bf16.gmra.mxu0 %v1930
        %v2196 = vpop.f32.mrf.mxu0
        %v2197 = vadd.f32 0.0, %v2196
        %v2198 = vpop.f32.mrf.mxu0
        %v2199 = vadd.f32 0.0, %v2198
        %v2200 = vpop.f32.mrf.mxu0
        %v2201 = vadd.f32 0.0, %v2200
        %v2202 = vpop.f32.mrf.mxu0
        %v2203 = vadd.f32 0.0, %v2202
        %2204 = vmatprep.mubr.bf16.mxu0 %v1933
        %2205 = vmatmul.mubr.bf16.gmra.mxu0 %v1932
        %v2206 = vpop.f32.mrf.mxu0
        %v2207 = vadd.f32 0.0, %v2206
        %v2208 = vpop.f32.mrf.mxu0
        %v2209 = vadd.f32 0.0, %v2208
        %v2210 = vpop.f32.mrf.mxu0
        %v2211 = vadd.f32 0.0, %v2210
        %v2212 = vpop.f32.mrf.mxu0
        %v2213 = vadd.f32 0.0, %v2212
        %2214 = vmatprep.mubr.bf16.mxu0 %v1935
        %2215 = vmatmul.mubr.bf16.gmra.mxu0 %v1934
        %v2216 = vpop.f32.mrf.mxu0
        %v2217 = vadd.f32 0.0, %v2216
        %v2218 = vpop.f32.mrf.mxu0
        %v2219 = vadd.f32 0.0, %v2218
        %v2220 = vpop.f32.mrf.mxu0
        %v2221 = vadd.f32 0.0, %v2220
        %v2222 = vpop.f32.mrf.mxu0
        %v2223 = vadd.f32 0.0, %v2222
        %2224 = vmatprep.mubr.bf16.mxu0 %v1937
        %2225 = vmatmul.mubr.bf16.gmra.mxu0 %v1936
        %v2226 = vpop.f32.mrf.mxu0
        %v2227 = vadd.f32 0.0, %v2226
        %v2228 = vpop.f32.mrf.mxu0
        %v2229 = vadd.f32 0.0, %v2228
        %v2230 = vpop.f32.mrf.mxu0
        %v2231 = vadd.f32 0.0, %v2230
        %v2232 = vpop.f32.mrf.mxu0
        %v2233 = vadd.f32 0.0, %v2232
        %2234 = vmatprep.mubr.bf16.mxu0 %v1939
        %2235 = vmatmul.mubr.bf16.gmra.mxu0 %v1938
        %v2236 = vpop.f32.mrf.mxu0
        %v2237 = vadd.f32 0.0, %v2236
        %v2238 = vpop.f32.mrf.mxu0
        %v2239 = vadd.f32 0.0, %v2238
        %v2240 = vpop.f32.mrf.mxu0
        %v2241 = vadd.f32 0.0, %v2240
        %v2242 = vpop.f32.mrf.mxu0
        %v2243 = vadd.f32 0.0, %v2242
        %2244 = vmatprep.mubr.bf16.mxu0 %v1941
        %2245 = vmatmul.mubr.bf16.gmra.mxu0 %v1940
        %v2246 = vpop.f32.mrf.mxu0
        %v2247 = vadd.f32 0.0, %v2246
        %v2248 = vpop.f32.mrf.mxu0
        %v2249 = vadd.f32 0.0, %v2248
        %v2250 = vpop.f32.mrf.mxu0
        %v2251 = vadd.f32 0.0, %v2250
        %v2252 = vpop.f32.mrf.mxu0
        %v2253 = vadd.f32 0.0, %v2252
        %2254 = vmatprep.mubr.bf16.mxu0 %v1943
        %2255 = vmatmul.mubr.bf16.gmra.mxu0 %v1942
        %v2256 = vpop.f32.mrf.mxu0
        %v2257 = vadd.f32 0.0, %v2256
        %v2258 = vpop.f32.mrf.mxu0
        %v2259 = vadd.f32 0.0, %v2258
        %v2260 = vpop.f32.mrf.mxu0
        %v2261 = vadd.f32 0.0, %v2260
        %v2262 = vpop.f32.mrf.mxu0
        %v2263 = vadd.f32 0.0, %v2262
        %2264 = vmatprep.mubr.bf16.mxu0 %v1945
        %2265 = vmatmul.mubr.bf16.gmra.mxu0 %v1944
        %v2266 = vpop.f32.mrf.mxu0
        %v2267 = vadd.f32 0.0, %v2266
        %v2268 = vpop.f32.mrf.mxu0
        %v2269 = vadd.f32 0.0, %v2268
        %v2270 = vpop.f32.mrf.mxu0
        %v2271 = vadd.f32 0.0, %v2270
        %v2272 = vpop.f32.mrf.mxu0
        %v2273 = vadd.f32 0.0, %v2272
        %2274 = vmatprep.mubr.bf16.mxu0 %v1947
        %2275 = vmatmul.mubr.bf16.gmra.mxu0 %v1946
        %v2276 = vpop.f32.mrf.mxu0
        %v2277 = vadd.f32 0.0, %v2276
        %v2278 = vpop.f32.mrf.mxu0
        %v2279 = vadd.f32 0.0, %v2278
        %v2280 = vpop.f32.mrf.mxu0
        %v2281 = vadd.f32 0.0, %v2280
        %v2282 = vpop.f32.mrf.mxu0
        %v2283 = vadd.f32 0.0, %v2282
        %2284 = vmatprep.mubr.bf16.mxu0 %v1949
        %2285 = vmatmul.mubr.bf16.gmra.mxu0 %v1948
        %v2286 = vpop.f32.mrf.mxu0
        %v2287 = vadd.f32 0.0, %v2286
        %v2288 = vpop.f32.mrf.mxu0
        %v2289 = vadd.f32 0.0, %v2288
        %v2290 = vpop.f32.mrf.mxu0
        %v2291 = vadd.f32 0.0, %v2290
        %v2292 = vpop.f32.mrf.mxu0
        %v2293 = vadd.f32 0.0, %v2292
        %2294 = vmatprep.mubr.bf16.mxu0 %v1951
        %2295 = vmatmul.mubr.bf16.gmra.mxu0 %v1950
        %v2296 = vpop.f32.mrf.mxu0
        %v2297 = vadd.f32 0.0, %v2296
        %v2298 = vpop.f32.mrf.mxu0
        %v2299 = vadd.f32 0.0, %v2298
        %v2300 = vpop.f32.mrf.mxu0
        %v2301 = vadd.f32 0.0, %v2300
        %v2302 = vpop.f32.mrf.mxu0
        %v2303 = vadd.f32 0.0, %v2302
        %2304 = vmatprep.mubr.bf16.mxu0 %v1953
        %2305 = vmatmul.mubr.bf16.gmra.mxu0 %v1952
        %v2306 = vpop.f32.mrf.mxu0
        %v2307 = vadd.f32 0.0, %v2306
        %v2308 = vpop.f32.mrf.mxu0
        %v2309 = vadd.f32 0.0, %v2308
        %v2310 = vpop.f32.mrf.mxu0
        %v2311 = vadd.f32 0.0, %v2310
        %v2312 = vpop.f32.mrf.mxu0
        %v2313 = vadd.f32 0.0, %v2312
        %2314 = vmatprep.mubr.bf16.mxu0 %v1955
        %2315 = vmatmul.mubr.bf16.gmra.mxu0 %v1954
        %v2316 = vpop.f32.mrf.mxu0
        %v2317 = vadd.f32 0.0, %v2316
        %v2318 = vpop.f32.mrf.mxu0
        %v2319 = vadd.f32 0.0, %v2318
        %v2320 = vpop.f32.mrf.mxu0
        %v2321 = vadd.f32 0.0, %v2320
        %v2322 = vpop.f32.mrf.mxu0
        %v2323 = vadd.f32 0.0, %v2322
        %2324 = vmatprep.mubr.bf16.mxu0 %v1957
        %2325 = vmatmul.mubr.bf16.gmra.mxu0 %v1956
        %v2326 = vpop.f32.mrf.mxu0
        %v2327 = vadd.f32 0.0, %v2326
        %v2328 = vpop.f32.mrf.mxu0
        %v2329 = vadd.f32 0.0, %v2328
        %v2330 = vpop.f32.mrf.mxu0
        %v2331 = vadd.f32 0.0, %v2330
        %v2332 = vpop.f32.mrf.mxu0
        %v2333 = vadd.f32 0.0, %v2332
        %2334 = vmatprep.mubr.bf16.mxu0 %v1959
        %2335 = vmatmul.mubr.bf16.gmra.mxu0 %v1958
        %v2336 = vpop.f32.mrf.mxu0
        %v2337 = vadd.f32 0.0, %v2336
        %v2338 = vpop.f32.mrf.mxu0
        %v2339 = vadd.f32 0.0, %v2338
        %v2340 = vpop.f32.mrf.mxu0
        %v2341 = vadd.f32 0.0, %v2340
        %v2342 = vpop.f32.mrf.mxu0
        %v2343 = vadd.f32 0.0, %v2342
        %2344 = vdwg.mxu0
        %v2345 = vld [vmem:[#allocation3] ss:$4 sm:$0x3]
        %v2347 = vlaneseq
        %v2348 = vshrl.u32 %v2347, 7
        %v2349 = vsub.s32 0, %v2348
        %v2350 = vrot.slane %v2345, %v2349
        %v2351 = vlaneseq
        %v2352 = vshrl.u32 %v2351, 7
        %v2353 = vsub.s32 1, %v2352
        %v2354 = vrot.slane %v2345, %v2353
        %v2357 = vsub.f32 %v2187, %v2350
        %v2358 = vsub.f32 %v2189, %v2354
        %v2359 = vsub.f32 %v2191, %v2350
        %v2360 = vsub.f32 %v2193, %v2354
        %v2361 = vsub.f32 %v2197, %v2350
        %v2362 = vsub.f32 %v2199, %v2354
        %v2363 = vsub.f32 %v2201, %v2350
        %v2364 = vsub.f32 %v2203, %v2354
        %v2365 = vsub.f32 %v2207, %v2350
        %v2366 = vsub.f32 %v2209, %v2354
        %v2367 = vsub.f32 %v2211, %v2350
        %v2368 = vsub.f32 %v2213, %v2354
        %v2369 = vsub.f32 %v2217, %v2350
        %v2370 = vsub.f32 %v2219, %v2354
        %v2371 = vsub.f32 %v2221, %v2350
        %v2372 = vsub.f32 %v2223, %v2354
        %v2373 = vsub.f32 %v2227, %v2350
        %v2374 = vsub.f32 %v2229, %v2354
        %v2375 = vsub.f32 %v2231, %v2350
        %v2376 = vsub.f32 %v2233, %v2354
        %v2377 = vsub.f32 %v2237, %v2350
        %v2378 = vsub.f32 %v2239, %v2354
        %v2379 = vsub.f32 %v2241, %v2350
        %v2380 = vsub.f32 %v2243, %v2354
        %v2381 = vsub.f32 %v2247, %v2350
        %v2382 = vsub.f32 %v2249, %v2354
        %v2383 = vsub.f32 %v2251, %v2350
        %v2384 = vsub.f32 %v2253, %v2354
        %v2385 = vsub.f32 %v2257, %v2350
        %v2386 = vsub.f32 %v2259, %v2354
        %v2387 = vsub.f32 %v2261, %v2350
        %v2388 = vsub.f32 %v2263, %v2354
        %v2389 = vsub.f32 %v2267, %v2350
        %v2390 = vsub.f32 %v2269, %v2354
        %v2391 = vsub.f32 %v2271, %v2350
        %v2392 = vsub.f32 %v2273, %v2354
        %v2393 = vsub.f32 %v2277, %v2350
        %v2394 = vsub.f32 %v2279, %v2354
        %v2395 = vsub.f32 %v2281, %v2350
        %v2396 = vsub.f32 %v2283, %v2354
        %v2397 = vsub.f32 %v2287, %v2350
        %v2398 = vsub.f32 %v2289, %v2354
        %v2399 = vsub.f32 %v2291, %v2350
        %v2400 = vsub.f32 %v2293, %v2354
        %v2401 = vsub.f32 %v2297, %v2350
        %v2402 = vsub.f32 %v2299, %v2354
        %v2403 = vsub.f32 %v2301, %v2350
        %v2404 = vsub.f32 %v2303, %v2354
        %v2405 = vsub.f32 %v2307, %v2350
        %v2406 = vsub.f32 %v2309, %v2354
        %v2407 = vsub.f32 %v2311, %v2350
        %v2408 = vsub.f32 %v2313, %v2354
        %v2409 = vsub.f32 %v2317, %v2350
        %v2410 = vsub.f32 %v2319, %v2354
        %v2411 = vsub.f32 %v2321, %v2350
        %v2412 = vsub.f32 %v2323, %v2354
        %v2413 = vsub.f32 %v2327, %v2350
        %v2414 = vsub.f32 %v2329, %v2354
        %v2415 = vsub.f32 %v2331, %v2350
        %v2416 = vsub.f32 %v2333, %v2354
        %v2417 = vsub.f32 %v2337, %v2350
        %v2418 = vsub.f32 %v2339, %v2354
        %v2419 = vsub.f32 %v2341, %v2350
        %v2420 = vsub.f32 %v2343, %v2354
        %s2421 = scalar_lea.vmem [#allocation3], 1
        %v2422 = vld [vmem:[%s2421] ss:$4 sm:$0x3]
        %v2424 = vlaneseq
        %v2425 = vshrl.u32 %v2424, 7
        %v2426 = vsub.s32 0, %v2425
        %v2427 = vrot.slane %v2422, %v2426
        %v2428 = vlaneseq
        %v2429 = vshrl.u32 %v2428, 7
        %v2430 = vsub.s32 1, %v2429
        %v2431 = vrot.slane %v2422, %v2430
        %v2434 = vmul.f32 %v2357, %v2427
        %v2435 = vmul.f32 %v2358, %v2431
        %v2436 = vmul.f32 %v2359, %v2427
        %v2437 = vmul.f32 %v2360, %v2431
        %v2438 = vmul.f32 %v2361, %v2427
        %v2439 = vmul.f32 %v2362, %v2431
        %v2440 = vmul.f32 %v2363, %v2427
        %v2441 = vmul.f32 %v2364, %v2431
        %v2442 = vmul.f32 %v2365, %v2427
        %v2443 = vmul.f32 %v2366, %v2431
        %v2444 = vmul.f32 %v2367, %v2427
        %v2445 = vmul.f32 %v2368, %v2431
        %v2446 = vmul.f32 %v2369, %v2427
        %v2447 = vmul.f32 %v2370, %v2431
        %v2448 = vmul.f32 %v2371, %v2427
        %v2449 = vmul.f32 %v2372, %v2431
        %v2450 = vmul.f32 %v2373, %v2427
        %v2451 = vmul.f32 %v2374, %v2431
        %v2452 = vmul.f32 %v2375, %v2427
        %v2453 = vmul.f32 %v2376, %v2431
        %v2454 = vmul.f32 %v2377, %v2427
        %v2455 = vmul.f32 %v2378, %v2431
        %v2456 = vmul.f32 %v2379, %v2427
        %v2457 = vmul.f32 %v2380, %v2431
        %v2458 = vmul.f32 %v2381, %v2427
        %v2459 = vmul.f32 %v2382, %v2431
        %v2460 = vmul.f32 %v2383, %v2427
        %v2461 = vmul.f32 %v2384, %v2431
        %v2462 = vmul.f32 %v2385, %v2427
        %v2463 = vmul.f32 %v2386, %v2431
        %v2464 = vmul.f32 %v2387, %v2427
        %v2465 = vmul.f32 %v2388, %v2431
        %v2466 = vmul.f32 %v2389, %v2427
        %v2467 = vmul.f32 %v2390, %v2431
        %v2468 = vmul.f32 %v2391, %v2427
        %v2469 = vmul.f32 %v2392, %v2431
        %v2470 = vmul.f32 %v2393, %v2427
        %v2471 = vmul.f32 %v2394, %v2431
        %v2472 = vmul.f32 %v2395, %v2427
        %v2473 = vmul.f32 %v2396, %v2431
        %v2474 = vmul.f32 %v2397, %v2427
        %v2475 = vmul.f32 %v2398, %v2431
        %v2476 = vmul.f32 %v2399, %v2427
        %v2477 = vmul.f32 %v2400, %v2431
        %v2478 = vmul.f32 %v2401, %v2427
        %v2479 = vmul.f32 %v2402, %v2431
        %v2480 = vmul.f32 %v2403, %v2427
        %v2481 = vmul.f32 %v2404, %v2431
        %v2482 = vmul.f32 %v2405, %v2427
        %v2483 = vmul.f32 %v2406, %v2431
        %v2484 = vmul.f32 %v2407, %v2427
        %v2485 = vmul.f32 %v2408, %v2431
        %v2486 = vmul.f32 %v2409, %v2427
        %v2487 = vmul.f32 %v2410, %v2431
        %v2488 = vmul.f32 %v2411, %v2427
        %v2489 = vmul.f32 %v2412, %v2431
        %v2490 = vmul.f32 %v2413, %v2427
        %v2491 = vmul.f32 %v2414, %v2431
        %v2492 = vmul.f32 %v2415, %v2427
        %v2493 = vmul.f32 %v2416, %v2431
        %v2494 = vmul.f32 %v2417, %v2427
        %v2495 = vmul.f32 %v2418, %v2431
        %v2496 = vmul.f32 %v2419, %v2427
        %v2497 = vmul.f32 %v2420, %v2431
        %v2498 = vadd.f32 %v2434, %v2435
        %2499 = vadd.xlane.f32.xlu0 %v2498
        %v2500 = vpop.xlane.xlu0 %2499
        %v2501 = vadd.f32 %v2436, %v2437
        %2502 = vadd.xlane.f32.xlu0 %v2501
        %v2503 = vpop.xlane.xlu0 %2502
        %v2504 = vadd.f32 %v2438, %v2439
        %2505 = vadd.xlane.f32.xlu0 %v2504
        %v2506 = vpop.xlane.xlu0 %2505
        %v2507 = vadd.f32 %v2440, %v2441
        %2508 = vadd.xlane.f32.xlu0 %v2507
        %v2509 = vpop.xlane.xlu0 %2508
        %v2510 = vadd.f32 %v2442, %v2443
        %2511 = vadd.xlane.f32.xlu0 %v2510
        %v2512 = vpop.xlane.xlu0 %2511
        %v2513 = vadd.f32 %v2444, %v2445
        %2514 = vadd.xlane.f32.xlu0 %v2513
        %v2515 = vpop.xlane.xlu0 %2514
        %v2516 = vadd.f32 %v2446, %v2447
        %2517 = vadd.xlane.f32.xlu0 %v2516
        %v2518 = vpop.xlane.xlu0 %2517
        %v2519 = vadd.f32 %v2448, %v2449
        %2520 = vadd.xlane.f32.xlu0 %v2519
        %v2521 = vpop.xlane.xlu0 %2520
        %v2522 = vadd.f32 %v2450, %v2451
        %2523 = vadd.xlane.f32.xlu0 %v2522
        %v2524 = vpop.xlane.xlu0 %2523
        %v2525 = vadd.f32 %v2452, %v2453
        %2526 = vadd.xlane.f32.xlu0 %v2525
        %v2527 = vpop.xlane.xlu0 %2526
        %v2528 = vadd.f32 %v2454, %v2455
        %2529 = vadd.xlane.f32.xlu0 %v2528
        %v2530 = vpop.xlane.xlu0 %2529
        %v2531 = vadd.f32 %v2456, %v2457
        %2532 = vadd.xlane.f32.xlu0 %v2531
        %v2533 = vpop.xlane.xlu0 %2532
        %v2534 = vadd.f32 %v2458, %v2459
        %2535 = vadd.xlane.f32.xlu0 %v2534
        %v2536 = vpop.xlane.xlu0 %2535
        %v2537 = vadd.f32 %v2460, %v2461
        %2538 = vadd.xlane.f32.xlu0 %v2537
        %v2539 = vpop.xlane.xlu0 %2538
        %v2540 = vadd.f32 %v2462, %v2463
        %2541 = vadd.xlane.f32.xlu0 %v2540
        %v2542 = vpop.xlane.xlu0 %2541
        %v2543 = vadd.f32 %v2464, %v2465
        %2544 = vadd.xlane.f32.xlu0 %v2543
        %v2545 = vpop.xlane.xlu0 %2544
        %v2546 = vadd.f32 %v2466, %v2467
        %2547 = vadd.xlane.f32.xlu0 %v2546
        %v2548 = vpop.xlane.xlu0 %2547
        %v2549 = vadd.f32 %v2468, %v2469
        %2550 = vadd.xlane.f32.xlu0 %v2549
        %v2551 = vpop.xlane.xlu0 %2550
        %v2552 = vadd.f32 %v2470, %v2471
        %2553 = vadd.xlane.f32.xlu0 %v2552
        %v2554 = vpop.xlane.xlu0 %2553
        %v2555 = vadd.f32 %v2472, %v2473
        %2556 = vadd.xlane.f32.xlu0 %v2555
        %v2557 = vpop.xlane.xlu0 %2556
        %v2558 = vadd.f32 %v2474, %v2475
        %2559 = vadd.xlane.f32.xlu0 %v2558
        %v2560 = vpop.xlane.xlu0 %2559
        %v2561 = vadd.f32 %v2476, %v2477
        %2562 = vadd.xlane.f32.xlu0 %v2561
        %v2563 = vpop.xlane.xlu0 %2562
        %v2564 = vadd.f32 %v2478, %v2479
        %2565 = vadd.xlane.f32.xlu0 %v2564
        %v2566 = vpop.xlane.xlu0 %2565
        %v2567 = vadd.f32 %v2480, %v2481
        %2568 = vadd.xlane.f32.xlu0 %v2567
        %v2569 = vpop.xlane.xlu0 %2568
        %v2570 = vadd.f32 %v2482, %v2483
        %2571 = vadd.xlane.f32.xlu0 %v2570
        %v2572 = vpop.xlane.xlu0 %2571
        %v2573 = vadd.f32 %v2484, %v2485
        %2574 = vadd.xlane.f32.xlu0 %v2573
        %v2575 = vpop.xlane.xlu0 %2574
        %v2576 = vadd.f32 %v2486, %v2487
        %2577 = vadd.xlane.f32.xlu0 %v2576
        %v2578 = vpop.xlane.xlu0 %2577
        %v2579 = vadd.f32 %v2488, %v2489
        %2580 = vadd.xlane.f32.xlu0 %v2579
        %v2581 = vpop.xlane.xlu0 %2580
        %v2582 = vadd.f32 %v2490, %v2491
        %2583 = vadd.xlane.f32.xlu0 %v2582
        %v2584 = vpop.xlane.xlu0 %2583
        %v2585 = vadd.f32 %v2492, %v2493
        %2586 = vadd.xlane.f32.xlu0 %v2585
        %v2587 = vpop.xlane.xlu0 %2586
        %v2588 = vadd.f32 %v2494, %v2495
        %2589 = vadd.xlane.f32.xlu0 %v2588
        %v2590 = vpop.xlane.xlu0 %2589
        %v2591 = vadd.f32 %v2496, %v2497
        %2592 = vadd.xlane.f32.xlu0 %v2591
        %v2593 = vpop.xlane.xlu0 %2592
        %v2594 = vmul.f32 %v2434, %v2434
        %v2595 = vmul.f32 %v2435, %v2435
        %v2596 = vmul.f32 %v2436, %v2436
        %v2597 = vmul.f32 %v2437, %v2437
        %v2598 = vmul.f32 %v2438, %v2438
        %v2599 = vmul.f32 %v2439, %v2439
        %v2600 = vmul.f32 %v2440, %v2440
        %v2601 = vmul.f32 %v2441, %v2441
        %v2602 = vmul.f32 %v2442, %v2442
        %v2603 = vmul.f32 %v2443, %v2443
        %v2604 = vmul.f32 %v2444, %v2444
        %v2605 = vmul.f32 %v2445, %v2445
        %v2606 = vmul.f32 %v2446, %v2446
        %v2607 = vmul.f32 %v2447, %v2447
        %v2608 = vmul.f32 %v2448, %v2448
        %v2609 = vmul.f32 %v2449, %v2449
        %v2610 = vmul.f32 %v2450, %v2450
        %v2611 = vmul.f32 %v2451, %v2451
        %v2612 = vmul.f32 %v2452, %v2452
        %v2613 = vmul.f32 %v2453, %v2453
        %v2614 = vmul.f32 %v2454, %v2454
        %v2615 = vmul.f32 %v2455, %v2455
        %v2616 = vmul.f32 %v2456, %v2456
        %v2617 = vmul.f32 %v2457, %v2457
        %v2618 = vmul.f32 %v2458, %v2458
        %v2619 = vmul.f32 %v2459, %v2459
        %v2620 = vmul.f32 %v2460, %v2460
        %v2621 = vmul.f32 %v2461, %v2461
        %v2622 = vmul.f32 %v2462, %v2462
        %v2623 = vmul.f32 %v2463, %v2463
        %v2624 = vmul.f32 %v2464, %v2464
        %v2625 = vmul.f32 %v2465, %v2465
        %v2626 = vmul.f32 %v2466, %v2466
        %v2627 = vmul.f32 %v2467, %v2467
        %v2628 = vmul.f32 %v2468, %v2468
        %v2629 = vmul.f32 %v2469, %v2469
        %v2630 = vmul.f32 %v2470, %v2470
        %v2631 = vmul.f32 %v2471, %v2471
        %v2632 = vmul.f32 %v2472, %v2472
        %v2633 = vmul.f32 %v2473, %v2473
        %v2634 = vmul.f32 %v2474, %v2474
        %v2635 = vmul.f32 %v2475, %v2475
        %v2636 = vmul.f32 %v2476, %v2476
        %v2637 = vmul.f32 %v2477, %v2477
        %v2638 = vmul.f32 %v2478, %v2478
        %v2639 = vmul.f32 %v2479, %v2479
        %v2640 = vmul.f32 %v2480, %v2480
        %v2641 = vmul.f32 %v2481, %v2481
        %v2642 = vmul.f32 %v2482, %v2482
        %v2643 = vmul.f32 %v2483, %v2483
        %v2644 = vmul.f32 %v2484, %v2484
        %v2645 = vmul.f32 %v2485, %v2485
        %v2646 = vmul.f32 %v2486, %v2486
        %v2647 = vmul.f32 %v2487, %v2487
        %v2648 = vmul.f32 %v2488, %v2488
        %v2649 = vmul.f32 %v2489, %v2489
        %v2650 = vmul.f32 %v2490, %v2490
        %v2651 = vmul.f32 %v2491, %v2491
        %v2652 = vmul.f32 %v2492, %v2492
        %v2653 = vmul.f32 %v2493, %v2493
        %v2654 = vmul.f32 %v2494, %v2494
        %v2655 = vmul.f32 %v2495, %v2495
        %v2656 = vmul.f32 %v2496, %v2496
        %v2657 = vmul.f32 %v2497, %v2497
        %v2658 = vadd.f32 %v2594, %v2595
        %2659 = vadd.xlane.f32.xlu0 %v2658
        %v2660 = vpop.xlane.xlu0 %2659
        %v2661 = vadd.f32 %v2596, %v2597
        %2662 = vadd.xlane.f32.xlu0 %v2661
        %v2663 = vpop.xlane.xlu0 %2662
        %v2664 = vadd.f32 %v2598, %v2599
        %2665 = vadd.xlane.f32.xlu0 %v2664
        %v2666 = vpop.xlane.xlu0 %2665
        %v2667 = vadd.f32 %v2600, %v2601
        %2668 = vadd.xlane.f32.xlu0 %v2667
        %v2669 = vpop.xlane.xlu0 %2668
        %v2670 = vadd.f32 %v2602, %v2603
        %2671 = vadd.xlane.f32.xlu0 %v2670
        %v2672 = vpop.xlane.xlu0 %2671
        %v2673 = vadd.f32 %v2604, %v2605
        %2674 = vadd.xlane.f32.xlu0 %v2673
        %v2675 = vpop.xlane.xlu0 %2674
        %v2676 = vadd.f32 %v2606, %v2607
        %2677 = vadd.xlane.f32.xlu0 %v2676
        %v2678 = vpop.xlane.xlu0 %2677
        %v2679 = vadd.f32 %v2608, %v2609
        %2680 = vadd.xlane.f32.xlu0 %v2679
        %v2681 = vpop.xlane.xlu0 %2680
        %v2682 = vadd.f32 %v2610, %v2611
        %2683 = vadd.xlane.f32.xlu0 %v2682
        %v2684 = vpop.xlane.xlu0 %2683
        %v2685 = vadd.f32 %v2612, %v2613
        %2686 = vadd.xlane.f32.xlu0 %v2685
        %v2687 = vpop.xlane.xlu0 %2686
        %v2688 = vadd.f32 %v2614, %v2615
        %2689 = vadd.xlane.f32.xlu0 %v2688
        %v2690 = vpop.xlane.xlu0 %2689
        %v2691 = vadd.f32 %v2616, %v2617
        %2692 = vadd.xlane.f32.xlu0 %v2691
        %v2693 = vpop.xlane.xlu0 %2692
        %v2694 = vadd.f32 %v2618, %v2619
        %2695 = vadd.xlane.f32.xlu0 %v2694
        %v2696 = vpop.xlane.xlu0 %2695
        %v2697 = vadd.f32 %v2620, %v2621
        %2698 = vadd.xlane.f32.xlu0 %v2697
        %v2699 = vpop.xlane.xlu0 %2698
        %v2700 = vadd.f32 %v2622, %v2623
        %2701 = vadd.xlane.f32.xlu0 %v2700
        %v2702 = vpop.xlane.xlu0 %2701
        %v2703 = vadd.f32 %v2624, %v2625
        %2704 = vadd.xlane.f32.xlu0 %v2703
        %v2705 = vpop.xlane.xlu0 %2704
        %v2706 = vadd.f32 %v2626, %v2627
        %2707 = vadd.xlane.f32.xlu0 %v2706
        %v2708 = vpop.xlane.xlu0 %2707
        %v2709 = vadd.f32 %v2628, %v2629
        %2710 = vadd.xlane.f32.xlu0 %v2709
        %v2711 = vpop.xlane.xlu0 %2710
        %v2712 = vadd.f32 %v2630, %v2631
        %2713 = vadd.xlane.f32.xlu0 %v2712
        %v2714 = vpop.xlane.xlu0 %2713
        %v2715 = vadd.f32 %v2632, %v2633
        %2716 = vadd.xlane.f32.xlu0 %v2715
        %v2717 = vpop.xlane.xlu0 %2716
        %v2718 = vadd.f32 %v2634, %v2635
        %2719 = vadd.xlane.f32.xlu0 %v2718
        %v2720 = vpop.xlane.xlu0 %2719
        %v2721 = vadd.f32 %v2636, %v2637
        %2722 = vadd.xlane.f32.xlu0 %v2721
        %v2723 = vpop.xlane.xlu0 %2722
        %v2724 = vadd.f32 %v2638, %v2639
        %2725 = vadd.xlane.f32.xlu0 %v2724
        %v2726 = vpop.xlane.xlu0 %2725
        %v2727 = vadd.f32 %v2640, %v2641
        %2728 = vadd.xlane.f32.xlu0 %v2727
        %v2729 = vpop.xlane.xlu0 %2728
        %v2730 = vadd.f32 %v2642, %v2643
        %2731 = vadd.xlane.f32.xlu0 %v2730
        %v2732 = vpop.xlane.xlu0 %2731
        %v2733 = vadd.f32 %v2644, %v2645
        %2734 = vadd.xlane.f32.xlu0 %v2733
        %v2735 = vpop.xlane.xlu0 %2734
        %v2736 = vadd.f32 %v2646, %v2647
        %2737 = vadd.xlane.f32.xlu0 %v2736
        %v2738 = vpop.xlane.xlu0 %2737
        %v2739 = vadd.f32 %v2648, %v2649
        %2740 = vadd.xlane.f32.xlu0 %v2739
        %v2741 = vpop.xlane.xlu0 %2740
        %v2742 = vadd.f32 %v2650, %v2651
        %2743 = vadd.xlane.f32.xlu0 %v2742
        %v2744 = vpop.xlane.xlu0 %2743
        %v2745 = vadd.f32 %v2652, %v2653
        %2746 = vadd.xlane.f32.xlu0 %v2745
        %v2747 = vpop.xlane.xlu0 %2746
        %v2748 = vadd.f32 %v2654, %v2655
        %2749 = vadd.xlane.f32.xlu0 %v2748
        %v2750 = vpop.xlane.xlu0 %2749
        %v2751 = vadd.f32 %v2656, %v2657
        %2752 = vadd.xlane.f32.xlu0 %v2751
        %v2753 = vpop.xlane.xlu0 %2752
        %v2754 = vmul.f32 %v2500, 0.00390625
        %v2755 = vmul.f32 %v2503, 0.00390625
        %v2756 = vmul.f32 %v2506, 0.00390625
        %v2757 = vmul.f32 %v2509, 0.00390625
        %v2758 = vmul.f32 %v2512, 0.00390625
        %v2759 = vmul.f32 %v2515, 0.00390625
        %v2760 = vmul.f32 %v2518, 0.00390625
        %v2761 = vmul.f32 %v2521, 0.00390625
        %v2762 = vmul.f32 %v2524, 0.00390625
        %v2763 = vmul.f32 %v2527, 0.00390625
        %v2764 = vmul.f32 %v2530, 0.00390625
        %v2765 = vmul.f32 %v2533, 0.00390625
        %v2766 = vmul.f32 %v2536, 0.00390625
        %v2767 = vmul.f32 %v2539, 0.00390625
        %v2768 = vmul.f32 %v2542, 0.00390625
        %v2769 = vmul.f32 %v2545, 0.00390625
        %v2770 = vmul.f32 %v2548, 0.00390625
        %v2771 = vmul.f32 %v2551, 0.00390625
        %v2772 = vmul.f32 %v2554, 0.00390625
        %v2773 = vmul.f32 %v2557, 0.00390625
        %v2774 = vmul.f32 %v2560, 0.00390625
        %v2775 = vmul.f32 %v2563, 0.00390625
        %v2776 = vmul.f32 %v2566, 0.00390625
        %v2777 = vmul.f32 %v2569, 0.00390625
        %v2778 = vmul.f32 %v2572, 0.00390625
        %v2779 = vmul.f32 %v2575, 0.00390625
        %v2780 = vmul.f32 %v2578, 0.00390625
        %v2781 = vmul.f32 %v2581, 0.00390625
        %v2782 = vmul.f32 %v2584, 0.00390625
        %v2783 = vmul.f32 %v2587, 0.00390625
        %v2784 = vmul.f32 %v2590, 0.00390625
        %v2785 = vmul.f32 %v2593, 0.00390625
        %v2786 = vmul.f32 %v2660, 0.00390625
        %v2787 = vmul.f32 %v2663, 0.00390625
        %v2788 = vmul.f32 %v2666, 0.00390625
        %v2789 = vmul.f32 %v2669, 0.00390625
        %v2790 = vmul.f32 %v2672, 0.00390625
        %v2791 = vmul.f32 %v2675, 0.00390625
        %v2792 = vmul.f32 %v2678, 0.00390625
        %v2793 = vmul.f32 %v2681, 0.00390625
        %v2794 = vmul.f32 %v2684, 0.00390625
        %v2795 = vmul.f32 %v2687, 0.00390625
        %v2796 = vmul.f32 %v2690, 0.00390625
        %v2797 = vmul.f32 %v2693, 0.00390625
        %v2798 = vmul.f32 %v2696, 0.00390625
        %v2799 = vmul.f32 %v2699, 0.00390625
        %v2800 = vmul.f32 %v2702, 0.00390625
        %v2801 = vmul.f32 %v2705, 0.00390625
        %v2802 = vmul.f32 %v2708, 0.00390625
        %v2803 = vmul.f32 %v2711, 0.00390625
        %v2804 = vmul.f32 %v2714, 0.00390625
        %v2805 = vmul.f32 %v2717, 0.00390625
        %v2806 = vmul.f32 %v2720, 0.00390625
        %v2807 = vmul.f32 %v2723, 0.00390625
        %v2808 = vmul.f32 %v2726, 0.00390625
        %v2809 = vmul.f32 %v2729, 0.00390625
        %v2810 = vmul.f32 %v2732, 0.00390625
        %v2811 = vmul.f32 %v2735, 0.00390625
        %v2812 = vmul.f32 %v2738, 0.00390625
        %v2813 = vmul.f32 %v2741, 0.00390625
        %v2814 = vmul.f32 %v2744, 0.00390625
        %v2815 = vmul.f32 %v2747, 0.00390625
        %v2816 = vmul.f32 %v2750, 0.00390625
        %v2817 = vmul.f32 %v2753, 0.00390625
        %v2818 = vmul.f32 %v2754, %v2754
        %v2819 = vmul.f32 %v2755, %v2755
        %v2820 = vmul.f32 %v2756, %v2756
        %v2821 = vmul.f32 %v2757, %v2757
        %v2822 = vmul.f32 %v2758, %v2758
        %v2823 = vmul.f32 %v2759, %v2759
        %v2824 = vmul.f32 %v2760, %v2760
        %v2825 = vmul.f32 %v2761, %v2761
        %v2826 = vmul.f32 %v2762, %v2762
        %v2827 = vmul.f32 %v2763, %v2763
        %v2828 = vmul.f32 %v2764, %v2764
        %v2829 = vmul.f32 %v2765, %v2765
        %v2830 = vmul.f32 %v2766, %v2766
        %v2831 = vmul.f32 %v2767, %v2767
        %v2832 = vmul.f32 %v2768, %v2768
        %v2833 = vmul.f32 %v2769, %v2769
        %v2834 = vmul.f32 %v2770, %v2770
        %v2835 = vmul.f32 %v2771, %v2771
        %v2836 = vmul.f32 %v2772, %v2772
        %v2837 = vmul.f32 %v2773, %v2773
        %v2838 = vmul.f32 %v2774, %v2774
        %v2839 = vmul.f32 %v2775, %v2775
        %v2840 = vmul.f32 %v2776, %v2776
        %v2841 = vmul.f32 %v2777, %v2777
        %v2842 = vmul.f32 %v2778, %v2778
        %v2843 = vmul.f32 %v2779, %v2779
        %v2844 = vmul.f32 %v2780, %v2780
        %v2845 = vmul.f32 %v2781, %v2781
        %v2846 = vmul.f32 %v2782, %v2782
        %v2847 = vmul.f32 %v2783, %v2783
        %v2848 = vmul.f32 %v2784, %v2784
        %v2849 = vmul.f32 %v2785, %v2785
        %v2850 = vsub.f32 %v2786, %v2818
        %v2851 = vsub.f32 %v2787, %v2819
        %v2852 = vsub.f32 %v2788, %v2820
        %v2853 = vsub.f32 %v2789, %v2821
        %v2854 = vsub.f32 %v2790, %v2822
        %v2855 = vsub.f32 %v2791, %v2823
        %v2856 = vsub.f32 %v2792, %v2824
        %v2857 = vsub.f32 %v2793, %v2825
        %v2858 = vsub.f32 %v2794, %v2826
        %v2859 = vsub.f32 %v2795, %v2827
        %v2860 = vsub.f32 %v2796, %v2828
        %v2861 = vsub.f32 %v2797, %v2829
        %v2862 = vsub.f32 %v2798, %v2830
        %v2863 = vsub.f32 %v2799, %v2831
        %v2864 = vsub.f32 %v2800, %v2832
        %v2865 = vsub.f32 %v2801, %v2833
        %v2866 = vsub.f32 %v2802, %v2834
        %v2867 = vsub.f32 %v2803, %v2835
        %v2868 = vsub.f32 %v2804, %v2836
        %v2869 = vsub.f32 %v2805, %v2837
        %v2870 = vsub.f32 %v2806, %v2838
        %v2871 = vsub.f32 %v2807, %v2839
        %v2872 = vsub.f32 %v2808, %v2840
        %v2873 = vsub.f32 %v2809, %v2841
        %v2874 = vsub.f32 %v2810, %v2842
        %v2875 = vsub.f32 %v2811, %v2843
        %v2876 = vsub.f32 %v2812, %v2844
        %v2877 = vsub.f32 %v2813, %v2845
        %v2878 = vsub.f32 %v2814, %v2846
        %v2879 = vsub.f32 %v2815, %v2847
        %v2880 = vsub.f32 %v2816, %v2848
        %v2881 = vsub.f32 %v2817, %v2849
        %v2882 = vmax.f32 %v2850, 0.0
        %v2883 = vmax.f32 %v2851, 0.0
        %v2884 = vmax.f32 %v2852, 0.0
        %v2885 = vmax.f32 %v2853, 0.0
        %v2886 = vmax.f32 %v2854, 0.0
        %v2887 = vmax.f32 %v2855, 0.0
        %v2888 = vmax.f32 %v2856, 0.0
        %v2889 = vmax.f32 %v2857, 0.0
        %v2890 = vmax.f32 %v2858, 0.0
        %v2891 = vmax.f32 %v2859, 0.0
        %v2892 = vmax.f32 %v2860, 0.0
        %v2893 = vmax.f32 %v2861, 0.0
        %v2894 = vmax.f32 %v2862, 0.0
        %v2895 = vmax.f32 %v2863, 0.0
        %v2896 = vmax.f32 %v2864, 0.0
        %v2897 = vmax.f32 %v2865, 0.0
        %v2898 = vmax.f32 %v2866, 0.0
        %v2899 = vmax.f32 %v2867, 0.0
        %v2900 = vmax.f32 %v2868, 0.0
        %v2901 = vmax.f32 %v2869, 0.0
        %v2902 = vmax.f32 %v2870, 0.0
        %v2903 = vmax.f32 %v2871, 0.0
        %v2904 = vmax.f32 %v2872, 0.0
        %v2905 = vmax.f32 %v2873, 0.0
        %v2906 = vmax.f32 %v2874, 0.0
        %v2907 = vmax.f32 %v2875, 0.0
        %v2908 = vmax.f32 %v2876, 0.0
        %v2909 = vmax.f32 %v2877, 0.0
        %v2910 = vmax.f32 %v2878, 0.0
        %v2911 = vmax.f32 %v2879, 0.0
        %v2912 = vmax.f32 %v2880, 0.0
        %v2913 = vmax.f32 %v2881, 0.0
        %v2914 = vsub.f32 %v2434, %v2754
        %v2915 = vsub.f32 %v2435, %v2754
        %v2916 = vsub.f32 %v2436, %v2755
        %v2917 = vsub.f32 %v2437, %v2755
        %v2918 = vsub.f32 %v2438, %v2756
        %v2919 = vsub.f32 %v2439, %v2756
        %v2920 = vsub.f32 %v2440, %v2757
        %v2921 = vsub.f32 %v2441, %v2757
        %v2922 = vsub.f32 %v2442, %v2758
        %v2923 = vsub.f32 %v2443, %v2758
        %v2924 = vsub.f32 %v2444, %v2759
        %v2925 = vsub.f32 %v2445, %v2759
        %v2926 = vsub.f32 %v2446, %v2760
        %v2927 = vsub.f32 %v2447, %v2760
        %v2928 = vsub.f32 %v2448, %v2761
        %v2929 = vsub.f32 %v2449, %v2761
        %v2930 = vsub.f32 %v2450, %v2762
        %v2931 = vsub.f32 %v2451, %v2762
        %v2932 = vsub.f32 %v2452, %v2763
        %v2933 = vsub.f32 %v2453, %v2763
        %v2934 = vsub.f32 %v2454, %v2764
        %v2935 = vsub.f32 %v2455, %v2764
        %v2936 = vsub.f32 %v2456, %v2765
        %v2937 = vsub.f32 %v2457, %v2765
        %v2938 = vsub.f32 %v2458, %v2766
        %v2939 = vsub.f32 %v2459, %v2766
        %v2940 = vsub.f32 %v2460, %v2767
        %v2941 = vsub.f32 %v2461, %v2767
        %v2942 = vsub.f32 %v2462, %v2768
        %v2943 = vsub.f32 %v2463, %v2768
        %v2944 = vsub.f32 %v2464, %v2769
        %v2945 = vsub.f32 %v2465, %v2769
        %v2946 = vsub.f32 %v2466, %v2770
        %v2947 = vsub.f32 %v2467, %v2770
        %v2948 = vsub.f32 %v2468, %v2771
        %v2949 = vsub.f32 %v2469, %v2771
        %v2950 = vsub.f32 %v2470, %v2772
        %v2951 = vsub.f32 %v2471, %v2772
        %v2952 = vsub.f32 %v2472, %v2773
        %v2953 = vsub.f32 %v2473, %v2773
        %v2954 = vsub.f32 %v2474, %v2774
        %v2955 = vsub.f32 %v2475, %v2774
        %v2956 = vsub.f32 %v2476, %v2775
        %v2957 = vsub.f32 %v2477, %v2775
        %v2958 = vsub.f32 %v2478, %v2776
        %v2959 = vsub.f32 %v2479, %v2776
        %v2960 = vsub.f32 %v2480, %v2777
        %v2961 = vsub.f32 %v2481, %v2777
        %v2962 = vsub.f32 %v2482, %v2778
        %v2963 = vsub.f32 %v2483, %v2778
        %v2964 = vsub.f32 %v2484, %v2779
        %v2965 = vsub.f32 %v2485, %v2779
        %v2966 = vsub.f32 %v2486, %v2780
        %v2967 = vsub.f32 %v2487, %v2780
        %v2968 = vsub.f32 %v2488, %v2781
        %v2969 = vsub.f32 %v2489, %v2781
        %v2970 = vsub.f32 %v2490, %v2782
        %v2971 = vsub.f32 %v2491, %v2782
        %v2972 = vsub.f32 %v2492, %v2783
        %v2973 = vsub.f32 %v2493, %v2783
        %v2974 = vsub.f32 %v2494, %v2784
        %v2975 = vsub.f32 %v2495, %v2784
        %v2976 = vsub.f32 %v2496, %v2785
        %v2977 = vsub.f32 %v2497, %v2785
        %v2978 = vadd.f32 %v2882, 1e-05
        %v2979 = vadd.f32 %v2883, 1e-05
        %v2980 = vadd.f32 %v2884, 1e-05
        %v2981 = vadd.f32 %v2885, 1e-05
        %v2982 = vadd.f32 %v2886, 1e-05
        %v2983 = vadd.f32 %v2887, 1e-05
        %v2984 = vadd.f32 %v2888, 1e-05
        %v2985 = vadd.f32 %v2889, 1e-05
        %v2986 = vadd.f32 %v2890, 1e-05
        %v2987 = vadd.f32 %v2891, 1e-05
        %v2988 = vadd.f32 %v2892, 1e-05
        %v2989 = vadd.f32 %v2893, 1e-05
        %v2990 = vadd.f32 %v2894, 1e-05
        %v2991 = vadd.f32 %v2895, 1e-05
        %v2992 = vadd.f32 %v2896, 1e-05
        %v2993 = vadd.f32 %v2897, 1e-05
        %v2994 = vadd.f32 %v2898, 1e-05
        %v2995 = vadd.f32 %v2899, 1e-05
        %v2996 = vadd.f32 %v2900, 1e-05
        %v2997 = vadd.f32 %v2901, 1e-05
        %v2998 = vadd.f32 %v2902, 1e-05
        %v2999 = vadd.f32 %v2903, 1e-05
        %v3000 = vadd.f32 %v2904, 1e-05
        %v3001 = vadd.f32 %v2905, 1e-05
        %v3002 = vadd.f32 %v2906, 1e-05
        %v3003 = vadd.f32 %v2907, 1e-05
        %v3004 = vadd.f32 %v2908, 1e-05
        %v3005 = vadd.f32 %v2909, 1e-05
        %v3006 = vadd.f32 %v2910, 1e-05
        %v3007 = vadd.f32 %v2911, 1e-05
        %v3008 = vadd.f32 %v2912, 1e-05
        %v3009 = vadd.f32 %v2913, 1e-05
        %v3010 = vrsqrt.pop %v2978
        %v3011 = vrsqrt.pop %v2979
        %v3012 = vrsqrt.pop %v2980
        %v3013 = vrsqrt.pop %v2981
        %v3014 = vrsqrt.pop %v2982
        %v3015 = vrsqrt.pop %v2983
        %v3016 = vrsqrt.pop %v2984
        %v3017 = vrsqrt.pop %v2985
        %v3018 = vrsqrt.pop %v2986
        %v3019 = vrsqrt.pop %v2987
        %v3020 = vrsqrt.pop %v2988
        %v3021 = vrsqrt.pop %v2989
        %v3022 = vrsqrt.pop %v2990
        %v3023 = vrsqrt.pop %v2991
        %v3024 = vrsqrt.pop %v2992
        %v3025 = vrsqrt.pop %v2993
        %v3026 = vrsqrt.pop %v2994
        %v3027 = vrsqrt.pop %v2995
        %v3028 = vrsqrt.pop %v2996
        %v3029 = vrsqrt.pop %v2997
        %v3030 = vrsqrt.pop %v2998
        %v3031 = vrsqrt.pop %v2999
        %v3032 = vrsqrt.pop %v3000
        %v3033 = vrsqrt.pop %v3001
        %v3034 = vrsqrt.pop %v3002
        %v3035 = vrsqrt.pop %v3003
        %v3036 = vrsqrt.pop %v3004
        %v3037 = vrsqrt.pop %v3005
        %v3038 = vrsqrt.pop %v3006
        %v3039 = vrsqrt.pop %v3007
        %v3040 = vrsqrt.pop %v3008
        %v3041 = vrsqrt.pop %v3009
        %v3042 = vmul.f32 %v2914, %v3010
        %v3043 = vmul.f32 %v2915, %v3010
        %v3044 = vmul.f32 %v2916, %v3011
        %v3045 = vmul.f32 %v2917, %v3011
        %v3046 = vmul.f32 %v2918, %v3012
        %v3047 = vmul.f32 %v2919, %v3012
        %v3048 = vmul.f32 %v2920, %v3013
        %v3049 = vmul.f32 %v2921, %v3013
        %v3050 = vmul.f32 %v2922, %v3014
        %v3051 = vmul.f32 %v2923, %v3014
        %v3052 = vmul.f32 %v2924, %v3015
        %v3053 = vmul.f32 %v2925, %v3015
        %v3054 = vmul.f32 %v2926, %v3016
        %v3055 = vmul.f32 %v2927, %v3016
        %v3056 = vmul.f32 %v2928, %v3017
        %v3057 = vmul.f32 %v2929, %v3017
        %v3058 = vmul.f32 %v2930, %v3018
        %v3059 = vmul.f32 %v2931, %v3018
        %v3060 = vmul.f32 %v2932, %v3019
        %v3061 = vmul.f32 %v2933, %v3019
        %v3062 = vmul.f32 %v2934, %v3020
        %v3063 = vmul.f32 %v2935, %v3020
        %v3064 = vmul.f32 %v2936, %v3021
        %v3065 = vmul.f32 %v2937, %v3021
        %v3066 = vmul.f32 %v2938, %v3022
        %v3067 = vmul.f32 %v2939, %v3022
        %v3068 = vmul.f32 %v2940, %v3023
        %v3069 = vmul.f32 %v2941, %v3023
        %v3070 = vmul.f32 %v2942, %v3024
        %v3071 = vmul.f32 %v2943, %v3024
        %v3072 = vmul.f32 %v2944, %v3025
        %v3073 = vmul.f32 %v2945, %v3025
        %v3074 = vmul.f32 %v2946, %v3026
        %v3075 = vmul.f32 %v2947, %v3026
        %v3076 = vmul.f32 %v2948, %v3027
        %v3077 = vmul.f32 %v2949, %v3027
        %v3078 = vmul.f32 %v2950, %v3028
        %v3079 = vmul.f32 %v2951, %v3028
        %v3080 = vmul.f32 %v2952, %v3029
        %v3081 = vmul.f32 %v2953, %v3029
        %v3082 = vmul.f32 %v2954, %v3030
        %v3083 = vmul.f32 %v2955, %v3030
        %v3084 = vmul.f32 %v2956, %v3031
        %v3085 = vmul.f32 %v2957, %v3031
        %v3086 = vmul.f32 %v2958, %v3032
        %v3087 = vmul.f32 %v2959, %v3032
        %v3088 = vmul.f32 %v2960, %v3033
        %v3089 = vmul.f32 %v2961, %v3033
        %v3090 = vmul.f32 %v2962, %v3034
        %v3091 = vmul.f32 %v2963, %v3034
        %v3092 = vmul.f32 %v2964, %v3035
        %v3093 = vmul.f32 %v2965, %v3035
        %v3094 = vmul.f32 %v2966, %v3036
        %v3095 = vmul.f32 %v2967, %v3036
        %v3096 = vmul.f32 %v2968, %v3037
        %v3097 = vmul.f32 %v2969, %v3037
        %v3098 = vmul.f32 %v2970, %v3038
        %v3099 = vmul.f32 %v2971, %v3038
        %v3100 = vmul.f32 %v2972, %v3039
        %v3101 = vmul.f32 %v2973, %v3039
        %v3102 = vmul.f32 %v2974, %v3040
        %v3103 = vmul.f32 %v2975, %v3040
        %v3104 = vmul.f32 %v2976, %v3041
        %v3105 = vmul.f32 %v2977, %v3041
        %v3106 = vmul.f32 %v3042, 0.01
        %v3107 = vmul.f32 %v3043, 0.01
        %v3108 = vmul.f32 %v3044, 0.01
        %v3109 = vmul.f32 %v3045, 0.01
        %v3110 = vmul.f32 %v3046, 0.01
        %v3111 = vmul.f32 %v3047, 0.01
        %v3112 = vmul.f32 %v3048, 0.01
        %v3113 = vmul.f32 %v3049, 0.01
        %v3114 = vmul.f32 %v3050, 0.01
        %v3115 = vmul.f32 %v3051, 0.01
        %v3116 = vmul.f32 %v3052, 0.01
        %v3117 = vmul.f32 %v3053, 0.01
        %v3118 = vmul.f32 %v3054, 0.01
        %v3119 = vmul.f32 %v3055, 0.01
        %v3120 = vmul.f32 %v3056, 0.01
        %v3121 = vmul.f32 %v3057, 0.01
        %v3122 = vmul.f32 %v3058, 0.01
        %v3123 = vmul.f32 %v3059, 0.01
        %v3124 = vmul.f32 %v3060, 0.01
        %v3125 = vmul.f32 %v3061, 0.01
        %v3126 = vmul.f32 %v3062, 0.01
        %v3127 = vmul.f32 %v3063, 0.01
        %v3128 = vmul.f32 %v3064, 0.01
        %v3129 = vmul.f32 %v3065, 0.01
        %v3130 = vmul.f32 %v3066, 0.01
        %v3131 = vmul.f32 %v3067, 0.01
        %v3132 = vmul.f32 %v3068, 0.01
        %v3133 = vmul.f32 %v3069, 0.01
        %v3134 = vmul.f32 %v3070, 0.01
        %v3135 = vmul.f32 %v3071, 0.01
        %v3136 = vmul.f32 %v3072, 0.01
        %v3137 = vmul.f32 %v3073, 0.01
        %v3138 = vmul.f32 %v3074, 0.01
        %v3139 = vmul.f32 %v3075, 0.01
        %v3140 = vmul.f32 %v3076, 0.01
        %v3141 = vmul.f32 %v3077, 0.01
        %v3142 = vmul.f32 %v3078, 0.01
        %v3143 = vmul.f32 %v3079, 0.01
        %v3144 = vmul.f32 %v3080, 0.01
        %v3145 = vmul.f32 %v3081, 0.01
        %v3146 = vmul.f32 %v3082, 0.01
        %v3147 = vmul.f32 %v3083, 0.01
        %v3148 = vmul.f32 %v3084, 0.01
        %v3149 = vmul.f32 %v3085, 0.01
        %v3150 = vmul.f32 %v3086, 0.01
        %v3151 = vmul.f32 %v3087, 0.01
        %v3152 = vmul.f32 %v3088, 0.01
        %v3153 = vmul.f32 %v3089, 0.01
        %v3154 = vmul.f32 %v3090, 0.01
        %v3155 = vmul.f32 %v3091, 0.01
        %v3156 = vmul.f32 %v3092, 0.01
        %v3157 = vmul.f32 %v3093, 0.01
        %v3158 = vmul.f32 %v3094, 0.01
        %v3159 = vmul.f32 %v3095, 0.01
        %v3160 = vmul.f32 %v3096, 0.01
        %v3161 = vmul.f32 %v3097, 0.01
        %v3162 = vmul.f32 %v3098, 0.01
        %v3163 = vmul.f32 %v3099, 0.01
        %v3164 = vmul.f32 %v3100, 0.01
        %v3165 = vmul.f32 %v3101, 0.01
        %v3166 = vmul.f32 %v3102, 0.01
        %v3167 = vmul.f32 %v3103, 0.01
        %v3168 = vmul.f32 %v3104, 0.01
        %v3169 = vmul.f32 %v3105, 0.01
        %v3170 = vmax.f32 %v3042, %v3106
        %v3171 = vmax.f32 %v3043, %v3107
        %v3172 = vmax.f32 %v3044, %v3108
        %v3173 = vmax.f32 %v3045, %v3109
        %v3174 = vmax.f32 %v3046, %v3110
        %v3175 = vmax.f32 %v3047, %v3111
        %v3176 = vmax.f32 %v3048, %v3112
        %v3177 = vmax.f32 %v3049, %v3113
        %v3178 = vmax.f32 %v3050, %v3114
        %v3179 = vmax.f32 %v3051, %v3115
        %v3180 = vmax.f32 %v3052, %v3116
        %v3181 = vmax.f32 %v3053, %v3117
        %v3182 = vmax.f32 %v3054, %v3118
        %v3183 = vmax.f32 %v3055, %v3119
        %v3184 = vmax.f32 %v3056, %v3120
        %v3185 = vmax.f32 %v3057, %v3121
        %v3186 = vmax.f32 %v3058, %v3122
        %v3187 = vmax.f32 %v3059, %v3123
        %v3188 = vmax.f32 %v3060, %v3124
        %v3189 = vmax.f32 %v3061, %v3125
        %v3190 = vmax.f32 %v3062, %v3126
        %v3191 = vmax.f32 %v3063, %v3127
        %v3192 = vmax.f32 %v3064, %v3128
        %v3193 = vmax.f32 %v3065, %v3129
        %v3194 = vmax.f32 %v3066, %v3130
        %v3195 = vmax.f32 %v3067, %v3131
        %v3196 = vmax.f32 %v3068, %v3132
        %v3197 = vmax.f32 %v3069, %v3133
        %v3198 = vmax.f32 %v3070, %v3134
        %v3199 = vmax.f32 %v3071, %v3135
        %v3200 = vmax.f32 %v3072, %v3136
        %v3201 = vmax.f32 %v3073, %v3137
        %v3202 = vmax.f32 %v3074, %v3138
        %v3203 = vmax.f32 %v3075, %v3139
        %v3204 = vmax.f32 %v3076, %v3140
        %v3205 = vmax.f32 %v3077, %v3141
        %v3206 = vmax.f32 %v3078, %v3142
        %v3207 = vmax.f32 %v3079, %v3143
        %v3208 = vmax.f32 %v3080, %v3144
        %v3209 = vmax.f32 %v3081, %v3145
        %v3210 = vmax.f32 %v3082, %v3146
        %v3211 = vmax.f32 %v3083, %v3147
        %v3212 = vmax.f32 %v3084, %v3148
        %v3213 = vmax.f32 %v3085, %v3149
        %v3214 = vmax.f32 %v3086, %v3150
        %v3215 = vmax.f32 %v3087, %v3151
        %v3216 = vmax.f32 %v3088, %v3152
        %v3217 = vmax.f32 %v3089, %v3153
        %v3218 = vmax.f32 %v3090, %v3154
        %v3219 = vmax.f32 %v3091, %v3155
        %v3220 = vmax.f32 %v3092, %v3156
        %v3221 = vmax.f32 %v3093, %v3157
        %v3222 = vmax.f32 %v3094, %v3158
        %v3223 = vmax.f32 %v3095, %v3159
        %v3224 = vmax.f32 %v3096, %v3160
        %v3225 = vmax.f32 %v3097, %v3161
        %v3226 = vmax.f32 %v3098, %v3162
        %v3227 = vmax.f32 %v3099, %v3163
        %v3228 = vmax.f32 %v3100, %v3164
        %v3229 = vmax.f32 %v3101, %v3165
        %v3230 = vmax.f32 %v3102, %v3166
        %v3231 = vmax.f32 %v3103, %v3167
        %v3232 = vmax.f32 %v3104, %v3168
        %v3233 = vmax.f32 %v3105, %v3169
        %v3234 = vpack.c.bf16 %v3172, %v3170
        %v3235 = vpack.c.bf16 %v3173, %v3171
        %v3236 = vpack.c.bf16 %v3176, %v3174
        %v3237 = vpack.c.bf16 %v3177, %v3175
        %v3238 = vpack.c.bf16 %v3180, %v3178
        %v3239 = vpack.c.bf16 %v3181, %v3179
        %v3240 = vpack.c.bf16 %v3184, %v3182
        %v3241 = vpack.c.bf16 %v3185, %v3183
        %v3242 = vpack.c.bf16 %v3188, %v3186
        %v3243 = vpack.c.bf16 %v3189, %v3187
        %v3244 = vpack.c.bf16 %v3192, %v3190
        %v3245 = vpack.c.bf16 %v3193, %v3191
        %v3246 = vpack.c.bf16 %v3196, %v3194
        %v3247 = vpack.c.bf16 %v3197, %v3195
        %v3248 = vpack.c.bf16 %v3200, %v3198
        %v3249 = vpack.c.bf16 %v3201, %v3199
        %v3250 = vpack.c.bf16 %v3204, %v3202
        %v3251 = vpack.c.bf16 %v3205, %v3203
        %v3252 = vpack.c.bf16 %v3208, %v3206
        %v3253 = vpack.c.bf16 %v3209, %v3207
        %v3254 = vpack.c.bf16 %v3212, %v3210
        %v3255 = vpack.c.bf16 %v3213, %v3211
        %v3256 = vpack.c.bf16 %v3216, %v3214
        %v3257 = vpack.c.bf16 %v3217, %v3215
        %v3258 = vpack.c.bf16 %v3220, %v3218
        %v3259 = vpack.c.bf16 %v3221, %v3219
        %v3260 = vpack.c.bf16 %v3224, %v3222
        %v3261 = vpack.c.bf16 %v3225, %v3223
        %v3262 = vpack.c.bf16 %v3228, %v3226
        %v3263 = vpack.c.bf16 %v3229, %v3227
        %v3264 = vpack.c.bf16 %v3232, %v3230
        %v3265 = vpack.c.bf16 %v3233, %v3231
        %v3266 = vld [vmem:[%s3] sm:$0xff]
        %v3267 = vld [vmem:[%s3 + $0x8] sm:$0xff]
        %v3268 = vld [vmem:[%s3 + $0x10] sm:$0xff]
        %v3269 = vld [vmem:[%s3 + $0x18] sm:$0xff]
        %v3270 = vld [vmem:[%s3 + $0x20] sm:$0xff]
        %v3271 = vld [vmem:[%s3 + $0x28] sm:$0xff]
        %v3272 = vld [vmem:[%s3 + $0x30] sm:$0xff]
        %v3273 = vld [vmem:[%s3 + $0x38] sm:$0xff]
        %v3274 = vld [vmem:[%s3 + $0x40] sm:$0xff]
        %v3275 = vld [vmem:[%s3 + $0x48] sm:$0xff]
        %v3276 = vld [vmem:[%s3 + $0x50] sm:$0xff]
        %v3277 = vld [vmem:[%s3 + $0x58] sm:$0xff]
        %v3278 = vld [vmem:[%s3 + $0x60] sm:$0xff]
        %v3279 = vld [vmem:[%s3 + $0x68] sm:$0xff]
        %v3280 = vld [vmem:[%s3 + $0x70] sm:$0xff]
        %v3281 = vld [vmem:[%s3 + $0x78] sm:$0xff]
        %v3282 = vld [vmem:[%s3 + $0x80] sm:$0xff]
        %v3283 = vld [vmem:[%s3 + $0x88] sm:$0xff]
        %v3284 = vld [vmem:[%s3 + $0x90] sm:$0xff]
        %v3285 = vld [vmem:[%s3 + $0x98] sm:$0xff]
        %v3286 = vld [vmem:[%s3 + $0xa0] sm:$0xff]
        %v3287 = vld [vmem:[%s3 + $0xa8] sm:$0xff]
        %v3288 = vld [vmem:[%s3 + $0xb0] sm:$0xff]
        %v3289 = vld [vmem:[%s3 + $0xb8] sm:$0xff]
        %v3290 = vld [vmem:[%s3 + $0xc0] sm:$0xff]
        %v3291 = vld [vmem:[%s3 + $0xc8] sm:$0xff]
        %v3292 = vld [vmem:[%s3 + $0xd0] sm:$0xff]
        %v3293 = vld [vmem:[%s3 + $0xd8] sm:$0xff]
        %v3294 = vld [vmem:[%s3 + $0xe0] sm:$0xff]
        %v3295 = vld [vmem:[%s3 + $0xe8] sm:$0xff]
        %v3296 = vld [vmem:[%s3 + $0xf0] sm:$0xff]
        %v3297 = vld [vmem:[%s3 + $0xf8] sm:$0xff]
        %v3298 = vld [vmem:[%s4] sm:$0x3]
        %v3300 = vlaneseq
        %v3301 = vshrl.u32 %v3300, 7
        %v3302 = vsub.s32 0, %v3301
        %v3303 = vrot.slane %v3298, %v3302
        %v3304 = vlaneseq
        %v3305 = vshrl.u32 %v3304, 7
        %v3306 = vsub.s32 1, %v3305
        %v3307 = vrot.slane %v3298, %v3306
        %v3342 = vunpack.c.l.b16 %v3266
        %v3343 = vunpack.c.h.b16 %v3266
        %v3344 = vunpack.c.l.b16 %v3267
        %v3345 = vunpack.c.h.b16 %v3267
        %v3346 = vunpack.c.l.b16 %v3268
        %v3347 = vunpack.c.h.b16 %v3268
        %v3348 = vunpack.c.l.b16 %v3269
        %v3349 = vunpack.c.h.b16 %v3269
        %v3350 = vunpack.c.l.b16 %v3270
        %v3351 = vunpack.c.h.b16 %v3270
        %v3352 = vunpack.c.l.b16 %v3271
        %v3353 = vunpack.c.h.b16 %v3271
        %v3354 = vunpack.c.l.b16 %v3272
        %v3355 = vunpack.c.h.b16 %v3272
        %v3356 = vunpack.c.l.b16 %v3273
        %v3357 = vunpack.c.h.b16 %v3273
        %v3358 = vunpack.c.l.b16 %v3274
        %v3359 = vunpack.c.h.b16 %v3274
        %v3360 = vunpack.c.l.b16 %v3275
        %v3361 = vunpack.c.h.b16 %v3275
        %v3362 = vunpack.c.l.b16 %v3276
        %v3363 = vunpack.c.h.b16 %v3276
        %v3364 = vunpack.c.l.b16 %v3277
        %v3365 = vunpack.c.h.b16 %v3277
        %v3366 = vunpack.c.l.b16 %v3278
        %v3367 = vunpack.c.h.b16 %v3278
        %v3368 = vunpack.c.l.b16 %v3279
        %v3369 = vunpack.c.h.b16 %v3279
        %v3370 = vunpack.c.l.b16 %v3280
        %v3371 = vunpack.c.h.b16 %v3280
        %v3372 = vunpack.c.l.b16 %v3281
        %v3373 = vunpack.c.h.b16 %v3281
        %v3374 = vunpack.c.l.b16 %v3282
        %v3375 = vunpack.c.h.b16 %v3282
        %v3376 = vunpack.c.l.b16 %v3283
        %v3377 = vunpack.c.h.b16 %v3283
        %v3378 = vunpack.c.l.b16 %v3284
        %v3379 = vunpack.c.h.b16 %v3284
        %v3380 = vunpack.c.l.b16 %v3285
        %v3381 = vunpack.c.h.b16 %v3285
        %v3382 = vunpack.c.l.b16 %v3286
        %v3383 = vunpack.c.h.b16 %v3286
        %v3384 = vunpack.c.l.b16 %v3287
        %v3385 = vunpack.c.h.b16 %v3287
        %v3386 = vunpack.c.l.b16 %v3288
        %v3387 = vunpack.c.h.b16 %v3288
        %v3388 = vunpack.c.l.b16 %v3289
        %v3389 = vunpack.c.h.b16 %v3289
        %v3390 = vunpack.c.l.b16 %v3290
        %v3391 = vunpack.c.h.b16 %v3290
        %v3392 = vunpack.c.l.b16 %v3291
        %v3393 = vunpack.c.h.b16 %v3291
        %v3394 = vunpack.c.l.b16 %v3292
        %v3395 = vunpack.c.h.b16 %v3292
        %v3396 = vunpack.c.l.b16 %v3293
        %v3397 = vunpack.c.h.b16 %v3293
        %v3398 = vunpack.c.l.b16 %v3294
        %v3399 = vunpack.c.h.b16 %v3294
        %v3400 = vunpack.c.l.b16 %v3295
        %v3401 = vunpack.c.h.b16 %v3295
        %v3402 = vunpack.c.l.b16 %v3296
        %v3403 = vunpack.c.h.b16 %v3296
        %v3404 = vunpack.c.l.b16 %v3297
        %v3405 = vunpack.c.h.b16 %v3297
        %v3406 = vpack.c.b16 %v3344, %v3342
        %v3407 = vpack.c.b16 %v3345, %v3343
        %v3408 = vpack.c.b16 %v3348, %v3346
        %v3409 = vpack.c.b16 %v3349, %v3347
        %v3410 = vpack.c.b16 %v3352, %v3350
        %v3411 = vpack.c.b16 %v3353, %v3351
        %v3412 = vpack.c.b16 %v3356, %v3354
        %v3413 = vpack.c.b16 %v3357, %v3355
        %v3414 = vpack.c.b16 %v3360, %v3358
        %v3415 = vpack.c.b16 %v3361, %v3359
        %v3416 = vpack.c.b16 %v3364, %v3362
        %v3417 = vpack.c.b16 %v3365, %v3363
        %v3418 = vpack.c.b16 %v3368, %v3366
        %v3419 = vpack.c.b16 %v3369, %v3367
        %v3420 = vpack.c.b16 %v3372, %v3370
        %v3421 = vpack.c.b16 %v3373, %v3371
        %v3422 = vpack.c.b16 %v3376, %v3374
        %v3423 = vpack.c.b16 %v3377, %v3375
        %v3424 = vpack.c.b16 %v3380, %v3378
        %v3425 = vpack.c.b16 %v3381, %v3379
        %v3426 = vpack.c.b16 %v3384, %v3382
        %v3427 = vpack.c.b16 %v3385, %v3383
        %v3428 = vpack.c.b16 %v3388, %v3386
        %v3429 = vpack.c.b16 %v3389, %v3387
        %v3430 = vpack.c.b16 %v3392, %v3390
        %v3431 = vpack.c.b16 %v3393, %v3391
        %v3432 = vpack.c.b16 %v3396, %v3394
        %v3433 = vpack.c.b16 %v3397, %v3395
        %v3434 = vpack.c.b16 %v3400, %v3398
        %v3435 = vpack.c.b16 %v3401, %v3399
        %v3436 = vpack.c.b16 %v3404, %v3402
        %v3437 = vpack.c.b16 %v3405, %v3403
        %3470 = vmatprep.subr.bf16.mxu0 %v3421
        %3471 = vmatpush1.bf16.msra.mxu0 %v3420
        %3472 = vmatprep.subr.bf16.mxu0 %v3419
        %3473 = vmatpush1.bf16.msra.mxu0 %v3418
        %3474 = vmatprep.subr.bf16.mxu0 %v3417
        %3475 = vmatpush1.bf16.msra.mxu0 %v3416
        %3476 = vmatprep.subr.bf16.mxu0 %v3415
        %3477 = vmatpush1.bf16.msra.mxu0 %v3414
        %3478 = vmatprep.subr.bf16.mxu0 %v3413
        %3479 = vmatpush1.bf16.msra.mxu0 %v3412
        %3480 = vmatprep.subr.bf16.mxu0 %v3411
        %3481 = vmatpush1.bf16.msra.mxu0 %v3410
        %3482 = vmatprep.subr.bf16.mxu0 %v3409
        %3483 = vmatpush1.bf16.msra.mxu0 %v3408
        %3484 = vmatprep.subr.bf16.mxu0 %v3407
        %3485 = vmatpush1.bf16.msra.mxu0 %v3406
        %3486 = vmatprep.subr.bf16.mxu0 %v3437
        %3487 = vmatpush2.bf16.msra.mxu0 %v3436
        %3488 = vmatprep.subr.bf16.mxu0 %v3435
        %3489 = vmatpush2.bf16.msra.mxu0 %v3434
        %3490 = vmatprep.subr.bf16.mxu0 %v3433
        %3491 = vmatpush2.bf16.msra.mxu0 %v3432
        %3492 = vmatprep.subr.bf16.mxu0 %v3431
        %3493 = vmatpush2.bf16.msra.mxu0 %v3430
        %3494 = vmatprep.subr.bf16.mxu0 %v3429
        %3495 = vmatpush2.bf16.msra.mxu0 %v3428
        %3496 = vmatprep.subr.bf16.mxu0 %v3427
        %3497 = vmatpush2.bf16.msra.mxu0 %v3426
        %3498 = vmatprep.subr.bf16.mxu0 %v3425
        %3499 = vmatpush2.bf16.msra.mxu0 %v3424
        %3500 = vmatprep.subr.bf16.mxu0 %v3423
        %3501 = vmatpush2.bf16.msra.mxu0 %v3422
        %3502 = vmatprep.mubr.bf16.mxu0 %v3235
        %3503 = vmatmul.mubr.bf16.gmra.mxu0 %v3234
        %v3504 = vpop.f32.mrf.mxu0
        %v3505 = vadd.f32 %v3303, %v3504
        %v3506 = vpop.f32.mrf.mxu0
        %v3507 = vadd.f32 %v3307, %v3506
        %v3508 = vpop.f32.mrf.mxu0
        %v3509 = vadd.f32 %v3303, %v3508
        %v3510 = vpop.f32.mrf.mxu0
        %v3511 = vadd.f32 %v3307, %v3510
        %3512 = vmatprep.mubr.bf16.mxu0 %v3237
        %3513 = vmatmul.mubr.bf16.gmra.mxu0 %v3236
        %v3514 = vpop.f32.mrf.mxu0
        %v3515 = vadd.f32 %v3303, %v3514
        %v3516 = vpop.f32.mrf.mxu0
        %v3517 = vadd.f32 %v3307, %v3516
        %v3518 = vpop.f32.mrf.mxu0
        %v3519 = vadd.f32 %v3303, %v3518
        %v3520 = vpop.f32.mrf.mxu0
        %v3521 = vadd.f32 %v3307, %v3520
        %3522 = vmatprep.mubr.bf16.mxu0 %v3239
        %3523 = vmatmul.mubr.bf16.gmra.mxu0 %v3238
        %v3524 = vpop.f32.mrf.mxu0
        %v3525 = vadd.f32 %v3303, %v3524
        %v3526 = vpop.f32.mrf.mxu0
        %v3527 = vadd.f32 %v3307, %v3526
        %v3528 = vpop.f32.mrf.mxu0
        %v3529 = vadd.f32 %v3303, %v3528
        %v3530 = vpop.f32.mrf.mxu0
        %v3531 = vadd.f32 %v3307, %v3530
        %3532 = vmatprep.mubr.bf16.mxu0 %v3241
        %3533 = vmatmul.mubr.bf16.gmra.mxu0 %v3240
        %v3534 = vpop.f32.mrf.mxu0
        %v3535 = vadd.f32 %v3303, %v3534
        %v3536 = vpop.f32.mrf.mxu0
        %v3537 = vadd.f32 %v3307, %v3536
        %v3538 = vpop.f32.mrf.mxu0
        %v3539 = vadd.f32 %v3303, %v3538
        %v3540 = vpop.f32.mrf.mxu0
        %v3541 = vadd.f32 %v3307, %v3540
        %3542 = vmatprep.mubr.bf16.mxu0 %v3243
        %3543 = vmatmul.mubr.bf16.gmra.mxu0 %v3242
        %v3544 = vpop.f32.mrf.mxu0
        %v3545 = vadd.f32 %v3303, %v3544
        %v3546 = vpop.f32.mrf.mxu0
        %v3547 = vadd.f32 %v3307, %v3546
        %v3548 = vpop.f32.mrf.mxu0
        %v3549 = vadd.f32 %v3303, %v3548
        %v3550 = vpop.f32.mrf.mxu0
        %v3551 = vadd.f32 %v3307, %v3550
        %3552 = vmatprep.mubr.bf16.mxu0 %v3245
        %3553 = vmatmul.mubr.bf16.gmra.mxu0 %v3244
        %v3554 = vpop.f32.mrf.mxu0
        %v3555 = vadd.f32 %v3303, %v3554
        %v3556 = vpop.f32.mrf.mxu0
        %v3557 = vadd.f32 %v3307, %v3556
        %v3558 = vpop.f32.mrf.mxu0
        %v3559 = vadd.f32 %v3303, %v3558
        %v3560 = vpop.f32.mrf.mxu0
        %v3561 = vadd.f32 %v3307, %v3560
        %3562 = vmatprep.mubr.bf16.mxu0 %v3247
        %3563 = vmatmul.mubr.bf16.gmra.mxu0 %v3246
        %v3564 = vpop.f32.mrf.mxu0
        %v3565 = vadd.f32 %v3303, %v3564
        %v3566 = vpop.f32.mrf.mxu0
        %v3567 = vadd.f32 %v3307, %v3566
        %v3568 = vpop.f32.mrf.mxu0
        %v3569 = vadd.f32 %v3303, %v3568
        %v3570 = vpop.f32.mrf.mxu0
        %v3571 = vadd.f32 %v3307, %v3570
        %3572 = vmatprep.mubr.bf16.mxu0 %v3249
        %3573 = vmatmul.mubr.bf16.gmra.mxu0 %v3248
        %v3574 = vpop.f32.mrf.mxu0
        %v3575 = vadd.f32 %v3303, %v3574
        %v3576 = vpop.f32.mrf.mxu0
        %v3577 = vadd.f32 %v3307, %v3576
        %v3578 = vpop.f32.mrf.mxu0
        %v3579 = vadd.f32 %v3303, %v3578
        %v3580 = vpop.f32.mrf.mxu0
        %v3581 = vadd.f32 %v3307, %v3580
        %3582 = vmatprep.mubr.bf16.mxu0 %v3251
        %3583 = vmatmul.mubr.bf16.gmra.mxu0 %v3250
        %v3584 = vpop.f32.mrf.mxu0
        %v3585 = vadd.f32 %v3303, %v3584
        %v3586 = vpop.f32.mrf.mxu0
        %v3587 = vadd.f32 %v3307, %v3586
        %v3588 = vpop.f32.mrf.mxu0
        %v3589 = vadd.f32 %v3303, %v3588
        %v3590 = vpop.f32.mrf.mxu0
        %v3591 = vadd.f32 %v3307, %v3590
        %3592 = vmatprep.mubr.bf16.mxu0 %v3253
        %3593 = vmatmul.mubr.bf16.gmra.mxu0 %v3252
        %v3594 = vpop.f32.mrf.mxu0
        %v3595 = vadd.f32 %v3303, %v3594
        %v3596 = vpop.f32.mrf.mxu0
        %v3597 = vadd.f32 %v3307, %v3596
        %v3598 = vpop.f32.mrf.mxu0
        %v3599 = vadd.f32 %v3303, %v3598
        %v3600 = vpop.f32.mrf.mxu0
        %v3601 = vadd.f32 %v3307, %v3600
        %3602 = vmatprep.mubr.bf16.mxu0 %v3255
        %3603 = vmatmul.mubr.bf16.gmra.mxu0 %v3254
        %v3604 = vpop.f32.mrf.mxu0
        %v3605 = vadd.f32 %v3303, %v3604
        %v3606 = vpop.f32.mrf.mxu0
        %v3607 = vadd.f32 %v3307, %v3606
        %v3608 = vpop.f32.mrf.mxu0
        %v3609 = vadd.f32 %v3303, %v3608
        %v3610 = vpop.f32.mrf.mxu0
        %v3611 = vadd.f32 %v3307, %v3610
        %3612 = vmatprep.mubr.bf16.mxu0 %v3257
        %3613 = vmatmul.mubr.bf16.gmra.mxu0 %v3256
        %v3614 = vpop.f32.mrf.mxu0
        %v3615 = vadd.f32 %v3303, %v3614
        %v3616 = vpop.f32.mrf.mxu0
        %v3617 = vadd.f32 %v3307, %v3616
        %v3618 = vpop.f32.mrf.mxu0
        %v3619 = vadd.f32 %v3303, %v3618
        %v3620 = vpop.f32.mrf.mxu0
        %v3621 = vadd.f32 %v3307, %v3620
        %3622 = vmatprep.mubr.bf16.mxu0 %v3259
        %3623 = vmatmul.mubr.bf16.gmra.mxu0 %v3258
        %v3624 = vpop.f32.mrf.mxu0
        %v3625 = vadd.f32 %v3303, %v3624
        %v3626 = vpop.f32.mrf.mxu0
        %v3627 = vadd.f32 %v3307, %v3626
        %v3628 = vpop.f32.mrf.mxu0
        %v3629 = vadd.f32 %v3303, %v3628
        %v3630 = vpop.f32.mrf.mxu0
        %v3631 = vadd.f32 %v3307, %v3630
        %3632 = vmatprep.mubr.bf16.mxu0 %v3261
        %3633 = vmatmul.mubr.bf16.gmra.mxu0 %v3260
        %v3634 = vpop.f32.mrf.mxu0
        %v3635 = vadd.f32 %v3303, %v3634
        %v3636 = vpop.f32.mrf.mxu0
        %v3637 = vadd.f32 %v3307, %v3636
        %v3638 = vpop.f32.mrf.mxu0
        %v3639 = vadd.f32 %v3303, %v3638
        %v3640 = vpop.f32.mrf.mxu0
        %v3641 = vadd.f32 %v3307, %v3640
        %3642 = vmatprep.mubr.bf16.mxu0 %v3263
        %3643 = vmatmul.mubr.bf16.gmra.mxu0 %v3262
        %v3644 = vpop.f32.mrf.mxu0
        %v3645 = vadd.f32 %v3303, %v3644
        %v3646 = vpop.f32.mrf.mxu0
        %v3647 = vadd.f32 %v3307, %v3646
        %v3648 = vpop.f32.mrf.mxu0
        %v3649 = vadd.f32 %v3303, %v3648
        %v3650 = vpop.f32.mrf.mxu0
        %v3651 = vadd.f32 %v3307, %v3650
        %3652 = vmatprep.mubr.bf16.mxu0 %v3265
        %3653 = vmatmul.mubr.bf16.gmra.mxu0 %v3264
        %v3654 = vpop.f32.mrf.mxu0
        %v3655 = vadd.f32 %v3303, %v3654
        %v3656 = vpop.f32.mrf.mxu0
        %v3657 = vadd.f32 %v3307, %v3656
        %v3658 = vpop.f32.mrf.mxu0
        %v3659 = vadd.f32 %v3303, %v3658
        %v3660 = vpop.f32.mrf.mxu0
        %v3661 = vadd.f32 %v3307, %v3660
        %3662 = vdwg.mxu0
        %3663 = vst [vmem:[%s428] sm:$0xff] %v3505
        %3664 = vst [vmem:[%s428 + $0x8] sm:$0xff] %v3507
        %3665 = vst [vmem:[%s428 + $0x10] sm:$0xff] %v3509
        %3666 = vst [vmem:[%s428 + $0x18] sm:$0xff] %v3511
        %3667 = vst [vmem:[%s428 + $0x20] sm:$0xff] %v3515
        %3668 = vst [vmem:[%s428 + $0x28] sm:$0xff] %v3517
        %3669 = vst [vmem:[%s428 + $0x30] sm:$0xff] %v3519
        %3670 = vst [vmem:[%s428 + $0x38] sm:$0xff] %v3521
        %3671 = vst [vmem:[%s428 + $0x40] sm:$0xff] %v3525
        %3672 = vst [vmem:[%s428 + $0x48] sm:$0xff] %v3527
        %3673 = vst [vmem:[%s428 + $0x50] sm:$0xff] %v3529
        %3674 = vst [vmem:[%s428 + $0x58] sm:$0xff] %v3531
        %3675 = vst [vmem:[%s428 + $0x60] sm:$0xff] %v3535
        %3676 = vst [vmem:[%s428 + $0x68] sm:$0xff] %v3537
        %3677 = vst [vmem:[%s428 + $0x70] sm:$0xff] %v3539
        %3678 = vst [vmem:[%s428 + $0x78] sm:$0xff] %v3541
        %3679 = vst [vmem:[%s428 + $0x80] sm:$0xff] %v3545
        %3680 = vst [vmem:[%s428 + $0x88] sm:$0xff] %v3547
        %3681 = vst [vmem:[%s428 + $0x90] sm:$0xff] %v3549
        %3682 = vst [vmem:[%s428 + $0x98] sm:$0xff] %v3551
        %3683 = vst [vmem:[%s428 + $0xa0] sm:$0xff] %v3555
        %3684 = vst [vmem:[%s428 + $0xa8] sm:$0xff] %v3557
        %3685 = vst [vmem:[%s428 + $0xb0] sm:$0xff] %v3559
        %3686 = vst [vmem:[%s428 + $0xb8] sm:$0xff] %v3561
        %3687 = vst [vmem:[%s428 + $0xc0] sm:$0xff] %v3565
        %3688 = vst [vmem:[%s428 + $0xc8] sm:$0xff] %v3567
        %3689 = vst [vmem:[%s428 + $0xd0] sm:$0xff] %v3569
        %3690 = vst [vmem:[%s428 + $0xd8] sm:$0xff] %v3571
        %3691 = vst [vmem:[%s428 + $0xe0] sm:$0xff] %v3575
        %3692 = vst [vmem:[%s428 + $0xe8] sm:$0xff] %v3577
        %3693 = vst [vmem:[%s428 + $0xf0] sm:$0xff] %v3579
        %3694 = vst [vmem:[%s428 + $0xf8] sm:$0xff] %v3581
        %3695 = vst [vmem:[%s428 + $0x100] sm:$0xff] %v3585
        %3696 = vst [vmem:[%s428 + $0x108] sm:$0xff] %v3587
        %3697 = vst [vmem:[%s428 + $0x110] sm:$0xff] %v3589
        %3698 = vst [vmem:[%s428 + $0x118] sm:$0xff] %v3591
        %3699 = vst [vmem:[%s428 + $0x120] sm:$0xff] %v3595
        %3700 = vst [vmem:[%s428 + $0x128] sm:$0xff] %v3597
        %3701 = vst [vmem:[%s428 + $0x130] sm:$0xff] %v3599
        %3702 = vst [vmem:[%s428 + $0x138] sm:$0xff] %v3601
        %3703 = vst [vmem:[%s428 + $0x140] sm:$0xff] %v3605
        %3704 = vst [vmem:[%s428 + $0x148] sm:$0xff] %v3607
        %3705 = vst [vmem:[%s428 + $0x150] sm:$0xff] %v3609
        %3706 = vst [vmem:[%s428 + $0x158] sm:$0xff] %v3611
        %3707 = vst [vmem:[%s428 + $0x160] sm:$0xff] %v3615
        %3708 = vst [vmem:[%s428 + $0x168] sm:$0xff] %v3617
        %3709 = vst [vmem:[%s428 + $0x170] sm:$0xff] %v3619
        %3710 = vst [vmem:[%s428 + $0x178] sm:$0xff] %v3621
        %3711 = vst [vmem:[%s428 + $0x180] sm:$0xff] %v3625
        %3712 = vst [vmem:[%s428 + $0x188] sm:$0xff] %v3627
        %3713 = vst [vmem:[%s428 + $0x190] sm:$0xff] %v3629
        %3714 = vst [vmem:[%s428 + $0x198] sm:$0xff] %v3631
        %3715 = vst [vmem:[%s428 + $0x1a0] sm:$0xff] %v3635
        %3716 = vst [vmem:[%s428 + $0x1a8] sm:$0xff] %v3637
        %3717 = vst [vmem:[%s428 + $0x1b0] sm:$0xff] %v3639
        %3718 = vst [vmem:[%s428 + $0x1b8] sm:$0xff] %v3641
        %3719 = vst [vmem:[%s428 + $0x1c0] sm:$0xff] %v3645
        %3720 = vst [vmem:[%s428 + $0x1c8] sm:$0xff] %v3647
        %3721 = vst [vmem:[%s428 + $0x1d0] sm:$0xff] %v3649
        %3722 = vst [vmem:[%s428 + $0x1d8] sm:$0xff] %v3651
        %3723 = vst [vmem:[%s428 + $0x1e0] sm:$0xff] %v3655
        %3724 = vst [vmem:[%s428 + $0x1e8] sm:$0xff] %v3657
        %3725 = vst [vmem:[%s428 + $0x1f0] sm:$0xff] %v3659
        %3726 = vst [vmem:[%s428 + $0x1f8] sm:$0xff] %v3661
        %v3727 = vld [vmem:[%s403] sm:$0xff]
        %v3728 = vld [vmem:[%s403 + $0x8] sm:$0xff]
        %v3729 = vld [vmem:[%s403 + $0x10] sm:$0xff]
        %v3730 = vld [vmem:[%s403 + $0x18] sm:$0xff]
        %v3731 = vld [vmem:[%s403 + $0x20] sm:$0xff]
        %v3732 = vld [vmem:[%s403 + $0x28] sm:$0xff]
        %v3733 = vld [vmem:[%s403 + $0x30] sm:$0xff]
        %v3734 = vld [vmem:[%s403 + $0x38] sm:$0xff]
        %v3735 = vld [vmem:[%s403 + $0x40] sm:$0xff]
        %v3736 = vld [vmem:[%s403 + $0x48] sm:$0xff]
        %v3737 = vld [vmem:[%s403 + $0x50] sm:$0xff]
        %v3738 = vld [vmem:[%s403 + $0x58] sm:$0xff]
        %v3739 = vld [vmem:[%s403 + $0x60] sm:$0xff]
        %v3740 = vld [vmem:[%s403 + $0x68] sm:$0xff]
        %v3741 = vld [vmem:[%s403 + $0x70] sm:$0xff]
        %v3742 = vld [vmem:[%s403 + $0x78] sm:$0xff]
        %v3743 = vld [vmem:[%s403 + $0x80] sm:$0xff]
        %v3744 = vld [vmem:[%s403 + $0x88] sm:$0xff]
        %v3745 = vld [vmem:[%s403 + $0x90] sm:$0xff]
        %v3746 = vld [vmem:[%s403 + $0x98] sm:$0xff]
        %v3747 = vld [vmem:[%s403 + $0xa0] sm:$0xff]
        %v3748 = vld [vmem:[%s403 + $0xa8] sm:$0xff]
        %v3749 = vld [vmem:[%s403 + $0xb0] sm:$0xff]
        %v3750 = vld [vmem:[%s403 + $0xb8] sm:$0xff]
        %v3751 = vld [vmem:[%s403 + $0xc0] sm:$0xff]
        %v3752 = vld [vmem:[%s403 + $0xc8] sm:$0xff]
        %v3753 = vld [vmem:[%s403 + $0xd0] sm:$0xff]
        %v3754 = vld [vmem:[%s403 + $0xd8] sm:$0xff]
        %v3755 = vld [vmem:[%s403 + $0xe0] sm:$0xff]
        %v3756 = vld [vmem:[%s403 + $0xe8] sm:$0xff]
        %v3757 = vld [vmem:[%s403 + $0xf0] sm:$0xff]
        %v3758 = vld [vmem:[%s403 + $0xf8] sm:$0xff]
        %v3759 = vmul.f32 %v3507, 0.5
        %v3760 = vmul.f32 %v3511, 0.5
        %v3761 = vmul.f32 %v3517, 0.5
        %v3762 = vmul.f32 %v3521, 0.5
        %v3763 = vmul.f32 %v3527, 0.5
        %v3764 = vmul.f32 %v3531, 0.5
        %v3765 = vmul.f32 %v3537, 0.5
        %v3766 = vmul.f32 %v3541, 0.5
        %v3767 = vmul.f32 %v3547, 0.5
        %v3768 = vmul.f32 %v3551, 0.5
        %v3769 = vmul.f32 %v3557, 0.5
        %v3770 = vmul.f32 %v3561, 0.5
        %v3771 = vmul.f32 %v3567, 0.5
        %v3772 = vmul.f32 %v3571, 0.5
        %v3773 = vmul.f32 %v3577, 0.5
        %v3774 = vmul.f32 %v3581, 0.5
        %v3775 = vmul.f32 %v3587, 0.5
        %v3776 = vmul.f32 %v3591, 0.5
        %v3777 = vmul.f32 %v3597, 0.5
        %v3778 = vmul.f32 %v3601, 0.5
        %v3779 = vmul.f32 %v3607, 0.5
        %v3780 = vmul.f32 %v3611, 0.5
        %v3781 = vmul.f32 %v3617, 0.5
        %v3782 = vmul.f32 %v3621, 0.5
        %v3783 = vmul.f32 %v3627, 0.5
        %v3784 = vmul.f32 %v3631, 0.5
        %v3785 = vmul.f32 %v3637, 0.5
        %v3786 = vmul.f32 %v3641, 0.5
        %v3787 = vmul.f32 %v3647, 0.5
        %v3788 = vmul.f32 %v3651, 0.5
        %v3789 = vmul.f32 %v3657, 0.5
        %v3790 = vmul.f32 %v3661, 0.5
        %v3791 = vmul.f32 %v3759, 1.442695
        %v3792 = vpow.pop %v3791
        %v3793 = vmul.f32 %v3760, 1.442695
        %v3794 = vpow.pop %v3793
        %v3795 = vmul.f32 %v3761, 1.442695
        %v3796 = vpow.pop %v3795
        %v3797 = vmul.f32 %v3762, 1.442695
        %v3798 = vpow.pop %v3797
        %v3799 = vmul.f32 %v3763, 1.442695
        %v3800 = vpow.pop %v3799
        %v3801 = vmul.f32 %v3764, 1.442695
        %v3802 = vpow.pop %v3801
        %v3803 = vmul.f32 %v3765, 1.442695
        %v3804 = vpow.pop %v3803
        %v3805 = vmul.f32 %v3766, 1.442695
        %v3806 = vpow.pop %v3805
        %v3807 = vmul.f32 %v3767, 1.442695
        %v3808 = vpow.pop %v3807
        %v3809 = vmul.f32 %v3768, 1.442695
        %v3810 = vpow.pop %v3809
        %v3811 = vmul.f32 %v3769, 1.442695
        %v3812 = vpow.pop %v3811
        %v3813 = vmul.f32 %v3770, 1.442695
        %v3814 = vpow.pop %v3813
        %v3815 = vmul.f32 %v3771, 1.442695
        %v3816 = vpow.pop %v3815
        %v3817 = vmul.f32 %v3772, 1.442695
        %v3818 = vpow.pop %v3817
        %v3819 = vmul.f32 %v3773, 1.442695
        %v3820 = vpow.pop %v3819
        %v3821 = vmul.f32 %v3774, 1.442695
        %v3822 = vpow.pop %v3821
        %v3823 = vmul.f32 %v3775, 1.442695
        %v3824 = vpow.pop %v3823
        %v3825 = vmul.f32 %v3776, 1.442695
        %v3826 = vpow.pop %v3825
        %v3827 = vmul.f32 %v3777, 1.442695
        %v3828 = vpow.pop %v3827
        %v3829 = vmul.f32 %v3778, 1.442695
        %v3830 = vpow.pop %v3829
        %v3831 = vmul.f32 %v3779, 1.442695
        %v3832 = vpow.pop %v3831
        %v3833 = vmul.f32 %v3780, 1.442695
        %v3834 = vpow.pop %v3833
        %v3835 = vmul.f32 %v3781, 1.442695
        %v3836 = vpow.pop %v3835
        %v3837 = vmul.f32 %v3782, 1.442695
        %v3838 = vpow.pop %v3837
        %v3839 = vmul.f32 %v3783, 1.442695
        %v3840 = vpow.pop %v3839
        %v3841 = vmul.f32 %v3784, 1.442695
        %v3842 = vpow.pop %v3841
        %v3843 = vmul.f32 %v3785, 1.442695
        %v3844 = vpow.pop %v3843
        %v3845 = vmul.f32 %v3786, 1.442695
        %v3846 = vpow.pop %v3845
        %v3847 = vmul.f32 %v3787, 1.442695
        %v3848 = vpow.pop %v3847
        %v3849 = vmul.f32 %v3788, 1.442695
        %v3850 = vpow.pop %v3849
        %v3851 = vmul.f32 %v3789, 1.442695
        %v3852 = vpow.pop %v3851
        %v3853 = vmul.f32 %v3790, 1.442695
        %v3854 = vpow.pop %v3853
        %v3855 = vmul.f32 %v3727, %v3792
        %v3856 = vmul.f32 %v3728, %v3794
        %v3857 = vmul.f32 %v3729, %v3796
        %v3858 = vmul.f32 %v3730, %v3798
        %v3859 = vmul.f32 %v3731, %v3800
        %v3860 = vmul.f32 %v3732, %v3802
        %v3861 = vmul.f32 %v3733, %v3804
        %v3862 = vmul.f32 %v3734, %v3806
        %v3863 = vmul.f32 %v3735, %v3808
        %v3864 = vmul.f32 %v3736, %v3810
        %v3865 = vmul.f32 %v3737, %v3812
        %v3866 = vmul.f32 %v3738, %v3814
        %v3867 = vmul.f32 %v3739, %v3816
        %v3868 = vmul.f32 %v3740, %v3818
        %v3869 = vmul.f32 %v3741, %v3820
        %v3870 = vmul.f32 %v3742, %v3822
        %v3871 = vmul.f32 %v3743, %v3824
        %v3872 = vmul.f32 %v3744, %v3826
        %v3873 = vmul.f32 %v3745, %v3828
        %v3874 = vmul.f32 %v3746, %v3830
        %v3875 = vmul.f32 %v3747, %v3832
        %v3876 = vmul.f32 %v3748, %v3834
        %v3877 = vmul.f32 %v3749, %v3836
        %v3878 = vmul.f32 %v3750, %v3838
        %v3879 = vmul.f32 %v3751, %v3840
        %v3880 = vmul.f32 %v3752, %v3842
        %v3881 = vmul.f32 %v3753, %v3844
        %v3882 = vmul.f32 %v3754, %v3846
        %v3883 = vmul.f32 %v3755, %v3848
        %v3884 = vmul.f32 %v3756, %v3850
        %v3885 = vmul.f32 %v3757, %v3852
        %v3886 = vmul.f32 %v3758, %v3854
        %v3887 = vadd.f32 %v3855, %v3505
        %v3888 = vadd.f32 %v3856, %v3509
        %v3889 = vadd.f32 %v3857, %v3515
        %v3890 = vadd.f32 %v3858, %v3519
        %v3891 = vadd.f32 %v3859, %v3525
        %v3892 = vadd.f32 %v3860, %v3529
        %v3893 = vadd.f32 %v3861, %v3535
        %v3894 = vadd.f32 %v3862, %v3539
        %v3895 = vadd.f32 %v3863, %v3545
        %v3896 = vadd.f32 %v3864, %v3549
        %v3897 = vadd.f32 %v3865, %v3555
        %v3898 = vadd.f32 %v3866, %v3559
        %v3899 = vadd.f32 %v3867, %v3565
        %v3900 = vadd.f32 %v3868, %v3569
        %v3901 = vadd.f32 %v3869, %v3575
        %v3902 = vadd.f32 %v3870, %v3579
        %v3903 = vadd.f32 %v3871, %v3585
        %v3904 = vadd.f32 %v3872, %v3589
        %v3905 = vadd.f32 %v3873, %v3595
        %v3906 = vadd.f32 %v3874, %v3599
        %v3907 = vadd.f32 %v3875, %v3605
        %v3908 = vadd.f32 %v3876, %v3609
        %v3909 = vadd.f32 %v3877, %v3615
        %v3910 = vadd.f32 %v3878, %v3619
        %v3911 = vadd.f32 %v3879, %v3625
        %v3912 = vadd.f32 %v3880, %v3629
        %v3913 = vadd.f32 %v3881, %v3635
        %v3914 = vadd.f32 %v3882, %v3639
        %v3915 = vadd.f32 %v3883, %v3645
        %v3916 = vadd.f32 %v3884, %v3649
        %v3917 = vadd.f32 %v3885, %v3655
        %v3918 = vadd.f32 %v3886, %v3659
        %s3919 = scalar_lea.vmem [#allocation2], %s435
        %3920 = vst [vmem:[%s3919] sm:$0xff] %v3887
        %3921 = vst [vmem:[%s3919 + $0x8] sm:$0xff] %v3888
        %3922 = vst [vmem:[%s3919 + $0x10] sm:$0xff] %v3889
        %3923 = vst [vmem:[%s3919 + $0x18] sm:$0xff] %v3890
        %3924 = vst [vmem:[%s3919 + $0x20] sm:$0xff] %v3891
        %3925 = vst [vmem:[%s3919 + $0x28] sm:$0xff] %v3892
        %3926 = vst [vmem:[%s3919 + $0x30] sm:$0xff] %v3893
        %3927 = vst [vmem:[%s3919 + $0x38] sm:$0xff] %v3894
        %3928 = vst [vmem:[%s3919 + $0x40] sm:$0xff] %v3895
        %3929 = vst [vmem:[%s3919 + $0x48] sm:$0xff] %v3896
        %3930 = vst [vmem:[%s3919 + $0x50] sm:$0xff] %v3897
        %3931 = vst [vmem:[%s3919 + $0x58] sm:$0xff] %v3898
        %3932 = vst [vmem:[%s3919 + $0x60] sm:$0xff] %v3899
        %3933 = vst [vmem:[%s3919 + $0x68] sm:$0xff] %v3900
        %3934 = vst [vmem:[%s3919 + $0x70] sm:$0xff] %v3901
        %3935 = vst [vmem:[%s3919 + $0x78] sm:$0xff] %v3902
        %3936 = vst [vmem:[%s3919 + $0x80] sm:$0xff] %v3903
        %3937 = vst [vmem:[%s3919 + $0x88] sm:$0xff] %v3904
        %3938 = vst [vmem:[%s3919 + $0x90] sm:$0xff] %v3905
        %3939 = vst [vmem:[%s3919 + $0x98] sm:$0xff] %v3906
        %3940 = vst [vmem:[%s3919 + $0xa0] sm:$0xff] %v3907
        %3941 = vst [vmem:[%s3919 + $0xa8] sm:$0xff] %v3908
        %3942 = vst [vmem:[%s3919 + $0xb0] sm:$0xff] %v3909
        %3943 = vst [vmem:[%s3919 + $0xb8] sm:$0xff] %v3910
        %3944 = vst [vmem:[%s3919 + $0xc0] sm:$0xff] %v3911
        %3945 = vst [vmem:[%s3919 + $0xc8] sm:$0xff] %v3912
        %3946 = vst [vmem:[%s3919 + $0xd0] sm:$0xff] %v3913
        %3947 = vst [vmem:[%s3919 + $0xd8] sm:$0xff] %v3914
        %3948 = vst [vmem:[%s3919 + $0xe0] sm:$0xff] %v3915
        %3949 = vst [vmem:[%s3919 + $0xe8] sm:$0xff] %v3916
        %3950 = vst [vmem:[%s3919 + $0xf0] sm:$0xff] %v3917
        %3951 = vst [vmem:[%s3919 + $0xf8] sm:$0xff] %v3918
        %v3952 = vpack.c.bf16 %v3888, %v3887
        %v3953 = vpack.c.bf16 %v3890, %v3889
        %v3954 = vpack.c.bf16 %v3892, %v3891
        %v3955 = vpack.c.bf16 %v3894, %v3893
        %v3956 = vpack.c.bf16 %v3896, %v3895
        %v3957 = vpack.c.bf16 %v3898, %v3897
        %v3958 = vpack.c.bf16 %v3900, %v3899
        %v3959 = vpack.c.bf16 %v3902, %v3901
        %v3960 = vpack.c.bf16 %v3904, %v3903
        %v3961 = vpack.c.bf16 %v3906, %v3905
        %v3962 = vpack.c.bf16 %v3908, %v3907
        %v3963 = vpack.c.bf16 %v3910, %v3909
        %v3964 = vpack.c.bf16 %v3912, %v3911
        %v3965 = vpack.c.bf16 %v3914, %v3913
        %v3966 = vpack.c.bf16 %v3916, %v3915
        %v3967 = vpack.c.bf16 %v3918, %v3917
        %v3968 = vld [vmem:[%s5] sm:$0xff]
        %v3969 = vld [vmem:[%s5 + $0x8] sm:$0xff]
        %v3970 = vld [vmem:[%s5 + $0x10] sm:$0xff]
        %v3971 = vld [vmem:[%s5 + $0x18] sm:$0xff]
        %v3972 = vld [vmem:[%s5 + $0x20] sm:$0xff]
        %v3973 = vld [vmem:[%s5 + $0x28] sm:$0xff]
        %v3974 = vld [vmem:[%s5 + $0x30] sm:$0xff]
        %v3975 = vld [vmem:[%s5 + $0x38] sm:$0xff]
        %v3976 = vld [vmem:[%s5 + $0x40] sm:$0xff]
        %v3977 = vld [vmem:[%s5 + $0x48] sm:$0xff]
        %v3978 = vld [vmem:[%s5 + $0x50] sm:$0xff]
        %v3979 = vld [vmem:[%s5 + $0x58] sm:$0xff]
        %v3980 = vld [vmem:[%s5 + $0x60] sm:$0xff]
        %v3981 = vld [vmem:[%s5 + $0x68] sm:$0xff]
        %v3982 = vld [vmem:[%s5 + $0x70] sm:$0xff]
        %v3983 = vld [vmem:[%s5 + $0x78] sm:$0xff]
        %v4000 = vunpack.c.l.b16 %v3968
        %v4001 = vunpack.c.h.b16 %v3968
        %v4002 = vunpack.c.l.b16 %v3969
        %v4003 = vunpack.c.h.b16 %v3969
        %v4004 = vunpack.c.l.b16 %v3970
        %v4005 = vunpack.c.h.b16 %v3970
        %v4006 = vunpack.c.l.b16 %v3971
        %v4007 = vunpack.c.h.b16 %v3971
        %v4008 = vunpack.c.l.b16 %v3972
        %v4009 = vunpack.c.h.b16 %v3972
        %v4010 = vunpack.c.l.b16 %v3973
        %v4011 = vunpack.c.h.b16 %v3973
        %v4012 = vunpack.c.l.b16 %v3974
        %v4013 = vunpack.c.h.b16 %v3974
        %v4014 = vunpack.c.l.b16 %v3975
        %v4015 = vunpack.c.h.b16 %v3975
        %v4016 = vunpack.c.l.b16 %v3976
        %v4017 = vunpack.c.h.b16 %v3976
        %v4018 = vunpack.c.l.b16 %v3977
        %v4019 = vunpack.c.h.b16 %v3977
        %v4020 = vunpack.c.l.b16 %v3978
        %v4021 = vunpack.c.h.b16 %v3978
        %v4022 = vunpack.c.l.b16 %v3979
        %v4023 = vunpack.c.h.b16 %v3979
        %v4024 = vunpack.c.l.b16 %v3980
        %v4025 = vunpack.c.h.b16 %v3980
        %v4026 = vunpack.c.l.b16 %v3981
        %v4027 = vunpack.c.h.b16 %v3981
        %v4028 = vunpack.c.l.b16 %v3982
        %v4029 = vunpack.c.h.b16 %v3982
        %v4030 = vunpack.c.l.b16 %v3983
        %v4031 = vunpack.c.h.b16 %v3983
        %v4032 = vpack.c.b16 %v4002, %v4000
        %v4033 = vpack.c.b16 %v4003, %v4001
        %v4034 = vpack.c.b16 %v4006, %v4004
        %v4035 = vpack.c.b16 %v4007, %v4005
        %v4036 = vpack.c.b16 %v4010, %v4008
        %v4037 = vpack.c.b16 %v4011, %v4009
        %v4038 = vpack.c.b16 %v4014, %v4012
        %v4039 = vpack.c.b16 %v4015, %v4013
        %v4040 = vpack.c.b16 %v4018, %v4016
        %v4041 = vpack.c.b16 %v4019, %v4017
        %v4042 = vpack.c.b16 %v4022, %v4020
        %v4043 = vpack.c.b16 %v4023, %v4021
        %v4044 = vpack.c.b16 %v4026, %v4024
        %v4045 = vpack.c.b16 %v4027, %v4025
        %v4046 = vpack.c.b16 %v4030, %v4028
        %v4047 = vpack.c.b16 %v4031, %v4029
        %4064 = vmatprep.subr.bf16.mxu0 %v4047
        %4065 = vmatpush1.bf16.msra.mxu0 %v4046
        %4066 = vmatprep.subr.bf16.mxu0 %v4045
        %4067 = vmatpush1.bf16.msra.mxu0 %v4044
        %4068 = vmatprep.subr.bf16.mxu0 %v4043
        %4069 = vmatpush1.bf16.msra.mxu0 %v4042
        %4070 = vmatprep.subr.bf16.mxu0 %v4041
        %4071 = vmatpush1.bf16.msra.mxu0 %v4040
        %4072 = vmatprep.subr.bf16.mxu0 %v4039
        %4073 = vmatpush1.bf16.msra.mxu0 %v4038
        %4074 = vmatprep.subr.bf16.mxu0 %v4037
        %4075 = vmatpush1.bf16.msra.mxu0 %v4036
        %4076 = vmatprep.subr.bf16.mxu0 %v4035
        %4077 = vmatpush1.bf16.msra.mxu0 %v4034
        %4078 = vmatprep.subr.bf16.mxu0 %v4033
        %4079 = vmatpush1.bf16.msra.mxu0 %v4032
        %4080 = vmatprep.subr.bf16.mxu0 0
        %4081 = vmatpush2.bf16.msra.mxu0 0
        %4082 = vmatprep.subr.bf16.mxu0 0
        %4083 = vmatpush2.bf16.msra.mxu0 0
        %4084 = vmatprep.subr.bf16.mxu0 0
        %4085 = vmatpush2.bf16.msra.mxu0 0
        %4086 = vmatprep.subr.bf16.mxu0 0
        %4087 = vmatpush2.bf16.msra.mxu0 0
        %4088 = vmatprep.subr.bf16.mxu0 0
        %4089 = vmatpush2.bf16.msra.mxu0 0
        %4090 = vmatprep.subr.bf16.mxu0 0
        %4091 = vmatpush2.bf16.msra.mxu0 0
        %4092 = vmatprep.subr.bf16.mxu0 0
        %4093 = vmatpush2.bf16.msra.mxu0 0
        %4094 = vmatprep.subr.bf16.mxu0 0
        %4095 = vmatpush2.bf16.msra.mxu0 0
        %4096 = vmatprep.mubr.bf16.mxu0 0
        %4097 = vmatmul.mubr.bf16.gmra.mxu0 %v3952
        %v4098 = vpop.f32.mrf.mxu0
        %v4099 = vadd.f32 0.0, %v4098
        %v4100 = vpop.f32.mrf.mxu0
        %v4101 = vadd.f32 0.0, %v4100
        %v4102 = vpop.f32.mrf.mxu0
        %v4103 = vadd.f32 0.0, %v4102
        %v4104 = vpop.f32.mrf.mxu0
        %v4105 = vadd.f32 0.0, %v4104
        %4106 = vmatprep.mubr.bf16.mxu0 0
        %4107 = vmatmul.mubr.bf16.gmra.mxu0 %v3953
        %v4108 = vpop.f32.mrf.mxu0
        %v4109 = vadd.f32 0.0, %v4108
        %v4110 = vpop.f32.mrf.mxu0
        %v4111 = vadd.f32 0.0, %v4110
        %v4112 = vpop.f32.mrf.mxu0
        %v4113 = vadd.f32 0.0, %v4112
        %v4114 = vpop.f32.mrf.mxu0
        %v4115 = vadd.f32 0.0, %v4114
        %4116 = vmatprep.mubr.bf16.mxu0 0
        %4117 = vmatmul.mubr.bf16.gmra.mxu0 %v3954
        %v4118 = vpop.f32.mrf.mxu0
        %v4119 = vadd.f32 0.0, %v4118
        %v4120 = vpop.f32.mrf.mxu0
        %v4121 = vadd.f32 0.0, %v4120
        %v4122 = vpop.f32.mrf.mxu0
        %v4123 = vadd.f32 0.0, %v4122
        %v4124 = vpop.f32.mrf.mxu0
        %v4125 = vadd.f32 0.0, %v4124
        %4126 = vmatprep.mubr.bf16.mxu0 0
        %4127 = vmatmul.mubr.bf16.gmra.mxu0 %v3955
        %v4128 = vpop.f32.mrf.mxu0
        %v4129 = vadd.f32 0.0, %v4128
        %v4130 = vpop.f32.mrf.mxu0
        %v4131 = vadd.f32 0.0, %v4130
        %v4132 = vpop.f32.mrf.mxu0
        %v4133 = vadd.f32 0.0, %v4132
        %v4134 = vpop.f32.mrf.mxu0
        %v4135 = vadd.f32 0.0, %v4134
        %4136 = vmatprep.mubr.bf16.mxu0 0
        %4137 = vmatmul.mubr.bf16.gmra.mxu0 %v3956
        %v4138 = vpop.f32.mrf.mxu0
        %v4139 = vadd.f32 0.0, %v4138
        %v4140 = vpop.f32.mrf.mxu0
        %v4141 = vadd.f32 0.0, %v4140
        %v4142 = vpop.f32.mrf.mxu0
        %v4143 = vadd.f32 0.0, %v4142
        %v4144 = vpop.f32.mrf.mxu0
        %v4145 = vadd.f32 0.0, %v4144
        %4146 = vmatprep.mubr.bf16.mxu0 0
        %4147 = vmatmul.mubr.bf16.gmra.mxu0 %v3957
        %v4148 = vpop.f32.mrf.mxu0
        %v4149 = vadd.f32 0.0, %v4148
        %v4150 = vpop.f32.mrf.mxu0
        %v4151 = vadd.f32 0.0, %v4150
        %v4152 = vpop.f32.mrf.mxu0
        %v4153 = vadd.f32 0.0, %v4152
        %v4154 = vpop.f32.mrf.mxu0
        %v4155 = vadd.f32 0.0, %v4154
        %4156 = vmatprep.mubr.bf16.mxu0 0
        %4157 = vmatmul.mubr.bf16.gmra.mxu0 %v3958
        %v4158 = vpop.f32.mrf.mxu0
        %v4159 = vadd.f32 0.0, %v4158
        %v4160 = vpop.f32.mrf.mxu0
        %v4161 = vadd.f32 0.0, %v4160
        %v4162 = vpop.f32.mrf.mxu0
        %v4163 = vadd.f32 0.0, %v4162
        %v4164 = vpop.f32.mrf.mxu0
        %v4165 = vadd.f32 0.0, %v4164
        %4166 = vmatprep.mubr.bf16.mxu0 0
        %4167 = vmatmul.mubr.bf16.gmra.mxu0 %v3959
        %v4168 = vpop.f32.mrf.mxu0
        %v4169 = vadd.f32 0.0, %v4168
        %v4170 = vpop.f32.mrf.mxu0
        %v4171 = vadd.f32 0.0, %v4170
        %v4172 = vpop.f32.mrf.mxu0
        %v4173 = vadd.f32 0.0, %v4172
        %v4174 = vpop.f32.mrf.mxu0
        %v4175 = vadd.f32 0.0, %v4174
        %4176 = vmatprep.mubr.bf16.mxu0 0
        %4177 = vmatmul.mubr.bf16.gmra.mxu0 %v3960
        %v4178 = vpop.f32.mrf.mxu0
        %v4179 = vadd.f32 0.0, %v4178
        %v4180 = vpop.f32.mrf.mxu0
        %v4181 = vadd.f32 0.0, %v4180
        %v4182 = vpop.f32.mrf.mxu0
        %v4183 = vadd.f32 0.0, %v4182
        %v4184 = vpop.f32.mrf.mxu0
        %v4185 = vadd.f32 0.0, %v4184
        %4186 = vmatprep.mubr.bf16.mxu0 0
        %4187 = vmatmul.mubr.bf16.gmra.mxu0 %v3961
        %v4188 = vpop.f32.mrf.mxu0
        %v4189 = vadd.f32 0.0, %v4188
        %v4190 = vpop.f32.mrf.mxu0
        %v4191 = vadd.f32 0.0, %v4190
        %v4192 = vpop.f32.mrf.mxu0
        %v4193 = vadd.f32 0.0, %v4192
        %v4194 = vpop.f32.mrf.mxu0
        %v4195 = vadd.f32 0.0, %v4194
        %4196 = vmatprep.mubr.bf16.mxu0 0
        %4197 = vmatmul.mubr.bf16.gmra.mxu0 %v3962
        %v4198 = vpop.f32.mrf.mxu0
        %v4199 = vadd.f32 0.0, %v4198
        %v4200 = vpop.f32.mrf.mxu0
        %v4201 = vadd.f32 0.0, %v4200
        %v4202 = vpop.f32.mrf.mxu0
        %v4203 = vadd.f32 0.0, %v4202
        %v4204 = vpop.f32.mrf.mxu0
        %v4205 = vadd.f32 0.0, %v4204
        %4206 = vmatprep.mubr.bf16.mxu0 0
        %4207 = vmatmul.mubr.bf16.gmra.mxu0 %v3963
        %v4208 = vpop.f32.mrf.mxu0
        %v4209 = vadd.f32 0.0, %v4208
        %v4210 = vpop.f32.mrf.mxu0
        %v4211 = vadd.f32 0.0, %v4210
        %v4212 = vpop.f32.mrf.mxu0
        %v4213 = vadd.f32 0.0, %v4212
        %v4214 = vpop.f32.mrf.mxu0
        %v4215 = vadd.f32 0.0, %v4214
        %4216 = vmatprep.mubr.bf16.mxu0 0
        %4217 = vmatmul.mubr.bf16.gmra.mxu0 %v3964
        %v4218 = vpop.f32.mrf.mxu0
        %v4219 = vadd.f32 0.0, %v4218
        %v4220 = vpop.f32.mrf.mxu0
        %v4221 = vadd.f32 0.0, %v4220
        %v4222 = vpop.f32.mrf.mxu0
        %v4223 = vadd.f32 0.0, %v4222
        %v4224 = vpop.f32.mrf.mxu0
        %v4225 = vadd.f32 0.0, %v4224
        %4226 = vmatprep.mubr.bf16.mxu0 0
        %4227 = vmatmul.mubr.bf16.gmra.mxu0 %v3965
        %v4228 = vpop.f32.mrf.mxu0
        %v4229 = vadd.f32 0.0, %v4228
        %v4230 = vpop.f32.mrf.mxu0
        %v4231 = vadd.f32 0.0, %v4230
        %v4232 = vpop.f32.mrf.mxu0
        %v4233 = vadd.f32 0.0, %v4232
        %v4234 = vpop.f32.mrf.mxu0
        %v4235 = vadd.f32 0.0, %v4234
        %4236 = vmatprep.mubr.bf16.mxu0 0
        %4237 = vmatmul.mubr.bf16.gmra.mxu0 %v3966
        %v4238 = vpop.f32.mrf.mxu0
        %v4239 = vadd.f32 0.0, %v4238
        %v4240 = vpop.f32.mrf.mxu0
        %v4241 = vadd.f32 0.0, %v4240
        %v4242 = vpop.f32.mrf.mxu0
        %v4243 = vadd.f32 0.0, %v4242
        %v4244 = vpop.f32.mrf.mxu0
        %v4245 = vadd.f32 0.0, %v4244
        %4246 = vmatprep.mubr.bf16.mxu0 0
        %4247 = vmatmul.mubr.bf16.gmra.mxu0 %v3967
        %v4248 = vpop.f32.mrf.mxu0
        %v4249 = vadd.f32 0.0, %v4248
        %v4250 = vpop.f32.mrf.mxu0
        %v4251 = vadd.f32 0.0, %v4250
        %v4252 = vpop.f32.mrf.mxu0
        %v4253 = vadd.f32 0.0, %v4252
        %v4254 = vpop.f32.mrf.mxu0
        %v4255 = vadd.f32 0.0, %v4254
        %4256 = vdwg.mxu0
        %p4257 = scmp.eq.s32.totalorder %s25, 0
        // Predicated region
        $region65: #{st_vae_forward.1} parent=63 // pred_check
          %p4258 = pneg %p4257
        $region66: #{st_vae_forward.1} parent=63 // pred_check_branch
          %4260 = sbr.rel (%p4258) target = $region68
        $region67: #{st_vae_forward.1} parent=63 // pred_region
          %v4261 = vmul.f32 %v4099, %v566
          %v4262 = vmul.f32 %v4101, %v566
          %v4263 = vmul.f32 %v4103, %v567
          %v4264 = vmul.f32 %v4105, %v567
          %v4265 = vmul.f32 %v4109, %v568
          %v4266 = vmul.f32 %v4111, %v568
          %v4267 = vmul.f32 %v4113, %v569
          %v4268 = vmul.f32 %v4115, %v569
          %v4269 = vmul.f32 %v4119, %v570
          %v4270 = vmul.f32 %v4121, %v570
          %v4271 = vmul.f32 %v4123, %v571
          %v4272 = vmul.f32 %v4125, %v571
          %v4273 = vmul.f32 %v4129, %v572
          %v4274 = vmul.f32 %v4131, %v572
          %v4275 = vmul.f32 %v4133, %v573
          %v4276 = vmul.f32 %v4135, %v573
          %v4277 = vmul.f32 %v4139, %v574
          %v4278 = vmul.f32 %v4141, %v574
          %v4279 = vmul.f32 %v4143, %v575
          %v4280 = vmul.f32 %v4145, %v575
          %v4281 = vmul.f32 %v4149, %v576
          %v4282 = vmul.f32 %v4151, %v576
          %v4283 = vmul.f32 %v4153, %v577
          %v4284 = vmul.f32 %v4155, %v577
          %v4285 = vmul.f32 %v4159, %v578
          %v4286 = vmul.f32 %v4161, %v578
          %v4287 = vmul.f32 %v4163, %v579
          %v4288 = vmul.f32 %v4165, %v579
          %v4289 = vmul.f32 %v4169, %v580
          %v4290 = vmul.f32 %v4171, %v580
          %v4291 = vmul.f32 %v4173, %v581
          %v4292 = vmul.f32 %v4175, %v581
          %v4293 = vmul.f32 %v4179, %v582
          %v4294 = vmul.f32 %v4181, %v582
          %v4295 = vmul.f32 %v4183, %v583
          %v4296 = vmul.f32 %v4185, %v583
          %v4297 = vmul.f32 %v4189, %v584
          %v4298 = vmul.f32 %v4191, %v584
          %v4299 = vmul.f32 %v4193, %v585
          %v4300 = vmul.f32 %v4195, %v585
          %v4301 = vmul.f32 %v4199, %v586
          %v4302 = vmul.f32 %v4201, %v586
          %v4303 = vmul.f32 %v4203, %v587
          %v4304 = vmul.f32 %v4205, %v587
          %v4305 = vmul.f32 %v4209, %v588
          %v4306 = vmul.f32 %v4211, %v588
          %v4307 = vmul.f32 %v4213, %v589
          %v4308 = vmul.f32 %v4215, %v589
          %v4309 = vmul.f32 %v4219, %v590
          %v4310 = vmul.f32 %v4221, %v590
          %v4311 = vmul.f32 %v4223, %v591
          %v4312 = vmul.f32 %v4225, %v591
          %v4313 = vmul.f32 %v4229, %v592
          %v4314 = vmul.f32 %v4231, %v592
          %v4315 = vmul.f32 %v4233, %v593
          %v4316 = vmul.f32 %v4235, %v593
          %v4317 = vmul.f32 %v4239, %v594
          %v4318 = vmul.f32 %v4241, %v594
          %v4319 = vmul.f32 %v4243, %v595
          %v4320 = vmul.f32 %v4245, %v595
          %v4321 = vmul.f32 %v4249, %v596
          %v4322 = vmul.f32 %v4251, %v596
          %v4323 = vmul.f32 %v4253, %v597
          %v4324 = vmul.f32 %v4255, %v597
          %v4325 = vadd.f32 %v4261, %v4263
          %v4326 = vadd.f32 %v4325, %v4265
          %v4327 = vadd.f32 %v4326, %v4267
          %v4328 = vadd.f32 %v4327, %v4269
          %v4329 = vadd.f32 %v4328, %v4271
          %v4330 = vadd.f32 %v4329, %v4273
          %v4331 = vadd.f32 %v4330, %v4275
          %v4332 = vadd.f32 %v4331, %v4277
          %v4333 = vadd.f32 %v4332, %v4279
          %v4334 = vadd.f32 %v4333, %v4281
          %v4335 = vadd.f32 %v4334, %v4283
          %v4336 = vadd.f32 %v4335, %v4285
          %v4337 = vadd.f32 %v4336, %v4287
          %v4338 = vadd.f32 %v4337, %v4289
          %v4339 = vadd.f32 %v4338, %v4291
          %v4340 = vadd.f32 %v4339, %v4293
          %v4341 = vadd.f32 %v4340, %v4295
          %v4342 = vadd.f32 %v4341, %v4297
          %v4343 = vadd.f32 %v4342, %v4299
          %v4344 = vadd.f32 %v4343, %v4301
          %v4345 = vadd.f32 %v4344, %v4303
          %v4346 = vadd.f32 %v4345, %v4305
          %v4347 = vadd.f32 %v4346, %v4307
          %v4348 = vadd.f32 %v4347, %v4309
          %v4349 = vadd.f32 %v4348, %v4311
          %v4350 = vadd.f32 %v4349, %v4313
          %v4351 = vadd.f32 %v4350, %v4315
          %v4352 = vadd.f32 %v4351, %v4317
          %v4353 = vadd.f32 %v4352, %v4319
          %v4354 = vadd.f32 %v4353, %v4321
          %v4355 = vadd.f32 %v4354, %v4323
          %v4356 = vrot.slane %v4355, 4
          %v4357 = vadd.f32 %v4355, %v4356
          %v4358 = vrot.slane %v4357, 2
          %v4359 = vadd.f32 %v4357, %v4358
          %v4360 = vrot.slane %v4359, 1
          %v4361 = vadd.f32 %v4359, %v4360
          %v4362 = vadd.f32 %v4262, %v4264
          %v4363 = vadd.f32 %v4362, %v4266
          %v4364 = vadd.f32 %v4363, %v4268
          %v4365 = vadd.f32 %v4364, %v4270
          %v4366 = vadd.f32 %v4365, %v4272
          %v4367 = vadd.f32 %v4366, %v4274
          %v4368 = vadd.f32 %v4367, %v4276
          %v4369 = vadd.f32 %v4368, %v4278
          %v4370 = vadd.f32 %v4369, %v4280
          %v4371 = vadd.f32 %v4370, %v4282
          %v4372 = vadd.f32 %v4371, %v4284
          %v4373 = vadd.f32 %v4372, %v4286
          %v4374 = vadd.f32 %v4373, %v4288
          %v4375 = vadd.f32 %v4374, %v4290
          %v4376 = vadd.f32 %v4375, %v4292
          %v4377 = vadd.f32 %v4376, %v4294
          %v4378 = vadd.f32 %v4377, %v4296
          %v4379 = vadd.f32 %v4378, %v4298
          %v4380 = vadd.f32 %v4379, %v4300
          %v4381 = vadd.f32 %v4380, %v4302
          %v4382 = vadd.f32 %v4381, %v4304
          %v4383 = vadd.f32 %v4382, %v4306
          %v4384 = vadd.f32 %v4383, %v4308
          %v4385 = vadd.f32 %v4384, %v4310
          %v4386 = vadd.f32 %v4385, %v4312
          %v4387 = vadd.f32 %v4386, %v4314
          %v4388 = vadd.f32 %v4387, %v4316
          %v4389 = vadd.f32 %v4388, %v4318
          %v4390 = vadd.f32 %v4389, %v4320
          %v4391 = vadd.f32 %v4390, %v4322
          %v4392 = vadd.f32 %v4391, %v4324
          %v4393 = vrot.slane %v4392, 4
          %v4394 = vadd.f32 %v4392, %v4393
          %v4395 = vrot.slane %v4394, 2
          %v4396 = vadd.f32 %v4394, %v4395
          %v4397 = vrot.slane %v4396, 1
          %v4398 = vadd.f32 %v4396, %v4397
          %v4399 = vmul.f32 %v4361, 0.00390625
          %v4400 = vmul.f32 %v4398, 0.00390625
          %v4403 = vcombine.low %v4399, %v4400
          %v4405 = vunpack.c.l.s4 1966171168
          %v4406 = vunpack.c.0.s8 %v4405
          %v4407 = vlaneseq
          %v4408 = vshrl.u32 %v4407, 7
          %v4409 = vsub.s32 %v4406, %v4408
          %v4410 = vrot.slane %v4403, %v4409
          %v4412 = vunpack.c.l.s4 1966171168
          %v4413 = vunpack.c.0.s8 %v4412
          %v4414 = vlaneseq
          %v4415 = vshrl.u32 %v4414, 7
          %v4416 = vsub.s32 %v4413, %v4415
          %v4417 = vrot.slane %v4410, %v4416
          %v4419 = vlaneseq
          %vm4420 = vcmp.ge.s32.totalorder %v4419, 0
          %vm4421 = vcmp.lt.s32.totalorder %v4419, 256
          %vm4422 = vmand %vm4420, %vm4421
          %4423 = vst.msk [vmem:[#allocation4] ss:$4 sm:$0x3] %vm4422, %v4417
          %4424 = vst [vmem:[#allocation4] sm:$0x66] 0.0
        $region68: #{st_vae_forward.1} parent=63 // pred_fallthru
          _
        %v4425 = vld [vmem:[#allocation4] ss:$4 sm:$0x3]
        %v4427 = vlaneseq
        %v4428 = vshrl.u32 %v4427, 7
        %v4429 = vsub.s32 0, %v4428
        %v4430 = vrot.slane %v4425, %v4429
        %v4431 = vlaneseq
        %v4432 = vshrl.u32 %v4431, 7
        %v4433 = vsub.s32 1, %v4432
        %v4434 = vrot.slane %v4425, %v4433
        %v4437 = vsub.f32 %v4099, %v4430
        %v4438 = vsub.f32 %v4101, %v4434
        %v4439 = vsub.f32 %v4103, %v4430
        %v4440 = vsub.f32 %v4105, %v4434
        %v4441 = vsub.f32 %v4109, %v4430
        %v4442 = vsub.f32 %v4111, %v4434
        %v4443 = vsub.f32 %v4113, %v4430
        %v4444 = vsub.f32 %v4115, %v4434
        %v4445 = vsub.f32 %v4119, %v4430
        %v4446 = vsub.f32 %v4121, %v4434
        %v4447 = vsub.f32 %v4123, %v4430
        %v4448 = vsub.f32 %v4125, %v4434
        %v4449 = vsub.f32 %v4129, %v4430
        %v4450 = vsub.f32 %v4131, %v4434
        %v4451 = vsub.f32 %v4133, %v4430
        %v4452 = vsub.f32 %v4135, %v4434
        %v4453 = vsub.f32 %v4139, %v4430
        %v4454 = vsub.f32 %v4141, %v4434
        %v4455 = vsub.f32 %v4143, %v4430
        %v4456 = vsub.f32 %v4145, %v4434
        %v4457 = vsub.f32 %v4149, %v4430
        %v4458 = vsub.f32 %v4151, %v4434
        %v4459 = vsub.f32 %v4153, %v4430
        %v4460 = vsub.f32 %v4155, %v4434
        %v4461 = vsub.f32 %v4159, %v4430
        %v4462 = vsub.f32 %v4161, %v4434
        %v4463 = vsub.f32 %v4163, %v4430
        %v4464 = vsub.f32 %v4165, %v4434
        %v4465 = vsub.f32 %v4169, %v4430
        %v4466 = vsub.f32 %v4171, %v4434
        %v4467 = vsub.f32 %v4173, %v4430
        %v4468 = vsub.f32 %v4175, %v4434
        %v4469 = vsub.f32 %v4179, %v4430
        %v4470 = vsub.f32 %v4181, %v4434
        %v4471 = vsub.f32 %v4183, %v4430
        %v4472 = vsub.f32 %v4185, %v4434
        %v4473 = vsub.f32 %v4189, %v4430
        %v4474 = vsub.f32 %v4191, %v4434
        %v4475 = vsub.f32 %v4193, %v4430
        %v4476 = vsub.f32 %v4195, %v4434
        %v4477 = vsub.f32 %v4199, %v4430
        %v4478 = vsub.f32 %v4201, %v4434
        %v4479 = vsub.f32 %v4203, %v4430
        %v4480 = vsub.f32 %v4205, %v4434
        %v4481 = vsub.f32 %v4209, %v4430
        %v4482 = vsub.f32 %v4211, %v4434
        %v4483 = vsub.f32 %v4213, %v4430
        %v4484 = vsub.f32 %v4215, %v4434
        %v4485 = vsub.f32 %v4219, %v4430
        %v4486 = vsub.f32 %v4221, %v4434
        %v4487 = vsub.f32 %v4223, %v4430
        %v4488 = vsub.f32 %v4225, %v4434
        %v4489 = vsub.f32 %v4229, %v4430
        %v4490 = vsub.f32 %v4231, %v4434
        %v4491 = vsub.f32 %v4233, %v4430
        %v4492 = vsub.f32 %v4235, %v4434
        %v4493 = vsub.f32 %v4239, %v4430
        %v4494 = vsub.f32 %v4241, %v4434
        %v4495 = vsub.f32 %v4243, %v4430
        %v4496 = vsub.f32 %v4245, %v4434
        %v4497 = vsub.f32 %v4249, %v4430
        %v4498 = vsub.f32 %v4251, %v4434
        %v4499 = vsub.f32 %v4253, %v4430
        %v4500 = vsub.f32 %v4255, %v4434
        %v4501 = vmul.f32 %v4437, %v566
        %v4502 = vmul.f32 %v4438, %v566
        %v4503 = vmul.f32 %v4439, %v567
        %v4504 = vmul.f32 %v4440, %v567
        %v4505 = vmul.f32 %v4441, %v568
        %v4506 = vmul.f32 %v4442, %v568
        %v4507 = vmul.f32 %v4443, %v569
        %v4508 = vmul.f32 %v4444, %v569
        %v4509 = vmul.f32 %v4445, %v570
        %v4510 = vmul.f32 %v4446, %v570
        %v4511 = vmul.f32 %v4447, %v571
        %v4512 = vmul.f32 %v4448, %v571
        %v4513 = vmul.f32 %v4449, %v572
        %v4514 = vmul.f32 %v4450, %v572
        %v4515 = vmul.f32 %v4451, %v573
        %v4516 = vmul.f32 %v4452, %v573
        %v4517 = vmul.f32 %v4453, %v574
        %v4518 = vmul.f32 %v4454, %v574
        %v4519 = vmul.f32 %v4455, %v575
        %v4520 = vmul.f32 %v4456, %v575
        %v4521 = vmul.f32 %v4457, %v576
        %v4522 = vmul.f32 %v4458, %v576
        %v4523 = vmul.f32 %v4459, %v577
        %v4524 = vmul.f32 %v4460, %v577
        %v4525 = vmul.f32 %v4461, %v578
        %v4526 = vmul.f32 %v4462, %v578
        %v4527 = vmul.f32 %v4463, %v579
        %v4528 = vmul.f32 %v4464, %v579
        %v4529 = vmul.f32 %v4465, %v580
        %v4530 = vmul.f32 %v4466, %v580
        %v4531 = vmul.f32 %v4467, %v581
        %v4532 = vmul.f32 %v4468, %v581
        %v4533 = vmul.f32 %v4469, %v582
        %v4534 = vmul.f32 %v4470, %v582
        %v4535 = vmul.f32 %v4471, %v583
        %v4536 = vmul.f32 %v4472, %v583
        %v4537 = vmul.f32 %v4473, %v584
        %v4538 = vmul.f32 %v4474, %v584
        %v4539 = vmul.f32 %v4475, %v585
        %v4540 = vmul.f32 %v4476, %v585
        %v4541 = vmul.f32 %v4477, %v586
        %v4542 = vmul.f32 %v4478, %v586
        %v4543 = vmul.f32 %v4479, %v587
        %v4544 = vmul.f32 %v4480, %v587
        %v4545 = vmul.f32 %v4481, %v588
        %v4546 = vmul.f32 %v4482, %v588
        %v4547 = vmul.f32 %v4483, %v589
        %v4548 = vmul.f32 %v4484, %v589
        %v4549 = vmul.f32 %v4485, %v590
        %v4550 = vmul.f32 %v4486, %v590
        %v4551 = vmul.f32 %v4487, %v591
        %v4552 = vmul.f32 %v4488, %v591
        %v4553 = vmul.f32 %v4489, %v592
        %v4554 = vmul.f32 %v4490, %v592
        %v4555 = vmul.f32 %v4491, %v593
        %v4556 = vmul.f32 %v4492, %v593
        %v4557 = vmul.f32 %v4493, %v594
        %v4558 = vmul.f32 %v4494, %v594
        %v4559 = vmul.f32 %v4495, %v595
        %v4560 = vmul.f32 %v4496, %v595
        %v4561 = vmul.f32 %v4497, %v596
        %v4562 = vmul.f32 %v4498, %v596
        %v4563 = vmul.f32 %v4499, %v597
        %v4564 = vmul.f32 %v4500, %v597
        %s4565 = scalar_lea.vmem [#allocation4], 1
        %v4566 = vld [vmem:[%s4565] ss:$4 sm:$0x3]
        %v4567 = vadd.f32 %v4501, %v4503
        %v4568 = vadd.f32 %v4567, %v4505
        %v4569 = vadd.f32 %v4568, %v4507
        %v4570 = vadd.f32 %v4569, %v4509
        %v4571 = vadd.f32 %v4570, %v4511
        %v4572 = vadd.f32 %v4571, %v4513
        %v4573 = vadd.f32 %v4572, %v4515
        %v4574 = vadd.f32 %v4573, %v4517
        %v4575 = vadd.f32 %v4574, %v4519
        %v4576 = vadd.f32 %v4575, %v4521
        %v4577 = vadd.f32 %v4576, %v4523
        %v4578 = vadd.f32 %v4577, %v4525
        %v4579 = vadd.f32 %v4578, %v4527
        %v4580 = vadd.f32 %v4579, %v4529
        %v4581 = vadd.f32 %v4580, %v4531
        %v4582 = vadd.f32 %v4581, %v4533
        %v4583 = vadd.f32 %v4582, %v4535
        %v4584 = vadd.f32 %v4583, %v4537
        %v4585 = vadd.f32 %v4584, %v4539
        %v4586 = vadd.f32 %v4585, %v4541
        %v4587 = vadd.f32 %v4586, %v4543
        %v4588 = vadd.f32 %v4587, %v4545
        %v4589 = vadd.f32 %v4588, %v4547
        %v4590 = vadd.f32 %v4589, %v4549
        %v4591 = vadd.f32 %v4590, %v4551
        %v4592 = vadd.f32 %v4591, %v4553
        %v4593 = vadd.f32 %v4592, %v4555
        %v4594 = vadd.f32 %v4593, %v4557
        %v4595 = vadd.f32 %v4594, %v4559
        %v4596 = vadd.f32 %v4595, %v4561
        %v4597 = vadd.f32 %v4596, %v4563
        %v4598 = vrot.slane %v4597, 4
        %v4599 = vadd.f32 %v4597, %v4598
        %v4600 = vrot.slane %v4599, 2
        %v4601 = vadd.f32 %v4599, %v4600
        %v4602 = vrot.slane %v4601, 1
        %v4603 = vadd.f32 %v4601, %v4602
        %v4604 = vadd.f32 %v4502, %v4504
        %v4605 = vadd.f32 %v4604, %v4506
        %v4606 = vadd.f32 %v4605, %v4508
        %v4607 = vadd.f32 %v4606, %v4510
        %v4608 = vadd.f32 %v4607, %v4512
        %v4609 = vadd.f32 %v4608, %v4514
        %v4610 = vadd.f32 %v4609, %v4516
        %v4611 = vadd.f32 %v4610, %v4518
        %v4612 = vadd.f32 %v4611, %v4520
        %v4613 = vadd.f32 %v4612, %v4522
        %v4614 = vadd.f32 %v4613, %v4524
        %v4615 = vadd.f32 %v4614, %v4526
        %v4616 = vadd.f32 %v4615, %v4528
        %v4617 = vadd.f32 %v4616, %v4530
        %v4618 = vadd.f32 %v4617, %v4532
        %v4619 = vadd.f32 %v4618, %v4534
        %v4620 = vadd.f32 %v4619, %v4536
        %v4621 = vadd.f32 %v4620, %v4538
        %v4622 = vadd.f32 %v4621, %v4540
        %v4623 = vadd.f32 %v4622, %v4542
        %v4624 = vadd.f32 %v4623, %v4544
        %v4625 = vadd.f32 %v4624, %v4546
        %v4626 = vadd.f32 %v4625, %v4548
        %v4627 = vadd.f32 %v4626, %v4550
        %v4628 = vadd.f32 %v4627, %v4552
        %v4629 = vadd.f32 %v4628, %v4554
        %v4630 = vadd.f32 %v4629, %v4556
        %v4631 = vadd.f32 %v4630, %v4558
        %v4632 = vadd.f32 %v4631, %v4560
        %v4633 = vadd.f32 %v4632, %v4562
        %v4634 = vadd.f32 %v4633, %v4564
        %v4635 = vrot.slane %v4634, 4
        %v4636 = vadd.f32 %v4634, %v4635
        %v4637 = vrot.slane %v4636, 2
        %v4638 = vadd.f32 %v4636, %v4637
        %v4639 = vrot.slane %v4638, 1
        %v4640 = vadd.f32 %v4638, %v4639
        %v4643 = vcombine.low %v4603, %v4640
        %v4645 = vunpack.c.l.s4 1966171168
        %v4646 = vunpack.c.0.s8 %v4645
        %v4647 = vlaneseq
        %v4648 = vshrl.u32 %v4647, 7
        %v4649 = vsub.s32 %v4646, %v4648
        %v4650 = vrot.slane %v4643, %v4649
        %v4652 = vunpack.c.l.s4 1966171168
        %v4653 = vunpack.c.0.s8 %v4652
        %v4654 = vlaneseq
        %v4655 = vshrl.u32 %v4654, 7
        %v4656 = vsub.s32 %v4653, %v4655
        %v4657 = vrot.slane %v4650, %v4656
        %v4659 = vadd.f32 %v4566, %v4657
        %v4660 = vlaneseq
        %vm4661 = vcmp.ge.s32.totalorder %v4660, 0
        %vm4662 = vcmp.lt.s32.totalorder %v4660, 256
        %vm4663 = vmand %vm4661, %vm4662
        %4664 = vst.msk [vmem:[%s4565] ss:$4 sm:$0x3] %vm4663, %v4659
        %s4665 = scalar_lea.vmem [#allocation4], 2
        %v4666 = vld [vmem:[%s4665] ss:$4 sm:$0x3]
        %v4667 = vmul.f32 %v4501, %v4501
        %v4668 = vmul.f32 %v4502, %v4502
        %v4669 = vmul.f32 %v4503, %v4503
        %v4670 = vmul.f32 %v4504, %v4504
        %v4671 = vmul.f32 %v4505, %v4505
        %v4672 = vmul.f32 %v4506, %v4506
        %v4673 = vmul.f32 %v4507, %v4507
        %v4674 = vmul.f32 %v4508, %v4508
        %v4675 = vmul.f32 %v4509, %v4509
        %v4676 = vmul.f32 %v4510, %v4510
        %v4677 = vmul.f32 %v4511, %v4511
        %v4678 = vmul.f32 %v4512, %v4512
        %v4679 = vmul.f32 %v4513, %v4513
        %v4680 = vmul.f32 %v4514, %v4514
        %v4681 = vmul.f32 %v4515, %v4515
        %v4682 = vmul.f32 %v4516, %v4516
        %v4683 = vmul.f32 %v4517, %v4517
        %v4684 = vmul.f32 %v4518, %v4518
        %v4685 = vmul.f32 %v4519, %v4519
        %v4686 = vmul.f32 %v4520, %v4520
        %v4687 = vmul.f32 %v4521, %v4521
        %v4688 = vmul.f32 %v4522, %v4522
        %v4689 = vmul.f32 %v4523, %v4523
        %v4690 = vmul.f32 %v4524, %v4524
        %v4691 = vmul.f32 %v4525, %v4525
        %v4692 = vmul.f32 %v4526, %v4526
        %v4693 = vmul.f32 %v4527, %v4527
        %v4694 = vmul.f32 %v4528, %v4528
        %v4695 = vmul.f32 %v4529, %v4529
        %v4696 = vmul.f32 %v4530, %v4530
        %v4697 = vmul.f32 %v4531, %v4531
        %v4698 = vmul.f32 %v4532, %v4532
        %v4699 = vmul.f32 %v4533, %v4533
        %v4700 = vmul.f32 %v4534, %v4534
        %v4701 = vmul.f32 %v4535, %v4535
        %v4702 = vmul.f32 %v4536, %v4536
        %v4703 = vmul.f32 %v4537, %v4537
        %v4704 = vmul.f32 %v4538, %v4538
        %v4705 = vmul.f32 %v4539, %v4539
        %v4706 = vmul.f32 %v4540, %v4540
        %v4707 = vmul.f32 %v4541, %v4541
        %v4708 = vmul.f32 %v4542, %v4542
        %v4709 = vmul.f32 %v4543, %v4543
        %v4710 = vmul.f32 %v4544, %v4544
        %v4711 = vmul.f32 %v4545, %v4545
        %v4712 = vmul.f32 %v4546, %v4546
        %v4713 = vmul.f32 %v4547, %v4547
        %v4714 = vmul.f32 %v4548, %v4548
        %v4715 = vmul.f32 %v4549, %v4549
        %v4716 = vmul.f32 %v4550, %v4550
        %v4717 = vmul.f32 %v4551, %v4551
        %v4718 = vmul.f32 %v4552, %v4552
        %v4719 = vmul.f32 %v4553, %v4553
        %v4720 = vmul.f32 %v4554, %v4554
        %v4721 = vmul.f32 %v4555, %v4555
        %v4722 = vmul.f32 %v4556, %v4556
        %v4723 = vmul.f32 %v4557, %v4557
        %v4724 = vmul.f32 %v4558, %v4558
        %v4725 = vmul.f32 %v4559, %v4559
        %v4726 = vmul.f32 %v4560, %v4560
        %v4727 = vmul.f32 %v4561, %v4561
        %v4728 = vmul.f32 %v4562, %v4562
        %v4729 = vmul.f32 %v4563, %v4563
        %v4730 = vmul.f32 %v4564, %v4564
        %v4731 = vadd.f32 %v4667, %v4669
        %v4732 = vadd.f32 %v4731, %v4671
        %v4733 = vadd.f32 %v4732, %v4673
        %v4734 = vadd.f32 %v4733, %v4675
        %v4735 = vadd.f32 %v4734, %v4677
        %v4736 = vadd.f32 %v4735, %v4679
        %v4737 = vadd.f32 %v4736, %v4681
        %v4738 = vadd.f32 %v4737, %v4683
        %v4739 = vadd.f32 %v4738, %v4685
        %v4740 = vadd.f32 %v4739, %v4687
        %v4741 = vadd.f32 %v4740, %v4689
        %v4742 = vadd.f32 %v4741, %v4691
        %v4743 = vadd.f32 %v4742, %v4693
        %v4744 = vadd.f32 %v4743, %v4695
        %v4745 = vadd.f32 %v4744, %v4697
        %v4746 = vadd.f32 %v4745, %v4699
        %v4747 = vadd.f32 %v4746, %v4701
        %v4748 = vadd.f32 %v4747, %v4703
        %v4749 = vadd.f32 %v4748, %v4705
        %v4750 = vadd.f32 %v4749, %v4707
        %v4751 = vadd.f32 %v4750, %v4709
        %v4752 = vadd.f32 %v4751, %v4711
        %v4753 = vadd.f32 %v4752, %v4713
        %v4754 = vadd.f32 %v4753, %v4715
        %v4755 = vadd.f32 %v4754, %v4717
        %v4756 = vadd.f32 %v4755, %v4719
        %v4757 = vadd.f32 %v4756, %v4721
        %v4758 = vadd.f32 %v4757, %v4723
        %v4759 = vadd.f32 %v4758, %v4725
        %v4760 = vadd.f32 %v4759, %v4727
        %v4761 = vadd.f32 %v4760, %v4729
        %v4762 = vrot.slane %v4761, 4
        %v4763 = vadd.f32 %v4761, %v4762
        %v4764 = vrot.slane %v4763, 2
        %v4765 = vadd.f32 %v4763, %v4764
        %v4766 = vrot.slane %v4765, 1
        %v4767 = vadd.f32 %v4765, %v4766
        %v4768 = vadd.f32 %v4668, %v4670
        %v4769 = vadd.f32 %v4768, %v4672
        %v4770 = vadd.f32 %v4769, %v4674
        %v4771 = vadd.f32 %v4770, %v4676
        %v4772 = vadd.f32 %v4771, %v4678
        %v4773 = vadd.f32 %v4772, %v4680
        %v4774 = vadd.f32 %v4773, %v4682
        %v4775 = vadd.f32 %v4774, %v4684
        %v4776 = vadd.f32 %v4775, %v4686
        %v4777 = vadd.f32 %v4776, %v4688
        %v4778 = vadd.f32 %v4777, %v4690
        %v4779 = vadd.f32 %v4778, %v4692
        %v4780 = vadd.f32 %v4779, %v4694
        %v4781 = vadd.f32 %v4780, %v4696
        %v4782 = vadd.f32 %v4781, %v4698
        %v4783 = vadd.f32 %v4782, %v4700
        %v4784 = vadd.f32 %v4783, %v4702
        %v4785 = vadd.f32 %v4784, %v4704
        %v4786 = vadd.f32 %v4785, %v4706
        %v4787 = vadd.f32 %v4786, %v4708
        %v4788 = vadd.f32 %v4787, %v4710
        %v4789 = vadd.f32 %v4788, %v4712
        %v4790 = vadd.f32 %v4789, %v4714
        %v4791 = vadd.f32 %v4790, %v4716
        %v4792 = vadd.f32 %v4791, %v4718
        %v4793 = vadd.f32 %v4792, %v4720
        %v4794 = vadd.f32 %v4793, %v4722
        %v4795 = vadd.f32 %v4794, %v4724
        %v4796 = vadd.f32 %v4795, %v4726
        %v4797 = vadd.f32 %v4796, %v4728
        %v4798 = vadd.f32 %v4797, %v4730
        %v4799 = vrot.slane %v4798, 4
        %v4800 = vadd.f32 %v4798, %v4799
        %v4801 = vrot.slane %v4800, 2
        %v4802 = vadd.f32 %v4800, %v4801
        %v4803 = vrot.slane %v4802, 1
        %v4804 = vadd.f32 %v4802, %v4803
        %v4807 = vcombine.low %v4767, %v4804
        %v4809 = vunpack.c.l.s4 1966171168
        %v4810 = vunpack.c.0.s8 %v4809
        %v4811 = vlaneseq
        %v4812 = vshrl.u32 %v4811, 7
        %v4813 = vsub.s32 %v4810, %v4812
        %v4814 = vrot.slane %v4807, %v4813
        %v4816 = vunpack.c.l.s4 1966171168
        %v4817 = vunpack.c.0.s8 %v4816
        %v4818 = vlaneseq
        %v4819 = vshrl.u32 %v4818, 7
        %v4820 = vsub.s32 %v4817, %v4819
        %v4821 = vrot.slane %v4814, %v4820
        %v4823 = vadd.f32 %v4666, %v4821
        %4824 = vst.msk [vmem:[%s4665] ss:$4 sm:$0x3] %vm4663, %v4823
        %p4825 = scmp.eq.s32.totalorder %s25, 2
        // Predicated region
        $region69: #{st_vae_forward.1} parent=63 // pred_check
          %p4826 = pneg %p4825
        $region70: #{st_vae_forward.1} parent=63 // pred_check_branch
          %4828 = sbr.rel (%p4826) target = $region72
        $region71: #{st_vae_forward.1} parent=63 // pred_region
          %v4829 = vld [vmem:[#allocation4] ss:$4 sm:$0x3]
          %v4830 = vld [vmem:[%s4565] ss:$4 sm:$0x3]
          %v4831 = vmul.f32 %v4830, 0.0016666667
          %v4832 = vld [vmem:[%s4665] ss:$4 sm:$0x3]
          %v4833 = vmul.f32 %v4832, 0.0016666667
          %v4834 = vmul.f32 %v4831, %v4831
          %v4835 = vsub.f32 %v4833, %v4834
          %v4836 = vmax.f32 %v4835, 0.0
          %v4837 = vadd.f32 %v4829, %v4831
          %4838 = vst.msk [vmem:[#allocation4] ss:$4 sm:$0x3] %vm4663, %v4837
          %v4839 = vadd.f32 %v4836, 0.001
          %v4840 = vrsqrt.pop %v4839
          %4841 = vst.msk [vmem:[%s4565] ss:$4 sm:$0x3] %vm4663, %v4840
        $region72: #{st_vae_forward.1} parent=63 // pred_fallthru
          _
      $region64: #{st_vae_forward.1} parent=47 // pred_fallthru
        _
      %p4842 = scmp.eq.s32.totalorder %s24, 2
      // Predicated region
      $region73: #{st_vae_forward.1} parent=47 // pred_check
        %p4843 = pneg %p4842
      $region74: #{st_vae_forward.1} parent=47 // pred_check_branch
        %4845 = sbr.rel (%p4843) target = $region76
      $region75: #{st_vae_forward.1} parent=47 // pred_region
        %s4846 = scalar_lea.vmem [#allocation2], %s435
        %v4847 = vld [vmem:[%s4846] sm:$0xff]
        %v4848 = vld [vmem:[%s4846 + $0x8] sm:$0xff]
        %v4849 = vld [vmem:[%s4846 + $0x10] sm:$0xff]
        %v4850 = vld [vmem:[%s4846 + $0x18] sm:$0xff]
        %v4851 = vld [vmem:[%s4846 + $0x20] sm:$0xff]
        %v4852 = vld [vmem:[%s4846 + $0x28] sm:$0xff]
        %v4853 = vld [vmem:[%s4846 + $0x30] sm:$0xff]
        %v4854 = vld [vmem:[%s4846 + $0x38] sm:$0xff]
        %v4855 = vld [vmem:[%s4846 + $0x40] sm:$0xff]
        %v4856 = vld [vmem:[%s4846 + $0x48] sm:$0xff]
        %v4857 = vld [vmem:[%s4846 + $0x50] sm:$0xff]
        %v4858 = vld [vmem:[%s4846 + $0x58] sm:$0xff]
        %v4859 = vld [vmem:[%s4846 + $0x60] sm:$0xff]
        %v4860 = vld [vmem:[%s4846 + $0x68] sm:$0xff]
        %v4861 = vld [vmem:[%s4846 + $0x70] sm:$0xff]
        %v4862 = vld [vmem:[%s4846 + $0x78] sm:$0xff]
        %v4863 = vld [vmem:[%s4846 + $0x80] sm:$0xff]
        %v4864 = vld [vmem:[%s4846 + $0x88] sm:$0xff]
        %v4865 = vld [vmem:[%s4846 + $0x90] sm:$0xff]
        %v4866 = vld [vmem:[%s4846 + $0x98] sm:$0xff]
        %v4867 = vld [vmem:[%s4846 + $0xa0] sm:$0xff]
        %v4868 = vld [vmem:[%s4846 + $0xa8] sm:$0xff]
        %v4869 = vld [vmem:[%s4846 + $0xb0] sm:$0xff]
        %v4870 = vld [vmem:[%s4846 + $0xb8] sm:$0xff]
        %v4871 = vld [vmem:[%s4846 + $0xc0] sm:$0xff]
        %v4872 = vld [vmem:[%s4846 + $0xc8] sm:$0xff]
        %v4873 = vld [vmem:[%s4846 + $0xd0] sm:$0xff]
        %v4874 = vld [vmem:[%s4846 + $0xd8] sm:$0xff]
        %v4875 = vld [vmem:[%s4846 + $0xe0] sm:$0xff]
        %v4876 = vld [vmem:[%s4846 + $0xe8] sm:$0xff]
        %v4877 = vld [vmem:[%s4846 + $0xf0] sm:$0xff]
        %v4878 = vld [vmem:[%s4846 + $0xf8] sm:$0xff]
        %v4879 = vpack.c.bf16 %v4848, %v4847
        %v4880 = vpack.c.bf16 %v4850, %v4849
        %v4881 = vpack.c.bf16 %v4852, %v4851
        %v4882 = vpack.c.bf16 %v4854, %v4853
        %v4883 = vpack.c.bf16 %v4856, %v4855
        %v4884 = vpack.c.bf16 %v4858, %v4857
        %v4885 = vpack.c.bf16 %v4860, %v4859
        %v4886 = vpack.c.bf16 %v4862, %v4861
        %v4887 = vpack.c.bf16 %v4864, %v4863
        %v4888 = vpack.c.bf16 %v4866, %v4865
        %v4889 = vpack.c.bf16 %v4868, %v4867
        %v4890 = vpack.c.bf16 %v4870, %v4869
        %v4891 = vpack.c.bf16 %v4872, %v4871
        %v4892 = vpack.c.bf16 %v4874, %v4873
        %v4893 = vpack.c.bf16 %v4876, %v4875
        %v4894 = vpack.c.bf16 %v4878, %v4877
        %v4895 = vld [vmem:[%s5] sm:$0xff]
        %v4896 = vld [vmem:[%s5 + $0x8] sm:$0xff]
        %v4897 = vld [vmem:[%s5 + $0x10] sm:$0xff]
        %v4898 = vld [vmem:[%s5 + $0x18] sm:$0xff]
        %v4899 = vld [vmem:[%s5 + $0x20] sm:$0xff]
        %v4900 = vld [vmem:[%s5 + $0x28] sm:$0xff]
        %v4901 = vld [vmem:[%s5 + $0x30] sm:$0xff]
        %v4902 = vld [vmem:[%s5 + $0x38] sm:$0xff]
        %v4903 = vld [vmem:[%s5 + $0x40] sm:$0xff]
        %v4904 = vld [vmem:[%s5 + $0x48] sm:$0xff]
        %v4905 = vld [vmem:[%s5 + $0x50] sm:$0xff]
        %v4906 = vld [vmem:[%s5 + $0x58] sm:$0xff]
        %v4907 = vld [vmem:[%s5 + $0x60] sm:$0xff]
        %v4908 = vld [vmem:[%s5 + $0x68] sm:$0xff]
        %v4909 = vld [vmem:[%s5 + $0x70] sm:$0xff]
        %v4910 = vld [vmem:[%s5 + $0x78] sm:$0xff]
        %v4927 = vunpack.c.l.b16 %v4895
        %v4928 = vunpack.c.h.b16 %v4895
        %v4929 = vunpack.c.l.b16 %v4896
        %v4930 = vunpack.c.h.b16 %v4896
        %v4931 = vunpack.c.l.b16 %v4897
        %v4932 = vunpack.c.h.b16 %v4897
        %v4933 = vunpack.c.l.b16 %v4898
        %v4934 = vunpack.c.h.b16 %v4898
        %v4935 = vunpack.c.l.b16 %v4899
        %v4936 = vunpack.c.h.b16 %v4899
        %v4937 = vunpack.c.l.b16 %v4900
        %v4938 = vunpack.c.h.b16 %v4900
        %v4939 = vunpack.c.l.b16 %v4901
        %v4940 = vunpack.c.h.b16 %v4901
        %v4941 = vunpack.c.l.b16 %v4902
        %v4942 = vunpack.c.h.b16 %v4902
        %v4943 = vunpack.c.l.b16 %v4903
        %v4944 = vunpack.c.h.b16 %v4903
        %v4945 = vunpack.c.l.b16 %v4904
        %v4946 = vunpack.c.h.b16 %v4904
        %v4947 = vunpack.c.l.b16 %v4905
        %v4948 = vunpack.c.h.b16 %v4905
        %v4949 = vunpack.c.l.b16 %v4906
        %v4950 = vunpack.c.h.b16 %v4906
        %v4951 = vunpack.c.l.b16 %v4907
        %v4952 = vunpack.c.h.b16 %v4907
        %v4953 = vunpack.c.l.b16 %v4908
        %v4954 = vunpack.c.h.b16 %v4908
        %v4955 = vunpack.c.l.b16 %v4909
        %v4956 = vunpack.c.h.b16 %v4909
        %v4957 = vunpack.c.l.b16 %v4910
        %v4958 = vunpack.c.h.b16 %v4910
        %v4959 = vpack.c.b16 %v4929, %v4927
        %v4960 = vpack.c.b16 %v4930, %v4928
        %v4961 = vpack.c.b16 %v4933, %v4931
        %v4962 = vpack.c.b16 %v4934, %v4932
        %v4963 = vpack.c.b16 %v4937, %v4935
        %v4964 = vpack.c.b16 %v4938, %v4936
        %v4965 = vpack.c.b16 %v4941, %v4939
        %v4966 = vpack.c.b16 %v4942, %v4940
        %v4967 = vpack.c.b16 %v4945, %v4943
        %v4968 = vpack.c.b16 %v4946, %v4944
        %v4969 = vpack.c.b16 %v4949, %v4947
        %v4970 = vpack.c.b16 %v4950, %v4948
        %v4971 = vpack.c.b16 %v4953, %v4951
        %v4972 = vpack.c.b16 %v4954, %v4952
        %v4973 = vpack.c.b16 %v4957, %v4955
        %v4974 = vpack.c.b16 %v4958, %v4956
        %4991 = vmatprep.subr.bf16.mxu0 %v4974
        %4992 = vmatpush1.bf16.msra.mxu0 %v4973
        %4993 = vmatprep.subr.bf16.mxu0 %v4972
        %4994 = vmatpush1.bf16.msra.mxu0 %v4971
        %4995 = vmatprep.subr.bf16.mxu0 %v4970
        %4996 = vmatpush1.bf16.msra.mxu0 %v4969
        %4997 = vmatprep.subr.bf16.mxu0 %v4968
        %4998 = vmatpush1.bf16.msra.mxu0 %v4967
        %4999 = vmatprep.subr.bf16.mxu0 %v4966
        %5000 = vmatpush1.bf16.msra.mxu0 %v4965
        %5001 = vmatprep.subr.bf16.mxu0 %v4964
        %5002 = vmatpush1.bf16.msra.mxu0 %v4963
        %5003 = vmatprep.subr.bf16.mxu0 %v4962
        %5004 = vmatpush1.bf16.msra.mxu0 %v4961
        %5005 = vmatprep.subr.bf16.mxu0 %v4960
        %5006 = vmatpush1.bf16.msra.mxu0 %v4959
        %5007 = vmatprep.subr.bf16.mxu0 0
        %5008 = vmatpush2.bf16.msra.mxu0 0
        %5009 = vmatprep.subr.bf16.mxu0 0
        %5010 = vmatpush2.bf16.msra.mxu0 0
        %5011 = vmatprep.subr.bf16.mxu0 0
        %5012 = vmatpush2.bf16.msra.mxu0 0
        %5013 = vmatprep.subr.bf16.mxu0 0
        %5014 = vmatpush2.bf16.msra.mxu0 0
        %5015 = vmatprep.subr.bf16.mxu0 0
        %5016 = vmatpush2.bf16.msra.mxu0 0
        %5017 = vmatprep.subr.bf16.mxu0 0
        %5018 = vmatpush2.bf16.msra.mxu0 0
        %5019 = vmatprep.subr.bf16.mxu0 0
        %5020 = vmatpush2.bf16.msra.mxu0 0
        %5021 = vmatprep.subr.bf16.mxu0 0
        %5022 = vmatpush2.bf16.msra.mxu0 0
        %5023 = vmatprep.mubr.bf16.mxu0 0
        %5024 = vmatmul.mubr.bf16.gmra.mxu0 %v4879
        %v5025 = vpop.f32.mrf.mxu0
        %v5026 = vadd.f32 0.0, %v5025
        %v5027 = vpop.f32.mrf.mxu0
        %v5028 = vadd.f32 0.0, %v5027
        %v5029 = vpop.f32.mrf.mxu0
        %v5030 = vadd.f32 0.0, %v5029
        %v5031 = vpop.f32.mrf.mxu0
        %v5032 = vadd.f32 0.0, %v5031
        %5033 = vmatprep.mubr.bf16.mxu0 0
        %5034 = vmatmul.mubr.bf16.gmra.mxu0 %v4880
        %v5035 = vpop.f32.mrf.mxu0
        %v5036 = vadd.f32 0.0, %v5035
        %v5037 = vpop.f32.mrf.mxu0
        %v5038 = vadd.f32 0.0, %v5037
        %v5039 = vpop.f32.mrf.mxu0
        %v5040 = vadd.f32 0.0, %v5039
        %v5041 = vpop.f32.mrf.mxu0
        %v5042 = vadd.f32 0.0, %v5041
        %5043 = vmatprep.mubr.bf16.mxu0 0
        %5044 = vmatmul.mubr.bf16.gmra.mxu0 %v4881
        %v5045 = vpop.f32.mrf.mxu0
        %v5046 = vadd.f32 0.0, %v5045
        %v5047 = vpop.f32.mrf.mxu0
        %v5048 = vadd.f32 0.0, %v5047
        %v5049 = vpop.f32.mrf.mxu0
        %v5050 = vadd.f32 0.0, %v5049
        %v5051 = vpop.f32.mrf.mxu0
        %v5052 = vadd.f32 0.0, %v5051
        %5053 = vmatprep.mubr.bf16.mxu0 0
        %5054 = vmatmul.mubr.bf16.gmra.mxu0 %v4882
        %v5055 = vpop.f32.mrf.mxu0
        %v5056 = vadd.f32 0.0, %v5055
        %v5057 = vpop.f32.mrf.mxu0
        %v5058 = vadd.f32 0.0, %v5057
        %v5059 = vpop.f32.mrf.mxu0
        %v5060 = vadd.f32 0.0, %v5059
        %v5061 = vpop.f32.mrf.mxu0
        %v5062 = vadd.f32 0.0, %v5061
        %5063 = vmatprep.mubr.bf16.mxu0 0
        %5064 = vmatmul.mubr.bf16.gmra.mxu0 %v4883
        %v5065 = vpop.f32.mrf.mxu0
        %v5066 = vadd.f32 0.0, %v5065
        %v5067 = vpop.f32.mrf.mxu0
        %v5068 = vadd.f32 0.0, %v5067
        %v5069 = vpop.f32.mrf.mxu0
        %v5070 = vadd.f32 0.0, %v5069
        %v5071 = vpop.f32.mrf.mxu0
        %v5072 = vadd.f32 0.0, %v5071
        %5073 = vmatprep.mubr.bf16.mxu0 0
        %5074 = vmatmul.mubr.bf16.gmra.mxu0 %v4884
        %v5075 = vpop.f32.mrf.mxu0
        %v5076 = vadd.f32 0.0, %v5075
        %v5077 = vpop.f32.mrf.mxu0
        %v5078 = vadd.f32 0.0, %v5077
        %v5079 = vpop.f32.mrf.mxu0
        %v5080 = vadd.f32 0.0, %v5079
        %v5081 = vpop.f32.mrf.mxu0
        %v5082 = vadd.f32 0.0, %v5081
        %5083 = vmatprep.mubr.bf16.mxu0 0
        %5084 = vmatmul.mubr.bf16.gmra.mxu0 %v4885
        %v5085 = vpop.f32.mrf.mxu0
        %v5086 = vadd.f32 0.0, %v5085
        %v5087 = vpop.f32.mrf.mxu0
        %v5088 = vadd.f32 0.0, %v5087
        %v5089 = vpop.f32.mrf.mxu0
        %v5090 = vadd.f32 0.0, %v5089
        %v5091 = vpop.f32.mrf.mxu0
        %v5092 = vadd.f32 0.0, %v5091
        %5093 = vmatprep.mubr.bf16.mxu0 0
        %5094 = vmatmul.mubr.bf16.gmra.mxu0 %v4886
        %v5095 = vpop.f32.mrf.mxu0
        %v5096 = vadd.f32 0.0, %v5095
        %v5097 = vpop.f32.mrf.mxu0
        %v5098 = vadd.f32 0.0, %v5097
        %v5099 = vpop.f32.mrf.mxu0
        %v5100 = vadd.f32 0.0, %v5099
        %v5101 = vpop.f32.mrf.mxu0
        %v5102 = vadd.f32 0.0, %v5101
        %5103 = vmatprep.mubr.bf16.mxu0 0
        %5104 = vmatmul.mubr.bf16.gmra.mxu0 %v4887
        %v5105 = vpop.f32.mrf.mxu0
        %v5106 = vadd.f32 0.0, %v5105
        %v5107 = vpop.f32.mrf.mxu0
        %v5108 = vadd.f32 0.0, %v5107
        %v5109 = vpop.f32.mrf.mxu0
        %v5110 = vadd.f32 0.0, %v5109
        %v5111 = vpop.f32.mrf.mxu0
        %v5112 = vadd.f32 0.0, %v5111
        %5113 = vmatprep.mubr.bf16.mxu0 0
        %5114 = vmatmul.mubr.bf16.gmra.mxu0 %v4888
        %v5115 = vpop.f32.mrf.mxu0
        %v5116 = vadd.f32 0.0, %v5115
        %v5117 = vpop.f32.mrf.mxu0
        %v5118 = vadd.f32 0.0, %v5117
        %v5119 = vpop.f32.mrf.mxu0
        %v5120 = vadd.f32 0.0, %v5119
        %v5121 = vpop.f32.mrf.mxu0
        %v5122 = vadd.f32 0.0, %v5121
        %5123 = vmatprep.mubr.bf16.mxu0 0
        %5124 = vmatmul.mubr.bf16.gmra.mxu0 %v4889
        %v5125 = vpop.f32.mrf.mxu0
        %v5126 = vadd.f32 0.0, %v5125
        %v5127 = vpop.f32.mrf.mxu0
        %v5128 = vadd.f32 0.0, %v5127
        %v5129 = vpop.f32.mrf.mxu0
        %v5130 = vadd.f32 0.0, %v5129
        %v5131 = vpop.f32.mrf.mxu0
        %v5132 = vadd.f32 0.0, %v5131
        %5133 = vmatprep.mubr.bf16.mxu0 0
        %5134 = vmatmul.mubr.bf16.gmra.mxu0 %v4890
        %v5135 = vpop.f32.mrf.mxu0
        %v5136 = vadd.f32 0.0, %v5135
        %v5137 = vpop.f32.mrf.mxu0
        %v5138 = vadd.f32 0.0, %v5137
        %v5139 = vpop.f32.mrf.mxu0
        %v5140 = vadd.f32 0.0, %v5139
        %v5141 = vpop.f32.mrf.mxu0
        %v5142 = vadd.f32 0.0, %v5141
        %5143 = vmatprep.mubr.bf16.mxu0 0
        %5144 = vmatmul.mubr.bf16.gmra.mxu0 %v4891
        %v5145 = vpop.f32.mrf.mxu0
        %v5146 = vadd.f32 0.0, %v5145
        %v5147 = vpop.f32.mrf.mxu0
        %v5148 = vadd.f32 0.0, %v5147
        %v5149 = vpop.f32.mrf.mxu0
        %v5150 = vadd.f32 0.0, %v5149
        %v5151 = vpop.f32.mrf.mxu0
        %v5152 = vadd.f32 0.0, %v5151
        %5153 = vmatprep.mubr.bf16.mxu0 0
        %5154 = vmatmul.mubr.bf16.gmra.mxu0 %v4892
        %v5155 = vpop.f32.mrf.mxu0
        %v5156 = vadd.f32 0.0, %v5155
        %v5157 = vpop.f32.mrf.mxu0
        %v5158 = vadd.f32 0.0, %v5157
        %v5159 = vpop.f32.mrf.mxu0
        %v5160 = vadd.f32 0.0, %v5159
        %v5161 = vpop.f32.mrf.mxu0
        %v5162 = vadd.f32 0.0, %v5161
        %5163 = vmatprep.mubr.bf16.mxu0 0
        %5164 = vmatmul.mubr.bf16.gmra.mxu0 %v4893
        %v5165 = vpop.f32.mrf.mxu0
        %v5166 = vadd.f32 0.0, %v5165
        %v5167 = vpop.f32.mrf.mxu0
        %v5168 = vadd.f32 0.0, %v5167
        %v5169 = vpop.f32.mrf.mxu0
        %v5170 = vadd.f32 0.0, %v5169
        %v5171 = vpop.f32.mrf.mxu0
        %v5172 = vadd.f32 0.0, %v5171
        %5173 = vmatprep.mubr.bf16.mxu0 0
        %5174 = vmatmul.mubr.bf16.gmra.mxu0 %v4894
        %v5175 = vpop.f32.mrf.mxu0
        %v5176 = vadd.f32 0.0, %v5175
        %v5177 = vpop.f32.mrf.mxu0
        %v5178 = vadd.f32 0.0, %v5177
        %v5179 = vpop.f32.mrf.mxu0
        %v5180 = vadd.f32 0.0, %v5179
        %v5181 = vpop.f32.mrf.mxu0
        %v5182 = vadd.f32 0.0, %v5181
        %5183 = vdwg.mxu0
        %v5184 = vld [vmem:[#allocation4] ss:$4 sm:$0x3]
        %v5186 = vlaneseq
        %v5187 = vshrl.u32 %v5186, 7
        %v5188 = vsub.s32 0, %v5187
        %v5189 = vrot.slane %v5184, %v5188
        %v5190 = vlaneseq
        %v5191 = vshrl.u32 %v5190, 7
        %v5192 = vsub.s32 1, %v5191
        %v5193 = vrot.slane %v5184, %v5192
        %v5196 = vsub.f32 %v5026, %v5189
        %v5197 = vsub.f32 %v5028, %v5193
        %v5198 = vsub.f32 %v5030, %v5189
        %v5199 = vsub.f32 %v5032, %v5193
        %v5200 = vsub.f32 %v5036, %v5189
        %v5201 = vsub.f32 %v5038, %v5193
        %v5202 = vsub.f32 %v5040, %v5189
        %v5203 = vsub.f32 %v5042, %v5193
        %v5204 = vsub.f32 %v5046, %v5189
        %v5205 = vsub.f32 %v5048, %v5193
        %v5206 = vsub.f32 %v5050, %v5189
        %v5207 = vsub.f32 %v5052, %v5193
        %v5208 = vsub.f32 %v5056, %v5189
        %v5209 = vsub.f32 %v5058, %v5193
        %v5210 = vsub.f32 %v5060, %v5189
        %v5211 = vsub.f32 %v5062, %v5193
        %v5212 = vsub.f32 %v5066, %v5189
        %v5213 = vsub.f32 %v5068, %v5193
        %v5214 = vsub.f32 %v5070, %v5189
        %v5215 = vsub.f32 %v5072, %v5193
        %v5216 = vsub.f32 %v5076, %v5189
        %v5217 = vsub.f32 %v5078, %v5193
        %v5218 = vsub.f32 %v5080, %v5189
        %v5219 = vsub.f32 %v5082, %v5193
        %v5220 = vsub.f32 %v5086, %v5189
        %v5221 = vsub.f32 %v5088, %v5193
        %v5222 = vsub.f32 %v5090, %v5189
        %v5223 = vsub.f32 %v5092, %v5193
        %v5224 = vsub.f32 %v5096, %v5189
        %v5225 = vsub.f32 %v5098, %v5193
        %v5226 = vsub.f32 %v5100, %v5189
        %v5227 = vsub.f32 %v5102, %v5193
        %v5228 = vsub.f32 %v5106, %v5189
        %v5229 = vsub.f32 %v5108, %v5193
        %v5230 = vsub.f32 %v5110, %v5189
        %v5231 = vsub.f32 %v5112, %v5193
        %v5232 = vsub.f32 %v5116, %v5189
        %v5233 = vsub.f32 %v5118, %v5193
        %v5234 = vsub.f32 %v5120, %v5189
        %v5235 = vsub.f32 %v5122, %v5193
        %v5236 = vsub.f32 %v5126, %v5189
        %v5237 = vsub.f32 %v5128, %v5193
        %v5238 = vsub.f32 %v5130, %v5189
        %v5239 = vsub.f32 %v5132, %v5193
        %v5240 = vsub.f32 %v5136, %v5189
        %v5241 = vsub.f32 %v5138, %v5193
        %v5242 = vsub.f32 %v5140, %v5189
        %v5243 = vsub.f32 %v5142, %v5193
        %v5244 = vsub.f32 %v5146, %v5189
        %v5245 = vsub.f32 %v5148, %v5193
        %v5246 = vsub.f32 %v5150, %v5189
        %v5247 = vsub.f32 %v5152, %v5193
        %v5248 = vsub.f32 %v5156, %v5189
        %v5249 = vsub.f32 %v5158, %v5193
        %v5250 = vsub.f32 %v5160, %v5189
        %v5251 = vsub.f32 %v5162, %v5193
        %v5252 = vsub.f32 %v5166, %v5189
        %v5253 = vsub.f32 %v5168, %v5193
        %v5254 = vsub.f32 %v5170, %v5189
        %v5255 = vsub.f32 %v5172, %v5193
        %v5256 = vsub.f32 %v5176, %v5189
        %v5257 = vsub.f32 %v5178, %v5193
        %v5258 = vsub.f32 %v5180, %v5189
        %v5259 = vsub.f32 %v5182, %v5193
        %s5260 = scalar_lea.vmem [#allocation4], 1
        %v5261 = vld [vmem:[%s5260] ss:$4 sm:$0x3]
        %v5263 = vlaneseq
        %v5264 = vshrl.u32 %v5263, 7
        %v5265 = vsub.s32 0, %v5264
        %v5266 = vrot.slane %v5261, %v5265
        %v5267 = vlaneseq
        %v5268 = vshrl.u32 %v5267, 7
        %v5269 = vsub.s32 1, %v5268
        %v5270 = vrot.slane %v5261, %v5269
        %v5273 = vmul.f32 %v5196, %v5266
        %v5274 = vmul.f32 %v5197, %v5270
        %v5275 = vmul.f32 %v5198, %v5266
        %v5276 = vmul.f32 %v5199, %v5270
        %v5277 = vmul.f32 %v5200, %v5266
        %v5278 = vmul.f32 %v5201, %v5270
        %v5279 = vmul.f32 %v5202, %v5266
        %v5280 = vmul.f32 %v5203, %v5270
        %v5281 = vmul.f32 %v5204, %v5266
        %v5282 = vmul.f32 %v5205, %v5270
        %v5283 = vmul.f32 %v5206, %v5266
        %v5284 = vmul.f32 %v5207, %v5270
        %v5285 = vmul.f32 %v5208, %v5266
        %v5286 = vmul.f32 %v5209, %v5270
        %v5287 = vmul.f32 %v5210, %v5266
        %v5288 = vmul.f32 %v5211, %v5270
        %v5289 = vmul.f32 %v5212, %v5266
        %v5290 = vmul.f32 %v5213, %v5270
        %v5291 = vmul.f32 %v5214, %v5266
        %v5292 = vmul.f32 %v5215, %v5270
        %v5293 = vmul.f32 %v5216, %v5266
        %v5294 = vmul.f32 %v5217, %v5270
        %v5295 = vmul.f32 %v5218, %v5266
        %v5296 = vmul.f32 %v5219, %v5270
        %v5297 = vmul.f32 %v5220, %v5266
        %v5298 = vmul.f32 %v5221, %v5270
        %v5299 = vmul.f32 %v5222, %v5266
        %v5300 = vmul.f32 %v5223, %v5270
        %v5301 = vmul.f32 %v5224, %v5266
        %v5302 = vmul.f32 %v5225, %v5270
        %v5303 = vmul.f32 %v5226, %v5266
        %v5304 = vmul.f32 %v5227, %v5270
        %v5305 = vmul.f32 %v5228, %v5266
        %v5306 = vmul.f32 %v5229, %v5270
        %v5307 = vmul.f32 %v5230, %v5266
        %v5308 = vmul.f32 %v5231, %v5270
        %v5309 = vmul.f32 %v5232, %v5266
        %v5310 = vmul.f32 %v5233, %v5270
        %v5311 = vmul.f32 %v5234, %v5266
        %v5312 = vmul.f32 %v5235, %v5270
        %v5313 = vmul.f32 %v5236, %v5266
        %v5314 = vmul.f32 %v5237, %v5270
        %v5315 = vmul.f32 %v5238, %v5266
        %v5316 = vmul.f32 %v5239, %v5270
        %v5317 = vmul.f32 %v5240, %v5266
        %v5318 = vmul.f32 %v5241, %v5270
        %v5319 = vmul.f32 %v5242, %v5266
        %v5320 = vmul.f32 %v5243, %v5270
        %v5321 = vmul.f32 %v5244, %v5266
        %v5322 = vmul.f32 %v5245, %v5270
        %v5323 = vmul.f32 %v5246, %v5266
        %v5324 = vmul.f32 %v5247, %v5270
        %v5325 = vmul.f32 %v5248, %v5266
        %v5326 = vmul.f32 %v5249, %v5270
        %v5327 = vmul.f32 %v5250, %v5266
        %v5328 = vmul.f32 %v5251, %v5270
        %v5329 = vmul.f32 %v5252, %v5266
        %v5330 = vmul.f32 %v5253, %v5270
        %v5331 = vmul.f32 %v5254, %v5266
        %v5332 = vmul.f32 %v5255, %v5270
        %v5333 = vmul.f32 %v5256, %v5266
        %v5334 = vmul.f32 %v5257, %v5270
        %v5335 = vmul.f32 %v5258, %v5266
        %v5336 = vmul.f32 %v5259, %v5270
        %v5337 = vadd.f32 %v5273, %v5274
        %5338 = vadd.xlane.f32.xlu0 %v5337
        %v5339 = vpop.xlane.xlu0 %5338
        %v5340 = vadd.f32 %v5275, %v5276
        %5341 = vadd.xlane.f32.xlu0 %v5340
        %v5342 = vpop.xlane.xlu0 %5341
        %v5343 = vadd.f32 %v5277, %v5278
        %5344 = vadd.xlane.f32.xlu0 %v5343
        %v5345 = vpop.xlane.xlu0 %5344
        %v5346 = vadd.f32 %v5279, %v5280
        %5347 = vadd.xlane.f32.xlu0 %v5346
        %v5348 = vpop.xlane.xlu0 %5347
        %v5349 = vadd.f32 %v5281, %v5282
        %5350 = vadd.xlane.f32.xlu0 %v5349
        %v5351 = vpop.xlane.xlu0 %5350
        %v5352 = vadd.f32 %v5283, %v5284
        %5353 = vadd.xlane.f32.xlu0 %v5352
        %v5354 = vpop.xlane.xlu0 %5353
        %v5355 = vadd.f32 %v5285, %v5286
        %5356 = vadd.xlane.f32.xlu0 %v5355
        %v5357 = vpop.xlane.xlu0 %5356
        %v5358 = vadd.f32 %v5287, %v5288
        %5359 = vadd.xlane.f32.xlu0 %v5358
        %v5360 = vpop.xlane.xlu0 %5359
        %v5361 = vadd.f32 %v5289, %v5290
        %5362 = vadd.xlane.f32.xlu0 %v5361
        %v5363 = vpop.xlane.xlu0 %5362
        %v5364 = vadd.f32 %v5291, %v5292
        %5365 = vadd.xlane.f32.xlu0 %v5364
        %v5366 = vpop.xlane.xlu0 %5365
        %v5367 = vadd.f32 %v5293, %v5294
        %5368 = vadd.xlane.f32.xlu0 %v5367
        %v5369 = vpop.xlane.xlu0 %5368
        %v5370 = vadd.f32 %v5295, %v5296
        %5371 = vadd.xlane.f32.xlu0 %v5370
        %v5372 = vpop.xlane.xlu0 %5371
        %v5373 = vadd.f32 %v5297, %v5298
        %5374 = vadd.xlane.f32.xlu0 %v5373
        %v5375 = vpop.xlane.xlu0 %5374
        %v5376 = vadd.f32 %v5299, %v5300
        %5377 = vadd.xlane.f32.xlu0 %v5376
        %v5378 = vpop.xlane.xlu0 %5377
        %v5379 = vadd.f32 %v5301, %v5302
        %5380 = vadd.xlane.f32.xlu0 %v5379
        %v5381 = vpop.xlane.xlu0 %5380
        %v5382 = vadd.f32 %v5303, %v5304
        %5383 = vadd.xlane.f32.xlu0 %v5382
        %v5384 = vpop.xlane.xlu0 %5383
        %v5385 = vadd.f32 %v5305, %v5306
        %5386 = vadd.xlane.f32.xlu0 %v5385
        %v5387 = vpop.xlane.xlu0 %5386
        %v5388 = vadd.f32 %v5307, %v5308
        %5389 = vadd.xlane.f32.xlu0 %v5388
        %v5390 = vpop.xlane.xlu0 %5389
        %v5391 = vadd.f32 %v5309, %v5310
        %5392 = vadd.xlane.f32.xlu0 %v5391
        %v5393 = vpop.xlane.xlu0 %5392
        %v5394 = vadd.f32 %v5311, %v5312
        %5395 = vadd.xlane.f32.xlu0 %v5394
        %v5396 = vpop.xlane.xlu0 %5395
        %v5397 = vadd.f32 %v5313, %v5314
        %5398 = vadd.xlane.f32.xlu0 %v5397
        %v5399 = vpop.xlane.xlu0 %5398
        %v5400 = vadd.f32 %v5315, %v5316
        %5401 = vadd.xlane.f32.xlu0 %v5400
        %v5402 = vpop.xlane.xlu0 %5401
        %v5403 = vadd.f32 %v5317, %v5318
        %5404 = vadd.xlane.f32.xlu0 %v5403
        %v5405 = vpop.xlane.xlu0 %5404
        %v5406 = vadd.f32 %v5319, %v5320
        %5407 = vadd.xlane.f32.xlu0 %v5406
        %v5408 = vpop.xlane.xlu0 %5407
        %v5409 = vadd.f32 %v5321, %v5322
        %5410 = vadd.xlane.f32.xlu0 %v5409
        %v5411 = vpop.xlane.xlu0 %5410
        %v5412 = vadd.f32 %v5323, %v5324
        %5413 = vadd.xlane.f32.xlu0 %v5412
        %v5414 = vpop.xlane.xlu0 %5413
        %v5415 = vadd.f32 %v5325, %v5326
        %5416 = vadd.xlane.f32.xlu0 %v5415
        %v5417 = vpop.xlane.xlu0 %5416
        %v5418 = vadd.f32 %v5327, %v5328
        %5419 = vadd.xlane.f32.xlu0 %v5418
        %v5420 = vpop.xlane.xlu0 %5419
        %v5421 = vadd.f32 %v5329, %v5330
        %5422 = vadd.xlane.f32.xlu0 %v5421
        %v5423 = vpop.xlane.xlu0 %5422
        %v5424 = vadd.f32 %v5331, %v5332
        %5425 = vadd.xlane.f32.xlu0 %v5424
        %v5426 = vpop.xlane.xlu0 %5425
        %v5427 = vadd.f32 %v5333, %v5334
        %5428 = vadd.xlane.f32.xlu0 %v5427
        %v5429 = vpop.xlane.xlu0 %5428
        %v5430 = vadd.f32 %v5335, %v5336
        %5431 = vadd.xlane.f32.xlu0 %v5430
        %v5432 = vpop.xlane.xlu0 %5431
        %v5433 = vmul.f32 %v5273, %v5273
        %v5434 = vmul.f32 %v5274, %v5274
        %v5435 = vmul.f32 %v5275, %v5275
        %v5436 = vmul.f32 %v5276, %v5276
        %v5437 = vmul.f32 %v5277, %v5277
        %v5438 = vmul.f32 %v5278, %v5278
        %v5439 = vmul.f32 %v5279, %v5279
        %v5440 = vmul.f32 %v5280, %v5280
        %v5441 = vmul.f32 %v5281, %v5281
        %v5442 = vmul.f32 %v5282, %v5282
        %v5443 = vmul.f32 %v5283, %v5283
        %v5444 = vmul.f32 %v5284, %v5284
        %v5445 = vmul.f32 %v5285, %v5285
        %v5446 = vmul.f32 %v5286, %v5286
        %v5447 = vmul.f32 %v5287, %v5287
        %v5448 = vmul.f32 %v5288, %v5288
        %v5449 = vmul.f32 %v5289, %v5289
        %v5450 = vmul.f32 %v5290, %v5290
        %v5451 = vmul.f32 %v5291, %v5291
        %v5452 = vmul.f32 %v5292, %v5292
        %v5453 = vmul.f32 %v5293, %v5293
        %v5454 = vmul.f32 %v5294, %v5294
        %v5455 = vmul.f32 %v5295, %v5295
        %v5456 = vmul.f32 %v5296, %v5296
        %v5457 = vmul.f32 %v5297, %v5297
        %v5458 = vmul.f32 %v5298, %v5298
        %v5459 = vmul.f32 %v5299, %v5299
        %v5460 = vmul.f32 %v5300, %v5300
        %v5461 = vmul.f32 %v5301, %v5301
        %v5462 = vmul.f32 %v5302, %v5302
        %v5463 = vmul.f32 %v5303, %v5303
        %v5464 = vmul.f32 %v5304, %v5304
        %v5465 = vmul.f32 %v5305, %v5305
        %v5466 = vmul.f32 %v5306, %v5306
        %v5467 = vmul.f32 %v5307, %v5307
        %v5468 = vmul.f32 %v5308, %v5308
        %v5469 = vmul.f32 %v5309, %v5309
        %v5470 = vmul.f32 %v5310, %v5310
        %v5471 = vmul.f32 %v5311, %v5311
        %v5472 = vmul.f32 %v5312, %v5312
        %v5473 = vmul.f32 %v5313, %v5313
        %v5474 = vmul.f32 %v5314, %v5314
        %v5475 = vmul.f32 %v5315, %v5315
        %v5476 = vmul.f32 %v5316, %v5316
        %v5477 = vmul.f32 %v5317, %v5317
        %v5478 = vmul.f32 %v5318, %v5318
        %v5479 = vmul.f32 %v5319, %v5319
        %v5480 = vmul.f32 %v5320, %v5320
        %v5481 = vmul.f32 %v5321, %v5321
        %v5482 = vmul.f32 %v5322, %v5322
        %v5483 = vmul.f32 %v5323, %v5323
        %v5484 = vmul.f32 %v5324, %v5324
        %v5485 = vmul.f32 %v5325, %v5325
        %v5486 = vmul.f32 %v5326, %v5326
        %v5487 = vmul.f32 %v5327, %v5327
        %v5488 = vmul.f32 %v5328, %v5328
        %v5489 = vmul.f32 %v5329, %v5329
        %v5490 = vmul.f32 %v5330, %v5330
        %v5491 = vmul.f32 %v5331, %v5331
        %v5492 = vmul.f32 %v5332, %v5332
        %v5493 = vmul.f32 %v5333, %v5333
        %v5494 = vmul.f32 %v5334, %v5334
        %v5495 = vmul.f32 %v5335, %v5335
        %v5496 = vmul.f32 %v5336, %v5336
        %v5497 = vadd.f32 %v5433, %v5434
        %5498 = vadd.xlane.f32.xlu0 %v5497
        %v5499 = vpop.xlane.xlu0 %5498
        %v5500 = vadd.f32 %v5435, %v5436
        %5501 = vadd.xlane.f32.xlu0 %v5500
        %v5502 = vpop.xlane.xlu0 %5501
        %v5503 = vadd.f32 %v5437, %v5438
        %5504 = vadd.xlane.f32.xlu0 %v5503
        %v5505 = vpop.xlane.xlu0 %5504
        %v5506 = vadd.f32 %v5439, %v5440
        %5507 = vadd.xlane.f32.xlu0 %v5506
        %v5508 = vpop.xlane.xlu0 %5507
        %v5509 = vadd.f32 %v5441, %v5442
        %5510 = vadd.xlane.f32.xlu0 %v5509
        %v5511 = vpop.xlane.xlu0 %5510
        %v5512 = vadd.f32 %v5443, %v5444
        %5513 = vadd.xlane.f32.xlu0 %v5512
        %v5514 = vpop.xlane.xlu0 %5513
        %v5515 = vadd.f32 %v5445, %v5446
        %5516 = vadd.xlane.f32.xlu0 %v5515
        %v5517 = vpop.xlane.xlu0 %5516
        %v5518 = vadd.f32 %v5447, %v5448
        %5519 = vadd.xlane.f32.xlu0 %v5518
        %v5520 = vpop.xlane.xlu0 %5519
        %v5521 = vadd.f32 %v5449, %v5450
        %5522 = vadd.xlane.f32.xlu0 %v5521
        %v5523 = vpop.xlane.xlu0 %5522
        %v5524 = vadd.f32 %v5451, %v5452
        %5525 = vadd.xlane.f32.xlu0 %v5524
        %v5526 = vpop.xlane.xlu0 %5525
        %v5527 = vadd.f32 %v5453, %v5454
        %5528 = vadd.xlane.f32.xlu0 %v5527
        %v5529 = vpop.xlane.xlu0 %5528
        %v5530 = vadd.f32 %v5455, %v5456
        %5531 = vadd.xlane.f32.xlu0 %v5530
        %v5532 = vpop.xlane.xlu0 %5531
        %v5533 = vadd.f32 %v5457, %v5458
        %5534 = vadd.xlane.f32.xlu0 %v5533
        %v5535 = vpop.xlane.xlu0 %5534
        %v5536 = vadd.f32 %v5459, %v5460
        %5537 = vadd.xlane.f32.xlu0 %v5536
        %v5538 = vpop.xlane.xlu0 %5537
        %v5539 = vadd.f32 %v5461, %v5462
        %5540 = vadd.xlane.f32.xlu0 %v5539
        %v5541 = vpop.xlane.xlu0 %5540
        %v5542 = vadd.f32 %v5463, %v5464
        %5543 = vadd.xlane.f32.xlu0 %v5542
        %v5544 = vpop.xlane.xlu0 %5543
        %v5545 = vadd.f32 %v5465, %v5466
        %5546 = vadd.xlane.f32.xlu0 %v5545
        %v5547 = vpop.xlane.xlu0 %5546
        %v5548 = vadd.f32 %v5467, %v5468
        %5549 = vadd.xlane.f32.xlu0 %v5548
        %v5550 = vpop.xlane.xlu0 %5549
        %v5551 = vadd.f32 %v5469, %v5470
        %5552 = vadd.xlane.f32.xlu0 %v5551
        %v5553 = vpop.xlane.xlu0 %5552
        %v5554 = vadd.f32 %v5471, %v5472
        %5555 = vadd.xlane.f32.xlu0 %v5554
        %v5556 = vpop.xlane.xlu0 %5555
        %v5557 = vadd.f32 %v5473, %v5474
        %5558 = vadd.xlane.f32.xlu0 %v5557
        %v5559 = vpop.xlane.xlu0 %5558
        %v5560 = vadd.f32 %v5475, %v5476
        %5561 = vadd.xlane.f32.xlu0 %v5560
        %v5562 = vpop.xlane.xlu0 %5561
        %v5563 = vadd.f32 %v5477, %v5478
        %5564 = vadd.xlane.f32.xlu0 %v5563
        %v5565 = vpop.xlane.xlu0 %5564
        %v5566 = vadd.f32 %v5479, %v5480
        %5567 = vadd.xlane.f32.xlu0 %v5566
        %v5568 = vpop.xlane.xlu0 %5567
        %v5569 = vadd.f32 %v5481, %v5482
        %5570 = vadd.xlane.f32.xlu0 %v5569
        %v5571 = vpop.xlane.xlu0 %5570
        %v5572 = vadd.f32 %v5483, %v5484
        %5573 = vadd.xlane.f32.xlu0 %v5572
        %v5574 = vpop.xlane.xlu0 %5573
        %v5575 = vadd.f32 %v5485, %v5486
        %5576 = vadd.xlane.f32.xlu0 %v5575
        %v5577 = vpop.xlane.xlu0 %5576
        %v5578 = vadd.f32 %v5487, %v5488
        %5579 = vadd.xlane.f32.xlu0 %v5578
        %v5580 = vpop.xlane.xlu0 %5579
        %v5581 = vadd.f32 %v5489, %v5490
        %5582 = vadd.xlane.f32.xlu0 %v5581
        %v5583 = vpop.xlane.xlu0 %5582
        %v5584 = vadd.f32 %v5491, %v5492
        %5585 = vadd.xlane.f32.xlu0 %v5584
        %v5586 = vpop.xlane.xlu0 %5585
        %v5587 = vadd.f32 %v5493, %v5494
        %5588 = vadd.xlane.f32.xlu0 %v5587
        %v5589 = vpop.xlane.xlu0 %5588
        %v5590 = vadd.f32 %v5495, %v5496
        %5591 = vadd.xlane.f32.xlu0 %v5590
        %v5592 = vpop.xlane.xlu0 %5591
        %v5593 = vmul.f32 %v5339, 0.00390625
        %v5594 = vmul.f32 %v5342, 0.00390625
        %v5595 = vmul.f32 %v5345, 0.00390625
        %v5596 = vmul.f32 %v5348, 0.00390625
        %v5597 = vmul.f32 %v5351, 0.00390625
        %v5598 = vmul.f32 %v5354, 0.00390625
        %v5599 = vmul.f32 %v5357, 0.00390625
        %v5600 = vmul.f32 %v5360, 0.00390625
        %v5601 = vmul.f32 %v5363, 0.00390625
        %v5602 = vmul.f32 %v5366, 0.00390625
        %v5603 = vmul.f32 %v5369, 0.00390625
        %v5604 = vmul.f32 %v5372, 0.00390625
        %v5605 = vmul.f32 %v5375, 0.00390625
        %v5606 = vmul.f32 %v5378, 0.00390625
        %v5607 = vmul.f32 %v5381, 0.00390625
        %v5608 = vmul.f32 %v5384, 0.00390625
        %v5609 = vmul.f32 %v5387, 0.00390625
        %v5610 = vmul.f32 %v5390, 0.00390625
        %v5611 = vmul.f32 %v5393, 0.00390625
        %v5612 = vmul.f32 %v5396, 0.00390625
        %v5613 = vmul.f32 %v5399, 0.00390625
        %v5614 = vmul.f32 %v5402, 0.00390625
        %v5615 = vmul.f32 %v5405, 0.00390625
        %v5616 = vmul.f32 %v5408, 0.00390625
        %v5617 = vmul.f32 %v5411, 0.00390625
        %v5618 = vmul.f32 %v5414, 0.00390625
        %v5619 = vmul.f32 %v5417, 0.00390625
        %v5620 = vmul.f32 %v5420, 0.00390625
        %v5621 = vmul.f32 %v5423, 0.00390625
        %v5622 = vmul.f32 %v5426, 0.00390625
        %v5623 = vmul.f32 %v5429, 0.00390625
        %v5624 = vmul.f32 %v5432, 0.00390625
        %v5625 = vmul.f32 %v5499, 0.00390625
        %v5626 = vmul.f32 %v5502, 0.00390625
        %v5627 = vmul.f32 %v5505, 0.00390625
        %v5628 = vmul.f32 %v5508, 0.00390625
        %v5629 = vmul.f32 %v5511, 0.00390625
        %v5630 = vmul.f32 %v5514, 0.00390625
        %v5631 = vmul.f32 %v5517, 0.00390625
        %v5632 = vmul.f32 %v5520, 0.00390625
        %v5633 = vmul.f32 %v5523, 0.00390625
        %v5634 = vmul.f32 %v5526, 0.00390625
        %v5635 = vmul.f32 %v5529, 0.00390625
        %v5636 = vmul.f32 %v5532, 0.00390625
        %v5637 = vmul.f32 %v5535, 0.00390625
        %v5638 = vmul.f32 %v5538, 0.00390625
        %v5639 = vmul.f32 %v5541, 0.00390625
        %v5640 = vmul.f32 %v5544, 0.00390625
        %v5641 = vmul.f32 %v5547, 0.00390625
        %v5642 = vmul.f32 %v5550, 0.00390625
        %v5643 = vmul.f32 %v5553, 0.00390625
        %v5644 = vmul.f32 %v5556, 0.00390625
        %v5645 = vmul.f32 %v5559, 0.00390625
        %v5646 = vmul.f32 %v5562, 0.00390625
        %v5647 = vmul.f32 %v5565, 0.00390625
        %v5648 = vmul.f32 %v5568, 0.00390625
        %v5649 = vmul.f32 %v5571, 0.00390625
        %v5650 = vmul.f32 %v5574, 0.00390625
        %v5651 = vmul.f32 %v5577, 0.00390625
        %v5652 = vmul.f32 %v5580, 0.00390625
        %v5653 = vmul.f32 %v5583, 0.00390625
        %v5654 = vmul.f32 %v5586, 0.00390625
        %v5655 = vmul.f32 %v5589, 0.00390625
        %v5656 = vmul.f32 %v5592, 0.00390625
        %v5657 = vmul.f32 %v5593, %v5593
        %v5658 = vmul.f32 %v5594, %v5594
        %v5659 = vmul.f32 %v5595, %v5595
        %v5660 = vmul.f32 %v5596, %v5596
        %v5661 = vmul.f32 %v5597, %v5597
        %v5662 = vmul.f32 %v5598, %v5598
        %v5663 = vmul.f32 %v5599, %v5599
        %v5664 = vmul.f32 %v5600, %v5600
        %v5665 = vmul.f32 %v5601, %v5601
        %v5666 = vmul.f32 %v5602, %v5602
        %v5667 = vmul.f32 %v5603, %v5603
        %v5668 = vmul.f32 %v5604, %v5604
        %v5669 = vmul.f32 %v5605, %v5605
        %v5670 = vmul.f32 %v5606, %v5606
        %v5671 = vmul.f32 %v5607, %v5607
        %v5672 = vmul.f32 %v5608, %v5608
        %v5673 = vmul.f32 %v5609, %v5609
        %v5674 = vmul.f32 %v5610, %v5610
        %v5675 = vmul.f32 %v5611, %v5611
        %v5676 = vmul.f32 %v5612, %v5612
        %v5677 = vmul.f32 %v5613, %v5613
        %v5678 = vmul.f32 %v5614, %v5614
        %v5679 = vmul.f32 %v5615, %v5615
        %v5680 = vmul.f32 %v5616, %v5616
        %v5681 = vmul.f32 %v5617, %v5617
        %v5682 = vmul.f32 %v5618, %v5618
        %v5683 = vmul.f32 %v5619, %v5619
        %v5684 = vmul.f32 %v5620, %v5620
        %v5685 = vmul.f32 %v5621, %v5621
        %v5686 = vmul.f32 %v5622, %v5622
        %v5687 = vmul.f32 %v5623, %v5623
        %v5688 = vmul.f32 %v5624, %v5624
        %v5689 = vsub.f32 %v5625, %v5657
        %v5690 = vsub.f32 %v5626, %v5658
        %v5691 = vsub.f32 %v5627, %v5659
        %v5692 = vsub.f32 %v5628, %v5660
        %v5693 = vsub.f32 %v5629, %v5661
        %v5694 = vsub.f32 %v5630, %v5662
        %v5695 = vsub.f32 %v5631, %v5663
        %v5696 = vsub.f32 %v5632, %v5664
        %v5697 = vsub.f32 %v5633, %v5665
        %v5698 = vsub.f32 %v5634, %v5666
        %v5699 = vsub.f32 %v5635, %v5667
        %v5700 = vsub.f32 %v5636, %v5668
        %v5701 = vsub.f32 %v5637, %v5669
        %v5702 = vsub.f32 %v5638, %v5670
        %v5703 = vsub.f32 %v5639, %v5671
        %v5704 = vsub.f32 %v5640, %v5672
        %v5705 = vsub.f32 %v5641, %v5673
        %v5706 = vsub.f32 %v5642, %v5674
        %v5707 = vsub.f32 %v5643, %v5675
        %v5708 = vsub.f32 %v5644, %v5676
        %v5709 = vsub.f32 %v5645, %v5677
        %v5710 = vsub.f32 %v5646, %v5678
        %v5711 = vsub.f32 %v5647, %v5679
        %v5712 = vsub.f32 %v5648, %v5680
        %v5713 = vsub.f32 %v5649, %v5681
        %v5714 = vsub.f32 %v5650, %v5682
        %v5715 = vsub.f32 %v5651, %v5683
        %v5716 = vsub.f32 %v5652, %v5684
        %v5717 = vsub.f32 %v5653, %v5685
        %v5718 = vsub.f32 %v5654, %v5686
        %v5719 = vsub.f32 %v5655, %v5687
        %v5720 = vsub.f32 %v5656, %v5688
        %v5721 = vmax.f32 %v5689, 0.0
        %v5722 = vmax.f32 %v5690, 0.0
        %v5723 = vmax.f32 %v5691, 0.0
        %v5724 = vmax.f32 %v5692, 0.0
        %v5725 = vmax.f32 %v5693, 0.0
        %v5726 = vmax.f32 %v5694, 0.0
        %v5727 = vmax.f32 %v5695, 0.0
        %v5728 = vmax.f32 %v5696, 0.0
        %v5729 = vmax.f32 %v5697, 0.0
        %v5730 = vmax.f32 %v5698, 0.0
        %v5731 = vmax.f32 %v5699, 0.0
        %v5732 = vmax.f32 %v5700, 0.0
        %v5733 = vmax.f32 %v5701, 0.0
        %v5734 = vmax.f32 %v5702, 0.0
        %v5735 = vmax.f32 %v5703, 0.0
        %v5736 = vmax.f32 %v5704, 0.0
        %v5737 = vmax.f32 %v5705, 0.0
        %v5738 = vmax.f32 %v5706, 0.0
        %v5739 = vmax.f32 %v5707, 0.0
        %v5740 = vmax.f32 %v5708, 0.0
        %v5741 = vmax.f32 %v5709, 0.0
        %v5742 = vmax.f32 %v5710, 0.0
        %v5743 = vmax.f32 %v5711, 0.0
        %v5744 = vmax.f32 %v5712, 0.0
        %v5745 = vmax.f32 %v5713, 0.0
        %v5746 = vmax.f32 %v5714, 0.0
        %v5747 = vmax.f32 %v5715, 0.0
        %v5748 = vmax.f32 %v5716, 0.0
        %v5749 = vmax.f32 %v5717, 0.0
        %v5750 = vmax.f32 %v5718, 0.0
        %v5751 = vmax.f32 %v5719, 0.0
        %v5752 = vmax.f32 %v5720, 0.0
        %v5753 = vsub.f32 %v5273, %v5593
        %v5754 = vsub.f32 %v5274, %v5593
        %v5755 = vsub.f32 %v5275, %v5594
        %v5756 = vsub.f32 %v5276, %v5594
        %v5757 = vsub.f32 %v5277, %v5595
        %v5758 = vsub.f32 %v5278, %v5595
        %v5759 = vsub.f32 %v5279, %v5596
        %v5760 = vsub.f32 %v5280, %v5596
        %v5761 = vsub.f32 %v5281, %v5597
        %v5762 = vsub.f32 %v5282, %v5597
        %v5763 = vsub.f32 %v5283, %v5598
        %v5764 = vsub.f32 %v5284, %v5598
        %v5765 = vsub.f32 %v5285, %v5599
        %v5766 = vsub.f32 %v5286, %v5599
        %v5767 = vsub.f32 %v5287, %v5600
        %v5768 = vsub.f32 %v5288, %v5600
        %v5769 = vsub.f32 %v5289, %v5601
        %v5770 = vsub.f32 %v5290, %v5601
        %v5771 = vsub.f32 %v5291, %v5602
        %v5772 = vsub.f32 %v5292, %v5602
        %v5773 = vsub.f32 %v5293, %v5603
        %v5774 = vsub.f32 %v5294, %v5603
        %v5775 = vsub.f32 %v5295, %v5604
        %v5776 = vsub.f32 %v5296, %v5604
        %v5777 = vsub.f32 %v5297, %v5605
        %v5778 = vsub.f32 %v5298, %v5605
        %v5779 = vsub.f32 %v5299, %v5606
        %v5780 = vsub.f32 %v5300, %v5606
        %v5781 = vsub.f32 %v5301, %v5607
        %v5782 = vsub.f32 %v5302, %v5607
        %v5783 = vsub.f32 %v5303, %v5608
        %v5784 = vsub.f32 %v5304, %v5608
        %v5785 = vsub.f32 %v5305, %v5609
        %v5786 = vsub.f32 %v5306, %v5609
        %v5787 = vsub.f32 %v5307, %v5610
        %v5788 = vsub.f32 %v5308, %v5610
        %v5789 = vsub.f32 %v5309, %v5611
        %v5790 = vsub.f32 %v5310, %v5611
        %v5791 = vsub.f32 %v5311, %v5612
        %v5792 = vsub.f32 %v5312, %v5612
        %v5793 = vsub.f32 %v5313, %v5613
        %v5794 = vsub.f32 %v5314, %v5613
        %v5795 = vsub.f32 %v5315, %v5614
        %v5796 = vsub.f32 %v5316, %v5614
        %v5797 = vsub.f32 %v5317, %v5615
        %v5798 = vsub.f32 %v5318, %v5615
        %v5799 = vsub.f32 %v5319, %v5616
        %v5800 = vsub.f32 %v5320, %v5616
        %v5801 = vsub.f32 %v5321, %v5617
        %v5802 = vsub.f32 %v5322, %v5617
        %v5803 = vsub.f32 %v5323, %v5618
        %v5804 = vsub.f32 %v5324, %v5618
        %v5805 = vsub.f32 %v5325, %v5619
        %v5806 = vsub.f32 %v5326, %v5619
        %v5807 = vsub.f32 %v5327, %v5620
        %v5808 = vsub.f32 %v5328, %v5620
        %v5809 = vsub.f32 %v5329, %v5621
        %v5810 = vsub.f32 %v5330, %v5621
        %v5811 = vsub.f32 %v5331, %v5622
        %v5812 = vsub.f32 %v5332, %v5622
        %v5813 = vsub.f32 %v5333, %v5623
        %v5814 = vsub.f32 %v5334, %v5623
        %v5815 = vsub.f32 %v5335, %v5624
        %v5816 = vsub.f32 %v5336, %v5624
        %v5817 = vadd.f32 %v5721, 1e-05
        %v5818 = vadd.f32 %v5722, 1e-05
        %v5819 = vadd.f32 %v5723, 1e-05
        %v5820 = vadd.f32 %v5724, 1e-05
        %v5821 = vadd.f32 %v5725, 1e-05
        %v5822 = vadd.f32 %v5726, 1e-05
        %v5823 = vadd.f32 %v5727, 1e-05
        %v5824 = vadd.f32 %v5728, 1e-05
        %v5825 = vadd.f32 %v5729, 1e-05
        %v5826 = vadd.f32 %v5730, 1e-05
        %v5827 = vadd.f32 %v5731, 1e-05
        %v5828 = vadd.f32 %v5732, 1e-05
        %v5829 = vadd.f32 %v5733, 1e-05
        %v5830 = vadd.f32 %v5734, 1e-05
        %v5831 = vadd.f32 %v5735, 1e-05
        %v5832 = vadd.f32 %v5736, 1e-05
        %v5833 = vadd.f32 %v5737, 1e-05
        %v5834 = vadd.f32 %v5738, 1e-05
        %v5835 = vadd.f32 %v5739, 1e-05
        %v5836 = vadd.f32 %v5740, 1e-05
        %v5837 = vadd.f32 %v5741, 1e-05
        %v5838 = vadd.f32 %v5742, 1e-05
        %v5839 = vadd.f32 %v5743, 1e-05
        %v5840 = vadd.f32 %v5744, 1e-05
        %v5841 = vadd.f32 %v5745, 1e-05
        %v5842 = vadd.f32 %v5746, 1e-05
        %v5843 = vadd.f32 %v5747, 1e-05
        %v5844 = vadd.f32 %v5748, 1e-05
        %v5845 = vadd.f32 %v5749, 1e-05
        %v5846 = vadd.f32 %v5750, 1e-05
        %v5847 = vadd.f32 %v5751, 1e-05
        %v5848 = vadd.f32 %v5752, 1e-05
        %v5849 = vrsqrt.pop %v5817
        %v5850 = vrsqrt.pop %v5818
        %v5851 = vrsqrt.pop %v5819
        %v5852 = vrsqrt.pop %v5820
        %v5853 = vrsqrt.pop %v5821
        %v5854 = vrsqrt.pop %v5822
        %v5855 = vrsqrt.pop %v5823
        %v5856 = vrsqrt.pop %v5824
        %v5857 = vrsqrt.pop %v5825
        %v5858 = vrsqrt.pop %v5826
        %v5859 = vrsqrt.pop %v5827
        %v5860 = vrsqrt.pop %v5828
        %v5861 = vrsqrt.pop %v5829
        %v5862 = vrsqrt.pop %v5830
        %v5863 = vrsqrt.pop %v5831
        %v5864 = vrsqrt.pop %v5832
        %v5865 = vrsqrt.pop %v5833
        %v5866 = vrsqrt.pop %v5834
        %v5867 = vrsqrt.pop %v5835
        %v5868 = vrsqrt.pop %v5836
        %v5869 = vrsqrt.pop %v5837
        %v5870 = vrsqrt.pop %v5838
        %v5871 = vrsqrt.pop %v5839
        %v5872 = vrsqrt.pop %v5840
        %v5873 = vrsqrt.pop %v5841
        %v5874 = vrsqrt.pop %v5842
        %v5875 = vrsqrt.pop %v5843
        %v5876 = vrsqrt.pop %v5844
        %v5877 = vrsqrt.pop %v5845
        %v5878 = vrsqrt.pop %v5846
        %v5879 = vrsqrt.pop %v5847
        %v5880 = vrsqrt.pop %v5848
        %v5881 = vmul.f32 %v5753, %v5849
        %v5882 = vmul.f32 %v5754, %v5849
        %v5883 = vmul.f32 %v5755, %v5850
        %v5884 = vmul.f32 %v5756, %v5850
        %v5885 = vmul.f32 %v5757, %v5851
        %v5886 = vmul.f32 %v5758, %v5851
        %v5887 = vmul.f32 %v5759, %v5852
        %v5888 = vmul.f32 %v5760, %v5852
        %v5889 = vmul.f32 %v5761, %v5853
        %v5890 = vmul.f32 %v5762, %v5853
        %v5891 = vmul.f32 %v5763, %v5854
        %v5892 = vmul.f32 %v5764, %v5854
        %v5893 = vmul.f32 %v5765, %v5855
        %v5894 = vmul.f32 %v5766, %v5855
        %v5895 = vmul.f32 %v5767, %v5856
        %v5896 = vmul.f32 %v5768, %v5856
        %v5897 = vmul.f32 %v5769, %v5857
        %v5898 = vmul.f32 %v5770, %v5857
        %v5899 = vmul.f32 %v5771, %v5858
        %v5900 = vmul.f32 %v5772, %v5858
        %v5901 = vmul.f32 %v5773, %v5859
        %v5902 = vmul.f32 %v5774, %v5859
        %v5903 = vmul.f32 %v5775, %v5860
        %v5904 = vmul.f32 %v5776, %v5860
        %v5905 = vmul.f32 %v5777, %v5861
        %v5906 = vmul.f32 %v5778, %v5861
        %v5907 = vmul.f32 %v5779, %v5862
        %v5908 = vmul.f32 %v5780, %v5862
        %v5909 = vmul.f32 %v5781, %v5863
        %v5910 = vmul.f32 %v5782, %v5863
        %v5911 = vmul.f32 %v5783, %v5864
        %v5912 = vmul.f32 %v5784, %v5864
        %v5913 = vmul.f32 %v5785, %v5865
        %v5914 = vmul.f32 %v5786, %v5865
        %v5915 = vmul.f32 %v5787, %v5866
        %v5916 = vmul.f32 %v5788, %v5866
        %v5917 = vmul.f32 %v5789, %v5867
        %v5918 = vmul.f32 %v5790, %v5867
        %v5919 = vmul.f32 %v5791, %v5868
        %v5920 = vmul.f32 %v5792, %v5868
        %v5921 = vmul.f32 %v5793, %v5869
        %v5922 = vmul.f32 %v5794, %v5869
        %v5923 = vmul.f32 %v5795, %v5870
        %v5924 = vmul.f32 %v5796, %v5870
        %v5925 = vmul.f32 %v5797, %v5871
        %v5926 = vmul.f32 %v5798, %v5871
        %v5927 = vmul.f32 %v5799, %v5872
        %v5928 = vmul.f32 %v5800, %v5872
        %v5929 = vmul.f32 %v5801, %v5873
        %v5930 = vmul.f32 %v5802, %v5873
        %v5931 = vmul.f32 %v5803, %v5874
        %v5932 = vmul.f32 %v5804, %v5874
        %v5933 = vmul.f32 %v5805, %v5875
        %v5934 = vmul.f32 %v5806, %v5875
        %v5935 = vmul.f32 %v5807, %v5876
        %v5936 = vmul.f32 %v5808, %v5876
        %v5937 = vmul.f32 %v5809, %v5877
        %v5938 = vmul.f32 %v5810, %v5877
        %v5939 = vmul.f32 %v5811, %v5878
        %v5940 = vmul.f32 %v5812, %v5878
        %v5941 = vmul.f32 %v5813, %v5879
        %v5942 = vmul.f32 %v5814, %v5879
        %v5943 = vmul.f32 %v5815, %v5880
        %v5944 = vmul.f32 %v5816, %v5880
        %v5945 = vmul.f32 %v5881, 0.01
        %v5946 = vmul.f32 %v5882, 0.01
        %v5947 = vmul.f32 %v5883, 0.01
        %v5948 = vmul.f32 %v5884, 0.01
        %v5949 = vmul.f32 %v5885, 0.01
        %v5950 = vmul.f32 %v5886, 0.01
        %v5951 = vmul.f32 %v5887, 0.01
        %v5952 = vmul.f32 %v5888, 0.01
        %v5953 = vmul.f32 %v5889, 0.01
        %v5954 = vmul.f32 %v5890, 0.01
        %v5955 = vmul.f32 %v5891, 0.01
        %v5956 = vmul.f32 %v5892, 0.01
        %v5957 = vmul.f32 %v5893, 0.01
        %v5958 = vmul.f32 %v5894, 0.01
        %v5959 = vmul.f32 %v5895, 0.01
        %v5960 = vmul.f32 %v5896, 0.01
        %v5961 = vmul.f32 %v5897, 0.01
        %v5962 = vmul.f32 %v5898, 0.01
        %v5963 = vmul.f32 %v5899, 0.01
        %v5964 = vmul.f32 %v5900, 0.01
        %v5965 = vmul.f32 %v5901, 0.01
        %v5966 = vmul.f32 %v5902, 0.01
        %v5967 = vmul.f32 %v5903, 0.01
        %v5968 = vmul.f32 %v5904, 0.01
        %v5969 = vmul.f32 %v5905, 0.01
        %v5970 = vmul.f32 %v5906, 0.01
        %v5971 = vmul.f32 %v5907, 0.01
        %v5972 = vmul.f32 %v5908, 0.01
        %v5973 = vmul.f32 %v5909, 0.01
        %v5974 = vmul.f32 %v5910, 0.01
        %v5975 = vmul.f32 %v5911, 0.01
        %v5976 = vmul.f32 %v5912, 0.01
        %v5977 = vmul.f32 %v5913, 0.01
        %v5978 = vmul.f32 %v5914, 0.01
        %v5979 = vmul.f32 %v5915, 0.01
        %v5980 = vmul.f32 %v5916, 0.01
        %v5981 = vmul.f32 %v5917, 0.01
        %v5982 = vmul.f32 %v5918, 0.01
        %v5983 = vmul.f32 %v5919, 0.01
        %v5984 = vmul.f32 %v5920, 0.01
        %v5985 = vmul.f32 %v5921, 0.01
        %v5986 = vmul.f32 %v5922, 0.01
        %v5987 = vmul.f32 %v5923, 0.01
        %v5988 = vmul.f32 %v5924, 0.01
        %v5989 = vmul.f32 %v5925, 0.01
        %v5990 = vmul.f32 %v5926, 0.01
        %v5991 = vmul.f32 %v5927, 0.01
        %v5992 = vmul.f32 %v5928, 0.01
        %v5993 = vmul.f32 %v5929, 0.01
        %v5994 = vmul.f32 %v5930, 0.01
        %v5995 = vmul.f32 %v5931, 0.01
        %v5996 = vmul.f32 %v5932, 0.01
        %v5997 = vmul.f32 %v5933, 0.01
        %v5998 = vmul.f32 %v5934, 0.01
        %v5999 = vmul.f32 %v5935, 0.01
        %v6000 = vmul.f32 %v5936, 0.01
        %v6001 = vmul.f32 %v5937, 0.01
        %v6002 = vmul.f32 %v5938, 0.01
        %v6003 = vmul.f32 %v5939, 0.01
        %v6004 = vmul.f32 %v5940, 0.01
        %v6005 = vmul.f32 %v5941, 0.01
        %v6006 = vmul.f32 %v5942, 0.01
        %v6007 = vmul.f32 %v5943, 0.01
        %v6008 = vmul.f32 %v5944, 0.01
        %v6009 = vmax.f32 %v5881, %v5945
        %v6010 = vmax.f32 %v5882, %v5946
        %v6011 = vmax.f32 %v5883, %v5947
        %v6012 = vmax.f32 %v5884, %v5948
        %v6013 = vmax.f32 %v5885, %v5949
        %v6014 = vmax.f32 %v5886, %v5950
        %v6015 = vmax.f32 %v5887, %v5951
        %v6016 = vmax.f32 %v5888, %v5952
        %v6017 = vmax.f32 %v5889, %v5953
        %v6018 = vmax.f32 %v5890, %v5954
        %v6019 = vmax.f32 %v5891, %v5955
        %v6020 = vmax.f32 %v5892, %v5956
        %v6021 = vmax.f32 %v5893, %v5957
        %v6022 = vmax.f32 %v5894, %v5958
        %v6023 = vmax.f32 %v5895, %v5959
        %v6024 = vmax.f32 %v5896, %v5960
        %v6025 = vmax.f32 %v5897, %v5961
        %v6026 = vmax.f32 %v5898, %v5962
        %v6027 = vmax.f32 %v5899, %v5963
        %v6028 = vmax.f32 %v5900, %v5964
        %v6029 = vmax.f32 %v5901, %v5965
        %v6030 = vmax.f32 %v5902, %v5966
        %v6031 = vmax.f32 %v5903, %v5967
        %v6032 = vmax.f32 %v5904, %v5968
        %v6033 = vmax.f32 %v5905, %v5969
        %v6034 = vmax.f32 %v5906, %v5970
        %v6035 = vmax.f32 %v5907, %v5971
        %v6036 = vmax.f32 %v5908, %v5972
        %v6037 = vmax.f32 %v5909, %v5973
        %v6038 = vmax.f32 %v5910, %v5974
        %v6039 = vmax.f32 %v5911, %v5975
        %v6040 = vmax.f32 %v5912, %v5976
        %v6041 = vmax.f32 %v5913, %v5977
        %v6042 = vmax.f32 %v5914, %v5978
        %v6043 = vmax.f32 %v5915, %v5979
        %v6044 = vmax.f32 %v5916, %v5980
        %v6045 = vmax.f32 %v5917, %v5981
        %v6046 = vmax.f32 %v5918, %v5982
        %v6047 = vmax.f32 %v5919, %v5983
        %v6048 = vmax.f32 %v5920, %v5984
        %v6049 = vmax.f32 %v5921, %v5985
        %v6050 = vmax.f32 %v5922, %v5986
        %v6051 = vmax.f32 %v5923, %v5987
        %v6052 = vmax.f32 %v5924, %v5988
        %v6053 = vmax.f32 %v5925, %v5989
        %v6054 = vmax.f32 %v5926, %v5990
        %v6055 = vmax.f32 %v5927, %v5991
        %v6056 = vmax.f32 %v5928, %v5992
        %v6057 = vmax.f32 %v5929, %v5993
        %v6058 = vmax.f32 %v5930, %v5994
        %v6059 = vmax.f32 %v5931, %v5995
        %v6060 = vmax.f32 %v5932, %v5996
        %v6061 = vmax.f32 %v5933, %v5997
        %v6062 = vmax.f32 %v5934, %v5998
        %v6063 = vmax.f32 %v5935, %v5999
        %v6064 = vmax.f32 %v5936, %v6000
        %v6065 = vmax.f32 %v5937, %v6001
        %v6066 = vmax.f32 %v5938, %v6002
        %v6067 = vmax.f32 %v5939, %v6003
        %v6068 = vmax.f32 %v5940, %v6004
        %v6069 = vmax.f32 %v5941, %v6005
        %v6070 = vmax.f32 %v5942, %v6006
        %v6071 = vmax.f32 %v5943, %v6007
        %v6072 = vmax.f32 %v5944, %v6008
        %v6073 = vpack.c.bf16 %v6011, %v6009
        %v6074 = vpack.c.bf16 %v6012, %v6010
        %v6075 = vpack.c.bf16 %v6015, %v6013
        %v6076 = vpack.c.bf16 %v6016, %v6014
        %v6077 = vpack.c.bf16 %v6019, %v6017
        %v6078 = vpack.c.bf16 %v6020, %v6018
        %v6079 = vpack.c.bf16 %v6023, %v6021
        %v6080 = vpack.c.bf16 %v6024, %v6022
        %v6081 = vpack.c.bf16 %v6027, %v6025
        %v6082 = vpack.c.bf16 %v6028, %v6026
        %v6083 = vpack.c.bf16 %v6031, %v6029
        %v6084 = vpack.c.bf16 %v6032, %v6030
        %v6085 = vpack.c.bf16 %v6035, %v6033
        %v6086 = vpack.c.bf16 %v6036, %v6034
        %v6087 = vpack.c.bf16 %v6039, %v6037
        %v6088 = vpack.c.bf16 %v6040, %v6038
        %v6089 = vpack.c.bf16 %v6043, %v6041
        %v6090 = vpack.c.bf16 %v6044, %v6042
        %v6091 = vpack.c.bf16 %v6047, %v6045
        %v6092 = vpack.c.bf16 %v6048, %v6046
        %v6093 = vpack.c.bf16 %v6051, %v6049
        %v6094 = vpack.c.bf16 %v6052, %v6050
        %v6095 = vpack.c.bf16 %v6055, %v6053
        %v6096 = vpack.c.bf16 %v6056, %v6054
        %v6097 = vpack.c.bf16 %v6059, %v6057
        %v6098 = vpack.c.bf16 %v6060, %v6058
        %v6099 = vpack.c.bf16 %v6063, %v6061
        %v6100 = vpack.c.bf16 %v6064, %v6062
        %v6101 = vpack.c.bf16 %v6067, %v6065
        %v6102 = vpack.c.bf16 %v6068, %v6066
        %v6103 = vpack.c.bf16 %v6071, %v6069
        %v6104 = vpack.c.bf16 %v6072, %v6070
        %v6105 = vld [vmem:[%s6] sm:$0xf]
        %v6106 = vld [vmem:[%s6 + $0x4] sm:$0xf]
        %v6107 = vld [vmem:[%s6 + $0x8] sm:$0xf]
        %v6108 = vld [vmem:[%s6 + $0xc] sm:$0xf]
        %v6109 = vld [vmem:[%s6 + $0x10] sm:$0xf]
        %v6110 = vld [vmem:[%s6 + $0x14] sm:$0xf]
        %v6111 = vld [vmem:[%s6 + $0x18] sm:$0xf]
        %v6112 = vld [vmem:[%s6 + $0x1c] sm:$0xf]
        %v6113 = vld [vmem:[%s6 + $0x20] sm:$0xf]
        %v6114 = vld [vmem:[%s6 + $0x24] sm:$0xf]
        %v6115 = vld [vmem:[%s6 + $0x28] sm:$0xf]
        %v6116 = vld [vmem:[%s6 + $0x2c] sm:$0xf]
        %v6117 = vld [vmem:[%s6 + $0x30] sm:$0xf]
        %v6118 = vld [vmem:[%s6 + $0x34] sm:$0xf]
        %v6119 = vld [vmem:[%s6 + $0x38] sm:$0xf]
        %v6120 = vld [vmem:[%s6 + $0x3c] sm:$0xf]
        %v6121 = vld [vmem:[%s6 + $0x40] sm:$0xf]
        %v6122 = vld [vmem:[%s6 + $0x44] sm:$0xf]
        %v6123 = vld [vmem:[%s6 + $0x48] sm:$0xf]
        %v6124 = vld [vmem:[%s6 + $0x4c] sm:$0xf]
        %v6125 = vld [vmem:[%s6 + $0x50] sm:$0xf]
        %v6126 = vld [vmem:[%s6 + $0x54] sm:$0xf]
        %v6127 = vld [vmem:[%s6 + $0x58] sm:$0xf]
        %v6128 = vld [vmem:[%s6 + $0x5c] sm:$0xf]
        %v6129 = vld [vmem:[%s6 + $0x60] sm:$0xf]
        %v6130 = vld [vmem:[%s6 + $0x64] sm:$0xf]
        %v6131 = vld [vmem:[%s6 + $0x68] sm:$0xf]
        %v6132 = vld [vmem:[%s6 + $0x6c] sm:$0xf]
        %v6133 = vld [vmem:[%s6 + $0x70] sm:$0xf]
        %v6134 = vld [vmem:[%s6 + $0x74] sm:$0xf]
        %v6135 = vld [vmem:[%s6 + $0x78] sm:$0xf]
        %v6136 = vld [vmem:[%s6 + $0x7c] sm:$0xf]
        %v6169 = vunpack.c.l.b16 %v6105
        %v6170 = vunpack.c.l.b16 %v6106
        %v6171 = vunpack.c.l.b16 %v6107
        %v6172 = vunpack.c.l.b16 %v6108
        %v6173 = vunpack.c.l.b16 %v6109
        %v6174 = vunpack.c.l.b16 %v6110
        %v6175 = vunpack.c.l.b16 %v6111
        %v6176 = vunpack.c.l.b16 %v6112
        %v6177 = vunpack.c.l.b16 %v6113
        %v6178 = vunpack.c.l.b16 %v6114
        %v6179 = vunpack.c.l.b16 %v6115
        %v6180 = vunpack.c.l.b16 %v6116
        %v6181 = vunpack.c.l.b16 %v6117
        %v6182 = vunpack.c.l.b16 %v6118
        %v6183 = vunpack.c.l.b16 %v6119
        %v6184 = vunpack.c.l.b16 %v6120
        %v6185 = vunpack.c.l.b16 %v6121
        %v6186 = vunpack.c.l.b16 %v6122
        %v6187 = vunpack.c.l.b16 %v6123
        %v6188 = vunpack.c.l.b16 %v6124
        %v6189 = vunpack.c.l.b16 %v6125
        %v6190 = vunpack.c.l.b16 %v6126
        %v6191 = vunpack.c.l.b16 %v6127
        %v6192 = vunpack.c.l.b16 %v6128
        %v6193 = vunpack.c.l.b16 %v6129
        %v6194 = vunpack.c.l.b16 %v6130
        %v6195 = vunpack.c.l.b16 %v6131
        %v6196 = vunpack.c.l.b16 %v6132
        %v6197 = vunpack.c.l.b16 %v6133
        %v6198 = vunpack.c.l.b16 %v6134
        %v6199 = vunpack.c.l.b16 %v6135
        %v6200 = vunpack.c.l.b16 %v6136
        %v6201 = vpack.c.b16 %v6170, %v6169
        %v6202 = vpack.c.b16 %v6172, %v6171
        %v6203 = vpack.c.b16 %v6174, %v6173
        %v6204 = vpack.c.b16 %v6176, %v6175
        %v6205 = vpack.c.b16 %v6178, %v6177
        %v6206 = vpack.c.b16 %v6180, %v6179
        %v6207 = vpack.c.b16 %v6182, %v6181
        %v6208 = vpack.c.b16 %v6184, %v6183
        %v6209 = vpack.c.b16 %v6186, %v6185
        %v6210 = vpack.c.b16 %v6188, %v6187
        %v6211 = vpack.c.b16 %v6190, %v6189
        %v6212 = vpack.c.b16 %v6192, %v6191
        %v6213 = vpack.c.b16 %v6194, %v6193
        %v6214 = vpack.c.b16 %v6196, %v6195
        %v6215 = vpack.c.b16 %v6198, %v6197
        %v6216 = vpack.c.b16 %v6200, %v6199
        %6233 = vmatprep.subr.bf16.mxu0 0
        %6234 = vmatpush1.bf16.msra.mxu0 %v6208
        %6235 = vmatprep.subr.bf16.mxu0 0
        %6236 = vmatpush1.bf16.msra.mxu0 %v6207
        %6237 = vmatprep.subr.bf16.mxu0 0
        %6238 = vmatpush1.bf16.msra.mxu0 %v6206
        %6239 = vmatprep.subr.bf16.mxu0 0
        %6240 = vmatpush1.bf16.msra.mxu0 %v6205
        %6241 = vmatprep.subr.bf16.mxu0 0
        %6242 = vmatpush1.bf16.msra.mxu0 %v6204
        %6243 = vmatprep.subr.bf16.mxu0 0
        %6244 = vmatpush1.bf16.msra.mxu0 %v6203
        %6245 = vmatprep.subr.bf16.mxu0 0
        %6246 = vmatpush1.bf16.msra.mxu0 %v6202
        %6247 = vmatprep.subr.bf16.mxu0 0
        %6248 = vmatpush1.bf16.msra.mxu0 %v6201
        %6249 = vmatprep.subr.bf16.mxu0 0
        %6250 = vmatpush2.bf16.msra.mxu0 %v6216
        %6251 = vmatprep.subr.bf16.mxu0 0
        %6252 = vmatpush2.bf16.msra.mxu0 %v6215
        %6253 = vmatprep.subr.bf16.mxu0 0
        %6254 = vmatpush2.bf16.msra.mxu0 %v6214
        %6255 = vmatprep.subr.bf16.mxu0 0
        %6256 = vmatpush2.bf16.msra.mxu0 %v6213
        %6257 = vmatprep.subr.bf16.mxu0 0
        %6258 = vmatpush2.bf16.msra.mxu0 %v6212
        %6259 = vmatprep.subr.bf16.mxu0 0
        %6260 = vmatpush2.bf16.msra.mxu0 %v6211
        %6261 = vmatprep.subr.bf16.mxu0 0
        %6262 = vmatpush2.bf16.msra.mxu0 %v6210
        %6263 = vmatprep.subr.bf16.mxu0 0
        %6264 = vmatpush2.bf16.msra.mxu0 %v6209
        %6265 = vmatprep.mubr.bf16.mxu0 %v6074
        %6266 = vmatmul.mubr.bf16.gmra.mxu0 %v6073
        %v6267 = vpop.f32.mrf.mxu0
        %v6268 = vadd.f32 0.0, %v6267
        %v6269 = vpop.f32.mrf.mxu0
        %v6270 = vpop.f32.mrf.mxu0
        %v6271 = vadd.f32 0.0, %v6270
        %v6272 = vpop.f32.mrf.mxu0
        %6273 = vmatprep.mubr.bf16.mxu0 %v6076
        %6274 = vmatmul.mubr.bf16.gmra.mxu0 %v6075
        %v6275 = vpop.f32.mrf.mxu0
        %v6276 = vadd.f32 0.0, %v6275
        %v6277 = vpop.f32.mrf.mxu0
        %v6278 = vpop.f32.mrf.mxu0
        %v6279 = vadd.f32 0.0, %v6278
        %v6280 = vpop.f32.mrf.mxu0
        %6281 = vmatprep.mubr.bf16.mxu0 %v6078
        %6282 = vmatmul.mubr.bf16.gmra.mxu0 %v6077
        %v6283 = vpop.f32.mrf.mxu0
        %v6284 = vadd.f32 0.0, %v6283
        %v6285 = vpop.f32.mrf.mxu0
        %v6286 = vpop.f32.mrf.mxu0
        %v6287 = vadd.f32 0.0, %v6286
        %v6288 = vpop.f32.mrf.mxu0
        %6289 = vmatprep.mubr.bf16.mxu0 %v6080
        %6290 = vmatmul.mubr.bf16.gmra.mxu0 %v6079
        %v6291 = vpop.f32.mrf.mxu0
        %v6292 = vadd.f32 0.0, %v6291
        %v6293 = vpop.f32.mrf.mxu0
        %v6294 = vpop.f32.mrf.mxu0
        %v6295 = vadd.f32 0.0, %v6294
        %v6296 = vpop.f32.mrf.mxu0
        %6297 = vmatprep.mubr.bf16.mxu0 %v6082
        %6298 = vmatmul.mubr.bf16.gmra.mxu0 %v6081
        %v6299 = vpop.f32.mrf.mxu0
        %v6300 = vadd.f32 0.0, %v6299
        %v6301 = vpop.f32.mrf.mxu0
        %v6302 = vpop.f32.mrf.mxu0
        %v6303 = vadd.f32 0.0, %v6302
        %v6304 = vpop.f32.mrf.mxu0
        %6305 = vmatprep.mubr.bf16.mxu0 %v6084
        %6306 = vmatmul.mubr.bf16.gmra.mxu0 %v6083
        %v6307 = vpop.f32.mrf.mxu0
        %v6308 = vadd.f32 0.0, %v6307
        %v6309 = vpop.f32.mrf.mxu0
        %v6310 = vpop.f32.mrf.mxu0
        %v6311 = vadd.f32 0.0, %v6310
        %v6312 = vpop.f32.mrf.mxu0
        %6313 = vmatprep.mubr.bf16.mxu0 %v6086
        %6314 = vmatmul.mubr.bf16.gmra.mxu0 %v6085
        %v6315 = vpop.f32.mrf.mxu0
        %v6316 = vadd.f32 0.0, %v6315
        %v6317 = vpop.f32.mrf.mxu0
        %v6318 = vpop.f32.mrf.mxu0
        %v6319 = vadd.f32 0.0, %v6318
        %v6320 = vpop.f32.mrf.mxu0
        %6321 = vmatprep.mubr.bf16.mxu0 %v6088
        %6322 = vmatmul.mubr.bf16.gmra.mxu0 %v6087
        %v6323 = vpop.f32.mrf.mxu0
        %v6324 = vadd.f32 0.0, %v6323
        %v6325 = vpop.f32.mrf.mxu0
        %v6326 = vpop.f32.mrf.mxu0
        %v6327 = vadd.f32 0.0, %v6326
        %v6328 = vpop.f32.mrf.mxu0
        %6329 = vmatprep.mubr.bf16.mxu0 %v6090
        %6330 = vmatmul.mubr.bf16.gmra.mxu0 %v6089
        %v6331 = vpop.f32.mrf.mxu0
        %v6332 = vadd.f32 0.0, %v6331
        %v6333 = vpop.f32.mrf.mxu0
        %v6334 = vpop.f32.mrf.mxu0
        %v6335 = vadd.f32 0.0, %v6334
        %v6336 = vpop.f32.mrf.mxu0
        %6337 = vmatprep.mubr.bf16.mxu0 %v6092
        %6338 = vmatmul.mubr.bf16.gmra.mxu0 %v6091
        %v6339 = vpop.f32.mrf.mxu0
        %v6340 = vadd.f32 0.0, %v6339
        %v6341 = vpop.f32.mrf.mxu0
        %v6342 = vpop.f32.mrf.mxu0
        %v6343 = vadd.f32 0.0, %v6342
        %v6344 = vpop.f32.mrf.mxu0
        %6345 = vmatprep.mubr.bf16.mxu0 %v6094
        %6346 = vmatmul.mubr.bf16.gmra.mxu0 %v6093
        %v6347 = vpop.f32.mrf.mxu0
        %v6348 = vadd.f32 0.0, %v6347
        %v6349 = vpop.f32.mrf.mxu0
        %v6350 = vpop.f32.mrf.mxu0
        %v6351 = vadd.f32 0.0, %v6350
        %v6352 = vpop.f32.mrf.mxu0
        %6353 = vmatprep.mubr.bf16.mxu0 %v6096
        %6354 = vmatmul.mubr.bf16.gmra.mxu0 %v6095
        %v6355 = vpop.f32.mrf.mxu0
        %v6356 = vadd.f32 0.0, %v6355
        %v6357 = vpop.f32.mrf.mxu0
        %v6358 = vpop.f32.mrf.mxu0
        %v6359 = vadd.f32 0.0, %v6358
        %v6360 = vpop.f32.mrf.mxu0
        %6361 = vmatprep.mubr.bf16.mxu0 %v6098
        %6362 = vmatmul.mubr.bf16.gmra.mxu0 %v6097
        %v6363 = vpop.f32.mrf.mxu0
        %v6364 = vadd.f32 0.0, %v6363
        %v6365 = vpop.f32.mrf.mxu0
        %v6366 = vpop.f32.mrf.mxu0
        %v6367 = vadd.f32 0.0, %v6366
        %v6368 = vpop.f32.mrf.mxu0
        %6369 = vmatprep.mubr.bf16.mxu0 %v6100
        %6370 = vmatmul.mubr.bf16.gmra.mxu0 %v6099
        %v6371 = vpop.f32.mrf.mxu0
        %v6372 = vadd.f32 0.0, %v6371
        %v6373 = vpop.f32.mrf.mxu0
        %v6374 = vpop.f32.mrf.mxu0
        %v6375 = vadd.f32 0.0, %v6374
        %v6376 = vpop.f32.mrf.mxu0
        %6377 = vmatprep.mubr.bf16.mxu0 %v6102
        %6378 = vmatmul.mubr.bf16.gmra.mxu0 %v6101
        %v6379 = vpop.f32.mrf.mxu0
        %v6380 = vadd.f32 0.0, %v6379
        %v6381 = vpop.f32.mrf.mxu0
        %v6382 = vpop.f32.mrf.mxu0
        %v6383 = vadd.f32 0.0, %v6382
        %v6384 = vpop.f32.mrf.mxu0
        %6385 = vmatprep.mubr.bf16.mxu0 %v6104
        %6386 = vmatmul.mubr.bf16.gmra.mxu0 %v6103
        %v6387 = vpop.f32.mrf.mxu0
        %v6388 = vadd.f32 0.0, %v6387
        %v6389 = vpop.f32.mrf.mxu0
        %v6390 = vpop.f32.mrf.mxu0
        %v6391 = vadd.f32 0.0, %v6390
        %v6392 = vpop.f32.mrf.mxu0
        %6393 = vdwg.mxu0
        %p6394 = scmp.eq.s32.totalorder %s25, 0
        // Predicated region
        $region77: #{st_vae_forward.1} parent=75 // pred_check
          %p6395 = pneg %p6394
        $region78: #{st_vae_forward.1} parent=75 // pred_check_branch
          %6397 = sbr.rel (%p6395) target = $region80
        $region79: #{st_vae_forward.1} parent=75 // pred_region
          %v6398 = vmul.f32 %v6268, %v566
          %v6399 = vmul.f32 %v6271, %v567
          %v6400 = vmul.f32 %v6276, %v568
          %v6401 = vmul.f32 %v6279, %v569
          %v6402 = vmul.f32 %v6284, %v570
          %v6403 = vmul.f32 %v6287, %v571
          %v6404 = vmul.f32 %v6292, %v572
          %v6405 = vmul.f32 %v6295, %v573
          %v6406 = vmul.f32 %v6300, %v574
          %v6407 = vmul.f32 %v6303, %v575
          %v6408 = vmul.f32 %v6308, %v576
          %v6409 = vmul.f32 %v6311, %v577
          %v6410 = vmul.f32 %v6316, %v578
          %v6411 = vmul.f32 %v6319, %v579
          %v6412 = vmul.f32 %v6324, %v580
          %v6413 = vmul.f32 %v6327, %v581
          %v6414 = vmul.f32 %v6332, %v582
          %v6415 = vmul.f32 %v6335, %v583
          %v6416 = vmul.f32 %v6340, %v584
          %v6417 = vmul.f32 %v6343, %v585
          %v6418 = vmul.f32 %v6348, %v586
          %v6419 = vmul.f32 %v6351, %v587
          %v6420 = vmul.f32 %v6356, %v588
          %v6421 = vmul.f32 %v6359, %v589
          %v6422 = vmul.f32 %v6364, %v590
          %v6423 = vmul.f32 %v6367, %v591
          %v6424 = vmul.f32 %v6372, %v592
          %v6425 = vmul.f32 %v6375, %v593
          %v6426 = vmul.f32 %v6380, %v594
          %v6427 = vmul.f32 %v6383, %v595
          %v6428 = vmul.f32 %v6388, %v596
          %v6429 = vmul.f32 %v6391, %v597
          %v6430 = vadd.f32 %v6398, %v6399
          %v6431 = vadd.f32 %v6430, %v6400
          %v6432 = vadd.f32 %v6431, %v6401
          %v6433 = vadd.f32 %v6432, %v6402
          %v6434 = vadd.f32 %v6433, %v6403
          %v6435 = vadd.f32 %v6434, %v6404
          %v6436 = vadd.f32 %v6435, %v6405
          %v6437 = vadd.f32 %v6436, %v6406
          %v6438 = vadd.f32 %v6437, %v6407
          %v6439 = vadd.f32 %v6438, %v6408
          %v6440 = vadd.f32 %v6439, %v6409
          %v6441 = vadd.f32 %v6440, %v6410
          %v6442 = vadd.f32 %v6441, %v6411
          %v6443 = vadd.f32 %v6442, %v6412
          %v6444 = vadd.f32 %v6443, %v6413
          %v6445 = vadd.f32 %v6444, %v6414
          %v6446 = vadd.f32 %v6445, %v6415
          %v6447 = vadd.f32 %v6446, %v6416
          %v6448 = vadd.f32 %v6447, %v6417
          %v6449 = vadd.f32 %v6448, %v6418
          %v6450 = vadd.f32 %v6449, %v6419
          %v6451 = vadd.f32 %v6450, %v6420
          %v6452 = vadd.f32 %v6451, %v6421
          %v6453 = vadd.f32 %v6452, %v6422
          %v6454 = vadd.f32 %v6453, %v6423
          %v6455 = vadd.f32 %v6454, %v6424
          %v6456 = vadd.f32 %v6455, %v6425
          %v6457 = vadd.f32 %v6456, %v6426
          %v6458 = vadd.f32 %v6457, %v6427
          %v6459 = vadd.f32 %v6458, %v6428
          %v6460 = vadd.f32 %v6459, %v6429
          %v6461 = vrot.slane %v6460, 4
          %v6462 = vadd.f32 %v6460, %v6461
          %v6463 = vrot.slane %v6462, 2
          %v6464 = vadd.f32 %v6462, %v6463
          %v6465 = vrot.slane %v6464, 1
          %v6466 = vadd.f32 %v6464, %v6465
          %v6467 = vmul.f32 %v6466, 0.00390625
          %6468 = vst [vmem:[#allocation5] sm:$0x1] %v6467
          %6469 = vst [vmem:[#allocation5 + $0x1] sm:$0x3] 0.0
        $region80: #{st_vae_forward.1} parent=75 // pred_fallthru
          _
        %v6470 = vld [vmem:[#allocation5] sm:$0x1]
        %v6471 = vlaneseq
        %v6472 = vshrl.u32 %v6471, 7
        %v6473 = vsub.s32 0, %v6472
        %v6474 = vrot.slane %v6470, %v6473
        %v6475 = vsub.f32 %v6268, %v6474
        %v6476 = vsub.f32 %v6271, %v6474
        %v6477 = vsub.f32 %v6276, %v6474
        %v6478 = vsub.f32 %v6279, %v6474
        %v6479 = vsub.f32 %v6284, %v6474
        %v6480 = vsub.f32 %v6287, %v6474
        %v6481 = vsub.f32 %v6292, %v6474
        %v6482 = vsub.f32 %v6295, %v6474
        %v6483 = vsub.f32 %v6300, %v6474
        %v6484 = vsub.f32 %v6303, %v6474
        %v6485 = vsub.f32 %v6308, %v6474
        %v6486 = vsub.f32 %v6311, %v6474
        %v6487 = vsub.f32 %v6316, %v6474
        %v6488 = vsub.f32 %v6319, %v6474
        %v6489 = vsub.f32 %v6324, %v6474
        %v6490 = vsub.f32 %v6327, %v6474
        %v6491 = vsub.f32 %v6332, %v6474
        %v6492 = vsub.f32 %v6335, %v6474
        %v6493 = vsub.f32 %v6340, %v6474
        %v6494 = vsub.f32 %v6343, %v6474
        %v6495 = vsub.f32 %v6348, %v6474
        %v6496 = vsub.f32 %v6351, %v6474
        %v6497 = vsub.f32 %v6356, %v6474
        %v6498 = vsub.f32 %v6359, %v6474
        %v6499 = vsub.f32 %v6364, %v6474
        %v6500 = vsub.f32 %v6367, %v6474
        %v6501 = vsub.f32 %v6372, %v6474
        %v6502 = vsub.f32 %v6375, %v6474
        %v6503 = vsub.f32 %v6380, %v6474
        %v6504 = vsub.f32 %v6383, %v6474
        %v6505 = vsub.f32 %v6388, %v6474
        %v6506 = vsub.f32 %v6391, %v6474
        %v6507 = vmul.f32 %v6475, %v566
        %v6508 = vmul.f32 %v6476, %v567
        %v6509 = vmul.f32 %v6477, %v568
        %v6510 = vmul.f32 %v6478, %v569
        %v6511 = vmul.f32 %v6479, %v570
        %v6512 = vmul.f32 %v6480, %v571
        %v6513 = vmul.f32 %v6481, %v572
        %v6514 = vmul.f32 %v6482, %v573
        %v6515 = vmul.f32 %v6483, %v574
        %v6516 = vmul.f32 %v6484, %v575
        %v6517 = vmul.f32 %v6485, %v576
        %v6518 = vmul.f32 %v6486, %v577
        %v6519 = vmul.f32 %v6487, %v578
        %v6520 = vmul.f32 %v6488, %v579
        %v6521 = vmul.f32 %v6489, %v580
        %v6522 = vmul.f32 %v6490, %v581
        %v6523 = vmul.f32 %v6491, %v582
        %v6524 = vmul.f32 %v6492, %v583
        %v6525 = vmul.f32 %v6493, %v584
        %v6526 = vmul.f32 %v6494, %v585
        %v6527 = vmul.f32 %v6495, %v586
        %v6528 = vmul.f32 %v6496, %v587
        %v6529 = vmul.f32 %v6497, %v588
        %v6530 = vmul.f32 %v6498, %v589
        %v6531 = vmul.f32 %v6499, %v590
        %v6532 = vmul.f32 %v6500, %v591
        %v6533 = vmul.f32 %v6501, %v592
        %v6534 = vmul.f32 %v6502, %v593
        %v6535 = vmul.f32 %v6503, %v594
        %v6536 = vmul.f32 %v6504, %v595
        %v6537 = vmul.f32 %v6505, %v596
        %v6538 = vmul.f32 %v6506, %v597
        %v6539 = vld [vmem:[#allocation5 + $0x1] sm:$0x1]
        %v6540 = vadd.f32 %v6507, %v6508
        %v6541 = vadd.f32 %v6540, %v6509
        %v6542 = vadd.f32 %v6541, %v6510
        %v6543 = vadd.f32 %v6542, %v6511
        %v6544 = vadd.f32 %v6543, %v6512
        %v6545 = vadd.f32 %v6544, %v6513
        %v6546 = vadd.f32 %v6545, %v6514
        %v6547 = vadd.f32 %v6546, %v6515
        %v6548 = vadd.f32 %v6547, %v6516
        %v6549 = vadd.f32 %v6548, %v6517
        %v6550 = vadd.f32 %v6549, %v6518
        %v6551 = vadd.f32 %v6550, %v6519
        %v6552 = vadd.f32 %v6551, %v6520
        %v6553 = vadd.f32 %v6552, %v6521
        %v6554 = vadd.f32 %v6553, %v6522
        %v6555 = vadd.f32 %v6554, %v6523
        %v6556 = vadd.f32 %v6555, %v6524
        %v6557 = vadd.f32 %v6556, %v6525
        %v6558 = vadd.f32 %v6557, %v6526
        %v6559 = vadd.f32 %v6558, %v6527
        %v6560 = vadd.f32 %v6559, %v6528
        %v6561 = vadd.f32 %v6560, %v6529
        %v6562 = vadd.f32 %v6561, %v6530
        %v6563 = vadd.f32 %v6562, %v6531
        %v6564 = vadd.f32 %v6563, %v6532
        %v6565 = vadd.f32 %v6564, %v6533
        %v6566 = vadd.f32 %v6565, %v6534
        %v6567 = vadd.f32 %v6566, %v6535
        %v6568 = vadd.f32 %v6567, %v6536
        %v6569 = vadd.f32 %v6568, %v6537
        %v6570 = vadd.f32 %v6569, %v6538
        %v6571 = vrot.slane %v6570, 4
        %v6572 = vadd.f32 %v6570, %v6571
        %v6573 = vrot.slane %v6572, 2
        %v6574 = vadd.f32 %v6572, %v6573
        %v6575 = vrot.slane %v6574, 1
        %v6576 = vadd.f32 %v6574, %v6575
        %v6577 = vadd.f32 %v6539, %v6576
        %6578 = vst [vmem:[#allocation5 + $0x1] sm:$0x1] %v6577
        %v6579 = vld [vmem:[#allocation5 + $0x2] sm:$0x1]
        %v6580 = vmul.f32 %v6507, %v6507
        %v6581 = vmul.f32 %v6508, %v6508
        %v6582 = vmul.f32 %v6509, %v6509
        %v6583 = vmul.f32 %v6510, %v6510
        %v6584 = vmul.f32 %v6511, %v6511
        %v6585 = vmul.f32 %v6512, %v6512
        %v6586 = vmul.f32 %v6513, %v6513
        %v6587 = vmul.f32 %v6514, %v6514
        %v6588 = vmul.f32 %v6515, %v6515
        %v6589 = vmul.f32 %v6516, %v6516
        %v6590 = vmul.f32 %v6517, %v6517
        %v6591 = vmul.f32 %v6518, %v6518
        %v6592 = vmul.f32 %v6519, %v6519
        %v6593 = vmul.f32 %v6520, %v6520
        %v6594 = vmul.f32 %v6521, %v6521
        %v6595 = vmul.f32 %v6522, %v6522
        %v6596 = vmul.f32 %v6523, %v6523
        %v6597 = vmul.f32 %v6524, %v6524
        %v6598 = vmul.f32 %v6525, %v6525
        %v6599 = vmul.f32 %v6526, %v6526
        %v6600 = vmul.f32 %v6527, %v6527
        %v6601 = vmul.f32 %v6528, %v6528
        %v6602 = vmul.f32 %v6529, %v6529
        %v6603 = vmul.f32 %v6530, %v6530
        %v6604 = vmul.f32 %v6531, %v6531
        %v6605 = vmul.f32 %v6532, %v6532
        %v6606 = vmul.f32 %v6533, %v6533
        %v6607 = vmul.f32 %v6534, %v6534
        %v6608 = vmul.f32 %v6535, %v6535
        %v6609 = vmul.f32 %v6536, %v6536
        %v6610 = vmul.f32 %v6537, %v6537
        %v6611 = vmul.f32 %v6538, %v6538
        %v6612 = vadd.f32 %v6580, %v6581
        %v6613 = vadd.f32 %v6612, %v6582
        %v6614 = vadd.f32 %v6613, %v6583
        %v6615 = vadd.f32 %v6614, %v6584
        %v6616 = vadd.f32 %v6615, %v6585
        %v6617 = vadd.f32 %v6616, %v6586
        %v6618 = vadd.f32 %v6617, %v6587
        %v6619 = vadd.f32 %v6618, %v6588
        %v6620 = vadd.f32 %v6619, %v6589
        %v6621 = vadd.f32 %v6620, %v6590
        %v6622 = vadd.f32 %v6621, %v6591
        %v6623 = vadd.f32 %v6622, %v6592
        %v6624 = vadd.f32 %v6623, %v6593
        %v6625 = vadd.f32 %v6624, %v6594
        %v6626 = vadd.f32 %v6625, %v6595
        %v6627 = vadd.f32 %v6626, %v6596
        %v6628 = vadd.f32 %v6627, %v6597
        %v6629 = vadd.f32 %v6628, %v6598
        %v6630 = vadd.f32 %v6629, %v6599
        %v6631 = vadd.f32 %v6630, %v6600
        %v6632 = vadd.f32 %v6631, %v6601
        %v6633 = vadd.f32 %v6632, %v6602
        %v6634 = vadd.f32 %v6633, %v6603
        %v6635 = vadd.f32 %v6634, %v6604
        %v6636 = vadd.f32 %v6635, %v6605
        %v6637 = vadd.f32 %v6636, %v6606
        %v6638 = vadd.f32 %v6637, %v6607
        %v6639 = vadd.f32 %v6638, %v6608
        %v6640 = vadd.f32 %v6639, %v6609
        %v6641 = vadd.f32 %v6640, %v6610
        %v6642 = vadd.f32 %v6641, %v6611
        %v6643 = vrot.slane %v6642, 4
        %v6644 = vadd.f32 %v6642, %v6643
        %v6645 = vrot.slane %v6644, 2
        %v6646 = vadd.f32 %v6644, %v6645
        %v6647 = vrot.slane %v6646, 1
        %v6648 = vadd.f32 %v6646, %v6647
        %v6649 = vadd.f32 %v6579, %v6648
        %6650 = vst [vmem:[#allocation5 + $0x2] sm:$0x1] %v6649
        %p6651 = scmp.eq.s32.totalorder %s25, 2
        // Predicated region
        $region81: #{st_vae_forward.1} parent=75 // pred_check
          %p6652 = pneg %p6651
        $region82: #{st_vae_forward.1} parent=75 // pred_check_branch
          %6654 = sbr.rel (%p6652) target = $region84
        $region83: #{st_vae_forward.1} parent=75 // pred_region
          %v6655 = vld [vmem:[#allocation5] sm:$0x1]
          %v6656 = vld [vmem:[#allocation5 + $0x1] sm:$0x1]
          %v6657 = vmul.f32 %v6656, 0.0016666667
          %v6658 = vld [vmem:[#allocation5 + $0x2] sm:$0x1]
          %v6659 = vmul.f32 %v6658, 0.0016666667
          %v6660 = vmul.f32 %v6657, %v6657
          %v6661 = vsub.f32 %v6659, %v6660
          %v6662 = vmax.f32 %v6661, 0.0
          %v6663 = vadd.f32 %v6655, %v6657
          %6664 = vst [vmem:[#allocation5] sm:$0x1] %v6663
          %v6665 = vadd.f32 %v6662, 0.001
          %v6666 = vrsqrt.pop %v6665
          %6667 = vst [vmem:[#allocation5 + $0x1] sm:$0x1] %v6666
        $region84: #{st_vae_forward.1} parent=75 // pred_fallthru
          _
      $region76: #{st_vae_forward.1} parent=47 // pred_fallthru
        _
      %p6668 = scmp.eq.s32.totalorder %s24, 3
      // Predicated region
      $region85: #{st_vae_forward.1} parent=47 // pred_check
        %p6669 = pneg %p6668
      $region86: #{st_vae_forward.1} parent=47 // pred_check_branch
        %6671 = sbr.rel (%p6669) target = $region88
      $region87: #{st_vae_forward.1} parent=47 // pred_region
        %s6672 = scalar_lea.vmem [#allocation2], %s435
        %v6673 = vld [vmem:[%s6672] sm:$0xff]
        %v6674 = vld [vmem:[%s6672 + $0x8] sm:$0xff]
        %v6675 = vld [vmem:[%s6672 + $0x10] sm:$0xff]
        %v6676 = vld [vmem:[%s6672 + $0x18] sm:$0xff]
        %v6677 = vld [vmem:[%s6672 + $0x20] sm:$0xff]
        %v6678 = vld [vmem:[%s6672 + $0x28] sm:$0xff]
        %v6679 = vld [vmem:[%s6672 + $0x30] sm:$0xff]
        %v6680 = vld [vmem:[%s6672 + $0x38] sm:$0xff]
        %v6681 = vld [vmem:[%s6672 + $0x40] sm:$0xff]
        %v6682 = vld [vmem:[%s6672 + $0x48] sm:$0xff]
        %v6683 = vld [vmem:[%s6672 + $0x50] sm:$0xff]
        %v6684 = vld [vmem:[%s6672 + $0x58] sm:$0xff]
        %v6685 = vld [vmem:[%s6672 + $0x60] sm:$0xff]
        %v6686 = vld [vmem:[%s6672 + $0x68] sm:$0xff]
        %v6687 = vld [vmem:[%s6672 + $0x70] sm:$0xff]
        %v6688 = vld [vmem:[%s6672 + $0x78] sm:$0xff]
        %v6689 = vld [vmem:[%s6672 + $0x80] sm:$0xff]
        %v6690 = vld [vmem:[%s6672 + $0x88] sm:$0xff]
        %v6691 = vld [vmem:[%s6672 + $0x90] sm:$0xff]
        %v6692 = vld [vmem:[%s6672 + $0x98] sm:$0xff]
        %v6693 = vld [vmem:[%s6672 + $0xa0] sm:$0xff]
        %v6694 = vld [vmem:[%s6672 + $0xa8] sm:$0xff]
        %v6695 = vld [vmem:[%s6672 + $0xb0] sm:$0xff]
        %v6696 = vld [vmem:[%s6672 + $0xb8] sm:$0xff]
        %v6697 = vld [vmem:[%s6672 + $0xc0] sm:$0xff]
        %v6698 = vld [vmem:[%s6672 + $0xc8] sm:$0xff]
        %v6699 = vld [vmem:[%s6672 + $0xd0] sm:$0xff]
        %v6700 = vld [vmem:[%s6672 + $0xd8] sm:$0xff]
        %v6701 = vld [vmem:[%s6672 + $0xe0] sm:$0xff]
        %v6702 = vld [vmem:[%s6672 + $0xe8] sm:$0xff]
        %v6703 = vld [vmem:[%s6672 + $0xf0] sm:$0xff]
        %v6704 = vld [vmem:[%s6672 + $0xf8] sm:$0xff]
        %v6705 = vpack.c.bf16 %v6674, %v6673
        %v6706 = vpack.c.bf16 %v6676, %v6675
        %v6707 = vpack.c.bf16 %v6678, %v6677
        %v6708 = vpack.c.bf16 %v6680, %v6679
        %v6709 = vpack.c.bf16 %v6682, %v6681
        %v6710 = vpack.c.bf16 %v6684, %v6683
        %v6711 = vpack.c.bf16 %v6686, %v6685
        %v6712 = vpack.c.bf16 %v6688, %v6687
        %v6713 = vpack.c.bf16 %v6690, %v6689
        %v6714 = vpack.c.bf16 %v6692, %v6691
        %v6715 = vpack.c.bf16 %v6694, %v6693
        %v6716 = vpack.c.bf16 %v6696, %v6695
        %v6717 = vpack.c.bf16 %v6698, %v6697
        %v6718 = vpack.c.bf16 %v6700, %v6699
        %v6719 = vpack.c.bf16 %v6702, %v6701
        %v6720 = vpack.c.bf16 %v6704, %v6703
        %v6721 = vld [vmem:[%s5] sm:$0xff]
        %v6722 = vld [vmem:[%s5 + $0x8] sm:$0xff]
        %v6723 = vld [vmem:[%s5 + $0x10] sm:$0xff]
        %v6724 = vld [vmem:[%s5 + $0x18] sm:$0xff]
        %v6725 = vld [vmem:[%s5 + $0x20] sm:$0xff]
        %v6726 = vld [vmem:[%s5 + $0x28] sm:$0xff]
        %v6727 = vld [vmem:[%s5 + $0x30] sm:$0xff]
        %v6728 = vld [vmem:[%s5 + $0x38] sm:$0xff]
        %v6729 = vld [vmem:[%s5 + $0x40] sm:$0xff]
        %v6730 = vld [vmem:[%s5 + $0x48] sm:$0xff]
        %v6731 = vld [vmem:[%s5 + $0x50] sm:$0xff]
        %v6732 = vld [vmem:[%s5 + $0x58] sm:$0xff]
        %v6733 = vld [vmem:[%s5 + $0x60] sm:$0xff]
        %v6734 = vld [vmem:[%s5 + $0x68] sm:$0xff]
        %v6735 = vld [vmem:[%s5 + $0x70] sm:$0xff]
        %v6736 = vld [vmem:[%s5 + $0x78] sm:$0xff]
        %v6753 = vunpack.c.l.b16 %v6721
        %v6754 = vunpack.c.h.b16 %v6721
        %v6755 = vunpack.c.l.b16 %v6722
        %v6756 = vunpack.c.h.b16 %v6722
        %v6757 = vunpack.c.l.b16 %v6723
        %v6758 = vunpack.c.h.b16 %v6723
        %v6759 = vunpack.c.l.b16 %v6724
        %v6760 = vunpack.c.h.b16 %v6724
        %v6761 = vunpack.c.l.b16 %v6725
        %v6762 = vunpack.c.h.b16 %v6725
        %v6763 = vunpack.c.l.b16 %v6726
        %v6764 = vunpack.c.h.b16 %v6726
        %v6765 = vunpack.c.l.b16 %v6727
        %v6766 = vunpack.c.h.b16 %v6727
        %v6767 = vunpack.c.l.b16 %v6728
        %v6768 = vunpack.c.h.b16 %v6728
        %v6769 = vunpack.c.l.b16 %v6729
        %v6770 = vunpack.c.h.b16 %v6729
        %v6771 = vunpack.c.l.b16 %v6730
        %v6772 = vunpack.c.h.b16 %v6730
        %v6773 = vunpack.c.l.b16 %v6731
        %v6774 = vunpack.c.h.b16 %v6731
        %v6775 = vunpack.c.l.b16 %v6732
        %v6776 = vunpack.c.h.b16 %v6732
        %v6777 = vunpack.c.l.b16 %v6733
        %v6778 = vunpack.c.h.b16 %v6733
        %v6779 = vunpack.c.l.b16 %v6734
        %v6780 = vunpack.c.h.b16 %v6734
        %v6781 = vunpack.c.l.b16 %v6735
        %v6782 = vunpack.c.h.b16 %v6735
        %v6783 = vunpack.c.l.b16 %v6736
        %v6784 = vunpack.c.h.b16 %v6736
        %v6785 = vpack.c.b16 %v6755, %v6753
        %v6786 = vpack.c.b16 %v6756, %v6754
        %v6787 = vpack.c.b16 %v6759, %v6757
        %v6788 = vpack.c.b16 %v6760, %v6758
        %v6789 = vpack.c.b16 %v6763, %v6761
        %v6790 = vpack.c.b16 %v6764, %v6762
        %v6791 = vpack.c.b16 %v6767, %v6765
        %v6792 = vpack.c.b16 %v6768, %v6766
        %v6793 = vpack.c.b16 %v6771, %v6769
        %v6794 = vpack.c.b16 %v6772, %v6770
        %v6795 = vpack.c.b16 %v6775, %v6773
        %v6796 = vpack.c.b16 %v6776, %v6774
        %v6797 = vpack.c.b16 %v6779, %v6777
        %v6798 = vpack.c.b16 %v6780, %v6778
        %v6799 = vpack.c.b16 %v6783, %v6781
        %v6800 = vpack.c.b16 %v6784, %v6782
        %6817 = vmatprep.subr.bf16.mxu0 %v6800
        %6818 = vmatpush1.bf16.msra.mxu0 %v6799
        %6819 = vmatprep.subr.bf16.mxu0 %v6798
        %6820 = vmatpush1.bf16.msra.mxu0 %v6797
        %6821 = vmatprep.subr.bf16.mxu0 %v6796
        %6822 = vmatpush1.bf16.msra.mxu0 %v6795
        %6823 = vmatprep.subr.bf16.mxu0 %v6794
        %6824 = vmatpush1.bf16.msra.mxu0 %v6793
        %6825 = vmatprep.subr.bf16.mxu0 %v6792
        %6826 = vmatpush1.bf16.msra.mxu0 %v6791
        %6827 = vmatprep.subr.bf16.mxu0 %v6790
        %6828 = vmatpush1.bf16.msra.mxu0 %v6789
        %6829 = vmatprep.subr.bf16.mxu0 %v6788
        %6830 = vmatpush1.bf16.msra.mxu0 %v6787
        %6831 = vmatprep.subr.bf16.mxu0 %v6786
        %6832 = vmatpush1.bf16.msra.mxu0 %v6785
        %6833 = vmatprep.subr.bf16.mxu0 0
        %6834 = vmatpush2.bf16.msra.mxu0 0
        %6835 = vmatprep.subr.bf16.mxu0 0
        %6836 = vmatpush2.bf16.msra.mxu0 0
        %6837 = vmatprep.subr.bf16.mxu0 0
        %6838 = vmatpush2.bf16.msra.mxu0 0
        %6839 = vmatprep.subr.bf16.mxu0 0
        %6840 = vmatpush2.bf16.msra.mxu0 0
        %6841 = vmatprep.subr.bf16.mxu0 0
        %6842 = vmatpush2.bf16.msra.mxu0 0
        %6843 = vmatprep.subr.bf16.mxu0 0
        %6844 = vmatpush2.bf16.msra.mxu0 0
        %6845 = vmatprep.subr.bf16.mxu0 0
        %6846 = vmatpush2.bf16.msra.mxu0 0
        %6847 = vmatprep.subr.bf16.mxu0 0
        %6848 = vmatpush2.bf16.msra.mxu0 0
        %6849 = vmatprep.mubr.bf16.mxu0 0
        %6850 = vmatmul.mubr.bf16.gmra.mxu0 %v6705
        %v6851 = vpop.f32.mrf.mxu0
        %v6852 = vadd.f32 0.0, %v6851
        %v6853 = vpop.f32.mrf.mxu0
        %v6854 = vadd.f32 0.0, %v6853
        %v6855 = vpop.f32.mrf.mxu0
        %v6856 = vadd.f32 0.0, %v6855
        %v6857 = vpop.f32.mrf.mxu0
        %v6858 = vadd.f32 0.0, %v6857
        %6859 = vmatprep.mubr.bf16.mxu0 0
        %6860 = vmatmul.mubr.bf16.gmra.mxu0 %v6706
        %v6861 = vpop.f32.mrf.mxu0
        %v6862 = vadd.f32 0.0, %v6861
        %v6863 = vpop.f32.mrf.mxu0
        %v6864 = vadd.f32 0.0, %v6863
        %v6865 = vpop.f32.mrf.mxu0
        %v6866 = vadd.f32 0.0, %v6865
        %v6867 = vpop.f32.mrf.mxu0
        %v6868 = vadd.f32 0.0, %v6867
        %6869 = vmatprep.mubr.bf16.mxu0 0
        %6870 = vmatmul.mubr.bf16.gmra.mxu0 %v6707
        %v6871 = vpop.f32.mrf.mxu0
        %v6872 = vadd.f32 0.0, %v6871
        %v6873 = vpop.f32.mrf.mxu0
        %v6874 = vadd.f32 0.0, %v6873
        %v6875 = vpop.f32.mrf.mxu0
        %v6876 = vadd.f32 0.0, %v6875
        %v6877 = vpop.f32.mrf.mxu0
        %v6878 = vadd.f32 0.0, %v6877
        %6879 = vmatprep.mubr.bf16.mxu0 0
        %6880 = vmatmul.mubr.bf16.gmra.mxu0 %v6708
        %v6881 = vpop.f32.mrf.mxu0
        %v6882 = vadd.f32 0.0, %v6881
        %v6883 = vpop.f32.mrf.mxu0
        %v6884 = vadd.f32 0.0, %v6883
        %v6885 = vpop.f32.mrf.mxu0
        %v6886 = vadd.f32 0.0, %v6885
        %v6887 = vpop.f32.mrf.mxu0
        %v6888 = vadd.f32 0.0, %v6887
        %6889 = vmatprep.mubr.bf16.mxu0 0
        %6890 = vmatmul.mubr.bf16.gmra.mxu0 %v6709
        %v6891 = vpop.f32.mrf.mxu0
        %v6892 = vadd.f32 0.0, %v6891
        %v6893 = vpop.f32.mrf.mxu0
        %v6894 = vadd.f32 0.0, %v6893
        %v6895 = vpop.f32.mrf.mxu0
        %v6896 = vadd.f32 0.0, %v6895
        %v6897 = vpop.f32.mrf.mxu0
        %v6898 = vadd.f32 0.0, %v6897
        %6899 = vmatprep.mubr.bf16.mxu0 0
        %6900 = vmatmul.mubr.bf16.gmra.mxu0 %v6710
        %v6901 = vpop.f32.mrf.mxu0
        %v6902 = vadd.f32 0.0, %v6901
        %v6903 = vpop.f32.mrf.mxu0
        %v6904 = vadd.f32 0.0, %v6903
        %v6905 = vpop.f32.mrf.mxu0
        %v6906 = vadd.f32 0.0, %v6905
        %v6907 = vpop.f32.mrf.mxu0
        %v6908 = vadd.f32 0.0, %v6907
        %6909 = vmatprep.mubr.bf16.mxu0 0
        %6910 = vmatmul.mubr.bf16.gmra.mxu0 %v6711
        %v6911 = vpop.f32.mrf.mxu0
        %v6912 = vadd.f32 0.0, %v6911
        %v6913 = vpop.f32.mrf.mxu0
        %v6914 = vadd.f32 0.0, %v6913
        %v6915 = vpop.f32.mrf.mxu0
        %v6916 = vadd.f32 0.0, %v6915
        %v6917 = vpop.f32.mrf.mxu0
        %v6918 = vadd.f32 0.0, %v6917
        %6919 = vmatprep.mubr.bf16.mxu0 0
        %6920 = vmatmul.mubr.bf16.gmra.mxu0 %v6712
        %v6921 = vpop.f32.mrf.mxu0
        %v6922 = vadd.f32 0.0, %v6921
        %v6923 = vpop.f32.mrf.mxu0
        %v6924 = vadd.f32 0.0, %v6923
        %v6925 = vpop.f32.mrf.mxu0
        %v6926 = vadd.f32 0.0, %v6925
        %v6927 = vpop.f32.mrf.mxu0
        %v6928 = vadd.f32 0.0, %v6927
        %6929 = vmatprep.mubr.bf16.mxu0 0
        %6930 = vmatmul.mubr.bf16.gmra.mxu0 %v6713
        %v6931 = vpop.f32.mrf.mxu0
        %v6932 = vadd.f32 0.0, %v6931
        %v6933 = vpop.f32.mrf.mxu0
        %v6934 = vadd.f32 0.0, %v6933
        %v6935 = vpop.f32.mrf.mxu0
        %v6936 = vadd.f32 0.0, %v6935
        %v6937 = vpop.f32.mrf.mxu0
        %v6938 = vadd.f32 0.0, %v6937
        %6939 = vmatprep.mubr.bf16.mxu0 0
        %6940 = vmatmul.mubr.bf16.gmra.mxu0 %v6714
        %v6941 = vpop.f32.mrf.mxu0
        %v6942 = vadd.f32 0.0, %v6941
        %v6943 = vpop.f32.mrf.mxu0
        %v6944 = vadd.f32 0.0, %v6943
        %v6945 = vpop.f32.mrf.mxu0
        %v6946 = vadd.f32 0.0, %v6945
        %v6947 = vpop.f32.mrf.mxu0
        %v6948 = vadd.f32 0.0, %v6947
        %6949 = vmatprep.mubr.bf16.mxu0 0
        %6950 = vmatmul.mubr.bf16.gmra.mxu0 %v6715
        %v6951 = vpop.f32.mrf.mxu0
        %v6952 = vadd.f32 0.0, %v6951
        %v6953 = vpop.f32.mrf.mxu0
        %v6954 = vadd.f32 0.0, %v6953
        %v6955 = vpop.f32.mrf.mxu0
        %v6956 = vadd.f32 0.0, %v6955
        %v6957 = vpop.f32.mrf.mxu0
        %v6958 = vadd.f32 0.0, %v6957
        %6959 = vmatprep.mubr.bf16.mxu0 0
        %6960 = vmatmul.mubr.bf16.gmra.mxu0 %v6716
        %v6961 = vpop.f32.mrf.mxu0
        %v6962 = vadd.f32 0.0, %v6961
        %v6963 = vpop.f32.mrf.mxu0
        %v6964 = vadd.f32 0.0, %v6963
        %v6965 = vpop.f32.mrf.mxu0
        %v6966 = vadd.f32 0.0, %v6965
        %v6967 = vpop.f32.mrf.mxu0
        %v6968 = vadd.f32 0.0, %v6967
        %6969 = vmatprep.mubr.bf16.mxu0 0
        %6970 = vmatmul.mubr.bf16.gmra.mxu0 %v6717
        %v6971 = vpop.f32.mrf.mxu0
        %v6972 = vadd.f32 0.0, %v6971
        %v6973 = vpop.f32.mrf.mxu0
        %v6974 = vadd.f32 0.0, %v6973
        %v6975 = vpop.f32.mrf.mxu0
        %v6976 = vadd.f32 0.0, %v6975
        %v6977 = vpop.f32.mrf.mxu0
        %v6978 = vadd.f32 0.0, %v6977
        %6979 = vmatprep.mubr.bf16.mxu0 0
        %6980 = vmatmul.mubr.bf16.gmra.mxu0 %v6718
        %v6981 = vpop.f32.mrf.mxu0
        %v6982 = vadd.f32 0.0, %v6981
        %v6983 = vpop.f32.mrf.mxu0
        %v6984 = vadd.f32 0.0, %v6983
        %v6985 = vpop.f32.mrf.mxu0
        %v6986 = vadd.f32 0.0, %v6985
        %v6987 = vpop.f32.mrf.mxu0
        %v6988 = vadd.f32 0.0, %v6987
        %6989 = vmatprep.mubr.bf16.mxu0 0
        %6990 = vmatmul.mubr.bf16.gmra.mxu0 %v6719
        %v6991 = vpop.f32.mrf.mxu0
        %v6992 = vadd.f32 0.0, %v6991
        %v6993 = vpop.f32.mrf.mxu0
        %v6994 = vadd.f32 0.0, %v6993
        %v6995 = vpop.f32.mrf.mxu0
        %v6996 = vadd.f32 0.0, %v6995
        %v6997 = vpop.f32.mrf.mxu0
        %v6998 = vadd.f32 0.0, %v6997
        %6999 = vmatprep.mubr.bf16.mxu0 0
        %7000 = vmatmul.mubr.bf16.gmra.mxu0 %v6720
        %v7001 = vpop.f32.mrf.mxu0
        %v7002 = vadd.f32 0.0, %v7001
        %v7003 = vpop.f32.mrf.mxu0
        %v7004 = vadd.f32 0.0, %v7003
        %v7005 = vpop.f32.mrf.mxu0
        %v7006 = vadd.f32 0.0, %v7005
        %v7007 = vpop.f32.mrf.mxu0
        %v7008 = vadd.f32 0.0, %v7007
        %7009 = vdwg.mxu0
        %v7010 = vld [vmem:[#allocation4] ss:$4 sm:$0x3]
        %v7012 = vlaneseq
        %v7013 = vshrl.u32 %v7012, 7
        %v7014 = vsub.s32 0, %v7013
        %v7015 = vrot.slane %v7010, %v7014
        %v7016 = vlaneseq
        %v7017 = vshrl.u32 %v7016, 7
        %v7018 = vsub.s32 1, %v7017
        %v7019 = vrot.slane %v7010, %v7018
        %v7022 = vsub.f32 %v6852, %v7015
        %v7023 = vsub.f32 %v6854, %v7019
        %v7024 = vsub.f32 %v6856, %v7015
        %v7025 = vsub.f32 %v6858, %v7019
        %v7026 = vsub.f32 %v6862, %v7015
        %v7027 = vsub.f32 %v6864, %v7019
        %v7028 = vsub.f32 %v6866, %v7015
        %v7029 = vsub.f32 %v6868, %v7019
        %v7030 = vsub.f32 %v6872, %v7015
        %v7031 = vsub.f32 %v6874, %v7019
        %v7032 = vsub.f32 %v6876, %v7015
        %v7033 = vsub.f32 %v6878, %v7019
        %v7034 = vsub.f32 %v6882, %v7015
        %v7035 = vsub.f32 %v6884, %v7019
        %v7036 = vsub.f32 %v6886, %v7015
        %v7037 = vsub.f32 %v6888, %v7019
        %v7038 = vsub.f32 %v6892, %v7015
        %v7039 = vsub.f32 %v6894, %v7019
        %v7040 = vsub.f32 %v6896, %v7015
        %v7041 = vsub.f32 %v6898, %v7019
        %v7042 = vsub.f32 %v6902, %v7015
        %v7043 = vsub.f32 %v6904, %v7019
        %v7044 = vsub.f32 %v6906, %v7015
        %v7045 = vsub.f32 %v6908, %v7019
        %v7046 = vsub.f32 %v6912, %v7015
        %v7047 = vsub.f32 %v6914, %v7019
        %v7048 = vsub.f32 %v6916, %v7015
        %v7049 = vsub.f32 %v6918, %v7019
        %v7050 = vsub.f32 %v6922, %v7015
        %v7051 = vsub.f32 %v6924, %v7019
        %v7052 = vsub.f32 %v6926, %v7015
        %v7053 = vsub.f32 %v6928, %v7019
        %v7054 = vsub.f32 %v6932, %v7015
        %v7055 = vsub.f32 %v6934, %v7019
        %v7056 = vsub.f32 %v6936, %v7015
        %v7057 = vsub.f32 %v6938, %v7019
        %v7058 = vsub.f32 %v6942, %v7015
        %v7059 = vsub.f32 %v6944, %v7019
        %v7060 = vsub.f32 %v6946, %v7015
        %v7061 = vsub.f32 %v6948, %v7019
        %v7062 = vsub.f32 %v6952, %v7015
        %v7063 = vsub.f32 %v6954, %v7019
        %v7064 = vsub.f32 %v6956, %v7015
        %v7065 = vsub.f32 %v6958, %v7019
        %v7066 = vsub.f32 %v6962, %v7015
        %v7067 = vsub.f32 %v6964, %v7019
        %v7068 = vsub.f32 %v6966, %v7015
        %v7069 = vsub.f32 %v6968, %v7019
        %v7070 = vsub.f32 %v6972, %v7015
        %v7071 = vsub.f32 %v6974, %v7019
        %v7072 = vsub.f32 %v6976, %v7015
        %v7073 = vsub.f32 %v6978, %v7019
        %v7074 = vsub.f32 %v6982, %v7015
        %v7075 = vsub.f32 %v6984, %v7019
        %v7076 = vsub.f32 %v6986, %v7015
        %v7077 = vsub.f32 %v6988, %v7019
        %v7078 = vsub.f32 %v6992, %v7015
        %v7079 = vsub.f32 %v6994, %v7019
        %v7080 = vsub.f32 %v6996, %v7015
        %v7081 = vsub.f32 %v6998, %v7019
        %v7082 = vsub.f32 %v7002, %v7015
        %v7083 = vsub.f32 %v7004, %v7019
        %v7084 = vsub.f32 %v7006, %v7015
        %v7085 = vsub.f32 %v7008, %v7019
        %s7086 = scalar_lea.vmem [#allocation4], 1
        %v7087 = vld [vmem:[%s7086] ss:$4 sm:$0x3]
        %v7089 = vlaneseq
        %v7090 = vshrl.u32 %v7089, 7
        %v7091 = vsub.s32 0, %v7090
        %v7092 = vrot.slane %v7087, %v7091
        %v7093 = vlaneseq
        %v7094 = vshrl.u32 %v7093, 7
        %v7095 = vsub.s32 1, %v7094
        %v7096 = vrot.slane %v7087, %v7095
        %v7099 = vmul.f32 %v7022, %v7092
        %v7100 = vmul.f32 %v7023, %v7096
        %v7101 = vmul.f32 %v7024, %v7092
        %v7102 = vmul.f32 %v7025, %v7096
        %v7103 = vmul.f32 %v7026, %v7092
        %v7104 = vmul.f32 %v7027, %v7096
        %v7105 = vmul.f32 %v7028, %v7092
        %v7106 = vmul.f32 %v7029, %v7096
        %v7107 = vmul.f32 %v7030, %v7092
        %v7108 = vmul.f32 %v7031, %v7096
        %v7109 = vmul.f32 %v7032, %v7092
        %v7110 = vmul.f32 %v7033, %v7096
        %v7111 = vmul.f32 %v7034, %v7092
        %v7112 = vmul.f32 %v7035, %v7096
        %v7113 = vmul.f32 %v7036, %v7092
        %v7114 = vmul.f32 %v7037, %v7096
        %v7115 = vmul.f32 %v7038, %v7092
        %v7116 = vmul.f32 %v7039, %v7096
        %v7117 = vmul.f32 %v7040, %v7092
        %v7118 = vmul.f32 %v7041, %v7096
        %v7119 = vmul.f32 %v7042, %v7092
        %v7120 = vmul.f32 %v7043, %v7096
        %v7121 = vmul.f32 %v7044, %v7092
        %v7122 = vmul.f32 %v7045, %v7096
        %v7123 = vmul.f32 %v7046, %v7092
        %v7124 = vmul.f32 %v7047, %v7096
        %v7125 = vmul.f32 %v7048, %v7092
        %v7126 = vmul.f32 %v7049, %v7096
        %v7127 = vmul.f32 %v7050, %v7092
        %v7128 = vmul.f32 %v7051, %v7096
        %v7129 = vmul.f32 %v7052, %v7092
        %v7130 = vmul.f32 %v7053, %v7096
        %v7131 = vmul.f32 %v7054, %v7092
        %v7132 = vmul.f32 %v7055, %v7096
        %v7133 = vmul.f32 %v7056, %v7092
        %v7134 = vmul.f32 %v7057, %v7096
        %v7135 = vmul.f32 %v7058, %v7092
        %v7136 = vmul.f32 %v7059, %v7096
        %v7137 = vmul.f32 %v7060, %v7092
        %v7138 = vmul.f32 %v7061, %v7096
        %v7139 = vmul.f32 %v7062, %v7092
        %v7140 = vmul.f32 %v7063, %v7096
        %v7141 = vmul.f32 %v7064, %v7092
        %v7142 = vmul.f32 %v7065, %v7096
        %v7143 = vmul.f32 %v7066, %v7092
        %v7144 = vmul.f32 %v7067, %v7096
        %v7145 = vmul.f32 %v7068, %v7092
        %v7146 = vmul.f32 %v7069, %v7096
        %v7147 = vmul.f32 %v7070, %v7092
        %v7148 = vmul.f32 %v7071, %v7096
        %v7149 = vmul.f32 %v7072, %v7092
        %v7150 = vmul.f32 %v7073, %v7096
        %v7151 = vmul.f32 %v7074, %v7092
        %v7152 = vmul.f32 %v7075, %v7096
        %v7153 = vmul.f32 %v7076, %v7092
        %v7154 = vmul.f32 %v7077, %v7096
        %v7155 = vmul.f32 %v7078, %v7092
        %v7156 = vmul.f32 %v7079, %v7096
        %v7157 = vmul.f32 %v7080, %v7092
        %v7158 = vmul.f32 %v7081, %v7096
        %v7159 = vmul.f32 %v7082, %v7092
        %v7160 = vmul.f32 %v7083, %v7096
        %v7161 = vmul.f32 %v7084, %v7092
        %v7162 = vmul.f32 %v7085, %v7096
        %v7163 = vadd.f32 %v7099, %v7100
        %7164 = vadd.xlane.f32.xlu0 %v7163
        %v7165 = vpop.xlane.xlu0 %7164
        %v7166 = vadd.f32 %v7101, %v7102
        %7167 = vadd.xlane.f32.xlu0 %v7166
        %v7168 = vpop.xlane.xlu0 %7167
        %v7169 = vadd.f32 %v7103, %v7104
        %7170 = vadd.xlane.f32.xlu0 %v7169
        %v7171 = vpop.xlane.xlu0 %7170
        %v7172 = vadd.f32 %v7105, %v7106
        %7173 = vadd.xlane.f32.xlu0 %v7172
        %v7174 = vpop.xlane.xlu0 %7173
        %v7175 = vadd.f32 %v7107, %v7108
        %7176 = vadd.xlane.f32.xlu0 %v7175
        %v7177 = vpop.xlane.xlu0 %7176
        %v7178 = vadd.f32 %v7109, %v7110
        %7179 = vadd.xlane.f32.xlu0 %v7178
        %v7180 = vpop.xlane.xlu0 %7179
        %v7181 = vadd.f32 %v7111, %v7112
        %7182 = vadd.xlane.f32.xlu0 %v7181
        %v7183 = vpop.xlane.xlu0 %7182
        %v7184 = vadd.f32 %v7113, %v7114
        %7185 = vadd.xlane.f32.xlu0 %v7184
        %v7186 = vpop.xlane.xlu0 %7185
        %v7187 = vadd.f32 %v7115, %v7116
        %7188 = vadd.xlane.f32.xlu0 %v7187
        %v7189 = vpop.xlane.xlu0 %7188
        %v7190 = vadd.f32 %v7117, %v7118
        %7191 = vadd.xlane.f32.xlu0 %v7190
        %v7192 = vpop.xlane.xlu0 %7191
        %v7193 = vadd.f32 %v7119, %v7120
        %7194 = vadd.xlane.f32.xlu0 %v7193
        %v7195 = vpop.xlane.xlu0 %7194
        %v7196 = vadd.f32 %v7121, %v7122
        %7197 = vadd.xlane.f32.xlu0 %v7196
        %v7198 = vpop.xlane.xlu0 %7197
        %v7199 = vadd.f32 %v7123, %v7124
        %7200 = vadd.xlane.f32.xlu0 %v7199
        %v7201 = vpop.xlane.xlu0 %7200
        %v7202 = vadd.f32 %v7125, %v7126
        %7203 = vadd.xlane.f32.xlu0 %v7202
        %v7204 = vpop.xlane.xlu0 %7203
        %v7205 = vadd.f32 %v7127, %v7128
        %7206 = vadd.xlane.f32.xlu0 %v7205
        %v7207 = vpop.xlane.xlu0 %7206
        %v7208 = vadd.f32 %v7129, %v7130
        %7209 = vadd.xlane.f32.xlu0 %v7208
        %v7210 = vpop.xlane.xlu0 %7209
        %v7211 = vadd.f32 %v7131, %v7132
        %7212 = vadd.xlane.f32.xlu0 %v7211
        %v7213 = vpop.xlane.xlu0 %7212
        %v7214 = vadd.f32 %v7133, %v7134
        %7215 = vadd.xlane.f32.xlu0 %v7214
        %v7216 = vpop.xlane.xlu0 %7215
        %v7217 = vadd.f32 %v7135, %v7136
        %7218 = vadd.xlane.f32.xlu0 %v7217
        %v7219 = vpop.xlane.xlu0 %7218
        %v7220 = vadd.f32 %v7137, %v7138
        %7221 = vadd.xlane.f32.xlu0 %v7220
        %v7222 = vpop.xlane.xlu0 %7221
        %v7223 = vadd.f32 %v7139, %v7140
        %7224 = vadd.xlane.f32.xlu0 %v7223
        %v7225 = vpop.xlane.xlu0 %7224
        %v7226 = vadd.f32 %v7141, %v7142
        %7227 = vadd.xlane.f32.xlu0 %v7226
        %v7228 = vpop.xlane.xlu0 %7227
        %v7229 = vadd.f32 %v7143, %v7144
        %7230 = vadd.xlane.f32.xlu0 %v7229
        %v7231 = vpop.xlane.xlu0 %7230
        %v7232 = vadd.f32 %v7145, %v7146
        %7233 = vadd.xlane.f32.xlu0 %v7232
        %v7234 = vpop.xlane.xlu0 %7233
        %v7235 = vadd.f32 %v7147, %v7148
        %7236 = vadd.xlane.f32.xlu0 %v7235
        %v7237 = vpop.xlane.xlu0 %7236
        %v7238 = vadd.f32 %v7149, %v7150
        %7239 = vadd.xlane.f32.xlu0 %v7238
        %v7240 = vpop.xlane.xlu0 %7239
        %v7241 = vadd.f32 %v7151, %v7152
        %7242 = vadd.xlane.f32.xlu0 %v7241
        %v7243 = vpop.xlane.xlu0 %7242
        %v7244 = vadd.f32 %v7153, %v7154
        %7245 = vadd.xlane.f32.xlu0 %v7244
        %v7246 = vpop.xlane.xlu0 %7245
        %v7247 = vadd.f32 %v7155, %v7156
        %7248 = vadd.xlane.f32.xlu0 %v7247
        %v7249 = vpop.xlane.xlu0 %7248
        %v7250 = vadd.f32 %v7157, %v7158
        %7251 = vadd.xlane.f32.xlu0 %v7250
        %v7252 = vpop.xlane.xlu0 %7251
        %v7253 = vadd.f32 %v7159, %v7160
        %7254 = vadd.xlane.f32.xlu0 %v7253
        %v7255 = vpop.xlane.xlu0 %7254
        %v7256 = vadd.f32 %v7161, %v7162
        %7257 = vadd.xlane.f32.xlu0 %v7256
        %v7258 = vpop.xlane.xlu0 %7257
        %v7259 = vmul.f32 %v7099, %v7099
        %v7260 = vmul.f32 %v7100, %v7100
        %v7261 = vmul.f32 %v7101, %v7101
        %v7262 = vmul.f32 %v7102, %v7102
        %v7263 = vmul.f32 %v7103, %v7103
        %v7264 = vmul.f32 %v7104, %v7104
        %v7265 = vmul.f32 %v7105, %v7105
        %v7266 = vmul.f32 %v7106, %v7106
        %v7267 = vmul.f32 %v7107, %v7107
        %v7268 = vmul.f32 %v7108, %v7108
        %v7269 = vmul.f32 %v7109, %v7109
        %v7270 = vmul.f32 %v7110, %v7110
        %v7271 = vmul.f32 %v7111, %v7111
        %v7272 = vmul.f32 %v7112, %v7112
        %v7273 = vmul.f32 %v7113, %v7113
        %v7274 = vmul.f32 %v7114, %v7114
        %v7275 = vmul.f32 %v7115, %v7115
        %v7276 = vmul.f32 %v7116, %v7116
        %v7277 = vmul.f32 %v7117, %v7117
        %v7278 = vmul.f32 %v7118, %v7118
        %v7279 = vmul.f32 %v7119, %v7119
        %v7280 = vmul.f32 %v7120, %v7120
        %v7281 = vmul.f32 %v7121, %v7121
        %v7282 = vmul.f32 %v7122, %v7122
        %v7283 = vmul.f32 %v7123, %v7123
        %v7284 = vmul.f32 %v7124, %v7124
        %v7285 = vmul.f32 %v7125, %v7125
        %v7286 = vmul.f32 %v7126, %v7126
        %v7287 = vmul.f32 %v7127, %v7127
        %v7288 = vmul.f32 %v7128, %v7128
        %v7289 = vmul.f32 %v7129, %v7129
        %v7290 = vmul.f32 %v7130, %v7130
        %v7291 = vmul.f32 %v7131, %v7131
        %v7292 = vmul.f32 %v7132, %v7132
        %v7293 = vmul.f32 %v7133, %v7133
        %v7294 = vmul.f32 %v7134, %v7134
        %v7295 = vmul.f32 %v7135, %v7135
        %v7296 = vmul.f32 %v7136, %v7136
        %v7297 = vmul.f32 %v7137, %v7137
        %v7298 = vmul.f32 %v7138, %v7138
        %v7299 = vmul.f32 %v7139, %v7139
        %v7300 = vmul.f32 %v7140, %v7140
        %v7301 = vmul.f32 %v7141, %v7141
        %v7302 = vmul.f32 %v7142, %v7142
        %v7303 = vmul.f32 %v7143, %v7143
        %v7304 = vmul.f32 %v7144, %v7144
        %v7305 = vmul.f32 %v7145, %v7145
        %v7306 = vmul.f32 %v7146, %v7146
        %v7307 = vmul.f32 %v7147, %v7147
        %v7308 = vmul.f32 %v7148, %v7148
        %v7309 = vmul.f32 %v7149, %v7149
        %v7310 = vmul.f32 %v7150, %v7150
        %v7311 = vmul.f32 %v7151, %v7151
        %v7312 = vmul.f32 %v7152, %v7152
        %v7313 = vmul.f32 %v7153, %v7153
        %v7314 = vmul.f32 %v7154, %v7154
        %v7315 = vmul.f32 %v7155, %v7155
        %v7316 = vmul.f32 %v7156, %v7156
        %v7317 = vmul.f32 %v7157, %v7157
        %v7318 = vmul.f32 %v7158, %v7158
        %v7319 = vmul.f32 %v7159, %v7159
        %v7320 = vmul.f32 %v7160, %v7160
        %v7321 = vmul.f32 %v7161, %v7161
        %v7322 = vmul.f32 %v7162, %v7162
        %v7323 = vadd.f32 %v7259, %v7260
        %7324 = vadd.xlane.f32.xlu0 %v7323
        %v7325 = vpop.xlane.xlu0 %7324
        %v7326 = vadd.f32 %v7261, %v7262
        %7327 = vadd.xlane.f32.xlu0 %v7326
        %v7328 = vpop.xlane.xlu0 %7327
        %v7329 = vadd.f32 %v7263, %v7264
        %7330 = vadd.xlane.f32.xlu0 %v7329
        %v7331 = vpop.xlane.xlu0 %7330
        %v7332 = vadd.f32 %v7265, %v7266
        %7333 = vadd.xlane.f32.xlu0 %v7332
        %v7334 = vpop.xlane.xlu0 %7333
        %v7335 = vadd.f32 %v7267, %v7268
        %7336 = vadd.xlane.f32.xlu0 %v7335
        %v7337 = vpop.xlane.xlu0 %7336
        %v7338 = vadd.f32 %v7269, %v7270
        %7339 = vadd.xlane.f32.xlu0 %v7338
        %v7340 = vpop.xlane.xlu0 %7339
        %v7341 = vadd.f32 %v7271, %v7272
        %7342 = vadd.xlane.f32.xlu0 %v7341
        %v7343 = vpop.xlane.xlu0 %7342
        %v7344 = vadd.f32 %v7273, %v7274
        %7345 = vadd.xlane.f32.xlu0 %v7344
        %v7346 = vpop.xlane.xlu0 %7345
        %v7347 = vadd.f32 %v7275, %v7276
        %7348 = vadd.xlane.f32.xlu0 %v7347
        %v7349 = vpop.xlane.xlu0 %7348
        %v7350 = vadd.f32 %v7277, %v7278
        %7351 = vadd.xlane.f32.xlu0 %v7350
        %v7352 = vpop.xlane.xlu0 %7351
        %v7353 = vadd.f32 %v7279, %v7280
        %7354 = vadd.xlane.f32.xlu0 %v7353
        %v7355 = vpop.xlane.xlu0 %7354
        %v7356 = vadd.f32 %v7281, %v7282
        %7357 = vadd.xlane.f32.xlu0 %v7356
        %v7358 = vpop.xlane.xlu0 %7357
        %v7359 = vadd.f32 %v7283, %v7284
        %7360 = vadd.xlane.f32.xlu0 %v7359
        %v7361 = vpop.xlane.xlu0 %7360
        %v7362 = vadd.f32 %v7285, %v7286
        %7363 = vadd.xlane.f32.xlu0 %v7362
        %v7364 = vpop.xlane.xlu0 %7363
        %v7365 = vadd.f32 %v7287, %v7288
        %7366 = vadd.xlane.f32.xlu0 %v7365
        %v7367 = vpop.xlane.xlu0 %7366
        %v7368 = vadd.f32 %v7289, %v7290
        %7369 = vadd.xlane.f32.xlu0 %v7368
        %v7370 = vpop.xlane.xlu0 %7369
        %v7371 = vadd.f32 %v7291, %v7292
        %7372 = vadd.xlane.f32.xlu0 %v7371
        %v7373 = vpop.xlane.xlu0 %7372
        %v7374 = vadd.f32 %v7293, %v7294
        %7375 = vadd.xlane.f32.xlu0 %v7374
        %v7376 = vpop.xlane.xlu0 %7375
        %v7377 = vadd.f32 %v7295, %v7296
        %7378 = vadd.xlane.f32.xlu0 %v7377
        %v7379 = vpop.xlane.xlu0 %7378
        %v7380 = vadd.f32 %v7297, %v7298
        %7381 = vadd.xlane.f32.xlu0 %v7380
        %v7382 = vpop.xlane.xlu0 %7381
        %v7383 = vadd.f32 %v7299, %v7300
        %7384 = vadd.xlane.f32.xlu0 %v7383
        %v7385 = vpop.xlane.xlu0 %7384
        %v7386 = vadd.f32 %v7301, %v7302
        %7387 = vadd.xlane.f32.xlu0 %v7386
        %v7388 = vpop.xlane.xlu0 %7387
        %v7389 = vadd.f32 %v7303, %v7304
        %7390 = vadd.xlane.f32.xlu0 %v7389
        %v7391 = vpop.xlane.xlu0 %7390
        %v7392 = vadd.f32 %v7305, %v7306
        %7393 = vadd.xlane.f32.xlu0 %v7392
        %v7394 = vpop.xlane.xlu0 %7393
        %v7395 = vadd.f32 %v7307, %v7308
        %7396 = vadd.xlane.f32.xlu0 %v7395
        %v7397 = vpop.xlane.xlu0 %7396
        %v7398 = vadd.f32 %v7309, %v7310
        %7399 = vadd.xlane.f32.xlu0 %v7398
        %v7400 = vpop.xlane.xlu0 %7399
        %v7401 = vadd.f32 %v7311, %v7312
        %7402 = vadd.xlane.f32.xlu0 %v7401
        %v7403 = vpop.xlane.xlu0 %7402
        %v7404 = vadd.f32 %v7313, %v7314
        %7405 = vadd.xlane.f32.xlu0 %v7404
        %v7406 = vpop.xlane.xlu0 %7405
        %v7407 = vadd.f32 %v7315, %v7316
        %7408 = vadd.xlane.f32.xlu0 %v7407
        %v7409 = vpop.xlane.xlu0 %7408
        %v7410 = vadd.f32 %v7317, %v7318
        %7411 = vadd.xlane.f32.xlu0 %v7410
        %v7412 = vpop.xlane.xlu0 %7411
        %v7413 = vadd.f32 %v7319, %v7320
        %7414 = vadd.xlane.f32.xlu0 %v7413
        %v7415 = vpop.xlane.xlu0 %7414
        %v7416 = vadd.f32 %v7321, %v7322
        %7417 = vadd.xlane.f32.xlu0 %v7416
        %v7418 = vpop.xlane.xlu0 %7417
        %v7419 = vmul.f32 %v7165, 0.00390625
        %v7420 = vmul.f32 %v7168, 0.00390625
        %v7421 = vmul.f32 %v7171, 0.00390625
        %v7422 = vmul.f32 %v7174, 0.00390625
        %v7423 = vmul.f32 %v7177, 0.00390625
        %v7424 = vmul.f32 %v7180, 0.00390625
        %v7425 = vmul.f32 %v7183, 0.00390625
        %v7426 = vmul.f32 %v7186, 0.00390625
        %v7427 = vmul.f32 %v7189, 0.00390625
        %v7428 = vmul.f32 %v7192, 0.00390625
        %v7429 = vmul.f32 %v7195, 0.00390625
        %v7430 = vmul.f32 %v7198, 0.00390625
        %v7431 = vmul.f32 %v7201, 0.00390625
        %v7432 = vmul.f32 %v7204, 0.00390625
        %v7433 = vmul.f32 %v7207, 0.00390625
        %v7434 = vmul.f32 %v7210, 0.00390625
        %v7435 = vmul.f32 %v7213, 0.00390625
        %v7436 = vmul.f32 %v7216, 0.00390625
        %v7437 = vmul.f32 %v7219, 0.00390625
        %v7438 = vmul.f32 %v7222, 0.00390625
        %v7439 = vmul.f32 %v7225, 0.00390625
        %v7440 = vmul.f32 %v7228, 0.00390625
        %v7441 = vmul.f32 %v7231, 0.00390625
        %v7442 = vmul.f32 %v7234, 0.00390625
        %v7443 = vmul.f32 %v7237, 0.00390625
        %v7444 = vmul.f32 %v7240, 0.00390625
        %v7445 = vmul.f32 %v7243, 0.00390625
        %v7446 = vmul.f32 %v7246, 0.00390625
        %v7447 = vmul.f32 %v7249, 0.00390625
        %v7448 = vmul.f32 %v7252, 0.00390625
        %v7449 = vmul.f32 %v7255, 0.00390625
        %v7450 = vmul.f32 %v7258, 0.00390625
        %v7451 = vmul.f32 %v7325, 0.00390625
        %v7452 = vmul.f32 %v7328, 0.00390625
        %v7453 = vmul.f32 %v7331, 0.00390625
        %v7454 = vmul.f32 %v7334, 0.00390625
        %v7455 = vmul.f32 %v7337, 0.00390625
        %v7456 = vmul.f32 %v7340, 0.00390625
        %v7457 = vmul.f32 %v7343, 0.00390625
        %v7458 = vmul.f32 %v7346, 0.00390625
        %v7459 = vmul.f32 %v7349, 0.00390625
        %v7460 = vmul.f32 %v7352, 0.00390625
        %v7461 = vmul.f32 %v7355, 0.00390625
        %v7462 = vmul.f32 %v7358, 0.00390625
        %v7463 = vmul.f32 %v7361, 0.00390625
        %v7464 = vmul.f32 %v7364, 0.00390625
        %v7465 = vmul.f32 %v7367, 0.00390625
        %v7466 = vmul.f32 %v7370, 0.00390625
        %v7467 = vmul.f32 %v7373, 0.00390625
        %v7468 = vmul.f32 %v7376, 0.00390625
        %v7469 = vmul.f32 %v7379, 0.00390625
        %v7470 = vmul.f32 %v7382, 0.00390625
        %v7471 = vmul.f32 %v7385, 0.00390625
        %v7472 = vmul.f32 %v7388, 0.00390625
        %v7473 = vmul.f32 %v7391, 0.00390625
        %v7474 = vmul.f32 %v7394, 0.00390625
        %v7475 = vmul.f32 %v7397, 0.00390625
        %v7476 = vmul.f32 %v7400, 0.00390625
        %v7477 = vmul.f32 %v7403, 0.00390625
        %v7478 = vmul.f32 %v7406, 0.00390625
        %v7479 = vmul.f32 %v7409, 0.00390625
        %v7480 = vmul.f32 %v7412, 0.00390625
        %v7481 = vmul.f32 %v7415, 0.00390625
        %v7482 = vmul.f32 %v7418, 0.00390625
        %v7483 = vmul.f32 %v7419, %v7419
        %v7484 = vmul.f32 %v7420, %v7420
        %v7485 = vmul.f32 %v7421, %v7421
        %v7486 = vmul.f32 %v7422, %v7422
        %v7487 = vmul.f32 %v7423, %v7423
        %v7488 = vmul.f32 %v7424, %v7424
        %v7489 = vmul.f32 %v7425, %v7425
        %v7490 = vmul.f32 %v7426, %v7426
        %v7491 = vmul.f32 %v7427, %v7427
        %v7492 = vmul.f32 %v7428, %v7428
        %v7493 = vmul.f32 %v7429, %v7429
        %v7494 = vmul.f32 %v7430, %v7430
        %v7495 = vmul.f32 %v7431, %v7431
        %v7496 = vmul.f32 %v7432, %v7432
        %v7497 = vmul.f32 %v7433, %v7433
        %v7498 = vmul.f32 %v7434, %v7434
        %v7499 = vmul.f32 %v7435, %v7435
        %v7500 = vmul.f32 %v7436, %v7436
        %v7501 = vmul.f32 %v7437, %v7437
        %v7502 = vmul.f32 %v7438, %v7438
        %v7503 = vmul.f32 %v7439, %v7439
        %v7504 = vmul.f32 %v7440, %v7440
        %v7505 = vmul.f32 %v7441, %v7441
        %v7506 = vmul.f32 %v7442, %v7442
        %v7507 = vmul.f32 %v7443, %v7443
        %v7508 = vmul.f32 %v7444, %v7444
        %v7509 = vmul.f32 %v7445, %v7445
        %v7510 = vmul.f32 %v7446, %v7446
        %v7511 = vmul.f32 %v7447, %v7447
        %v7512 = vmul.f32 %v7448, %v7448
        %v7513 = vmul.f32 %v7449, %v7449
        %v7514 = vmul.f32 %v7450, %v7450
        %v7515 = vsub.f32 %v7451, %v7483
        %v7516 = vsub.f32 %v7452, %v7484
        %v7517 = vsub.f32 %v7453, %v7485
        %v7518 = vsub.f32 %v7454, %v7486
        %v7519 = vsub.f32 %v7455, %v7487
        %v7520 = vsub.f32 %v7456, %v7488
        %v7521 = vsub.f32 %v7457, %v7489
        %v7522 = vsub.f32 %v7458, %v7490
        %v7523 = vsub.f32 %v7459, %v7491
        %v7524 = vsub.f32 %v7460, %v7492
        %v7525 = vsub.f32 %v7461, %v7493
        %v7526 = vsub.f32 %v7462, %v7494
        %v7527 = vsub.f32 %v7463, %v7495
        %v7528 = vsub.f32 %v7464, %v7496
        %v7529 = vsub.f32 %v7465, %v7497
        %v7530 = vsub.f32 %v7466, %v7498
        %v7531 = vsub.f32 %v7467, %v7499
        %v7532 = vsub.f32 %v7468, %v7500
        %v7533 = vsub.f32 %v7469, %v7501
        %v7534 = vsub.f32 %v7470, %v7502
        %v7535 = vsub.f32 %v7471, %v7503
        %v7536 = vsub.f32 %v7472, %v7504
        %v7537 = vsub.f32 %v7473, %v7505
        %v7538 = vsub.f32 %v7474, %v7506
        %v7539 = vsub.f32 %v7475, %v7507
        %v7540 = vsub.f32 %v7476, %v7508
        %v7541 = vsub.f32 %v7477, %v7509
        %v7542 = vsub.f32 %v7478, %v7510
        %v7543 = vsub.f32 %v7479, %v7511
        %v7544 = vsub.f32 %v7480, %v7512
        %v7545 = vsub.f32 %v7481, %v7513
        %v7546 = vsub.f32 %v7482, %v7514
        %v7547 = vmax.f32 %v7515, 0.0
        %v7548 = vmax.f32 %v7516, 0.0
        %v7549 = vmax.f32 %v7517, 0.0
        %v7550 = vmax.f32 %v7518, 0.0
        %v7551 = vmax.f32 %v7519, 0.0
        %v7552 = vmax.f32 %v7520, 0.0
        %v7553 = vmax.f32 %v7521, 0.0
        %v7554 = vmax.f32 %v7522, 0.0
        %v7555 = vmax.f32 %v7523, 0.0
        %v7556 = vmax.f32 %v7524, 0.0
        %v7557 = vmax.f32 %v7525, 0.0
        %v7558 = vmax.f32 %v7526, 0.0
        %v7559 = vmax.f32 %v7527, 0.0
        %v7560 = vmax.f32 %v7528, 0.0
        %v7561 = vmax.f32 %v7529, 0.0
        %v7562 = vmax.f32 %v7530, 0.0
        %v7563 = vmax.f32 %v7531, 0.0
        %v7564 = vmax.f32 %v7532, 0.0
        %v7565 = vmax.f32 %v7533, 0.0
        %v7566 = vmax.f32 %v7534, 0.0
        %v7567 = vmax.f32 %v7535, 0.0
        %v7568 = vmax.f32 %v7536, 0.0
        %v7569 = vmax.f32 %v7537, 0.0
        %v7570 = vmax.f32 %v7538, 0.0
        %v7571 = vmax.f32 %v7539, 0.0
        %v7572 = vmax.f32 %v7540, 0.0
        %v7573 = vmax.f32 %v7541, 0.0
        %v7574 = vmax.f32 %v7542, 0.0
        %v7575 = vmax.f32 %v7543, 0.0
        %v7576 = vmax.f32 %v7544, 0.0
        %v7577 = vmax.f32 %v7545, 0.0
        %v7578 = vmax.f32 %v7546, 0.0
        %v7579 = vsub.f32 %v7099, %v7419
        %v7580 = vsub.f32 %v7100, %v7419
        %v7581 = vsub.f32 %v7101, %v7420
        %v7582 = vsub.f32 %v7102, %v7420
        %v7583 = vsub.f32 %v7103, %v7421
        %v7584 = vsub.f32 %v7104, %v7421
        %v7585 = vsub.f32 %v7105, %v7422
        %v7586 = vsub.f32 %v7106, %v7422
        %v7587 = vsub.f32 %v7107, %v7423
        %v7588 = vsub.f32 %v7108, %v7423
        %v7589 = vsub.f32 %v7109, %v7424
        %v7590 = vsub.f32 %v7110, %v7424
        %v7591 = vsub.f32 %v7111, %v7425
        %v7592 = vsub.f32 %v7112, %v7425
        %v7593 = vsub.f32 %v7113, %v7426
        %v7594 = vsub.f32 %v7114, %v7426
        %v7595 = vsub.f32 %v7115, %v7427
        %v7596 = vsub.f32 %v7116, %v7427
        %v7597 = vsub.f32 %v7117, %v7428
        %v7598 = vsub.f32 %v7118, %v7428
        %v7599 = vsub.f32 %v7119, %v7429
        %v7600 = vsub.f32 %v7120, %v7429
        %v7601 = vsub.f32 %v7121, %v7430
        %v7602 = vsub.f32 %v7122, %v7430
        %v7603 = vsub.f32 %v7123, %v7431
        %v7604 = vsub.f32 %v7124, %v7431
        %v7605 = vsub.f32 %v7125, %v7432
        %v7606 = vsub.f32 %v7126, %v7432
        %v7607 = vsub.f32 %v7127, %v7433
        %v7608 = vsub.f32 %v7128, %v7433
        %v7609 = vsub.f32 %v7129, %v7434
        %v7610 = vsub.f32 %v7130, %v7434
        %v7611 = vsub.f32 %v7131, %v7435
        %v7612 = vsub.f32 %v7132, %v7435
        %v7613 = vsub.f32 %v7133, %v7436
        %v7614 = vsub.f32 %v7134, %v7436
        %v7615 = vsub.f32 %v7135, %v7437
        %v7616 = vsub.f32 %v7136, %v7437
        %v7617 = vsub.f32 %v7137, %v7438
        %v7618 = vsub.f32 %v7138, %v7438
        %v7619 = vsub.f32 %v7139, %v7439
        %v7620 = vsub.f32 %v7140, %v7439
        %v7621 = vsub.f32 %v7141, %v7440
        %v7622 = vsub.f32 %v7142, %v7440
        %v7623 = vsub.f32 %v7143, %v7441
        %v7624 = vsub.f32 %v7144, %v7441
        %v7625 = vsub.f32 %v7145, %v7442
        %v7626 = vsub.f32 %v7146, %v7442
        %v7627 = vsub.f32 %v7147, %v7443
        %v7628 = vsub.f32 %v7148, %v7443
        %v7629 = vsub.f32 %v7149, %v7444
        %v7630 = vsub.f32 %v7150, %v7444
        %v7631 = vsub.f32 %v7151, %v7445
        %v7632 = vsub.f32 %v7152, %v7445
        %v7633 = vsub.f32 %v7153, %v7446
        %v7634 = vsub.f32 %v7154, %v7446
        %v7635 = vsub.f32 %v7155, %v7447
        %v7636 = vsub.f32 %v7156, %v7447
        %v7637 = vsub.f32 %v7157, %v7448
        %v7638 = vsub.f32 %v7158, %v7448
        %v7639 = vsub.f32 %v7159, %v7449
        %v7640 = vsub.f32 %v7160, %v7449
        %v7641 = vsub.f32 %v7161, %v7450
        %v7642 = vsub.f32 %v7162, %v7450
        %v7643 = vadd.f32 %v7547, 1e-05
        %v7644 = vadd.f32 %v7548, 1e-05
        %v7645 = vadd.f32 %v7549, 1e-05
        %v7646 = vadd.f32 %v7550, 1e-05
        %v7647 = vadd.f32 %v7551, 1e-05
        %v7648 = vadd.f32 %v7552, 1e-05
        %v7649 = vadd.f32 %v7553, 1e-05
        %v7650 = vadd.f32 %v7554, 1e-05
        %v7651 = vadd.f32 %v7555, 1e-05
        %v7652 = vadd.f32 %v7556, 1e-05
        %v7653 = vadd.f32 %v7557, 1e-05
        %v7654 = vadd.f32 %v7558, 1e-05
        %v7655 = vadd.f32 %v7559, 1e-05
        %v7656 = vadd.f32 %v7560, 1e-05
        %v7657 = vadd.f32 %v7561, 1e-05
        %v7658 = vadd.f32 %v7562, 1e-05
        %v7659 = vadd.f32 %v7563, 1e-05
        %v7660 = vadd.f32 %v7564, 1e-05
        %v7661 = vadd.f32 %v7565, 1e-05
        %v7662 = vadd.f32 %v7566, 1e-05
        %v7663 = vadd.f32 %v7567, 1e-05
        %v7664 = vadd.f32 %v7568, 1e-05
        %v7665 = vadd.f32 %v7569, 1e-05
        %v7666 = vadd.f32 %v7570, 1e-05
        %v7667 = vadd.f32 %v7571, 1e-05
        %v7668 = vadd.f32 %v7572, 1e-05
        %v7669 = vadd.f32 %v7573, 1e-05
        %v7670 = vadd.f32 %v7574, 1e-05
        %v7671 = vadd.f32 %v7575, 1e-05
        %v7672 = vadd.f32 %v7576, 1e-05
        %v7673 = vadd.f32 %v7577, 1e-05
        %v7674 = vadd.f32 %v7578, 1e-05
        %v7675 = vrsqrt.pop %v7643
        %v7676 = vrsqrt.pop %v7644
        %v7677 = vrsqrt.pop %v7645
        %v7678 = vrsqrt.pop %v7646
        %v7679 = vrsqrt.pop %v7647
        %v7680 = vrsqrt.pop %v7648
        %v7681 = vrsqrt.pop %v7649
        %v7682 = vrsqrt.pop %v7650
        %v7683 = vrsqrt.pop %v7651
        %v7684 = vrsqrt.pop %v7652
        %v7685 = vrsqrt.pop %v7653
        %v7686 = vrsqrt.pop %v7654
        %v7687 = vrsqrt.pop %v7655
        %v7688 = vrsqrt.pop %v7656
        %v7689 = vrsqrt.pop %v7657
        %v7690 = vrsqrt.pop %v7658
        %v7691 = vrsqrt.pop %v7659
        %v7692 = vrsqrt.pop %v7660
        %v7693 = vrsqrt.pop %v7661
        %v7694 = vrsqrt.pop %v7662
        %v7695 = vrsqrt.pop %v7663
        %v7696 = vrsqrt.pop %v7664
        %v7697 = vrsqrt.pop %v7665
        %v7698 = vrsqrt.pop %v7666
        %v7699 = vrsqrt.pop %v7667
        %v7700 = vrsqrt.pop %v7668
        %v7701 = vrsqrt.pop %v7669
        %v7702 = vrsqrt.pop %v7670
        %v7703 = vrsqrt.pop %v7671
        %v7704 = vrsqrt.pop %v7672
        %v7705 = vrsqrt.pop %v7673
        %v7706 = vrsqrt.pop %v7674
        %v7707 = vmul.f32 %v7579, %v7675
        %v7708 = vmul.f32 %v7580, %v7675
        %v7709 = vmul.f32 %v7581, %v7676
        %v7710 = vmul.f32 %v7582, %v7676
        %v7711 = vmul.f32 %v7583, %v7677
        %v7712 = vmul.f32 %v7584, %v7677
        %v7713 = vmul.f32 %v7585, %v7678
        %v7714 = vmul.f32 %v7586, %v7678
        %v7715 = vmul.f32 %v7587, %v7679
        %v7716 = vmul.f32 %v7588, %v7679
        %v7717 = vmul.f32 %v7589, %v7680
        %v7718 = vmul.f32 %v7590, %v7680
        %v7719 = vmul.f32 %v7591, %v7681
        %v7720 = vmul.f32 %v7592, %v7681
        %v7721 = vmul.f32 %v7593, %v7682
        %v7722 = vmul.f32 %v7594, %v7682
        %v7723 = vmul.f32 %v7595, %v7683
        %v7724 = vmul.f32 %v7596, %v7683
        %v7725 = vmul.f32 %v7597, %v7684
        %v7726 = vmul.f32 %v7598, %v7684
        %v7727 = vmul.f32 %v7599, %v7685
        %v7728 = vmul.f32 %v7600, %v7685
        %v7729 = vmul.f32 %v7601, %v7686
        %v7730 = vmul.f32 %v7602, %v7686
        %v7731 = vmul.f32 %v7603, %v7687
        %v7732 = vmul.f32 %v7604, %v7687
        %v7733 = vmul.f32 %v7605, %v7688
        %v7734 = vmul.f32 %v7606, %v7688
        %v7735 = vmul.f32 %v7607, %v7689
        %v7736 = vmul.f32 %v7608, %v7689
        %v7737 = vmul.f32 %v7609, %v7690
        %v7738 = vmul.f32 %v7610, %v7690
        %v7739 = vmul.f32 %v7611, %v7691
        %v7740 = vmul.f32 %v7612, %v7691
        %v7741 = vmul.f32 %v7613, %v7692
        %v7742 = vmul.f32 %v7614, %v7692
        %v7743 = vmul.f32 %v7615, %v7693
        %v7744 = vmul.f32 %v7616, %v7693
        %v7745 = vmul.f32 %v7617, %v7694
        %v7746 = vmul.f32 %v7618, %v7694
        %v7747 = vmul.f32 %v7619, %v7695
        %v7748 = vmul.f32 %v7620, %v7695
        %v7749 = vmul.f32 %v7621, %v7696
        %v7750 = vmul.f32 %v7622, %v7696
        %v7751 = vmul.f32 %v7623, %v7697
        %v7752 = vmul.f32 %v7624, %v7697
        %v7753 = vmul.f32 %v7625, %v7698
        %v7754 = vmul.f32 %v7626, %v7698
        %v7755 = vmul.f32 %v7627, %v7699
        %v7756 = vmul.f32 %v7628, %v7699
        %v7757 = vmul.f32 %v7629, %v7700
        %v7758 = vmul.f32 %v7630, %v7700
        %v7759 = vmul.f32 %v7631, %v7701
        %v7760 = vmul.f32 %v7632, %v7701
        %v7761 = vmul.f32 %v7633, %v7702
        %v7762 = vmul.f32 %v7634, %v7702
        %v7763 = vmul.f32 %v7635, %v7703
        %v7764 = vmul.f32 %v7636, %v7703
        %v7765 = vmul.f32 %v7637, %v7704
        %v7766 = vmul.f32 %v7638, %v7704
        %v7767 = vmul.f32 %v7639, %v7705
        %v7768 = vmul.f32 %v7640, %v7705
        %v7769 = vmul.f32 %v7641, %v7706
        %v7770 = vmul.f32 %v7642, %v7706
        %v7771 = vmul.f32 %v7707, 0.01
        %v7772 = vmul.f32 %v7708, 0.01
        %v7773 = vmul.f32 %v7709, 0.01
        %v7774 = vmul.f32 %v7710, 0.01
        %v7775 = vmul.f32 %v7711, 0.01
        %v7776 = vmul.f32 %v7712, 0.01
        %v7777 = vmul.f32 %v7713, 0.01
        %v7778 = vmul.f32 %v7714, 0.01
        %v7779 = vmul.f32 %v7715, 0.01
        %v7780 = vmul.f32 %v7716, 0.01
        %v7781 = vmul.f32 %v7717, 0.01
        %v7782 = vmul.f32 %v7718, 0.01
        %v7783 = vmul.f32 %v7719, 0.01
        %v7784 = vmul.f32 %v7720, 0.01
        %v7785 = vmul.f32 %v7721, 0.01
        %v7786 = vmul.f32 %v7722, 0.01
        %v7787 = vmul.f32 %v7723, 0.01
        %v7788 = vmul.f32 %v7724, 0.01
        %v7789 = vmul.f32 %v7725, 0.01
        %v7790 = vmul.f32 %v7726, 0.01
        %v7791 = vmul.f32 %v7727, 0.01
        %v7792 = vmul.f32 %v7728, 0.01
        %v7793 = vmul.f32 %v7729, 0.01
        %v7794 = vmul.f32 %v7730, 0.01
        %v7795 = vmul.f32 %v7731, 0.01
        %v7796 = vmul.f32 %v7732, 0.01
        %v7797 = vmul.f32 %v7733, 0.01
        %v7798 = vmul.f32 %v7734, 0.01
        %v7799 = vmul.f32 %v7735, 0.01
        %v7800 = vmul.f32 %v7736, 0.01
        %v7801 = vmul.f32 %v7737, 0.01
        %v7802 = vmul.f32 %v7738, 0.01
        %v7803 = vmul.f32 %v7739, 0.01
        %v7804 = vmul.f32 %v7740, 0.01
        %v7805 = vmul.f32 %v7741, 0.01
        %v7806 = vmul.f32 %v7742, 0.01
        %v7807 = vmul.f32 %v7743, 0.01
        %v7808 = vmul.f32 %v7744, 0.01
        %v7809 = vmul.f32 %v7745, 0.01
        %v7810 = vmul.f32 %v7746, 0.01
        %v7811 = vmul.f32 %v7747, 0.01
        %v7812 = vmul.f32 %v7748, 0.01
        %v7813 = vmul.f32 %v7749, 0.01
        %v7814 = vmul.f32 %v7750, 0.01
        %v7815 = vmul.f32 %v7751, 0.01
        %v7816 = vmul.f32 %v7752, 0.01
        %v7817 = vmul.f32 %v7753, 0.01
        %v7818 = vmul.f32 %v7754, 0.01
        %v7819 = vmul.f32 %v7755, 0.01
        %v7820 = vmul.f32 %v7756, 0.01
        %v7821 = vmul.f32 %v7757, 0.01
        %v7822 = vmul.f32 %v7758, 0.01
        %v7823 = vmul.f32 %v7759, 0.01
        %v7824 = vmul.f32 %v7760, 0.01
        %v7825 = vmul.f32 %v7761, 0.01
        %v7826 = vmul.f32 %v7762, 0.01
        %v7827 = vmul.f32 %v7763, 0.01
        %v7828 = vmul.f32 %v7764, 0.01
        %v7829 = vmul.f32 %v7765, 0.01
        %v7830 = vmul.f32 %v7766, 0.01
        %v7831 = vmul.f32 %v7767, 0.01
        %v7832 = vmul.f32 %v7768, 0.01
        %v7833 = vmul.f32 %v7769, 0.01
        %v7834 = vmul.f32 %v7770, 0.01
        %v7835 = vmax.f32 %v7707, %v7771
        %v7836 = vmax.f32 %v7708, %v7772
        %v7837 = vmax.f32 %v7709, %v7773
        %v7838 = vmax.f32 %v7710, %v7774
        %v7839 = vmax.f32 %v7711, %v7775
        %v7840 = vmax.f32 %v7712, %v7776
        %v7841 = vmax.f32 %v7713, %v7777
        %v7842 = vmax.f32 %v7714, %v7778
        %v7843 = vmax.f32 %v7715, %v7779
        %v7844 = vmax.f32 %v7716, %v7780
        %v7845 = vmax.f32 %v7717, %v7781
        %v7846 = vmax.f32 %v7718, %v7782
        %v7847 = vmax.f32 %v7719, %v7783
        %v7848 = vmax.f32 %v7720, %v7784
        %v7849 = vmax.f32 %v7721, %v7785
        %v7850 = vmax.f32 %v7722, %v7786
        %v7851 = vmax.f32 %v7723, %v7787
        %v7852 = vmax.f32 %v7724, %v7788
        %v7853 = vmax.f32 %v7725, %v7789
        %v7854 = vmax.f32 %v7726, %v7790
        %v7855 = vmax.f32 %v7727, %v7791
        %v7856 = vmax.f32 %v7728, %v7792
        %v7857 = vmax.f32 %v7729, %v7793
        %v7858 = vmax.f32 %v7730, %v7794
        %v7859 = vmax.f32 %v7731, %v7795
        %v7860 = vmax.f32 %v7732, %v7796
        %v7861 = vmax.f32 %v7733, %v7797
        %v7862 = vmax.f32 %v7734, %v7798
        %v7863 = vmax.f32 %v7735, %v7799
        %v7864 = vmax.f32 %v7736, %v7800
        %v7865 = vmax.f32 %v7737, %v7801
        %v7866 = vmax.f32 %v7738, %v7802
        %v7867 = vmax.f32 %v7739, %v7803
        %v7868 = vmax.f32 %v7740, %v7804
        %v7869 = vmax.f32 %v7741, %v7805
        %v7870 = vmax.f32 %v7742, %v7806
        %v7871 = vmax.f32 %v7743, %v7807
        %v7872 = vmax.f32 %v7744, %v7808
        %v7873 = vmax.f32 %v7745, %v7809
        %v7874 = vmax.f32 %v7746, %v7810
        %v7875 = vmax.f32 %v7747, %v7811
        %v7876 = vmax.f32 %v7748, %v7812
        %v7877 = vmax.f32 %v7749, %v7813
        %v7878 = vmax.f32 %v7750, %v7814
        %v7879 = vmax.f32 %v7751, %v7815
        %v7880 = vmax.f32 %v7752, %v7816
        %v7881 = vmax.f32 %v7753, %v7817
        %v7882 = vmax.f32 %v7754, %v7818
        %v7883 = vmax.f32 %v7755, %v7819
        %v7884 = vmax.f32 %v7756, %v7820
        %v7885 = vmax.f32 %v7757, %v7821
        %v7886 = vmax.f32 %v7758, %v7822
        %v7887 = vmax.f32 %v7759, %v7823
        %v7888 = vmax.f32 %v7760, %v7824
        %v7889 = vmax.f32 %v7761, %v7825
        %v7890 = vmax.f32 %v7762, %v7826
        %v7891 = vmax.f32 %v7763, %v7827
        %v7892 = vmax.f32 %v7764, %v7828
        %v7893 = vmax.f32 %v7765, %v7829
        %v7894 = vmax.f32 %v7766, %v7830
        %v7895 = vmax.f32 %v7767, %v7831
        %v7896 = vmax.f32 %v7768, %v7832
        %v7897 = vmax.f32 %v7769, %v7833
        %v7898 = vmax.f32 %v7770, %v7834
        %v7899 = vpack.c.bf16 %v7837, %v7835
        %v7900 = vpack.c.bf16 %v7838, %v7836
        %v7901 = vpack.c.bf16 %v7841, %v7839
        %v7902 = vpack.c.bf16 %v7842, %v7840
        %v7903 = vpack.c.bf16 %v7845, %v7843
        %v7904 = vpack.c.bf16 %v7846, %v7844
        %v7905 = vpack.c.bf16 %v7849, %v7847
        %v7906 = vpack.c.bf16 %v7850, %v7848
        %v7907 = vpack.c.bf16 %v7853, %v7851
        %v7908 = vpack.c.bf16 %v7854, %v7852
        %v7909 = vpack.c.bf16 %v7857, %v7855
        %v7910 = vpack.c.bf16 %v7858, %v7856
        %v7911 = vpack.c.bf16 %v7861, %v7859
        %v7912 = vpack.c.bf16 %v7862, %v7860
        %v7913 = vpack.c.bf16 %v7865, %v7863
        %v7914 = vpack.c.bf16 %v7866, %v7864
        %v7915 = vpack.c.bf16 %v7869, %v7867
        %v7916 = vpack.c.bf16 %v7870, %v7868
        %v7917 = vpack.c.bf16 %v7873, %v7871
        %v7918 = vpack.c.bf16 %v7874, %v7872
        %v7919 = vpack.c.bf16 %v7877, %v7875
        %v7920 = vpack.c.bf16 %v7878, %v7876
        %v7921 = vpack.c.bf16 %v7881, %v7879
        %v7922 = vpack.c.bf16 %v7882, %v7880
        %v7923 = vpack.c.bf16 %v7885, %v7883
        %v7924 = vpack.c.bf16 %v7886, %v7884
        %v7925 = vpack.c.bf16 %v7889, %v7887
        %v7926 = vpack.c.bf16 %v7890, %v7888
        %v7927 = vpack.c.bf16 %v7893, %v7891
        %v7928 = vpack.c.bf16 %v7894, %v7892
        %v7929 = vpack.c.bf16 %v7897, %v7895
        %v7930 = vpack.c.bf16 %v7898, %v7896
        %v7931 = vld [vmem:[%s6] sm:$0xf]
        %v7932 = vld [vmem:[%s6 + $0x4] sm:$0xf]
        %v7933 = vld [vmem:[%s6 + $0x8] sm:$0xf]
        %v7934 = vld [vmem:[%s6 + $0xc] sm:$0xf]
        %v7935 = vld [vmem:[%s6 + $0x10] sm:$0xf]
        %v7936 = vld [vmem:[%s6 + $0x14] sm:$0xf]
        %v7937 = vld [vmem:[%s6 + $0x18] sm:$0xf]
        %v7938 = vld [vmem:[%s6 + $0x1c] sm:$0xf]
        %v7939 = vld [vmem:[%s6 + $0x20] sm:$0xf]
        %v7940 = vld [vmem:[%s6 + $0x24] sm:$0xf]
        %v7941 = vld [vmem:[%s6 + $0x28] sm:$0xf]
        %v7942 = vld [vmem:[%s6 + $0x2c] sm:$0xf]
        %v7943 = vld [vmem:[%s6 + $0x30] sm:$0xf]
        %v7944 = vld [vmem:[%s6 + $0x34] sm:$0xf]
        %v7945 = vld [vmem:[%s6 + $0x38] sm:$0xf]
        %v7946 = vld [vmem:[%s6 + $0x3c] sm:$0xf]
        %v7947 = vld [vmem:[%s6 + $0x40] sm:$0xf]
        %v7948 = vld [vmem:[%s6 + $0x44] sm:$0xf]
        %v7949 = vld [vmem:[%s6 + $0x48] sm:$0xf]
        %v7950 = vld [vmem:[%s6 + $0x4c] sm:$0xf]
        %v7951 = vld [vmem:[%s6 + $0x50] sm:$0xf]
        %v7952 = vld [vmem:[%s6 + $0x54] sm:$0xf]
        %v7953 = vld [vmem:[%s6 + $0x58] sm:$0xf]
        %v7954 = vld [vmem:[%s6 + $0x5c] sm:$0xf]
        %v7955 = vld [vmem:[%s6 + $0x60] sm:$0xf]
        %v7956 = vld [vmem:[%s6 + $0x64] sm:$0xf]
        %v7957 = vld [vmem:[%s6 + $0x68] sm:$0xf]
        %v7958 = vld [vmem:[%s6 + $0x6c] sm:$0xf]
        %v7959 = vld [vmem:[%s6 + $0x70] sm:$0xf]
        %v7960 = vld [vmem:[%s6 + $0x74] sm:$0xf]
        %v7961 = vld [vmem:[%s6 + $0x78] sm:$0xf]
        %v7962 = vld [vmem:[%s6 + $0x7c] sm:$0xf]
        %v7995 = vunpack.c.l.b16 %v7931
        %v7996 = vunpack.c.l.b16 %v7932
        %v7997 = vunpack.c.l.b16 %v7933
        %v7998 = vunpack.c.l.b16 %v7934
        %v7999 = vunpack.c.l.b16 %v7935
        %v8000 = vunpack.c.l.b16 %v7936
        %v8001 = vunpack.c.l.b16 %v7937
        %v8002 = vunpack.c.l.b16 %v7938
        %v8003 = vunpack.c.l.b16 %v7939
        %v8004 = vunpack.c.l.b16 %v7940
        %v8005 = vunpack.c.l.b16 %v7941
        %v8006 = vunpack.c.l.b16 %v7942
        %v8007 = vunpack.c.l.b16 %v7943
        %v8008 = vunpack.c.l.b16 %v7944
        %v8009 = vunpack.c.l.b16 %v7945
        %v8010 = vunpack.c.l.b16 %v7946
        %v8011 = vunpack.c.l.b16 %v7947
        %v8012 = vunpack.c.l.b16 %v7948
        %v8013 = vunpack.c.l.b16 %v7949
        %v8014 = vunpack.c.l.b16 %v7950
        %v8015 = vunpack.c.l.b16 %v7951
        %v8016 = vunpack.c.l.b16 %v7952
        %v8017 = vunpack.c.l.b16 %v7953
        %v8018 = vunpack.c.l.b16 %v7954
        %v8019 = vunpack.c.l.b16 %v7955
        %v8020 = vunpack.c.l.b16 %v7956
        %v8021 = vunpack.c.l.b16 %v7957
        %v8022 = vunpack.c.l.b16 %v7958
        %v8023 = vunpack.c.l.b16 %v7959
        %v8024 = vunpack.c.l.b16 %v7960
        %v8025 = vunpack.c.l.b16 %v7961
        %v8026 = vunpack.c.l.b16 %v7962
        %v8027 = vpack.c.b16 %v7996, %v7995
        %v8028 = vpack.c.b16 %v7998, %v7997
        %v8029 = vpack.c.b16 %v8000, %v7999
        %v8030 = vpack.c.b16 %v8002, %v8001
        %v8031 = vpack.c.b16 %v8004, %v8003
        %v8032 = vpack.c.b16 %v8006, %v8005
        %v8033 = vpack.c.b16 %v8008, %v8007
        %v8034 = vpack.c.b16 %v8010, %v8009
        %v8035 = vpack.c.b16 %v8012, %v8011
        %v8036 = vpack.c.b16 %v8014, %v8013
        %v8037 = vpack.c.b16 %v8016, %v8015
        %v8038 = vpack.c.b16 %v8018, %v8017
        %v8039 = vpack.c.b16 %v8020, %v8019
        %v8040 = vpack.c.b16 %v8022, %v8021
        %v8041 = vpack.c.b16 %v8024, %v8023
        %v8042 = vpack.c.b16 %v8026, %v8025
        %8059 = vmatprep.subr.bf16.mxu0 0
        %8060 = vmatpush1.bf16.msra.mxu0 %v8034
        %8061 = vmatprep.subr.bf16.mxu0 0
        %8062 = vmatpush1.bf16.msra.mxu0 %v8033
        %8063 = vmatprep.subr.bf16.mxu0 0
        %8064 = vmatpush1.bf16.msra.mxu0 %v8032
        %8065 = vmatprep.subr.bf16.mxu0 0
        %8066 = vmatpush1.bf16.msra.mxu0 %v8031
        %8067 = vmatprep.subr.bf16.mxu0 0
        %8068 = vmatpush1.bf16.msra.mxu0 %v8030
        %8069 = vmatprep.subr.bf16.mxu0 0
        %8070 = vmatpush1.bf16.msra.mxu0 %v8029
        %8071 = vmatprep.subr.bf16.mxu0 0
        %8072 = vmatpush1.bf16.msra.mxu0 %v8028
        %8073 = vmatprep.subr.bf16.mxu0 0
        %8074 = vmatpush1.bf16.msra.mxu0 %v8027
        %8075 = vmatprep.subr.bf16.mxu0 0
        %8076 = vmatpush2.bf16.msra.mxu0 %v8042
        %8077 = vmatprep.subr.bf16.mxu0 0
        %8078 = vmatpush2.bf16.msra.mxu0 %v8041
        %8079 = vmatprep.subr.bf16.mxu0 0
        %8080 = vmatpush2.bf16.msra.mxu0 %v8040
        %8081 = vmatprep.subr.bf16.mxu0 0
        %8082 = vmatpush2.bf16.msra.mxu0 %v8039
        %8083 = vmatprep.subr.bf16.mxu0 0
        %8084 = vmatpush2.bf16.msra.mxu0 %v8038
        %8085 = vmatprep.subr.bf16.mxu0 0
        %8086 = vmatpush2.bf16.msra.mxu0 %v8037
        %8087 = vmatprep.subr.bf16.mxu0 0
        %8088 = vmatpush2.bf16.msra.mxu0 %v8036
        %8089 = vmatprep.subr.bf16.mxu0 0
        %8090 = vmatpush2.bf16.msra.mxu0 %v8035
        %8091 = vmatprep.mubr.bf16.mxu0 %v7900
        %8092 = vmatmul.mubr.bf16.gmra.mxu0 %v7899
        %v8093 = vpop.f32.mrf.mxu0
        %v8094 = vadd.f32 0.0, %v8093
        %v8095 = vpop.f32.mrf.mxu0
        %v8096 = vpop.f32.mrf.mxu0
        %v8097 = vadd.f32 0.0, %v8096
        %v8098 = vpop.f32.mrf.mxu0
        %8099 = vmatprep.mubr.bf16.mxu0 %v7902
        %8100 = vmatmul.mubr.bf16.gmra.mxu0 %v7901
        %v8101 = vpop.f32.mrf.mxu0
        %v8102 = vadd.f32 0.0, %v8101
        %v8103 = vpop.f32.mrf.mxu0
        %v8104 = vpop.f32.mrf.mxu0
        %v8105 = vadd.f32 0.0, %v8104
        %v8106 = vpop.f32.mrf.mxu0
        %8107 = vmatprep.mubr.bf16.mxu0 %v7904
        %8108 = vmatmul.mubr.bf16.gmra.mxu0 %v7903
        %v8109 = vpop.f32.mrf.mxu0
        %v8110 = vadd.f32 0.0, %v8109
        %v8111 = vpop.f32.mrf.mxu0
        %v8112 = vpop.f32.mrf.mxu0
        %v8113 = vadd.f32 0.0, %v8112
        %v8114 = vpop.f32.mrf.mxu0
        %8115 = vmatprep.mubr.bf16.mxu0 %v7906
        %8116 = vmatmul.mubr.bf16.gmra.mxu0 %v7905
        %v8117 = vpop.f32.mrf.mxu0
        %v8118 = vadd.f32 0.0, %v8117
        %v8119 = vpop.f32.mrf.mxu0
        %v8120 = vpop.f32.mrf.mxu0
        %v8121 = vadd.f32 0.0, %v8120
        %v8122 = vpop.f32.mrf.mxu0
        %8123 = vmatprep.mubr.bf16.mxu0 %v7908
        %8124 = vmatmul.mubr.bf16.gmra.mxu0 %v7907
        %v8125 = vpop.f32.mrf.mxu0
        %v8126 = vadd.f32 0.0, %v8125
        %v8127 = vpop.f32.mrf.mxu0
        %v8128 = vpop.f32.mrf.mxu0
        %v8129 = vadd.f32 0.0, %v8128
        %v8130 = vpop.f32.mrf.mxu0
        %8131 = vmatprep.mubr.bf16.mxu0 %v7910
        %8132 = vmatmul.mubr.bf16.gmra.mxu0 %v7909
        %v8133 = vpop.f32.mrf.mxu0
        %v8134 = vadd.f32 0.0, %v8133
        %v8135 = vpop.f32.mrf.mxu0
        %v8136 = vpop.f32.mrf.mxu0
        %v8137 = vadd.f32 0.0, %v8136
        %v8138 = vpop.f32.mrf.mxu0
        %8139 = vmatprep.mubr.bf16.mxu0 %v7912
        %8140 = vmatmul.mubr.bf16.gmra.mxu0 %v7911
        %v8141 = vpop.f32.mrf.mxu0
        %v8142 = vadd.f32 0.0, %v8141
        %v8143 = vpop.f32.mrf.mxu0
        %v8144 = vpop.f32.mrf.mxu0
        %v8145 = vadd.f32 0.0, %v8144
        %v8146 = vpop.f32.mrf.mxu0
        %8147 = vmatprep.mubr.bf16.mxu0 %v7914
        %8148 = vmatmul.mubr.bf16.gmra.mxu0 %v7913
        %v8149 = vpop.f32.mrf.mxu0
        %v8150 = vadd.f32 0.0, %v8149
        %v8151 = vpop.f32.mrf.mxu0
        %v8152 = vpop.f32.mrf.mxu0
        %v8153 = vadd.f32 0.0, %v8152
        %v8154 = vpop.f32.mrf.mxu0
        %8155 = vmatprep.mubr.bf16.mxu0 %v7916
        %8156 = vmatmul.mubr.bf16.gmra.mxu0 %v7915
        %v8157 = vpop.f32.mrf.mxu0
        %v8158 = vadd.f32 0.0, %v8157
        %v8159 = vpop.f32.mrf.mxu0
        %v8160 = vpop.f32.mrf.mxu0
        %v8161 = vadd.f32 0.0, %v8160
        %v8162 = vpop.f32.mrf.mxu0
        %8163 = vmatprep.mubr.bf16.mxu0 %v7918
        %8164 = vmatmul.mubr.bf16.gmra.mxu0 %v7917
        %v8165 = vpop.f32.mrf.mxu0
        %v8166 = vadd.f32 0.0, %v8165
        %v8167 = vpop.f32.mrf.mxu0
        %v8168 = vpop.f32.mrf.mxu0
        %v8169 = vadd.f32 0.0, %v8168
        %v8170 = vpop.f32.mrf.mxu0
        %8171 = vmatprep.mubr.bf16.mxu0 %v7920
        %8172 = vmatmul.mubr.bf16.gmra.mxu0 %v7919
        %v8173 = vpop.f32.mrf.mxu0
        %v8174 = vadd.f32 0.0, %v8173
        %v8175 = vpop.f32.mrf.mxu0
        %v8176 = vpop.f32.mrf.mxu0
        %v8177 = vadd.f32 0.0, %v8176
        %v8178 = vpop.f32.mrf.mxu0
        %8179 = vmatprep.mubr.bf16.mxu0 %v7922
        %8180 = vmatmul.mubr.bf16.gmra.mxu0 %v7921
        %v8181 = vpop.f32.mrf.mxu0
        %v8182 = vadd.f32 0.0, %v8181
        %v8183 = vpop.f32.mrf.mxu0
        %v8184 = vpop.f32.mrf.mxu0
        %v8185 = vadd.f32 0.0, %v8184
        %v8186 = vpop.f32.mrf.mxu0
        %8187 = vmatprep.mubr.bf16.mxu0 %v7924
        %8188 = vmatmul.mubr.bf16.gmra.mxu0 %v7923
        %v8189 = vpop.f32.mrf.mxu0
        %v8190 = vadd.f32 0.0, %v8189
        %v8191 = vpop.f32.mrf.mxu0
        %v8192 = vpop.f32.mrf.mxu0
        %v8193 = vadd.f32 0.0, %v8192
        %v8194 = vpop.f32.mrf.mxu0
        %8195 = vmatprep.mubr.bf16.mxu0 %v7926
        %8196 = vmatmul.mubr.bf16.gmra.mxu0 %v7925
        %v8197 = vpop.f32.mrf.mxu0
        %v8198 = vadd.f32 0.0, %v8197
        %v8199 = vpop.f32.mrf.mxu0
        %v8200 = vpop.f32.mrf.mxu0
        %v8201 = vadd.f32 0.0, %v8200
        %v8202 = vpop.f32.mrf.mxu0
        %8203 = vmatprep.mubr.bf16.mxu0 %v7928
        %8204 = vmatmul.mubr.bf16.gmra.mxu0 %v7927
        %v8205 = vpop.f32.mrf.mxu0
        %v8206 = vadd.f32 0.0, %v8205
        %v8207 = vpop.f32.mrf.mxu0
        %v8208 = vpop.f32.mrf.mxu0
        %v8209 = vadd.f32 0.0, %v8208
        %v8210 = vpop.f32.mrf.mxu0
        %8211 = vmatprep.mubr.bf16.mxu0 %v7930
        %8212 = vmatmul.mubr.bf16.gmra.mxu0 %v7929
        %v8213 = vpop.f32.mrf.mxu0
        %v8214 = vadd.f32 0.0, %v8213
        %v8215 = vpop.f32.mrf.mxu0
        %v8216 = vpop.f32.mrf.mxu0
        %v8217 = vadd.f32 0.0, %v8216
        %v8218 = vpop.f32.mrf.mxu0
        %8219 = vdwg.mxu0
        %v8220 = vld [vmem:[#allocation5] sm:$0x1]
        %v8221 = vlaneseq
        %v8222 = vshrl.u32 %v8221, 7
        %v8223 = vsub.s32 0, %v8222
        %v8224 = vrot.slane %v8220, %v8223
        %v8225 = vsub.f32 %v8094, %v8224
        %v8226 = vsub.f32 %v8097, %v8224
        %v8227 = vsub.f32 %v8102, %v8224
        %v8228 = vsub.f32 %v8105, %v8224
        %v8229 = vsub.f32 %v8110, %v8224
        %v8230 = vsub.f32 %v8113, %v8224
        %v8231 = vsub.f32 %v8118, %v8224
        %v8232 = vsub.f32 %v8121, %v8224
        %v8233 = vsub.f32 %v8126, %v8224
        %v8234 = vsub.f32 %v8129, %v8224
        %v8235 = vsub.f32 %v8134, %v8224
        %v8236 = vsub.f32 %v8137, %v8224
        %v8237 = vsub.f32 %v8142, %v8224
        %v8238 = vsub.f32 %v8145, %v8224
        %v8239 = vsub.f32 %v8150, %v8224
        %v8240 = vsub.f32 %v8153, %v8224
        %v8241 = vsub.f32 %v8158, %v8224
        %v8242 = vsub.f32 %v8161, %v8224
        %v8243 = vsub.f32 %v8166, %v8224
        %v8244 = vsub.f32 %v8169, %v8224
        %v8245 = vsub.f32 %v8174, %v8224
        %v8246 = vsub.f32 %v8177, %v8224
        %v8247 = vsub.f32 %v8182, %v8224
        %v8248 = vsub.f32 %v8185, %v8224
        %v8249 = vsub.f32 %v8190, %v8224
        %v8250 = vsub.f32 %v8193, %v8224
        %v8251 = vsub.f32 %v8198, %v8224
        %v8252 = vsub.f32 %v8201, %v8224
        %v8253 = vsub.f32 %v8206, %v8224
        %v8254 = vsub.f32 %v8209, %v8224
        %v8255 = vsub.f32 %v8214, %v8224
        %v8256 = vsub.f32 %v8217, %v8224
        %v8257 = vld [vmem:[#allocation5 + $0x1] sm:$0x1]
        %v8258 = vlaneseq
        %v8259 = vshrl.u32 %v8258, 7
        %v8260 = vsub.s32 0, %v8259
        %v8261 = vrot.slane %v8257, %v8260
        %v8262 = vmul.f32 %v8225, %v8261
        %v8263 = vmul.f32 %v8226, %v8261
        %v8264 = vmul.f32 %v8227, %v8261
        %v8265 = vmul.f32 %v8228, %v8261
        %v8266 = vmul.f32 %v8229, %v8261
        %v8267 = vmul.f32 %v8230, %v8261
        %v8268 = vmul.f32 %v8231, %v8261
        %v8269 = vmul.f32 %v8232, %v8261
        %v8270 = vmul.f32 %v8233, %v8261
        %v8271 = vmul.f32 %v8234, %v8261
        %v8272 = vmul.f32 %v8235, %v8261
        %v8273 = vmul.f32 %v8236, %v8261
        %v8274 = vmul.f32 %v8237, %v8261
        %v8275 = vmul.f32 %v8238, %v8261
        %v8276 = vmul.f32 %v8239, %v8261
        %v8277 = vmul.f32 %v8240, %v8261
        %v8278 = vmul.f32 %v8241, %v8261
        %v8279 = vmul.f32 %v8242, %v8261
        %v8280 = vmul.f32 %v8243, %v8261
        %v8281 = vmul.f32 %v8244, %v8261
        %v8282 = vmul.f32 %v8245, %v8261
        %v8283 = vmul.f32 %v8246, %v8261
        %v8284 = vmul.f32 %v8247, %v8261
        %v8285 = vmul.f32 %v8248, %v8261
        %v8286 = vmul.f32 %v8249, %v8261
        %v8287 = vmul.f32 %v8250, %v8261
        %v8288 = vmul.f32 %v8251, %v8261
        %v8289 = vmul.f32 %v8252, %v8261
        %v8290 = vmul.f32 %v8253, %v8261
        %v8291 = vmul.f32 %v8254, %v8261
        %v8292 = vmul.f32 %v8255, %v8261
        %v8293 = vmul.f32 %v8256, %v8261
        %8294 = vadd.xlane.f32.xlu0 %v8262
        %v8295 = vpop.xlane.xlu0 %8294
        %8296 = vadd.xlane.f32.xlu0 %v8263
        %v8297 = vpop.xlane.xlu0 %8296
        %8298 = vadd.xlane.f32.xlu0 %v8264
        %v8299 = vpop.xlane.xlu0 %8298
        %8300 = vadd.xlane.f32.xlu0 %v8265
        %v8301 = vpop.xlane.xlu0 %8300
        %8302 = vadd.xlane.f32.xlu0 %v8266
        %v8303 = vpop.xlane.xlu0 %8302
        %8304 = vadd.xlane.f32.xlu0 %v8267
        %v8305 = vpop.xlane.xlu0 %8304
        %8306 = vadd.xlane.f32.xlu0 %v8268
        %v8307 = vpop.xlane.xlu0 %8306
        %8308 = vadd.xlane.f32.xlu0 %v8269
        %v8309 = vpop.xlane.xlu0 %8308
        %8310 = vadd.xlane.f32.xlu0 %v8270
        %v8311 = vpop.xlane.xlu0 %8310
        %8312 = vadd.xlane.f32.xlu0 %v8271
        %v8313 = vpop.xlane.xlu0 %8312
        %8314 = vadd.xlane.f32.xlu0 %v8272
        %v8315 = vpop.xlane.xlu0 %8314
        %8316 = vadd.xlane.f32.xlu0 %v8273
        %v8317 = vpop.xlane.xlu0 %8316
        %8318 = vadd.xlane.f32.xlu0 %v8274
        %v8319 = vpop.xlane.xlu0 %8318
        %8320 = vadd.xlane.f32.xlu0 %v8275
        %v8321 = vpop.xlane.xlu0 %8320
        %8322 = vadd.xlane.f32.xlu0 %v8276
        %v8323 = vpop.xlane.xlu0 %8322
        %8324 = vadd.xlane.f32.xlu0 %v8277
        %v8325 = vpop.xlane.xlu0 %8324
        %8326 = vadd.xlane.f32.xlu0 %v8278
        %v8327 = vpop.xlane.xlu0 %8326
        %8328 = vadd.xlane.f32.xlu0 %v8279
        %v8329 = vpop.xlane.xlu0 %8328
        %8330 = vadd.xlane.f32.xlu0 %v8280
        %v8331 = vpop.xlane.xlu0 %8330
        %8332 = vadd.xlane.f32.xlu0 %v8281
        %v8333 = vpop.xlane.xlu0 %8332
        %8334 = vadd.xlane.f32.xlu0 %v8282
        %v8335 = vpop.xlane.xlu0 %8334
        %8336 = vadd.xlane.f32.xlu0 %v8283
        %v8337 = vpop.xlane.xlu0 %8336
        %8338 = vadd.xlane.f32.xlu0 %v8284
        %v8339 = vpop.xlane.xlu0 %8338
        %8340 = vadd.xlane.f32.xlu0 %v8285
        %v8341 = vpop.xlane.xlu0 %8340
        %8342 = vadd.xlane.f32.xlu0 %v8286
        %v8343 = vpop.xlane.xlu0 %8342
        %8344 = vadd.xlane.f32.xlu0 %v8287
        %v8345 = vpop.xlane.xlu0 %8344
        %8346 = vadd.xlane.f32.xlu0 %v8288
        %v8347 = vpop.xlane.xlu0 %8346
        %8348 = vadd.xlane.f32.xlu0 %v8289
        %v8349 = vpop.xlane.xlu0 %8348
        %8350 = vadd.xlane.f32.xlu0 %v8290
        %v8351 = vpop.xlane.xlu0 %8350
        %8352 = vadd.xlane.f32.xlu0 %v8291
        %v8353 = vpop.xlane.xlu0 %8352
        %8354 = vadd.xlane.f32.xlu0 %v8292
        %v8355 = vpop.xlane.xlu0 %8354
        %8356 = vadd.xlane.f32.xlu0 %v8293
        %v8357 = vpop.xlane.xlu0 %8356
        %v8358 = vmul.f32 %v8262, %v8262
        %v8359 = vmul.f32 %v8263, %v8263
        %v8360 = vmul.f32 %v8264, %v8264
        %v8361 = vmul.f32 %v8265, %v8265
        %v8362 = vmul.f32 %v8266, %v8266
        %v8363 = vmul.f32 %v8267, %v8267
        %v8364 = vmul.f32 %v8268, %v8268
        %v8365 = vmul.f32 %v8269, %v8269
        %v8366 = vmul.f32 %v8270, %v8270
        %v8367 = vmul.f32 %v8271, %v8271
        %v8368 = vmul.f32 %v8272, %v8272
        %v8369 = vmul.f32 %v8273, %v8273
        %v8370 = vmul.f32 %v8274, %v8274
        %v8371 = vmul.f32 %v8275, %v8275
        %v8372 = vmul.f32 %v8276, %v8276
        %v8373 = vmul.f32 %v8277, %v8277
        %v8374 = vmul.f32 %v8278, %v8278
        %v8375 = vmul.f32 %v8279, %v8279
        %v8376 = vmul.f32 %v8280, %v8280
        %v8377 = vmul.f32 %v8281, %v8281
        %v8378 = vmul.f32 %v8282, %v8282
        %v8379 = vmul.f32 %v8283, %v8283
        %v8380 = vmul.f32 %v8284, %v8284
        %v8381 = vmul.f32 %v8285, %v8285
        %v8382 = vmul.f32 %v8286, %v8286
        %v8383 = vmul.f32 %v8287, %v8287
        %v8384 = vmul.f32 %v8288, %v8288
        %v8385 = vmul.f32 %v8289, %v8289
        %v8386 = vmul.f32 %v8290, %v8290
        %v8387 = vmul.f32 %v8291, %v8291
        %v8388 = vmul.f32 %v8292, %v8292
        %v8389 = vmul.f32 %v8293, %v8293
        %8390 = vadd.xlane.f32.xlu0 %v8358
        %v8391 = vpop.xlane.xlu0 %8390
        %8392 = vadd.xlane.f32.xlu0 %v8359
        %v8393 = vpop.xlane.xlu0 %8392
        %8394 = vadd.xlane.f32.xlu0 %v8360
        %v8395 = vpop.xlane.xlu0 %8394
        %8396 = vadd.xlane.f32.xlu0 %v8361
        %v8397 = vpop.xlane.xlu0 %8396
        %8398 = vadd.xlane.f32.xlu0 %v8362
        %v8399 = vpop.xlane.xlu0 %8398
        %8400 = vadd.xlane.f32.xlu0 %v8363
        %v8401 = vpop.xlane.xlu0 %8400
        %8402 = vadd.xlane.f32.xlu0 %v8364
        %v8403 = vpop.xlane.xlu0 %8402
        %8404 = vadd.xlane.f32.xlu0 %v8365
        %v8405 = vpop.xlane.xlu0 %8404
        %8406 = vadd.xlane.f32.xlu0 %v8366
        %v8407 = vpop.xlane.xlu0 %8406
        %8408 = vadd.xlane.f32.xlu0 %v8367
        %v8409 = vpop.xlane.xlu0 %8408
        %8410 = vadd.xlane.f32.xlu0 %v8368
        %v8411 = vpop.xlane.xlu0 %8410
        %8412 = vadd.xlane.f32.xlu0 %v8369
        %v8413 = vpop.xlane.xlu0 %8412
        %8414 = vadd.xlane.f32.xlu0 %v8370
        %v8415 = vpop.xlane.xlu0 %8414
        %8416 = vadd.xlane.f32.xlu0 %v8371
        %v8417 = vpop.xlane.xlu0 %8416
        %8418 = vadd.xlane.f32.xlu0 %v8372
        %v8419 = vpop.xlane.xlu0 %8418
        %8420 = vadd.xlane.f32.xlu0 %v8373
        %v8421 = vpop.xlane.xlu0 %8420
        %8422 = vadd.xlane.f32.xlu0 %v8374
        %v8423 = vpop.xlane.xlu0 %8422
        %8424 = vadd.xlane.f32.xlu0 %v8375
        %v8425 = vpop.xlane.xlu0 %8424
        %8426 = vadd.xlane.f32.xlu0 %v8376
        %v8427 = vpop.xlane.xlu0 %8426
        %8428 = vadd.xlane.f32.xlu0 %v8377
        %v8429 = vpop.xlane.xlu0 %8428
        %8430 = vadd.xlane.f32.xlu0 %v8378
        %v8431 = vpop.xlane.xlu0 %8430
        %8432 = vadd.xlane.f32.xlu0 %v8379
        %v8433 = vpop.xlane.xlu0 %8432
        %8434 = vadd.xlane.f32.xlu0 %v8380
        %v8435 = vpop.xlane.xlu0 %8434
        %8436 = vadd.xlane.f32.xlu0 %v8381
        %v8437 = vpop.xlane.xlu0 %8436
        %8438 = vadd.xlane.f32.xlu0 %v8382
        %v8439 = vpop.xlane.xlu0 %8438
        %8440 = vadd.xlane.f32.xlu0 %v8383
        %v8441 = vpop.xlane.xlu0 %8440
        %8442 = vadd.xlane.f32.xlu0 %v8384
        %v8443 = vpop.xlane.xlu0 %8442
        %8444 = vadd.xlane.f32.xlu0 %v8385
        %v8445 = vpop.xlane.xlu0 %8444
        %8446 = vadd.xlane.f32.xlu0 %v8386
        %v8447 = vpop.xlane.xlu0 %8446
        %8448 = vadd.xlane.f32.xlu0 %v8387
        %v8449 = vpop.xlane.xlu0 %8448
        %8450 = vadd.xlane.f32.xlu0 %v8388
        %v8451 = vpop.xlane.xlu0 %8450
        %8452 = vadd.xlane.f32.xlu0 %v8389
        %v8453 = vpop.xlane.xlu0 %8452
        %v8454 = vmul.f32 %v8295, 0.1
        %v8455 = vmul.f32 %v8297, 0.1
        %v8456 = vmul.f32 %v8299, 0.1
        %v8457 = vmul.f32 %v8301, 0.1
        %v8458 = vmul.f32 %v8303, 0.1
        %v8459 = vmul.f32 %v8305, 0.1
        %v8460 = vmul.f32 %v8307, 0.1
        %v8461 = vmul.f32 %v8309, 0.1
        %v8462 = vmul.f32 %v8311, 0.1
        %v8463 = vmul.f32 %v8313, 0.1
        %v8464 = vmul.f32 %v8315, 0.1
        %v8465 = vmul.f32 %v8317, 0.1
        %v8466 = vmul.f32 %v8319, 0.1
        %v8467 = vmul.f32 %v8321, 0.1
        %v8468 = vmul.f32 %v8323, 0.1
        %v8469 = vmul.f32 %v8325, 0.1
        %v8470 = vmul.f32 %v8327, 0.1
        %v8471 = vmul.f32 %v8329, 0.1
        %v8472 = vmul.f32 %v8331, 0.1
        %v8473 = vmul.f32 %v8333, 0.1
        %v8474 = vmul.f32 %v8335, 0.1
        %v8475 = vmul.f32 %v8337, 0.1
        %v8476 = vmul.f32 %v8339, 0.1
        %v8477 = vmul.f32 %v8341, 0.1
        %v8478 = vmul.f32 %v8343, 0.1
        %v8479 = vmul.f32 %v8345, 0.1
        %v8480 = vmul.f32 %v8347, 0.1
        %v8481 = vmul.f32 %v8349, 0.1
        %v8482 = vmul.f32 %v8351, 0.1
        %v8483 = vmul.f32 %v8353, 0.1
        %v8484 = vmul.f32 %v8355, 0.1
        %v8485 = vmul.f32 %v8357, 0.1
        %v8486 = vmul.f32 %v8391, 0.1
        %v8487 = vmul.f32 %v8393, 0.1
        %v8488 = vmul.f32 %v8395, 0.1
        %v8489 = vmul.f32 %v8397, 0.1
        %v8490 = vmul.f32 %v8399, 0.1
        %v8491 = vmul.f32 %v8401, 0.1
        %v8492 = vmul.f32 %v8403, 0.1
        %v8493 = vmul.f32 %v8405, 0.1
        %v8494 = vmul.f32 %v8407, 0.1
        %v8495 = vmul.f32 %v8409, 0.1
        %v8496 = vmul.f32 %v8411, 0.1
        %v8497 = vmul.f32 %v8413, 0.1
        %v8498 = vmul.f32 %v8415, 0.1
        %v8499 = vmul.f32 %v8417, 0.1
        %v8500 = vmul.f32 %v8419, 0.1
        %v8501 = vmul.f32 %v8421, 0.1
        %v8502 = vmul.f32 %v8423, 0.1
        %v8503 = vmul.f32 %v8425, 0.1
        %v8504 = vmul.f32 %v8427, 0.1
        %v8505 = vmul.f32 %v8429, 0.1
        %v8506 = vmul.f32 %v8431, 0.1
        %v8507 = vmul.f32 %v8433, 0.1
        %v8508 = vmul.f32 %v8435, 0.1
        %v8509 = vmul.f32 %v8437, 0.1
        %v8510 = vmul.f32 %v8439, 0.1
        %v8511 = vmul.f32 %v8441, 0.1
        %v8512 = vmul.f32 %v8443, 0.1
        %v8513 = vmul.f32 %v8445, 0.1
        %v8514 = vmul.f32 %v8447, 0.1
        %v8515 = vmul.f32 %v8449, 0.1
        %v8516 = vmul.f32 %v8451, 0.1
        %v8517 = vmul.f32 %v8453, 0.1
        %v8518 = vmul.f32 %v8454, %v8454
        %v8519 = vmul.f32 %v8455, %v8455
        %v8520 = vmul.f32 %v8456, %v8456
        %v8521 = vmul.f32 %v8457, %v8457
        %v8522 = vmul.f32 %v8458, %v8458
        %v8523 = vmul.f32 %v8459, %v8459
        %v8524 = vmul.f32 %v8460, %v8460
        %v8525 = vmul.f32 %v8461, %v8461
        %v8526 = vmul.f32 %v8462, %v8462
        %v8527 = vmul.f32 %v8463, %v8463
        %v8528 = vmul.f32 %v8464, %v8464
        %v8529 = vmul.f32 %v8465, %v8465
        %v8530 = vmul.f32 %v8466, %v8466
        %v8531 = vmul.f32 %v8467, %v8467
        %v8532 = vmul.f32 %v8468, %v8468
        %v8533 = vmul.f32 %v8469, %v8469
        %v8534 = vmul.f32 %v8470, %v8470
        %v8535 = vmul.f32 %v8471, %v8471
        %v8536 = vmul.f32 %v8472, %v8472
        %v8537 = vmul.f32 %v8473, %v8473
        %v8538 = vmul.f32 %v8474, %v8474
        %v8539 = vmul.f32 %v8475, %v8475
        %v8540 = vmul.f32 %v8476, %v8476
        %v8541 = vmul.f32 %v8477, %v8477
        %v8542 = vmul.f32 %v8478, %v8478
        %v8543 = vmul.f32 %v8479, %v8479
        %v8544 = vmul.f32 %v8480, %v8480
        %v8545 = vmul.f32 %v8481, %v8481
        %v8546 = vmul.f32 %v8482, %v8482
        %v8547 = vmul.f32 %v8483, %v8483
        %v8548 = vmul.f32 %v8484, %v8484
        %v8549 = vmul.f32 %v8485, %v8485
        %v8550 = vsub.f32 %v8486, %v8518
        %v8551 = vsub.f32 %v8487, %v8519
        %v8552 = vsub.f32 %v8488, %v8520
        %v8553 = vsub.f32 %v8489, %v8521
        %v8554 = vsub.f32 %v8490, %v8522
        %v8555 = vsub.f32 %v8491, %v8523
        %v8556 = vsub.f32 %v8492, %v8524
        %v8557 = vsub.f32 %v8493, %v8525
        %v8558 = vsub.f32 %v8494, %v8526
        %v8559 = vsub.f32 %v8495, %v8527
        %v8560 = vsub.f32 %v8496, %v8528
        %v8561 = vsub.f32 %v8497, %v8529
        %v8562 = vsub.f32 %v8498, %v8530
        %v8563 = vsub.f32 %v8499, %v8531
        %v8564 = vsub.f32 %v8500, %v8532
        %v8565 = vsub.f32 %v8501, %v8533
        %v8566 = vsub.f32 %v8502, %v8534
        %v8567 = vsub.f32 %v8503, %v8535
        %v8568 = vsub.f32 %v8504, %v8536
        %v8569 = vsub.f32 %v8505, %v8537
        %v8570 = vsub.f32 %v8506, %v8538
        %v8571 = vsub.f32 %v8507, %v8539
        %v8572 = vsub.f32 %v8508, %v8540
        %v8573 = vsub.f32 %v8509, %v8541
        %v8574 = vsub.f32 %v8510, %v8542
        %v8575 = vsub.f32 %v8511, %v8543
        %v8576 = vsub.f32 %v8512, %v8544
        %v8577 = vsub.f32 %v8513, %v8545
        %v8578 = vsub.f32 %v8514, %v8546
        %v8579 = vsub.f32 %v8515, %v8547
        %v8580 = vsub.f32 %v8516, %v8548
        %v8581 = vsub.f32 %v8517, %v8549
        %v8582 = vmax.f32 %v8550, 0.0
        %v8583 = vmax.f32 %v8551, 0.0
        %v8584 = vmax.f32 %v8552, 0.0
        %v8585 = vmax.f32 %v8553, 0.0
        %v8586 = vmax.f32 %v8554, 0.0
        %v8587 = vmax.f32 %v8555, 0.0
        %v8588 = vmax.f32 %v8556, 0.0
        %v8589 = vmax.f32 %v8557, 0.0
        %v8590 = vmax.f32 %v8558, 0.0
        %v8591 = vmax.f32 %v8559, 0.0
        %v8592 = vmax.f32 %v8560, 0.0
        %v8593 = vmax.f32 %v8561, 0.0
        %v8594 = vmax.f32 %v8562, 0.0
        %v8595 = vmax.f32 %v8563, 0.0
        %v8596 = vmax.f32 %v8564, 0.0
        %v8597 = vmax.f32 %v8565, 0.0
        %v8598 = vmax.f32 %v8566, 0.0
        %v8599 = vmax.f32 %v8567, 0.0
        %v8600 = vmax.f32 %v8568, 0.0
        %v8601 = vmax.f32 %v8569, 0.0
        %v8602 = vmax.f32 %v8570, 0.0
        %v8603 = vmax.f32 %v8571, 0.0
        %v8604 = vmax.f32 %v8572, 0.0
        %v8605 = vmax.f32 %v8573, 0.0
        %v8606 = vmax.f32 %v8574, 0.0
        %v8607 = vmax.f32 %v8575, 0.0
        %v8608 = vmax.f32 %v8576, 0.0
        %v8609 = vmax.f32 %v8577, 0.0
        %v8610 = vmax.f32 %v8578, 0.0
        %v8611 = vmax.f32 %v8579, 0.0
        %v8612 = vmax.f32 %v8580, 0.0
        %v8613 = vmax.f32 %v8581, 0.0
        %v8614 = vsub.f32 %v8262, %v8454
        %v8615 = vsub.f32 %v8263, %v8455
        %v8616 = vsub.f32 %v8264, %v8456
        %v8617 = vsub.f32 %v8265, %v8457
        %v8618 = vsub.f32 %v8266, %v8458
        %v8619 = vsub.f32 %v8267, %v8459
        %v8620 = vsub.f32 %v8268, %v8460
        %v8621 = vsub.f32 %v8269, %v8461
        %v8622 = vsub.f32 %v8270, %v8462
        %v8623 = vsub.f32 %v8271, %v8463
        %v8624 = vsub.f32 %v8272, %v8464
        %v8625 = vsub.f32 %v8273, %v8465
        %v8626 = vsub.f32 %v8274, %v8466
        %v8627 = vsub.f32 %v8275, %v8467
        %v8628 = vsub.f32 %v8276, %v8468
        %v8629 = vsub.f32 %v8277, %v8469
        %v8630 = vsub.f32 %v8278, %v8470
        %v8631 = vsub.f32 %v8279, %v8471
        %v8632 = vsub.f32 %v8280, %v8472
        %v8633 = vsub.f32 %v8281, %v8473
        %v8634 = vsub.f32 %v8282, %v8474
        %v8635 = vsub.f32 %v8283, %v8475
        %v8636 = vsub.f32 %v8284, %v8476
        %v8637 = vsub.f32 %v8285, %v8477
        %v8638 = vsub.f32 %v8286, %v8478
        %v8639 = vsub.f32 %v8287, %v8479
        %v8640 = vsub.f32 %v8288, %v8480
        %v8641 = vsub.f32 %v8289, %v8481
        %v8642 = vsub.f32 %v8290, %v8482
        %v8643 = vsub.f32 %v8291, %v8483
        %v8644 = vsub.f32 %v8292, %v8484
        %v8645 = vsub.f32 %v8293, %v8485
        %v8646 = vadd.f32 %v8582, 1e-05
        %v8647 = vadd.f32 %v8583, 1e-05
        %v8648 = vadd.f32 %v8584, 1e-05
        %v8649 = vadd.f32 %v8585, 1e-05
        %v8650 = vadd.f32 %v8586, 1e-05
        %v8651 = vadd.f32 %v8587, 1e-05
        %v8652 = vadd.f32 %v8588, 1e-05
        %v8653 = vadd.f32 %v8589, 1e-05
        %v8654 = vadd.f32 %v8590, 1e-05
        %v8655 = vadd.f32 %v8591, 1e-05
        %v8656 = vadd.f32 %v8592, 1e-05
        %v8657 = vadd.f32 %v8593, 1e-05
        %v8658 = vadd.f32 %v8594, 1e-05
        %v8659 = vadd.f32 %v8595, 1e-05
        %v8660 = vadd.f32 %v8596, 1e-05
        %v8661 = vadd.f32 %v8597, 1e-05
        %v8662 = vadd.f32 %v8598, 1e-05
        %v8663 = vadd.f32 %v8599, 1e-05
        %v8664 = vadd.f32 %v8600, 1e-05
        %v8665 = vadd.f32 %v8601, 1e-05
        %v8666 = vadd.f32 %v8602, 1e-05
        %v8667 = vadd.f32 %v8603, 1e-05
        %v8668 = vadd.f32 %v8604, 1e-05
        %v8669 = vadd.f32 %v8605, 1e-05
        %v8670 = vadd.f32 %v8606, 1e-05
        %v8671 = vadd.f32 %v8607, 1e-05
        %v8672 = vadd.f32 %v8608, 1e-05
        %v8673 = vadd.f32 %v8609, 1e-05
        %v8674 = vadd.f32 %v8610, 1e-05
        %v8675 = vadd.f32 %v8611, 1e-05
        %v8676 = vadd.f32 %v8612, 1e-05
        %v8677 = vadd.f32 %v8613, 1e-05
        %v8678 = vrsqrt.pop %v8646
        %v8679 = vrsqrt.pop %v8647
        %v8680 = vrsqrt.pop %v8648
        %v8681 = vrsqrt.pop %v8649
        %v8682 = vrsqrt.pop %v8650
        %v8683 = vrsqrt.pop %v8651
        %v8684 = vrsqrt.pop %v8652
        %v8685 = vrsqrt.pop %v8653
        %v8686 = vrsqrt.pop %v8654
        %v8687 = vrsqrt.pop %v8655
        %v8688 = vrsqrt.pop %v8656
        %v8689 = vrsqrt.pop %v8657
        %v8690 = vrsqrt.pop %v8658
        %v8691 = vrsqrt.pop %v8659
        %v8692 = vrsqrt.pop %v8660
        %v8693 = vrsqrt.pop %v8661
        %v8694 = vrsqrt.pop %v8662
        %v8695 = vrsqrt.pop %v8663
        %v8696 = vrsqrt.pop %v8664
        %v8697 = vrsqrt.pop %v8665
        %v8698 = vrsqrt.pop %v8666
        %v8699 = vrsqrt.pop %v8667
        %v8700 = vrsqrt.pop %v8668
        %v8701 = vrsqrt.pop %v8669
        %v8702 = vrsqrt.pop %v8670
        %v8703 = vrsqrt.pop %v8671
        %v8704 = vrsqrt.pop %v8672
        %v8705 = vrsqrt.pop %v8673
        %v8706 = vrsqrt.pop %v8674
        %v8707 = vrsqrt.pop %v8675
        %v8708 = vrsqrt.pop %v8676
        %v8709 = vrsqrt.pop %v8677
        %v8710 = vmul.f32 %v8614, %v8678
        %v8711 = vmul.f32 %v8615, %v8679
        %v8712 = vmul.f32 %v8616, %v8680
        %v8713 = vmul.f32 %v8617, %v8681
        %v8714 = vmul.f32 %v8618, %v8682
        %v8715 = vmul.f32 %v8619, %v8683
        %v8716 = vmul.f32 %v8620, %v8684
        %v8717 = vmul.f32 %v8621, %v8685
        %v8718 = vmul.f32 %v8622, %v8686
        %v8719 = vmul.f32 %v8623, %v8687
        %v8720 = vmul.f32 %v8624, %v8688
        %v8721 = vmul.f32 %v8625, %v8689
        %v8722 = vmul.f32 %v8626, %v8690
        %v8723 = vmul.f32 %v8627, %v8691
        %v8724 = vmul.f32 %v8628, %v8692
        %v8725 = vmul.f32 %v8629, %v8693
        %v8726 = vmul.f32 %v8630, %v8694
        %v8727 = vmul.f32 %v8631, %v8695
        %v8728 = vmul.f32 %v8632, %v8696
        %v8729 = vmul.f32 %v8633, %v8697
        %v8730 = vmul.f32 %v8634, %v8698
        %v8731 = vmul.f32 %v8635, %v8699
        %v8732 = vmul.f32 %v8636, %v8700
        %v8733 = vmul.f32 %v8637, %v8701
        %v8734 = vmul.f32 %v8638, %v8702
        %v8735 = vmul.f32 %v8639, %v8703
        %v8736 = vmul.f32 %v8640, %v8704
        %v8737 = vmul.f32 %v8641, %v8705
        %v8738 = vmul.f32 %v8642, %v8706
        %v8739 = vmul.f32 %v8643, %v8707
        %v8740 = vmul.f32 %v8644, %v8708
        %v8741 = vmul.f32 %v8645, %v8709
        %v8742 = vtanh.pop %v8710
        %v8743 = vtanh.pop %v8711
        %v8744 = vtanh.pop %v8712
        %v8745 = vtanh.pop %v8713
        %v8746 = vtanh.pop %v8714
        %v8747 = vtanh.pop %v8715
        %v8748 = vtanh.pop %v8716
        %v8749 = vtanh.pop %v8717
        %v8750 = vtanh.pop %v8718
        %v8751 = vtanh.pop %v8719
        %v8752 = vtanh.pop %v8720
        %v8753 = vtanh.pop %v8721
        %v8754 = vtanh.pop %v8722
        %v8755 = vtanh.pop %v8723
        %v8756 = vtanh.pop %v8724
        %v8757 = vtanh.pop %v8725
        %v8758 = vtanh.pop %v8726
        %v8759 = vtanh.pop %v8727
        %v8760 = vtanh.pop %v8728
        %v8761 = vtanh.pop %v8729
        %v8762 = vtanh.pop %v8730
        %v8763 = vtanh.pop %v8731
        %v8764 = vtanh.pop %v8732
        %v8765 = vtanh.pop %v8733
        %v8766 = vtanh.pop %v8734
        %v8767 = vtanh.pop %v8735
        %v8768 = vtanh.pop %v8736
        %v8769 = vtanh.pop %v8737
        %v8770 = vtanh.pop %v8738
        %v8771 = vtanh.pop %v8739
        %v8772 = vtanh.pop %v8740
        %v8773 = vtanh.pop %v8741
        %8774 = vst [vmem:[%s415] sm:$0xff] %v8742
        %8775 = vst [vmem:[%s415 + $0x8] sm:$0xff] %v8743
        %8776 = vst [vmem:[%s415 + $0x10] sm:$0xff] %v8744
        %8777 = vst [vmem:[%s415 + $0x18] sm:$0xff] %v8745
        %8778 = vst [vmem:[%s415 + $0x20] sm:$0xff] %v8746
        %8779 = vst [vmem:[%s415 + $0x28] sm:$0xff] %v8747
        %8780 = vst [vmem:[%s415 + $0x30] sm:$0xff] %v8748
        %8781 = vst [vmem:[%s415 + $0x38] sm:$0xff] %v8749
        %8782 = vst [vmem:[%s415 + $0x40] sm:$0xff] %v8750
        %8783 = vst [vmem:[%s415 + $0x48] sm:$0xff] %v8751
        %8784 = vst [vmem:[%s415 + $0x50] sm:$0xff] %v8752
        %8785 = vst [vmem:[%s415 + $0x58] sm:$0xff] %v8753
        %8786 = vst [vmem:[%s415 + $0x60] sm:$0xff] %v8754
        %8787 = vst [vmem:[%s415 + $0x68] sm:$0xff] %v8755
        %8788 = vst [vmem:[%s415 + $0x70] sm:$0xff] %v8756
        %8789 = vst [vmem:[%s415 + $0x78] sm:$0xff] %v8757
        %8790 = vst [vmem:[%s415 + $0x80] sm:$0xff] %v8758
        %8791 = vst [vmem:[%s415 + $0x88] sm:$0xff] %v8759
        %8792 = vst [vmem:[%s415 + $0x90] sm:$0xff] %v8760
        %8793 = vst [vmem:[%s415 + $0x98] sm:$0xff] %v8761
        %8794 = vst [vmem:[%s415 + $0xa0] sm:$0xff] %v8762
        %8795 = vst [vmem:[%s415 + $0xa8] sm:$0xff] %v8763
        %8796 = vst [vmem:[%s415 + $0xb0] sm:$0xff] %v8764
        %8797 = vst [vmem:[%s415 + $0xb8] sm:$0xff] %v8765
        %8798 = vst [vmem:[%s415 + $0xc0] sm:$0xff] %v8766
        %8799 = vst [vmem:[%s415 + $0xc8] sm:$0xff] %v8767
        %8800 = vst [vmem:[%s415 + $0xd0] sm:$0xff] %v8768
        %8801 = vst [vmem:[%s415 + $0xd8] sm:$0xff] %v8769
        %8802 = vst [vmem:[%s415 + $0xe0] sm:$0xff] %v8770
        %8803 = vst [vmem:[%s415 + $0xe8] sm:$0xff] %v8771
        %8804 = vst [vmem:[%s415 + $0xf0] sm:$0xff] %v8772
        %8805 = vst [vmem:[%s415 + $0xf8] sm:$0xff] %v8773
      $region88: #{st_vae_forward.1} parent=47 // pred_fallthru
        _
      %p8806 = scmp.eq.s32.totalorder %s24, 3
      %s8807 = scalar_select %p8806, %s25, 0
      %s8808 = smul.u32 32, %s8807
      %p8809 = scmp.lt.s32.totalorder %s8808, 95
      %s8810 = scalar_select %p8809, %s8808, 95
      %s8811 = smul.addr %s8810, 8
      %s8812 = scalar_lea.vmem %s7, %s8811
      %p8813 = scmp.eq.s32.totalorder %s24, 1
      %p8814 = scmp.eq.s32.totalorder %s24, 0
      %s8815 = scalar_select %p8814, 0, 2
      %s8816 = scalar_select %p8813, %s25, %s8815
      %s8817 = smul.u32 32, %s8816
      %p8818 = scmp.lt.s32.totalorder %s8817, 95
      %s8819 = scalar_select %p8818, %s8817, 95
      %s8820 = smul.addr %s8819, 2
      %s8821 = smul.addr %s8820, 8
      %s8822 = scalar_lea.vmem %s8, %s8821
      // Predicated region
      $region89: #{st_vae_forward.1} parent=47 // pred_check
        %p8823 = pneg %p223
      $region90: #{st_vae_forward.1} parent=47 // pred_check_branch
        %8825 = sbr.rel (%p8823) target = $region92
      $region91: #{st_vae_forward.1} parent=47 // pred_region
        %p8826 = scmp.eq.s32.totalorder %s24, 3
        %s8827 = scalar_select %p8826, %s25, 0
        %s8828 = smul.u32 32, %s8827
      $region92: #{st_vae_forward.1} parent=47 // pred_fallthru
        _
      // Predicated region
      $region93: #{st_vae_forward.1} parent=47 // pred_check
        %p8829 = pneg %p257
      $region94: #{st_vae_forward.1} parent=47 // pred_check_branch
        %8831 = sbr.rel (%p8829) target = $region96
      $region95: #{st_vae_forward.1} parent=47 // pred_region
        %p8832 = scmp.eq.s32.totalorder %s24, 1
        %p8833 = scmp.eq.s32.totalorder %s24, 0
        %s8834 = scalar_select %p8833, 0, 2
        %s8835 = scalar_select %p8832, %s25, %s8834
        %s8836 = smul.u32 32, %s8835
      $region96: #{st_vae_forward.1} parent=47 // pred_fallthru
        _
    $region48: #{st_vae_forward.1} parent=5 // pred_fallthru
      _
    %p8837 = scmp.le.s32.totalorder 2, %s15
    // Predicated region
    $region97: #{st_vae_forward.1} parent=5 // pred_check
      %p8838 = pneg %p8837
    $region98: #{st_vae_forward.1} parent=5 // pred_check_branch
      %8840 = sbr.rel (%p8838) target = $region100
    $region99: #{st_vae_forward.1} parent=5 // pred_region
      %s8841 = ssub.s32 %s15, 2
      // Predicated region
      $region101: #{st_vae_forward.1} parent=99 // pred_check
        %p8842 = pneg %p229
      $region102: #{st_vae_forward.1} parent=99 // pred_check_branch
        %8844 = sbr.rel (%p8842) target = $region104
      $region103: #{st_vae_forward.1} parent=99 // pred_region
        %p8845 = scmp.eq.s32.totalorder %s26, 3
        %s8846 = scalar_select %p8845, %s27, 0
        %s8847 = smul.u32 32, %s8846
        %p8848 = scmp.lt.s32.totalorder %s8847, 95
        %s8849 = scalar_select %p8848, %s8847, 95
        %s8850 = smul.addr %s8849, 8
        %s8851 = scalar_lea.vmem %s7, %s8850
      $region104: #{st_vae_forward.1} parent=99 // pred_fallthru
        _
      // Predicated region
      $region105: #{st_vae_forward.1} parent=99 // pred_check
        %p8852 = pneg %p263
      $region106: #{st_vae_forward.1} parent=99 // pred_check_branch
        %8854 = sbr.rel (%p8852) target = $region108
      $region107: #{st_vae_forward.1} parent=99 // pred_region
        %p8855 = scmp.eq.s32.totalorder %s26, 1
        %p8856 = scmp.eq.s32.totalorder %s26, 0
        %s8857 = scalar_select %p8856, 0, 2
        %s8858 = scalar_select %p8855, %s27, %s8857
        %s8859 = smul.u32 32, %s8858
        %p8860 = scmp.lt.s32.totalorder %s8859, 95
        %s8861 = scalar_select %p8860, %s8859, 95
        %s8862 = smul.addr %s8861, 2
        %s8863 = smul.addr %s8862, 8
        %s8864 = scalar_lea.vmem %s8, %s8863
      $region108: #{st_vae_forward.1} parent=99 // pred_fallthru
        _
    $region100: #{st_vae_forward.1} parent=5 // pred_fallthru
      _
  $region6: #{st_vae_forward.1} parent=0 // loop_footer
    %s19 = sadd.s32 1, %s15
  $region7: #{st_vae_forward.1} parent=0 // loop_footer_branch
    %14 = sbr.rel target = $region3
  $region8: #{st_vae_forward.1} parent=0 // loop_exit
    _

</llo_original>
